<compile_context>
chip_gen: v7x
topology: tpu7x:2x2x1
jax: 0.10.0
libtpu: 0.0.40
codegen_flags: <defaults>
</compile_context>

<pallas_src>
import functools

import numpy as np
import jax
import jax.numpy as jnp
from jax import lax
from jax.experimental import pallas as pl
from jax.experimental.pallas import tpu as pltpu

_PAD = 128          # zero margin (in lanes) around the flattened activations
_C1, _C2 = 16, 32   # channel counts fixed by the module definition


def _tap_masks(N, H, W):
    """(9, N*H*W) float32 validity masks, one per 3x3 tap, (dy, dx) raster order."""
    P = N * H * W
    hw = np.arange(P) % (H * W)
    h, w = hw // W, hw % W
    rows = []
    for dy in (-1, 0, 1):
        for dx in (-1, 0, 1):
            ok = (h + dy >= 0) & (h + dy < H) & (w + dx >= 0) & (w + dx < W)
            rows.append(ok.astype(np.float32))
    return np.stack(rows, axis=0)


def _fused_cnn_kernel(mask_ref, x_ref, w1_ref, b1_ref, w2_ref, b2_ref, wl_ref,
                      bl_ref, out_ref, xp_ref, y1p_ref, y2_ref,
                      *, N, H, W, NCLS):
    f32 = jnp.float32
    HW = H * W
    P = N * HW
    # 3x3 tap offsets in the flattened p = n*HW + h*W + w index, (dy, dx) order.
    offsets = [dy * W + dx for dy in (-1, 0, 1) for dx in (-1, 0, 1)]

    # ---- stage the flat input inside a zero-margined VMEM buffer ------------
    xp_ref[...] = jnp.zeros(xp_ref.shape, f32)
    xp_ref[:, _PAD:_PAD + P] = x_ref[...]

    # ---- conv1 (1 -> C1): 9 masked shifted taps, VPU multiply-accumulate ----
    acc1 = jnp.zeros((_C1, P), f32)
    for t, off in enumerate(offsets):
        tap = xp_ref[:, _PAD + off:_PAD + off + P] * mask_ref[t:t + 1, :]   # (1, P)
        acc1 = acc1 + w1_ref[:, t:t + 1] * tap                              # (C1,1)*(1,P)
    y1 = jnp.maximum(acc1 + b1_ref[...], 0.0)                               # (C1, P)

    # ---- conv2 (C1 -> C2): in-VMEM im2col rows + one lane-dense MXU matmul --
    y1p_ref[...] = jnp.zeros(y1p_ref.shape, f32)
    y1p_ref[:, _PAD:_PAD + P] = y1
    taps = []
    for t, off in enumerate(offsets):
        taps.append(y1p_ref[:, _PAD + off:_PAD + off + P] * mask_ref[t:t + 1, :])
    patches = jnp.concatenate(taps, axis=0)                                 # (9*C1, P)
    y2 = jnp.dot(w2_ref[...], patches, preferred_element_type=f32)          # (C2, P)
    y2_ref[...] = jnp.maximum(y2 + b2_ref[...], 0.0)

    # ---- classifier: torch flatten (channel-major per image) + Linear -------
    nt_dims = (((1,), (1,)), ((), ()))      # contract the HW axis of both operands
    rows = []
    for n in range(N):
        acc = jnp.zeros((1, NCLS), f32)
        for c in range(_C2):
            acc = acc + lax.dot_general(
                y2_ref[c:c + 1, n * HW:(n + 1) * HW],     # (1, HW)
                wl_ref[c],                                # (NCLS, HW)
                nt_dims, preferred_element_type=f32)
        rows.append(acc)
    out_ref[...] = jnp.concatenate(rows, axis=0) + bl_ref[...]


def cnn_network1_forward(x, params):
    N, Cin, H, W = x.shape
    assert Cin == 1, "CNNNetwork1 takes single-channel spectrogram input"
    HW = H * W
    P = N * HW

    w1, b1 = params["w1"], params["b1"]        # (16, 1, 3, 3), (16,)
    w2, b2 = params["w2"], params["b2"]        # (32, 16, 3, 3), (32,)
    wl, bl = params["wl"], params["bl"]        # (NCLS, 32*H*W), (NCLS,)
    NCLS = bl.shape[0]

    # Host-side layout prep: weight-only reshapes + a static boundary mask.
    masks = jnp.asarray(_tap_masks(N, H, W))                        # (9, P)
    x_flat = x.reshape(1, P)                                        # p = n*HW + h*W + w
    w1m = w1.reshape(_C1, 9)                                        # (co, ky*3+kx)
    b1c = b1.reshape(_C1, 1)
    w2m = jnp.transpose(w2, (0, 2, 3, 1)).reshape(_C2, 9 * _C1)     # (co, (ky,kx), ci)
    b2c = b2.reshape(_C2, 1)
    wlt = jnp.transpose(wl.reshape(NCLS, _C2, HW), (1, 0, 2))       # (c, class, hw)
    blr = bl.reshape(1, NCLS)

    kernel = functools.partial(_fused_cnn_kernel, N=N, H=H, W=W, NCLS=NCLS)
    # NOTE: one grid step with full-array blocks is the right call at these
    # sizes (everything fits in a few hundred KB of VMEM, single-buffered
    # scratch).  If N or the spatial size grows, tile the P axis over a
    # 'parallel' grid dimension instead.
    return pl.pallas_call(
        kernel,
        out_shape=jax.ShapeDtypeStruct((N, NCLS), jnp.float32),
        grid=(1,),
        in_specs=[
            pl.BlockSpec((9, P), lambda i: (0, 0)),
            pl.BlockSpec((1, P), lambda i: (0, 0)),
            pl.BlockSpec((_C1, 9), lambda i: (0, 0)),
            pl.BlockSpec((_C1, 1), lambda i: (0, 0)),
            pl.BlockSpec((_C2, 9 * _C1), lambda i: (0, 0)),
            pl.BlockSpec((_C2, 1), lambda i: (0, 0)),
            pl.BlockSpec((_C2, NCLS, HW), lambda i: (0, 0, 0)),
            pl.BlockSpec((1, NCLS), lambda i: (0, 0)),
        ],
        out_specs=pl.BlockSpec((N, NCLS), lambda i: (0, 0)),
        scratch_shapes=[
            pltpu.VMEM((1, P + 2 * _PAD), jnp.float32),     # zero-margined flat input
            pltpu.VMEM((_C1, P + 2 * _PAD), jnp.float32),   # zero-margined conv1 output
            pltpu.VMEM((_C2, P), jnp.float32),              # conv2 output
        ],
        compiler_params=pltpu.CompilerParams(dimension_semantics=("parallel",)),
    )(masks, x_flat, w1m, b1c, w2m, b2c, wlt, blr)


# Pure-JAX reference mirroring the PyTorch forward exactly (for verification).
def reference_forward(x, params):
    hp = lax.Precision.HIGHEST
    y1 = lax.conv_general_dilated(
        x, params["w1"], (1, 1), ((1, 1), (1, 1)),
        dimension_numbers=("NCHW", "OIHW", "NCHW"), precision=hp)
    y1 = jnp.maximum(y1 + params["b1"][None, :, None, None], 0.0)
    y2 = lax.conv_general_dilated(
        y1, params["w2"], (1, 1), ((1, 1), (1, 1)),
        dimension_numbers=("NCHW", "OIHW", "NCHW"), precision=hp)
    y2 = jnp.maximum(y2 + params["b2"][None, :, None, None], 0.0)
    flat = y2.reshape(x.shape[0], -1)
    return jnp.dot(flat, params["wl"].T, precision=hp) + params["bl"]


if __name__ == "__main__":
    # spectrogram_height=16, spectrogram_width=16, output_class_number=10, batch=2
    N, H, W = 2, 16, 16
    num_classes = 10
    feat = _C2 * H * W            # 8192 == 32 * spectrogram_height * spectrogram_width

    key = jax.random.PRNGKey(0)
    ks = jax.random.split(key, 7)
    params = dict(
        w1=0.10 * jax.random.normal(ks[0], (_C1, 1, 3, 3), jnp.float32),
        b1=0.10 * jax.random.normal(ks[1], (_C1,), jnp.float32),
        w2=0.05 * jax.random.normal(ks[2], (_C2, _C1, 3, 3), jnp.float32),
        b2=0.05 * jax.random.normal(ks[3], (_C2,), jnp.float32),
        wl=0.02 * jax.random.normal(ks[4], (num_classes, feat), jnp.float32),
        bl=0.02 * jax.random.normal(ks[5], (num_classes,), jnp.float32),
    )
    x = jax.random.normal(ks[6], (N, 1, H, W), jnp.float32)

    logits = jax.jit(cnn_network1_forward)(x, params)
    jax.block_until_ready(logits)

    ref = reference_forward(x, params)
    assert logits.shape == (N, num_classes), logits.shape
    max_err = float(jnp.max(jnp.abs(logits - ref)))
    assert jnp.allclose(logits, ref, atol=5e-3, rtol=5e-3), f"max_err={max_err}"

    print("KERNEL_OK")
</pallas_src>

<mosaic_0001>
module attributes {stable_mosaic.version = 11 : i64} {
  func.func @_fused_cnn_kernel(%arg0: i32, %arg1: memref<9x512xf32, #tpu.memory_space<vmem>>, %arg2: memref<1x512xf32, #tpu.memory_space<vmem>>, %arg3: memref<16x9xf32, #tpu.memory_space<vmem>>, %arg4: memref<16x1xf32, #tpu.memory_space<vmem>>, %arg5: memref<32x144xf32, #tpu.memory_space<vmem>>, %arg6: memref<32x1xf32, #tpu.memory_space<vmem>>, %arg7: memref<32x10x256xf32, #tpu.memory_space<vmem>>, %arg8: memref<1x10xf32, #tpu.memory_space<vmem>>, %arg9: memref<2x10xf32, #tpu.memory_space<vmem>>, %arg10: memref<1x768xf32, #tpu.memory_space<vmem>>, %arg11: memref<16x768xf32, #tpu.memory_space<vmem>>, %arg12: memref<32x512xf32, #tpu.memory_space<vmem>>) attributes {dimension_semantics = [#tpu.dimension_semantics<parallel>], iteration_bounds = array<i64: 1>, scalar_prefetch = 0 : i64, scratch_operands = 3 : i64, tpu.core_type = #tpu.core_type<tc>, window_params = [{pipeline_mode = #tpu.pipeline_mode<synchronous>, transform_indices = @transform_0, window_bounds = array<i64: 9, 512>}, {pipeline_mode = #tpu.pipeline_mode<synchronous>, transform_indices = @transform_1, window_bounds = array<i64: 1, 512>}, {pipeline_mode = #tpu.pipeline_mode<synchronous>, transform_indices = @transform_2, window_bounds = array<i64: 16, 9>}, {pipeline_mode = #tpu.pipeline_mode<synchronous>, transform_indices = @transform_3, window_bounds = array<i64: 16, 1>}, {pipeline_mode = #tpu.pipeline_mode<synchronous>, transform_indices = @transform_4, window_bounds = array<i64: 32, 144>}, {pipeline_mode = #tpu.pipeline_mode<synchronous>, transform_indices = @transform_5, window_bounds = array<i64: 32, 1>}, {pipeline_mode = #tpu.pipeline_mode<synchronous>, transform_indices = @transform_6, window_bounds = array<i64: 32, 10, 256>}, {pipeline_mode = #tpu.pipeline_mode<synchronous>, transform_indices = @transform_7, window_bounds = array<i64: 1, 10>}, {pipeline_mode = #tpu.pipeline_mode<synchronous>, transform_indices = @transform_8, window_bounds = array<i64: 2, 10>}]} {
    %cst = arith.constant 0.000000e+00 : f32
    %0 = vector.broadcast %cst : f32 to vector<1x768xf32>
    %c0 = arith.constant 0 : index
    %c0_0 = arith.constant 0 : index
    %1 = vector.load %arg10[%c0, %c0_0] : memref<1x768xf32, #tpu.memory_space<vmem>>, vector<1x768xf32>
    tpu.vector_store %arg10[%c0, %c0_0], %0 {strides = array<i32>} : memref<1x768xf32, #tpu.memory_space<vmem>>, vector<1x768xf32>,
    %c0_1 = arith.constant 0 : index
    %c0_2 = arith.constant 0 : index
    %2 = vector.load %arg2[%c0_1, %c0_2] : memref<1x512xf32, #tpu.memory_space<vmem>>, vector<1x512xf32>
    %c0_3 = arith.constant 0 : index
    %c128 = arith.constant 128 : index
    %3 = vector.load %arg10[%c0_3, %c128] : memref<1x768xf32, #tpu.memory_space<vmem>>, vector<1x512xf32>
    tpu.vector_store %arg10[%c0_3, %c128], %2 {strides = array<i32>} : memref<1x768xf32, #tpu.memory_space<vmem>>, vector<1x512xf32>,
    %cst_4 = arith.constant 0.000000e+00 : f32
    %4 = vector.broadcast %cst_4 : f32 to vector<16x512xf32>
    %c0_5 = arith.constant 0 : index
    %c111 = arith.constant 111 : index
    %5 = vector.load %arg10[%c0_5, %c111] : memref<1x768xf32, #tpu.memory_space<vmem>>, vector<1x512xf32>
    %c0_6 = arith.constant 0 : index
    %c0_7 = arith.constant 0 : index
    %6 = vector.load %arg1[%c0_6, %c0_7] : memref<9x512xf32, #tpu.memory_space<vmem>>, vector<1x512xf32>
    %7 = arith.mulf %5, %6 : vector<1x512xf32>
    %c0_8 = arith.constant 0 : index
    %c0_9 = arith.constant 0 : index
    %8 = vector.load %arg3[%c0_8, %c0_9] : memref<16x9xf32, #tpu.memory_space<vmem>>, vector<16x1xf32>
    %9 = vector.broadcast %8 : vector<16x1xf32> to vector<16x512xf32>
    %10 = vector.broadcast %7 : vector<1x512xf32> to vector<16x512xf32>
    %11 = arith.mulf %9, %10 : vector<16x512xf32>
    %12 = arith.addf %4, %11 : vector<16x512xf32>
    %c0_10 = arith.constant 0 : index
    %c112 = arith.constant 112 : index
    %13 = vector.load %arg10[%c0_10, %c112] : memref<1x768xf32, #tpu.memory_space<vmem>>, vector<1x512xf32>
    %c1 = arith.constant 1 : index
    %c0_11 = arith.constant 0 : index
    %14 = vector.load %arg1[%c1, %c0_11] : memref<9x512xf32, #tpu.memory_space<vmem>>, vector<1x512xf32>
    %15 = arith.mulf %13, %14 : vector<1x512xf32>
    %c0_12 = arith.constant 0 : index
    %c1_13 = arith.constant 1 : index
    %16 = vector.load %arg3[%c0_12, %c1_13] : memref<16x9xf32, #tpu.memory_space<vmem>>, vector<16x1xf32>
    %17 = vector.broadcast %16 : vector<16x1xf32> to vector<16x512xf32>
    %18 = vector.broadcast %15 : vector<1x512xf32> to vector<16x512xf32>
    %19 = arith.mulf %17, %18 : vector<16x512xf32>
    %20 = arith.addf %12, %19 : vector<16x512xf32>
    %c0_14 = arith.constant 0 : index
    %c113 = arith.constant 113 : index
    %21 = vector.load %arg10[%c0_14, %c113] : memref<1x768xf32, #tpu.memory_space<vmem>>, vector<1x512xf32>
    %c2 = arith.constant 2 : index
    %c0_15 = arith.constant 0 : index
    %22 = vector.load %arg1[%c2, %c0_15] : memref<9x512xf32, #tpu.memory_space<vmem>>, vector<1x512xf32>
    %23 = arith.mulf %21, %22 : vector<1x512xf32>
    %c0_16 = arith.constant 0 : index
    %c2_17 = arith.constant 2 : index
    %24 = vector.load %arg3[%c0_16, %c2_17] : memref<16x9xf32, #tpu.memory_space<vmem>>, vector<16x1xf32>
    %25 = vector.broadcast %24 : vector<16x1xf32> to vector<16x512xf32>
    %26 = vector.broadcast %23 : vector<1x512xf32> to vector<16x512xf32>
    %27 = arith.mulf %25, %26 : vector<16x512xf32>
    %28 = arith.addf %20, %27 : vector<16x512xf32>
    %c0_18 = arith.constant 0 : index
    %c127 = arith.constant 127 : index
    %29 = vector.load %arg10[%c0_18, %c127] : memref<1x768xf32, #tpu.memory_space<vmem>>, vector<1x512xf32>
    %c3 = arith.constant 3 : index
    %c0_19 = arith.constant 0 : index
    %30 = vector.load %arg1[%c3, %c0_19] : memref<9x512xf32, #tpu.memory_space<vmem>>, vector<1x512xf32>
    %31 = arith.mulf %29, %30 : vector<1x512xf32>
    %c0_20 = arith.constant 0 : index
    %c3_21 = arith.constant 3 : index
    %32 = vector.load %arg3[%c0_20, %c3_21] : memref<16x9xf32, #tpu.memory_space<vmem>>, vector<16x1xf32>
    %33 = vector.broadcast %32 : vector<16x1xf32> to vector<16x512xf32>
    %34 = vector.broadcast %31 : vector<1x512xf32> to vector<16x512xf32>
    %35 = arith.mulf %33, %34 : vector<16x512xf32>
    %36 = arith.addf %28, %35 : vector<16x512xf32>
    %c0_22 = arith.constant 0 : index
    %c128_23 = arith.constant 128 : index
    %37 = vector.load %arg10[%c0_22, %c128_23] : memref<1x768xf32, #tpu.memory_space<vmem>>, vector<1x512xf32>
    %c4 = arith.constant 4 : index
    %c0_24 = arith.constant 0 : index
    %38 = vector.load %arg1[%c4, %c0_24] : memref<9x512xf32, #tpu.memory_space<vmem>>, vector<1x512xf32>
    %39 = arith.mulf %37, %38 : vector<1x512xf32>
    %c0_25 = arith.constant 0 : index
    %c4_26 = arith.constant 4 : index
    %40 = vector.load %arg3[%c0_25, %c4_26] : memref<16x9xf32, #tpu.memory_space<vmem>>, vector<16x1xf32>
    %41 = vector.broadcast %40 : vector<16x1xf32> to vector<16x512xf32>
    %42 = vector.broadcast %39 : vector<1x512xf32> to vector<16x512xf32>
    %43 = arith.mulf %41, %42 : vector<16x512xf32>
    %44 = arith.addf %36, %43 : vector<16x512xf32>
    %c0_27 = arith.constant 0 : index
    %c129 = arith.constant 129 : index
    %45 = vector.load %arg10[%c0_27, %c129] : memref<1x768xf32, #tpu.memory_space<vmem>>, vector<1x512xf32>
    %c5 = arith.constant 5 : index
    %c0_28 = arith.constant 0 : index
    %46 = vector.load %arg1[%c5, %c0_28] : memref<9x512xf32, #tpu.memory_space<vmem>>, vector<1x512xf32>
    %47 = arith.mulf %45, %46 : vector<1x512xf32>
    %c0_29 = arith.constant 0 : index
    %c5_30 = arith.constant 5 : index
    %48 = vector.load %arg3[%c0_29, %c5_30] : memref<16x9xf32, #tpu.memory_space<vmem>>, vector<16x1xf32>
    %49 = vector.broadcast %48 : vector<16x1xf32> to vector<16x512xf32>
    %50 = vector.broadcast %47 : vector<1x512xf32> to vector<16x512xf32>
    %51 = arith.mulf %49, %50 : vector<16x512xf32>
    %52 = arith.addf %44, %51 : vector<16x512xf32>
    %c0_31 = arith.constant 0 : index
    %c143 = arith.constant 143 : index
    %53 = vector.load %arg10[%c0_31, %c143] : memref<1x768xf32, #tpu.memory_space<vmem>>, vector<1x512xf32>
    %c6 = arith.constant 6 : index
    %c0_32 = arith.constant 0 : index
    %54 = vector.load %arg1[%c6, %c0_32] : memref<9x512xf32, #tpu.memory_space<vmem>>, vector<1x512xf32>
    %55 = arith.mulf %53, %54 : vector<1x512xf32>
    %c0_33 = arith.constant 0 : index
    %c6_34 = arith.constant 6 : index
    %56 = vector.load %arg3[%c0_33, %c6_34] : memref<16x9xf32, #tpu.memory_space<vmem>>, vector<16x1xf32>
    %57 = vector.broadcast %56 : vector<16x1xf32> to vector<16x512xf32>
    %58 = vector.broadcast %55 : vector<1x512xf32> to vector<16x512xf32>
    %59 = arith.mulf %57, %58 : vector<16x512xf32>
    %60 = arith.addf %52, %59 : vector<16x512xf32>
    %c0_35 = arith.constant 0 : index
    %c144 = arith.constant 144 : index
    %61 = vector.load %arg10[%c0_35, %c144] : memref<1x768xf32, #tpu.memory_space<vmem>>, vector<1x512xf32>
    %c7 = arith.constant 7 : index
    %c0_36 = arith.constant 0 : index
    %62 = vector.load %arg1[%c7, %c0_36] : memref<9x512xf32, #tpu.memory_space<vmem>>, vector<1x512xf32>
    %63 = arith.mulf %61, %62 : vector<1x512xf32>
    %c0_37 = arith.constant 0 : index
    %c7_38 = arith.constant 7 : index
    %64 = vector.load %arg3[%c0_37, %c7_38] : memref<16x9xf32, #tpu.memory_space<vmem>>, vector<16x1xf32>
    %65 = vector.broadcast %64 : vector<16x1xf32> to vector<16x512xf32>
    %66 = vector.broadcast %63 : vector<1x512xf32> to vector<16x512xf32>
    %67 = arith.mulf %65, %66 : vector<16x512xf32>
    %68 = arith.addf %60, %67 : vector<16x512xf32>
    %c0_39 = arith.constant 0 : index
    %c145 = arith.constant 145 : index
    %69 = vector.load %arg10[%c0_39, %c145] : memref<1x768xf32, #tpu.memory_space<vmem>>, vector<1x512xf32>
    %c8 = arith.constant 8 : index
    %c0_40 = arith.constant 0 : index
    %70 = vector.load %arg1[%c8, %c0_40] : memref<9x512xf32, #tpu.memory_space<vmem>>, vector<1x512xf32>
    %71 = arith.mulf %69, %70 : vector<1x512xf32>
    %c0_41 = arith.constant 0 : index
    %c8_42 = arith.constant 8 : index
    %72 = vector.load %arg3[%c0_41, %c8_42] : memref<16x9xf32, #tpu.memory_space<vmem>>, vector<16x1xf32>
    %73 = vector.broadcast %72 : vector<16x1xf32> to vector<16x512xf32>
    %74 = vector.broadcast %71 : vector<1x512xf32> to vector<16x512xf32>
    %75 = arith.mulf %73, %74 : vector<16x512xf32>
    %76 = arith.addf %68, %75 : vector<16x512xf32>
    %c0_43 = arith.constant 0 : index
    %c0_44 = arith.constant 0 : index
    %77 = vector.load %arg4[%c0_43, %c0_44] : memref<16x1xf32, #tpu.memory_space<vmem>>, vector<16x1xf32>
    %78 = vector.broadcast %77 : vector<16x1xf32> to vector<16x512xf32>
    %79 = arith.addf %76, %78 : vector<16x512xf32>
    %cst_45 = arith.constant 0.000000e+00 : f32
    %80 = vector.broadcast %cst_45 : f32 to vector<16x512xf32>
    %81 = arith.maximumf %79, %80 : vector<16x512xf32>
    %cst_46 = arith.constant 0.000000e+00 : f32
    %82 = vector.broadcast %cst_46 : f32 to vector<16x768xf32>
    %c0_47 = arith.constant 0 : index
    %c0_48 = arith.constant 0 : index
    %83 = vector.load %arg11[%c0_47, %c0_48] : memref<16x768xf32, #tpu.memory_space<vmem>>, vector<16x768xf32>
    tpu.vector_store %arg11[%c0_47, %c0_48], %82 {strides = array<i32>} : memref<16x768xf32, #tpu.memory_space<vmem>>, vector<16x768xf32>,
    %c0_49 = arith.constant 0 : index
    %c128_50 = arith.constant 128 : index
    %84 = vector.load %arg11[%c0_49, %c128_50] : memref<16x768xf32, #tpu.memory_space<vmem>>, vector<16x512xf32>
    tpu.vector_store %arg11[%c0_49, %c128_50], %81 {strides = array<i32>} : memref<16x768xf32, #tpu.memory_space<vmem>>, vector<16x512xf32>,
    %c0_51 = arith.constant 0 : index
    %c111_52 = arith.constant 111 : index
    %85 = vector.load %arg11[%c0_51, %c111_52] : memref<16x768xf32, #tpu.memory_space<vmem>>, vector<16x512xf32>
    %c0_53 = arith.constant 0 : index
    %c0_54 = arith.constant 0 : index
    %86 = vector.load %arg1[%c0_53, %c0_54] : memref<9x512xf32, #tpu.memory_space<vmem>>, vector<1x512xf32>
    %87 = vector.broadcast %86 : vector<1x512xf32> to vector<16x512xf32>
    %88 = arith.mulf %85, %87 : vector<16x512xf32>
    %c0_55 = arith.constant 0 : index
    %c112_56 = arith.constant 112 : index
    %89 = vector.load %arg11[%c0_55, %c112_56] : memref<16x768xf32, #tpu.memory_space<vmem>>, vector<16x512xf32>
    %c1_57 = arith.constant 1 : index
    %c0_58 = arith.constant 0 : index
    %90 = vector.load %arg1[%c1_57, %c0_58] : memref<9x512xf32, #tpu.memory_space<vmem>>, vector<1x512xf32>
    %91 = vector.broadcast %90 : vector<1x512xf32> to vector<16x512xf32>
    %92 = arith.mulf %89, %91 : vector<16x512xf32>
    %c0_59 = arith.constant 0 : index
    %c113_60 = arith.constant 113 : index
    %93 = vector.load %arg11[%c0_59, %c113_60] : memref<16x768xf32, #tpu.memory_space<vmem>>, vector<16x512xf32>
    %c2_61 = arith.constant 2 : index
    %c0_62 = arith.constant 0 : index
    %94 = vector.load %arg1[%c2_61, %c0_62] : memref<9x512xf32, #tpu.memory_space<vmem>>, vector<1x512xf32>
    %95 = vector.broadcast %94 : vector<1x512xf32> to vector<16x512xf32>
    %96 = arith.mulf %93, %95 : vector<16x512xf32>
    %c0_63 = arith.constant 0 : index
    %c127_64 = arith.constant 127 : index
    %97 = vector.load %arg11[%c0_63, %c127_64] : memref<16x768xf32, #tpu.memory_space<vmem>>, vector<16x512xf32>
    %c3_65 = arith.constant 3 : index
    %c0_66 = arith.constant 0 : index
    %98 = vector.load %arg1[%c3_65, %c0_66] : memref<9x512xf32, #tpu.memory_space<vmem>>, vector<1x512xf32>
    %99 = vector.broadcast %98 : vector<1x512xf32> to vector<16x512xf32>
    %100 = arith.mulf %97, %99 : vector<16x512xf32>
    %c0_67 = arith.constant 0 : index
    %c128_68 = arith.constant 128 : index
    %101 = vector.load %arg11[%c0_67, %c128_68] : memref<16x768xf32, #tpu.memory_space<vmem>>, vector<16x512xf32>
    %c4_69 = arith.constant 4 : index
    %c0_70 = arith.constant 0 : index
    %102 = vector.load %arg1[%c4_69, %c0_70] : memref<9x512xf32, #tpu.memory_space<vmem>>, vector<1x512xf32>
    %103 = vector.broadcast %102 : vector<1x512xf32> to vector<16x512xf32>
    %104 = arith.mulf %101, %103 : vector<16x512xf32>
    %c0_71 = arith.constant 0 : index
    %c129_72 = arith.constant 129 : index
    %105 = vector.load %arg11[%c0_71, %c129_72] : memref<16x768xf32, #tpu.memory_space<vmem>>, vector<16x512xf32>
    %c5_73 = arith.constant 5 : index
    %c0_74 = arith.constant 0 : index
    %106 = vector.load %arg1[%c5_73, %c0_74] : memref<9x512xf32, #tpu.memory_space<vmem>>, vector<1x512xf32>
    %107 = vector.broadcast %106 : vector<1x512xf32> to vector<16x512xf32>
    %108 = arith.mulf %105, %107 : vector<16x512xf32>
    %c0_75 = arith.constant 0 : index
    %c143_76 = arith.constant 143 : index
    %109 = vector.load %arg11[%c0_75, %c143_76] : memref<16x768xf32, #tpu.memory_space<vmem>>, vector<16x512xf32>
    %c6_77 = arith.constant 6 : index
    %c0_78 = arith.constant 0 : index
    %110 = vector.load %arg1[%c6_77, %c0_78] : memref<9x512xf32, #tpu.memory_space<vmem>>, vector<1x512xf32>
    %111 = vector.broadcast %110 : vector<1x512xf32> to vector<16x512xf32>
    %112 = arith.mulf %109, %111 : vector<16x512xf32>
    %c0_79 = arith.constant 0 : index
    %c144_80 = arith.constant 144 : index
    %113 = vector.load %arg11[%c0_79, %c144_80] : memref<16x768xf32, #tpu.memory_space<vmem>>, vector<16x512xf32>
    %c7_81 = arith.constant 7 : index
    %c0_82 = arith.constant 0 : index
    %114 = vector.load %arg1[%c7_81, %c0_82] : memref<9x512xf32, #tpu.memory_space<vmem>>, vector<1x512xf32>
    %115 = vector.broadcast %114 : vector<1x512xf32> to vector<16x512xf32>
    %116 = arith.mulf %113, %115 : vector<16x512xf32>
    %c0_83 = arith.constant 0 : index
    %c145_84 = arith.constant 145 : index
    %117 = vector.load %arg11[%c0_83, %c145_84] : memref<16x768xf32, #tpu.memory_space<vmem>>, vector<16x512xf32>
    %c8_85 = arith.constant 8 : index
    %c0_86 = arith.constant 0 : index
    %118 = vector.load %arg1[%c8_85, %c0_86] : memref<9x512xf32, #tpu.memory_space<vmem>>, vector<1x512xf32>
    %119 = vector.broadcast %118 : vector<1x512xf32> to vector<16x512xf32>
    %120 = arith.mulf %117, %119 : vector<16x512xf32>
    %121 = tpu.concatenate %88, %92, %96, %100, %104, %108, %112, %116, %120 in 0 : vector<16x512xf32>, vector<16x512xf32>, vector<16x512xf32>, vector<16x512xf32>, vector<16x512xf32>, vector<16x512xf32>, vector<16x512xf32>, vector<16x512xf32>, vector<16x512xf32> -> vector<144x512xf32>
    %c0_87 = arith.constant 0 : index
    %c0_88 = arith.constant 0 : index
    %122 = vector.load %arg5[%c0_87, %c0_88] : memref<32x144xf32, #tpu.memory_space<vmem>>, vector<32x144xf32>
    %cst_89 = arith.constant dense<0.000000e+00> : vector<32x512xf32>
    %123 = tpu.matmul %122, %121, %cst_89 {dimension_numbers = #tpu.dot_dimension_numbers<[1], [0], [0], [1], [0, 0, 1, 1], [], []>} : vector<32x144xf32>, vector<144x512xf32>, vector<32x512xf32> -> vector<32x512xf32>
    %c0_90 = arith.constant 0 : index
    %c0_91 = arith.constant 0 : index
    %124 = vector.load %arg6[%c0_90, %c0_91] : memref<32x1xf32, #tpu.memory_space<vmem>>, vector<32x1xf32>
    %125 = vector.broadcast %124 : vector<32x1xf32> to vector<32x512xf32>
    %126 = arith.addf %123, %125 : vector<32x512xf32>
    %cst_92 = arith.constant 0.000000e+00 : f32
    %127 = vector.broadcast %cst_92 : f32 to vector<32x512xf32>
    %128 = arith.maximumf %126, %127 : vector<32x512xf32>
    %c0_93 = arith.constant 0 : index
    %c0_94 = arith.constant 0 : index
    %129 = vector.load %arg12[%c0_93, %c0_94] : memref<32x512xf32, #tpu.memory_space<vmem>>, vector<32x512xf32>
    tpu.vector_store %arg12[%c0_93, %c0_94], %128 {strides = array<i32>} : memref<32x512xf32, #tpu.memory_space<vmem>>, vector<32x512xf32>,
    %cst_95 = arith.constant 0.000000e+00 : f32
    %130 = vector.broadcast %cst_95 : f32 to vector<1x10xf32>
    %c0_96 = arith.constant 0 : index
    %c0_97 = arith.constant 0 : index
    %131 = vector.load %arg12[%c0_96, %c0_97] : memref<32x512xf32, #tpu.memory_space<vmem>>, vector<1x256xf32>
    %c0_98 = arith.constant 0 : index
    %c0_99 = arith.constant 0 : index
    %c0_100 = arith.constant 0 : index
    %132 = vector.load %arg7[%c0_98, %c0_99, %c0_100] : memref<32x10x256xf32, #tpu.memory_space<vmem>>, vector<1x10x256xf32>
    %133 = vector.shape_cast %132 : vector<1x10x256xf32> to vector<10x256xf32>
    %cst_101 = arith.constant dense<0.000000e+00> : vector<1x10xf32>
    %134 = tpu.matmul %131, %133, %cst_101 {dimension_numbers = #tpu.dot_dimension_numbers<[1], [1], [0], [0], [0, 0, 1, 0], [], []>} : vector<1x256xf32>, vector<10x256xf32>, vector<1x10xf32> -> vector<1x10xf32>
    %135 = arith.addf %130, %134 : vector<1x10xf32>
    %c1_102 = arith.constant 1 : index
    %c0_103 = arith.constant 0 : index
    %136 = vector.load %arg12[%c1_102, %c0_103] : memref<32x512xf32, #tpu.memory_space<vmem>>, vector<1x256xf32>
    %c1_104 = arith.constant 1 : index
    %c0_105 = arith.constant 0 : index
    %c0_106 = arith.constant 0 : index
    %137 = vector.load %arg7[%c1_104, %c0_105, %c0_106] : memref<32x10x256xf32, #tpu.memory_space<vmem>>, vector<1x10x256xf32>
    %138 = vector.shape_cast %137 : vector<1x10x256xf32> to vector<10x256xf32>
    %cst_107 = arith.constant dense<0.000000e+00> : vector<1x10xf32>
    %139 = tpu.matmul %136, %138, %cst_107 {dimension_numbers = #tpu.dot_dimension_numbers<[1], [1], [0], [0], [0, 0, 1, 0], [], []>} : vector<1x256xf32>, vector<10x256xf32>, vector<1x10xf32> -> vector<1x10xf32>
    %140 = arith.addf %135, %139 : vector<1x10xf32>
    %c2_108 = arith.constant 2 : index
    %c0_109 = arith.constant 0 : index
    %141 = vector.load %arg12[%c2_108, %c0_109] : memref<32x512xf32, #tpu.memory_space<vmem>>, vector<1x256xf32>
    %c2_110 = arith.constant 2 : index
    %c0_111 = arith.constant 0 : index
    %c0_112 = arith.constant 0 : index
    %142 = vector.load %arg7[%c2_110, %c0_111, %c0_112] : memref<32x10x256xf32, #tpu.memory_space<vmem>>, vector<1x10x256xf32>
    %143 = vector.shape_cast %142 : vector<1x10x256xf32> to vector<10x256xf32>
    %cst_113 = arith.constant dense<0.000000e+00> : vector<1x10xf32>
    %144 = tpu.matmul %141, %143, %cst_113 {dimension_numbers = #tpu.dot_dimension_numbers<[1], [1], [0], [0], [0, 0, 1, 0], [], []>} : vector<1x256xf32>, vector<10x256xf32>, vector<1x10xf32> -> vector<1x10xf32>
    %145 = arith.addf %140, %144 : vector<1x10xf32>
    %c3_114 = arith.constant 3 : index
    %c0_115 = arith.constant 0 : index
    %146 = vector.load %arg12[%c3_114, %c0_115] : memref<32x512xf32, #tpu.memory_space<vmem>>, vector<1x256xf32>
    %c3_116 = arith.constant 3 : index
    %c0_117 = arith.constant 0 : index
    %c0_118 = arith.constant 0 : index
    %147 = vector.load %arg7[%c3_116, %c0_117, %c0_118] : memref<32x10x256xf32, #tpu.memory_space<vmem>>, vector<1x10x256xf32>
    %148 = vector.shape_cast %147 : vector<1x10x256xf32> to vector<10x256xf32>
    %cst_119 = arith.constant dense<0.000000e+00> : vector<1x10xf32>
    %149 = tpu.matmul %146, %148, %cst_119 {dimension_numbers = #tpu.dot_dimension_numbers<[1], [1], [0], [0], [0, 0, 1, 0], [], []>} : vector<1x256xf32>, vector<10x256xf32>, vector<1x10xf32> -> vector<1x10xf32>
    %150 = arith.addf %145, %149 : vector<1x10xf32>
    %c4_120 = arith.constant 4 : index
    %c0_121 = arith.constant 0 : index
    %151 = vector.load %arg12[%c4_120, %c0_121] : memref<32x512xf32, #tpu.memory_space<vmem>>, vector<1x256xf32>
    %c4_122 = arith.constant 4 : index
    %c0_123 = arith.constant 0 : index
    %c0_124 = arith.constant 0 : index
    %152 = vector.load %arg7[%c4_122, %c0_123, %c0_124] : memref<32x10x256xf32, #tpu.memory_space<vmem>>, vector<1x10x256xf32>
    %153 = vector.shape_cast %152 : vector<1x10x256xf32> to vector<10x256xf32>
    %cst_125 = arith.constant dense<0.000000e+00> : vector<1x10xf32>
    %154 = tpu.matmul %151, %153, %cst_125 {dimension_numbers = #tpu.dot_dimension_numbers<[1], [1], [0], [0], [0, 0, 1, 0], [], []>} : vector<1x256xf32>, vector<10x256xf32>, vector<1x10xf32> -> vector<1x10xf32>
    %155 = arith.addf %150, %154 : vector<1x10xf32>
    %c5_126 = arith.constant 5 : index
    %c0_127 = arith.constant 0 : index
    %156 = vector.load %arg12[%c5_126, %c0_127] : memref<32x512xf32, #tpu.memory_space<vmem>>, vector<1x256xf32>
    %c5_128 = arith.constant 5 : index
    %c0_129 = arith.constant 0 : index
    %c0_130 = arith.constant 0 : index
    %157 = vector.load %arg7[%c5_128, %c0_129, %c0_130] : memref<32x10x256xf32, #tpu.memory_space<vmem>>, vector<1x10x256xf32>
    %158 = vector.shape_cast %157 : vector<1x10x256xf32> to vector<10x256xf32>
    %cst_131 = arith.constant dense<0.000000e+00> : vector<1x10xf32>
    %159 = tpu.matmul %156, %158, %cst_131 {dimension_numbers = #tpu.dot_dimension_numbers<[1], [1], [0], [0], [0, 0, 1, 0], [], []>} : vector<1x256xf32>, vector<10x256xf32>, vector<1x10xf32> -> vector<1x10xf32>
    %160 = arith.addf %155, %159 : vector<1x10xf32>
    %c6_132 = arith.constant 6 : index
    %c0_133 = arith.constant 0 : index
    %161 = vector.load %arg12[%c6_132, %c0_133] : memref<32x512xf32, #tpu.memory_space<vmem>>, vector<1x256xf32>
    %c6_134 = arith.constant 6 : index
    %c0_135 = arith.constant 0 : index
    %c0_136 = arith.constant 0 : index
    %162 = vector.load %arg7[%c6_134, %c0_135, %c0_136] : memref<32x10x256xf32, #tpu.memory_space<vmem>>, vector<1x10x256xf32>
    %163 = vector.shape_cast %162 : vector<1x10x256xf32> to vector<10x256xf32>
    %cst_137 = arith.constant dense<0.000000e+00> : vector<1x10xf32>
    %164 = tpu.matmul %161, %163, %cst_137 {dimension_numbers = #tpu.dot_dimension_numbers<[1], [1], [0], [0], [0, 0, 1, 0], [], []>} : vector<1x256xf32>, vector<10x256xf32>, vector<1x10xf32> -> vector<1x10xf32>
    %165 = arith.addf %160, %164 : vector<1x10xf32>
    %c7_138 = arith.constant 7 : index
    %c0_139 = arith.constant 0 : index
    %166 = vector.load %arg12[%c7_138, %c0_139] : memref<32x512xf32, #tpu.memory_space<vmem>>, vector<1x256xf32>
    %c7_140 = arith.constant 7 : index
    %c0_141 = arith.constant 0 : index
    %c0_142 = arith.constant 0 : index
    %167 = vector.load %arg7[%c7_140, %c0_141, %c0_142] : memref<32x10x256xf32, #tpu.memory_space<vmem>>, vector<1x10x256xf32>
    %168 = vector.shape_cast %167 : vector<1x10x256xf32> to vector<10x256xf32>
    %cst_143 = arith.constant dense<0.000000e+00> : vector<1x10xf32>
    %169 = tpu.matmul %166, %168, %cst_143 {dimension_numbers = #tpu.dot_dimension_numbers<[1], [1], [0], [0], [0, 0, 1, 0], [], []>} : vector<1x256xf32>, vector<10x256xf32>, vector<1x10xf32> -> vector<1x10xf32>
    %170 = arith.addf %165, %169 : vector<1x10xf32>
    %c8_144 = arith.constant 8 : index
    %c0_145 = arith.constant 0 : index
    %171 = vector.load %arg12[%c8_144, %c0_145] : memref<32x512xf32, #tpu.memory_space<vmem>>, vector<1x256xf32>
    %c8_146 = arith.constant 8 : index
    %c0_147 = arith.constant 0 : index
    %c0_148 = arith.constant 0 : index
    %172 = vector.load %arg7[%c8_146, %c0_147, %c0_148] : memref<32x10x256xf32, #tpu.memory_space<vmem>>, vector<1x10x256xf32>
    %173 = vector.shape_cast %172 : vector<1x10x256xf32> to vector<10x256xf32>
    %cst_149 = arith.constant dense<0.000000e+00> : vector<1x10xf32>
    %174 = tpu.matmul %171, %173, %cst_149 {dimension_numbers = #tpu.dot_dimension_numbers<[1], [1], [0], [0], [0, 0, 1, 0], [], []>} : vector<1x256xf32>, vector<10x256xf32>, vector<1x10xf32> -> vector<1x10xf32>
    %175 = arith.addf %170, %174 : vector<1x10xf32>
    %c9 = arith.constant 9 : index
    %c0_150 = arith.constant 0 : index
    %176 = vector.load %arg12[%c9, %c0_150] : memref<32x512xf32, #tpu.memory_space<vmem>>, vector<1x256xf32>
    %c9_151 = arith.constant 9 : index
    %c0_152 = arith.constant 0 : index
    %c0_153 = arith.constant 0 : index
    %177 = vector.load %arg7[%c9_151, %c0_152, %c0_153] : memref<32x10x256xf32, #tpu.memory_space<vmem>>, vector<1x10x256xf32>
    %178 = vector.shape_cast %177 : vector<1x10x256xf32> to vector<10x256xf32>
    %cst_154 = arith.constant dense<0.000000e+00> : vector<1x10xf32>
    %179 = tpu.matmul %176, %178, %cst_154 {dimension_numbers = #tpu.dot_dimension_numbers<[1], [1], [0], [0], [0, 0, 1, 0], [], []>} : vector<1x256xf32>, vector<10x256xf32>, vector<1x10xf32> -> vector<1x10xf32>
    %180 = arith.addf %175, %179 : vector<1x10xf32>
    %c10 = arith.constant 10 : index
    %c0_155 = arith.constant 0 : index
    %181 = vector.load %arg12[%c10, %c0_155] : memref<32x512xf32, #tpu.memory_space<vmem>>, vector<1x256xf32>
    %c10_156 = arith.constant 10 : index
    %c0_157 = arith.constant 0 : index
    %c0_158 = arith.constant 0 : index
    %182 = vector.load %arg7[%c10_156, %c0_157, %c0_158] : memref<32x10x256xf32, #tpu.memory_space<vmem>>, vector<1x10x256xf32>
    %183 = vector.shape_cast %182 : vector<1x10x256xf32> to vector<10x256xf32>
    %cst_159 = arith.constant dense<0.000000e+00> : vector<1x10xf32>
    %184 = tpu.matmul %181, %183, %cst_159 {dimension_numbers = #tpu.dot_dimension_numbers<[1], [1], [0], [0], [0, 0, 1, 0], [], []>} : vector<1x256xf32>, vector<10x256xf32>, vector<1x10xf32> -> vector<1x10xf32>
    %185 = arith.addf %180, %184 : vector<1x10xf32>
    %c11 = arith.constant 11 : index
    %c0_160 = arith.constant 0 : index
    %186 = vector.load %arg12[%c11, %c0_160] : memref<32x512xf32, #tpu.memory_space<vmem>>, vector<1x256xf32>
    %c11_161 = arith.constant 11 : index
    %c0_162 = arith.constant 0 : index
    %c0_163 = arith.constant 0 : index
    %187 = vector.load %arg7[%c11_161, %c0_162, %c0_163] : memref<32x10x256xf32, #tpu.memory_space<vmem>>, vector<1x10x256xf32>
    %188 = vector.shape_cast %187 : vector<1x10x256xf32> to vector<10x256xf32>
    %cst_164 = arith.constant dense<0.000000e+00> : vector<1x10xf32>
    %189 = tpu.matmul %186, %188, %cst_164 {dimension_numbers = #tpu.dot_dimension_numbers<[1], [1], [0], [0], [0, 0, 1, 0], [], []>} : vector<1x256xf32>, vector<10x256xf32>, vector<1x10xf32> -> vector<1x10xf32>
    %190 = arith.addf %185, %189 : vector<1x10xf32>
    %c12 = arith.constant 12 : index
    %c0_165 = arith.constant 0 : index
    %191 = vector.load %arg12[%c12, %c0_165] : memref<32x512xf32, #tpu.memory_space<vmem>>, vector<1x256xf32>
    %c12_166 = arith.constant 12 : index
    %c0_167 = arith.constant 0 : index
    %c0_168 = arith.constant 0 : index
    %192 = vector.load %arg7[%c12_166, %c0_167, %c0_168] : memref<32x10x256xf32, #tpu.memory_space<vmem>>, vector<1x10x256xf32>
    %193 = vector.shape_cast %192 : vector<1x10x256xf32> to vector<10x256xf32>
    %cst_169 = arith.constant dense<0.000000e+00> : vector<1x10xf32>
    %194 = tpu.matmul %191, %193, %cst_169 {dimension_numbers = #tpu.dot_dimension_numbers<[1], [1], [0], [0], [0, 0, 1, 0], [], []>} : vector<1x256xf32>, vector<10x256xf32>, vector<1x10xf32> -> vector<1x10xf32>
    %195 = arith.addf %190, %194 : vector<1x10xf32>
    %c13 = arith.constant 13 : index
    %c0_170 = arith.constant 0 : index
    %196 = vector.load %arg12[%c13, %c0_170] : memref<32x512xf32, #tpu.memory_space<vmem>>, vector<1x256xf32>
    %c13_171 = arith.constant 13 : index
    %c0_172 = arith.constant 0 : index
    %c0_173 = arith.constant 0 : index
    %197 = vector.load %arg7[%c13_171, %c0_172, %c0_173] : memref<32x10x256xf32, #tpu.memory_space<vmem>>, vector<1x10x256xf32>
    %198 = vector.shape_cast %197 : vector<1x10x256xf32> to vector<10x256xf32>
    %cst_174 = arith.constant dense<0.000000e+00> : vector<1x10xf32>
    %199 = tpu.matmul %196, %198, %cst_174 {dimension_numbers = #tpu.dot_dimension_numbers<[1], [1], [0], [0], [0, 0, 1, 0], [], []>} : vector<1x256xf32>, vector<10x256xf32>, vector<1x10xf32> -> vector<1x10xf32>
    %200 = arith.addf %195, %199 : vector<1x10xf32>
    %c14 = arith.constant 14 : index
    %c0_175 = arith.constant 0 : index
    %201 = vector.load %arg12[%c14, %c0_175] : memref<32x512xf32, #tpu.memory_space<vmem>>, vector<1x256xf32>
    %c14_176 = arith.constant 14 : index
    %c0_177 = arith.constant 0 : index
    %c0_178 = arith.constant 0 : index
    %202 = vector.load %arg7[%c14_176, %c0_177, %c0_178] : memref<32x10x256xf32, #tpu.memory_space<vmem>>, vector<1x10x256xf32>
    %203 = vector.shape_cast %202 : vector<1x10x256xf32> to vector<10x256xf32>
    %cst_179 = arith.constant dense<0.000000e+00> : vector<1x10xf32>
    %204 = tpu.matmul %201, %203, %cst_179 {dimension_numbers = #tpu.dot_dimension_numbers<[1], [1], [0], [0], [0, 0, 1, 0], [], []>} : vector<1x256xf32>, vector<10x256xf32>, vector<1x10xf32> -> vector<1x10xf32>
    %205 = arith.addf %200, %204 : vector<1x10xf32>
    %c15 = arith.constant 15 : index
    %c0_180 = arith.constant 0 : index
    %206 = vector.load %arg12[%c15, %c0_180] : memref<32x512xf32, #tpu.memory_space<vmem>>, vector<1x256xf32>
    %c15_181 = arith.constant 15 : index
    %c0_182 = arith.constant 0 : index
    %c0_183 = arith.constant 0 : index
    %207 = vector.load %arg7[%c15_181, %c0_182, %c0_183] : memref<32x10x256xf32, #tpu.memory_space<vmem>>, vector<1x10x256xf32>
    %208 = vector.shape_cast %207 : vector<1x10x256xf32> to vector<10x256xf32>
    %cst_184 = arith.constant dense<0.000000e+00> : vector<1x10xf32>
    %209 = tpu.matmul %206, %208, %cst_184 {dimension_numbers = #tpu.dot_dimension_numbers<[1], [1], [0], [0], [0, 0, 1, 0], [], []>} : vector<1x256xf32>, vector<10x256xf32>, vector<1x10xf32> -> vector<1x10xf32>
    %210 = arith.addf %205, %209 : vector<1x10xf32>
    %c16 = arith.constant 16 : index
    %c0_185 = arith.constant 0 : index
    %211 = vector.load %arg12[%c16, %c0_185] : memref<32x512xf32, #tpu.memory_space<vmem>>, vector<1x256xf32>
    %c16_186 = arith.constant 16 : index
    %c0_187 = arith.constant 0 : index
    %c0_188 = arith.constant 0 : index
    %212 = vector.load %arg7[%c16_186, %c0_187, %c0_188] : memref<32x10x256xf32, #tpu.memory_space<vmem>>, vector<1x10x256xf32>
    %213 = vector.shape_cast %212 : vector<1x10x256xf32> to vector<10x256xf32>
    %cst_189 = arith.constant dense<0.000000e+00> : vector<1x10xf32>
    %214 = tpu.matmul %211, %213, %cst_189 {dimension_numbers = #tpu.dot_dimension_numbers<[1], [1], [0], [0], [0, 0, 1, 0], [], []>} : vector<1x256xf32>, vector<10x256xf32>, vector<1x10xf32> -> vector<1x10xf32>
    %215 = arith.addf %210, %214 : vector<1x10xf32>
    %c17 = arith.constant 17 : index
    %c0_190 = arith.constant 0 : index
    %216 = vector.load %arg12[%c17, %c0_190] : memref<32x512xf32, #tpu.memory_space<vmem>>, vector<1x256xf32>
    %c17_191 = arith.constant 17 : index
    %c0_192 = arith.constant 0 : index
    %c0_193 = arith.constant 0 : index
    %217 = vector.load %arg7[%c17_191, %c0_192, %c0_193] : memref<32x10x256xf32, #tpu.memory_space<vmem>>, vector<1x10x256xf32>
    %218 = vector.shape_cast %217 : vector<1x10x256xf32> to vector<10x256xf32>
    %cst_194 = arith.constant dense<0.000000e+00> : vector<1x10xf32>
    %219 = tpu.matmul %216, %218, %cst_194 {dimension_numbers = #tpu.dot_dimension_numbers<[1], [1], [0], [0], [0, 0, 1, 0], [], []>} : vector<1x256xf32>, vector<10x256xf32>, vector<1x10xf32> -> vector<1x10xf32>
    %220 = arith.addf %215, %219 : vector<1x10xf32>
    %c18 = arith.constant 18 : index
    %c0_195 = arith.constant 0 : index
    %221 = vector.load %arg12[%c18, %c0_195] : memref<32x512xf32, #tpu.memory_space<vmem>>, vector<1x256xf32>
    %c18_196 = arith.constant 18 : index
    %c0_197 = arith.constant 0 : index
    %c0_198 = arith.constant 0 : index
    %222 = vector.load %arg7[%c18_196, %c0_197, %c0_198] : memref<32x10x256xf32, #tpu.memory_space<vmem>>, vector<1x10x256xf32>
    %223 = vector.shape_cast %222 : vector<1x10x256xf32> to vector<10x256xf32>
    %cst_199 = arith.constant dense<0.000000e+00> : vector<1x10xf32>
    %224 = tpu.matmul %221, %223, %cst_199 {dimension_numbers = #tpu.dot_dimension_numbers<[1], [1], [0], [0], [0, 0, 1, 0], [], []>} : vector<1x256xf32>, vector<10x256xf32>, vector<1x10xf32> -> vector<1x10xf32>
    %225 = arith.addf %220, %224 : vector<1x10xf32>
    %c19 = arith.constant 19 : index
    %c0_200 = arith.constant 0 : index
    %226 = vector.load %arg12[%c19, %c0_200] : memref<32x512xf32, #tpu.memory_space<vmem>>, vector<1x256xf32>
    %c19_201 = arith.constant 19 : index
    %c0_202 = arith.constant 0 : index
    %c0_203 = arith.constant 0 : index
    %227 = vector.load %arg7[%c19_201, %c0_202, %c0_203] : memref<32x10x256xf32, #tpu.memory_space<vmem>>, vector<1x10x256xf32>
    %228 = vector.shape_cast %227 : vector<1x10x256xf32> to vector<10x256xf32>
    %cst_204 = arith.constant dense<0.000000e+00> : vector<1x10xf32>
    %229 = tpu.matmul %226, %228, %cst_204 {dimension_numbers = #tpu.dot_dimension_numbers<[1], [1], [0], [0], [0, 0, 1, 0], [], []>} : vector<1x256xf32>, vector<10x256xf32>, vector<1x10xf32> -> vector<1x10xf32>
    %230 = arith.addf %225, %229 : vector<1x10xf32>
    %c20 = arith.constant 20 : index
    %c0_205 = arith.constant 0 : index
    %231 = vector.load %arg12[%c20, %c0_205] : memref<32x512xf32, #tpu.memory_space<vmem>>, vector<1x256xf32>
    %c20_206 = arith.constant 20 : index
    %c0_207 = arith.constant 0 : index
    %c0_208 = arith.constant 0 : index
    %232 = vector.load %arg7[%c20_206, %c0_207, %c0_208] : memref<32x10x256xf32, #tpu.memory_space<vmem>>, vector<1x10x256xf32>
    %233 = vector.shape_cast %232 : vector<1x10x256xf32> to vector<10x256xf32>
    %cst_209 = arith.constant dense<0.000000e+00> : vector<1x10xf32>
    %234 = tpu.matmul %231, %233, %cst_209 {dimension_numbers = #tpu.dot_dimension_numbers<[1], [1], [0], [0], [0, 0, 1, 0], [], []>} : vector<1x256xf32>, vector<10x256xf32>, vector<1x10xf32> -> vector<1x10xf32>
    %235 = arith.addf %230, %234 : vector<1x10xf32>
    %c21 = arith.constant 21 : index
    %c0_210 = arith.constant 0 : index
    %236 = vector.load %arg12[%c21, %c0_210] : memref<32x512xf32, #tpu.memory_space<vmem>>, vector<1x256xf32>
    %c21_211 = arith.constant 21 : index
    %c0_212 = arith.constant 0 : index
    %c0_213 = arith.constant 0 : index
    %237 = vector.load %arg7[%c21_211, %c0_212, %c0_213] : memref<32x10x256xf32, #tpu.memory_space<vmem>>, vector<1x10x256xf32>
    %238 = vector.shape_cast %237 : vector<1x10x256xf32> to vector<10x256xf32>
    %cst_214 = arith.constant dense<0.000000e+00> : vector<1x10xf32>
    %239 = tpu.matmul %236, %238, %cst_214 {dimension_numbers = #tpu.dot_dimension_numbers<[1], [1], [0], [0], [0, 0, 1, 0], [], []>} : vector<1x256xf32>, vector<10x256xf32>, vector<1x10xf32> -> vector<1x10xf32>
    %240 = arith.addf %235, %239 : vector<1x10xf32>
    %c22 = arith.constant 22 : index
    %c0_215 = arith.constant 0 : index
    %241 = vector.load %arg12[%c22, %c0_215] : memref<32x512xf32, #tpu.memory_space<vmem>>, vector<1x256xf32>
    %c22_216 = arith.constant 22 : index
    %c0_217 = arith.constant 0 : index
    %c0_218 = arith.constant 0 : index
    %242 = vector.load %arg7[%c22_216, %c0_217, %c0_218] : memref<32x10x256xf32, #tpu.memory_space<vmem>>, vector<1x10x256xf32>
    %243 = vector.shape_cast %242 : vector<1x10x256xf32> to vector<10x256xf32>
    %cst_219 = arith.constant dense<0.000000e+00> : vector<1x10xf32>
    %244 = tpu.matmul %241, %243, %cst_219 {dimension_numbers = #tpu.dot_dimension_numbers<[1], [1], [0], [0], [0, 0, 1, 0], [], []>} : vector<1x256xf32>, vector<10x256xf32>, vector<1x10xf32> -> vector<1x10xf32>
    %245 = arith.addf %240, %244 : vector<1x10xf32>
    %c23 = arith.constant 23 : index
    %c0_220 = arith.constant 0 : index
    %246 = vector.load %arg12[%c23, %c0_220] : memref<32x512xf32, #tpu.memory_space<vmem>>, vector<1x256xf32>
    %c23_221 = arith.constant 23 : index
    %c0_222 = arith.constant 0 : index
    %c0_223 = arith.constant 0 : index
    %247 = vector.load %arg7[%c23_221, %c0_222, %c0_223] : memref<32x10x256xf32, #tpu.memory_space<vmem>>, vector<1x10x256xf32>
    %248 = vector.shape_cast %247 : vector<1x10x256xf32> to vector<10x256xf32>
    %cst_224 = arith.constant dense<0.000000e+00> : vector<1x10xf32>
    %249 = tpu.matmul %246, %248, %cst_224 {dimension_numbers = #tpu.dot_dimension_numbers<[1], [1], [0], [0], [0, 0, 1, 0], [], []>} : vector<1x256xf32>, vector<10x256xf32>, vector<1x10xf32> -> vector<1x10xf32>
    %250 = arith.addf %245, %249 : vector<1x10xf32>
    %c24 = arith.constant 24 : index
    %c0_225 = arith.constant 0 : index
    %251 = vector.load %arg12[%c24, %c0_225] : memref<32x512xf32, #tpu.memory_space<vmem>>, vector<1x256xf32>
    %c24_226 = arith.constant 24 : index
    %c0_227 = arith.constant 0 : index
    %c0_228 = arith.constant 0 : index
    %252 = vector.load %arg7[%c24_226, %c0_227, %c0_228] : memref<32x10x256xf32, #tpu.memory_space<vmem>>, vector<1x10x256xf32>
    %253 = vector.shape_cast %252 : vector<1x10x256xf32> to vector<10x256xf32>
    %cst_229 = arith.constant dense<0.000000e+00> : vector<1x10xf32>
    %254 = tpu.matmul %251, %253, %cst_229 {dimension_numbers = #tpu.dot_dimension_numbers<[1], [1], [0], [0], [0, 0, 1, 0], [], []>} : vector<1x256xf32>, vector<10x256xf32>, vector<1x10xf32> -> vector<1x10xf32>
    %255 = arith.addf %250, %254 : vector<1x10xf32>
    %c25 = arith.constant 25 : index
    %c0_230 = arith.constant 0 : index
    %256 = vector.load %arg12[%c25, %c0_230] : memref<32x512xf32, #tpu.memory_space<vmem>>, vector<1x256xf32>
    %c25_231 = arith.constant 25 : index
    %c0_232 = arith.constant 0 : index
    %c0_233 = arith.constant 0 : index
    %257 = vector.load %arg7[%c25_231, %c0_232, %c0_233] : memref<32x10x256xf32, #tpu.memory_space<vmem>>, vector<1x10x256xf32>
    %258 = vector.shape_cast %257 : vector<1x10x256xf32> to vector<10x256xf32>
    %cst_234 = arith.constant dense<0.000000e+00> : vector<1x10xf32>
    %259 = tpu.matmul %256, %258, %cst_234 {dimension_numbers = #tpu.dot_dimension_numbers<[1], [1], [0], [0], [0, 0, 1, 0], [], []>} : vector<1x256xf32>, vector<10x256xf32>, vector<1x10xf32> -> vector<1x10xf32>
    %260 = arith.addf %255, %259 : vector<1x10xf32>
    %c26 = arith.constant 26 : index
    %c0_235 = arith.constant 0 : index
    %261 = vector.load %arg12[%c26, %c0_235] : memref<32x512xf32, #tpu.memory_space<vmem>>, vector<1x256xf32>
    %c26_236 = arith.constant 26 : index
    %c0_237 = arith.constant 0 : index
    %c0_238 = arith.constant 0 : index
    %262 = vector.load %arg7[%c26_236, %c0_237, %c0_238] : memref<32x10x256xf32, #tpu.memory_space<vmem>>, vector<1x10x256xf32>
    %263 = vector.shape_cast %262 : vector<1x10x256xf32> to vector<10x256xf32>
    %cst_239 = arith.constant dense<0.000000e+00> : vector<1x10xf32>
    %264 = tpu.matmul %261, %263, %cst_239 {dimension_numbers = #tpu.dot_dimension_numbers<[1], [1], [0], [0], [0, 0, 1, 0], [], []>} : vector<1x256xf32>, vector<10x256xf32>, vector<1x10xf32> -> vector<1x10xf32>
    %265 = arith.addf %260, %264 : vector<1x10xf32>
    %c27 = arith.constant 27 : index
    %c0_240 = arith.constant 0 : index
    %266 = vector.load %arg12[%c27, %c0_240] : memref<32x512xf32, #tpu.memory_space<vmem>>, vector<1x256xf32>
    %c27_241 = arith.constant 27 : index
    %c0_242 = arith.constant 0 : index
    %c0_243 = arith.constant 0 : index
    %267 = vector.load %arg7[%c27_241, %c0_242, %c0_243] : memref<32x10x256xf32, #tpu.memory_space<vmem>>, vector<1x10x256xf32>
    %268 = vector.shape_cast %267 : vector<1x10x256xf32> to vector<10x256xf32>
    %cst_244 = arith.constant dense<0.000000e+00> : vector<1x10xf32>
    %269 = tpu.matmul %266, %268, %cst_244 {dimension_numbers = #tpu.dot_dimension_numbers<[1], [1], [0], [0], [0, 0, 1, 0], [], []>} : vector<1x256xf32>, vector<10x256xf32>, vector<1x10xf32> -> vector<1x10xf32>
    %270 = arith.addf %265, %269 : vector<1x10xf32>
    %c28 = arith.constant 28 : index
    %c0_245 = arith.constant 0 : index
    %271 = vector.load %arg12[%c28, %c0_245] : memref<32x512xf32, #tpu.memory_space<vmem>>, vector<1x256xf32>
    %c28_246 = arith.constant 28 : index
    %c0_247 = arith.constant 0 : index
    %c0_248 = arith.constant 0 : index
    %272 = vector.load %arg7[%c28_246, %c0_247, %c0_248] : memref<32x10x256xf32, #tpu.memory_space<vmem>>, vector<1x10x256xf32>
    %273 = vector.shape_cast %272 : vector<1x10x256xf32> to vector<10x256xf32>
    %cst_249 = arith.constant dense<0.000000e+00> : vector<1x10xf32>
    %274 = tpu.matmul %271, %273, %cst_249 {dimension_numbers = #tpu.dot_dimension_numbers<[1], [1], [0], [0], [0, 0, 1, 0], [], []>} : vector<1x256xf32>, vector<10x256xf32>, vector<1x10xf32> -> vector<1x10xf32>
    %275 = arith.addf %270, %274 : vector<1x10xf32>
    %c29 = arith.constant 29 : index
    %c0_250 = arith.constant 0 : index
    %276 = vector.load %arg12[%c29, %c0_250] : memref<32x512xf32, #tpu.memory_space<vmem>>, vector<1x256xf32>
    %c29_251 = arith.constant 29 : index
    %c0_252 = arith.constant 0 : index
    %c0_253 = arith.constant 0 : index
    %277 = vector.load %arg7[%c29_251, %c0_252, %c0_253] : memref<32x10x256xf32, #tpu.memory_space<vmem>>, vector<1x10x256xf32>
    %278 = vector.shape_cast %277 : vector<1x10x256xf32> to vector<10x256xf32>
    %cst_254 = arith.constant dense<0.000000e+00> : vector<1x10xf32>
    %279 = tpu.matmul %276, %278, %cst_254 {dimension_numbers = #tpu.dot_dimension_numbers<[1], [1], [0], [0], [0, 0, 1, 0], [], []>} : vector<1x256xf32>, vector<10x256xf32>, vector<1x10xf32> -> vector<1x10xf32>
    %280 = arith.addf %275, %279 : vector<1x10xf32>
    %c30 = arith.constant 30 : index
    %c0_255 = arith.constant 0 : index
    %281 = vector.load %arg12[%c30, %c0_255] : memref<32x512xf32, #tpu.memory_space<vmem>>, vector<1x256xf32>
    %c30_256 = arith.constant 30 : index
    %c0_257 = arith.constant 0 : index
    %c0_258 = arith.constant 0 : index
    %282 = vector.load %arg7[%c30_256, %c0_257, %c0_258] : memref<32x10x256xf32, #tpu.memory_space<vmem>>, vector<1x10x256xf32>
    %283 = vector.shape_cast %282 : vector<1x10x256xf32> to vector<10x256xf32>
    %cst_259 = arith.constant dense<0.000000e+00> : vector<1x10xf32>
    %284 = tpu.matmul %281, %283, %cst_259 {dimension_numbers = #tpu.dot_dimension_numbers<[1], [1], [0], [0], [0, 0, 1, 0], [], []>} : vector<1x256xf32>, vector<10x256xf32>, vector<1x10xf32> -> vector<1x10xf32>
    %285 = arith.addf %280, %284 : vector<1x10xf32>
    %c31 = arith.constant 31 : index
    %c0_260 = arith.constant 0 : index
    %286 = vector.load %arg12[%c31, %c0_260] : memref<32x512xf32, #tpu.memory_space<vmem>>, vector<1x256xf32>
    %c31_261 = arith.constant 31 : index
    %c0_262 = arith.constant 0 : index
    %c0_263 = arith.constant 0 : index
    %287 = vector.load %arg7[%c31_261, %c0_262, %c0_263] : memref<32x10x256xf32, #tpu.memory_space<vmem>>, vector<1x10x256xf32>
    %288 = vector.shape_cast %287 : vector<1x10x256xf32> to vector<10x256xf32>
    %cst_264 = arith.constant dense<0.000000e+00> : vector<1x10xf32>
    %289 = tpu.matmul %286, %288, %cst_264 {dimension_numbers = #tpu.dot_dimension_numbers<[1], [1], [0], [0], [0, 0, 1, 0], [], []>} : vector<1x256xf32>, vector<10x256xf32>, vector<1x10xf32> -> vector<1x10xf32>
    %290 = arith.addf %285, %289 : vector<1x10xf32>
    %cst_265 = arith.constant 0.000000e+00 : f32
    %291 = vector.broadcast %cst_265 : f32 to vector<1x10xf32>
    %c0_266 = arith.constant 0 : index
    %c256 = arith.constant 256 : index
    %292 = vector.load %arg12[%c0_266, %c256] : memref<32x512xf32, #tpu.memory_space<vmem>>, vector<1x256xf32>
    %c0_267 = arith.constant 0 : index
    %c0_268 = arith.constant 0 : index
    %c0_269 = arith.constant 0 : index
    %293 = vector.load %arg7[%c0_267, %c0_268, %c0_269] : memref<32x10x256xf32, #tpu.memory_space<vmem>>, vector<1x10x256xf32>
    %294 = vector.shape_cast %293 : vector<1x10x256xf32> to vector<10x256xf32>
    %cst_270 = arith.constant dense<0.000000e+00> : vector<1x10xf32>
    %295 = tpu.matmul %292, %294, %cst_270 {dimension_numbers = #tpu.dot_dimension_numbers<[1], [1], [0], [0], [0, 0, 1, 0], [], []>} : vector<1x256xf32>, vector<10x256xf32>, vector<1x10xf32> -> vector<1x10xf32>
    %296 = arith.addf %291, %295 : vector<1x10xf32>
    %c1_271 = arith.constant 1 : index
    %c256_272 = arith.constant 256 : index
    %297 = vector.load %arg12[%c1_271, %c256_272] : memref<32x512xf32, #tpu.memory_space<vmem>>, vector<1x256xf32>
    %c1_273 = arith.constant 1 : index
    %c0_274 = arith.constant 0 : index
    %c0_275 = arith.constant 0 : index
    %298 = vector.load %arg7[%c1_273, %c0_274, %c0_275] : memref<32x10x256xf32, #tpu.memory_space<vmem>>, vector<1x10x256xf32>
    %299 = vector.shape_cast %298 : vector<1x10x256xf32> to vector<10x256xf32>
    %cst_276 = arith.constant dense<0.000000e+00> : vector<1x10xf32>
    %300 = tpu.matmul %297, %299, %cst_276 {dimension_numbers = #tpu.dot_dimension_numbers<[1], [1], [0], [0], [0, 0, 1, 0], [], []>} : vector<1x256xf32>, vector<10x256xf32>, vector<1x10xf32> -> vector<1x10xf32>
    %301 = arith.addf %296, %300 : vector<1x10xf32>
    %c2_277 = arith.constant 2 : index
    %c256_278 = arith.constant 256 : index
    %302 = vector.load %arg12[%c2_277, %c256_278] : memref<32x512xf32, #tpu.memory_space<vmem>>, vector<1x256xf32>
    %c2_279 = arith.constant 2 : index
    %c0_280 = arith.constant 0 : index
    %c0_281 = arith.constant 0 : index
    %303 = vector.load %arg7[%c2_279, %c0_280, %c0_281] : memref<32x10x256xf32, #tpu.memory_space<vmem>>, vector<1x10x256xf32>
    %304 = vector.shape_cast %303 : vector<1x10x256xf32> to vector<10x256xf32>
    %cst_282 = arith.constant dense<0.000000e+00> : vector<1x10xf32>
    %305 = tpu.matmul %302, %304, %cst_282 {dimension_numbers = #tpu.dot_dimension_numbers<[1], [1], [0], [0], [0, 0, 1, 0], [], []>} : vector<1x256xf32>, vector<10x256xf32>, vector<1x10xf32> -> vector<1x10xf32>
    %306 = arith.addf %301, %305 : vector<1x10xf32>
    %c3_283 = arith.constant 3 : index
    %c256_284 = arith.constant 256 : index
    %307 = vector.load %arg12[%c3_283, %c256_284] : memref<32x512xf32, #tpu.memory_space<vmem>>, vector<1x256xf32>
    %c3_285 = arith.constant 3 : index
    %c0_286 = arith.constant 0 : index
    %c0_287 = arith.constant 0 : index
    %308 = vector.load %arg7[%c3_285, %c0_286, %c0_287] : memref<32x10x256xf32, #tpu.memory_space<vmem>>, vector<1x10x256xf32>
    %309 = vector.shape_cast %308 : vector<1x10x256xf32> to vector<10x256xf32>
    %cst_288 = arith.constant dense<0.000000e+00> : vector<1x10xf32>
    %310 = tpu.matmul %307, %309, %cst_288 {dimension_numbers = #tpu.dot_dimension_numbers<[1], [1], [0], [0], [0, 0, 1, 0], [], []>} : vector<1x256xf32>, vector<10x256xf32>, vector<1x10xf32> -> vector<1x10xf32>
    %311 = arith.addf %306, %310 : vector<1x10xf32>
    %c4_289 = arith.constant 4 : index
    %c256_290 = arith.constant 256 : index
    %312 = vector.load %arg12[%c4_289, %c256_290] : memref<32x512xf32, #tpu.memory_space<vmem>>, vector<1x256xf32>
    %c4_291 = arith.constant 4 : index
    %c0_292 = arith.constant 0 : index
    %c0_293 = arith.constant 0 : index
    %313 = vector.load %arg7[%c4_291, %c0_292, %c0_293] : memref<32x10x256xf32, #tpu.memory_space<vmem>>, vector<1x10x256xf32>
    %314 = vector.shape_cast %313 : vector<1x10x256xf32> to vector<10x256xf32>
    %cst_294 = arith.constant dense<0.000000e+00> : vector<1x10xf32>
    %315 = tpu.matmul %312, %314, %cst_294 {dimension_numbers = #tpu.dot_dimension_numbers<[1], [1], [0], [0], [0, 0, 1, 0], [], []>} : vector<1x256xf32>, vector<10x256xf32>, vector<1x10xf32> -> vector<1x10xf32>
    %316 = arith.addf %311, %315 : vector<1x10xf32>
    %c5_295 = arith.constant 5 : index
    %c256_296 = arith.constant 256 : index
    %317 = vector.load %arg12[%c5_295, %c256_296] : memref<32x512xf32, #tpu.memory_space<vmem>>, vector<1x256xf32>
    %c5_297 = arith.constant 5 : index
    %c0_298 = arith.constant 0 : index
    %c0_299 = arith.constant 0 : index
    %318 = vector.load %arg7[%c5_297, %c0_298, %c0_299] : memref<32x10x256xf32, #tpu.memory_space<vmem>>, vector<1x10x256xf32>
    %319 = vector.shape_cast %318 : vector<1x10x256xf32> to vector<10x256xf32>
    %cst_300 = arith.constant dense<0.000000e+00> : vector<1x10xf32>
    %320 = tpu.matmul %317, %319, %cst_300 {dimension_numbers = #tpu.dot_dimension_numbers<[1], [1], [0], [0], [0, 0, 1, 0], [], []>} : vector<1x256xf32>, vector<10x256xf32>, vector<1x10xf32> -> vector<1x10xf32>
    %321 = arith.addf %316, %320 : vector<1x10xf32>
    %c6_301 = arith.constant 6 : index
    %c256_302 = arith.constant 256 : index
    %322 = vector.load %arg12[%c6_301, %c256_302] : memref<32x512xf32, #tpu.memory_space<vmem>>, vector<1x256xf32>
    %c6_303 = arith.constant 6 : index
    %c0_304 = arith.constant 0 : index
    %c0_305 = arith.constant 0 : index
    %323 = vector.load %arg7[%c6_303, %c0_304, %c0_305] : memref<32x10x256xf32, #tpu.memory_space<vmem>>, vector<1x10x256xf32>
    %324 = vector.shape_cast %323 : vector<1x10x256xf32> to vector<10x256xf32>
    %cst_306 = arith.constant dense<0.000000e+00> : vector<1x10xf32>
    %325 = tpu.matmul %322, %324, %cst_306 {dimension_numbers = #tpu.dot_dimension_numbers<[1], [1], [0], [0], [0, 0, 1, 0], [], []>} : vector<1x256xf32>, vector<10x256xf32>, vector<1x10xf32> -> vector<1x10xf32>
    %326 = arith.addf %321, %325 : vector<1x10xf32>
    %c7_307 = arith.constant 7 : index
    %c256_308 = arith.constant 256 : index
    %327 = vector.load %arg12[%c7_307, %c256_308] : memref<32x512xf32, #tpu.memory_space<vmem>>, vector<1x256xf32>
    %c7_309 = arith.constant 7 : index
    %c0_310 = arith.constant 0 : index
    %c0_311 = arith.constant 0 : index
    %328 = vector.load %arg7[%c7_309, %c0_310, %c0_311] : memref<32x10x256xf32, #tpu.memory_space<vmem>>, vector<1x10x256xf32>
    %329 = vector.shape_cast %328 : vector<1x10x256xf32> to vector<10x256xf32>
    %cst_312 = arith.constant dense<0.000000e+00> : vector<1x10xf32>
    %330 = tpu.matmul %327, %329, %cst_312 {dimension_numbers = #tpu.dot_dimension_numbers<[1], [1], [0], [0], [0, 0, 1, 0], [], []>} : vector<1x256xf32>, vector<10x256xf32>, vector<1x10xf32> -> vector<1x10xf32>
    %331 = arith.addf %326, %330 : vector<1x10xf32>
    %c8_313 = arith.constant 8 : index
    %c256_314 = arith.constant 256 : index
    %332 = vector.load %arg12[%c8_313, %c256_314] : memref<32x512xf32, #tpu.memory_space<vmem>>, vector<1x256xf32>
    %c8_315 = arith.constant 8 : index
    %c0_316 = arith.constant 0 : index
    %c0_317 = arith.constant 0 : index
    %333 = vector.load %arg7[%c8_315, %c0_316, %c0_317] : memref<32x10x256xf32, #tpu.memory_space<vmem>>, vector<1x10x256xf32>
    %334 = vector.shape_cast %333 : vector<1x10x256xf32> to vector<10x256xf32>
    %cst_318 = arith.constant dense<0.000000e+00> : vector<1x10xf32>
    %335 = tpu.matmul %332, %334, %cst_318 {dimension_numbers = #tpu.dot_dimension_numbers<[1], [1], [0], [0], [0, 0, 1, 0], [], []>} : vector<1x256xf32>, vector<10x256xf32>, vector<1x10xf32> -> vector<1x10xf32>
    %336 = arith.addf %331, %335 : vector<1x10xf32>
    %c9_319 = arith.constant 9 : index
    %c256_320 = arith.constant 256 : index
    %337 = vector.load %arg12[%c9_319, %c256_320] : memref<32x512xf32, #tpu.memory_space<vmem>>, vector<1x256xf32>
    %c9_321 = arith.constant 9 : index
    %c0_322 = arith.constant 0 : index
    %c0_323 = arith.constant 0 : index
    %338 = vector.load %arg7[%c9_321, %c0_322, %c0_323] : memref<32x10x256xf32, #tpu.memory_space<vmem>>, vector<1x10x256xf32>
    %339 = vector.shape_cast %338 : vector<1x10x256xf32> to vector<10x256xf32>
    %cst_324 = arith.constant dense<0.000000e+00> : vector<1x10xf32>
    %340 = tpu.matmul %337, %339, %cst_324 {dimension_numbers = #tpu.dot_dimension_numbers<[1], [1], [0], [0], [0, 0, 1, 0], [], []>} : vector<1x256xf32>, vector<10x256xf32>, vector<1x10xf32> -> vector<1x10xf32>
    %341 = arith.addf %336, %340 : vector<1x10xf32>
    %c10_325 = arith.constant 10 : index
    %c256_326 = arith.constant 256 : index
    %342 = vector.load %arg12[%c10_325, %c256_326] : memref<32x512xf32, #tpu.memory_space<vmem>>, vector<1x256xf32>
    %c10_327 = arith.constant 10 : index
    %c0_328 = arith.constant 0 : index
    %c0_329 = arith.constant 0 : index
    %343 = vector.load %arg7[%c10_327, %c0_328, %c0_329] : memref<32x10x256xf32, #tpu.memory_space<vmem>>, vector<1x10x256xf32>
    %344 = vector.shape_cast %343 : vector<1x10x256xf32> to vector<10x256xf32>
    %cst_330 = arith.constant dense<0.000000e+00> : vector<1x10xf32>
    %345 = tpu.matmul %342, %344, %cst_330 {dimension_numbers = #tpu.dot_dimension_numbers<[1], [1], [0], [0], [0, 0, 1, 0], [], []>} : vector<1x256xf32>, vector<10x256xf32>, vector<1x10xf32> -> vector<1x10xf32>
    %346 = arith.addf %341, %345 : vector<1x10xf32>
    %c11_331 = arith.constant 11 : index
    %c256_332 = arith.constant 256 : index
    %347 = vector.load %arg12[%c11_331, %c256_332] : memref<32x512xf32, #tpu.memory_space<vmem>>, vector<1x256xf32>
    %c11_333 = arith.constant 11 : index
    %c0_334 = arith.constant 0 : index
    %c0_335 = arith.constant 0 : index
    %348 = vector.load %arg7[%c11_333, %c0_334, %c0_335] : memref<32x10x256xf32, #tpu.memory_space<vmem>>, vector<1x10x256xf32>
    %349 = vector.shape_cast %348 : vector<1x10x256xf32> to vector<10x256xf32>
    %cst_336 = arith.constant dense<0.000000e+00> : vector<1x10xf32>
    %350 = tpu.matmul %347, %349, %cst_336 {dimension_numbers = #tpu.dot_dimension_numbers<[1], [1], [0], [0], [0, 0, 1, 0], [], []>} : vector<1x256xf32>, vector<10x256xf32>, vector<1x10xf32> -> vector<1x10xf32>
    %351 = arith.addf %346, %350 : vector<1x10xf32>
    %c12_337 = arith.constant 12 : index
    %c256_338 = arith.constant 256 : index
    %352 = vector.load %arg12[%c12_337, %c256_338] : memref<32x512xf32, #tpu.memory_space<vmem>>, vector<1x256xf32>
    %c12_339 = arith.constant 12 : index
    %c0_340 = arith.constant 0 : index
    %c0_341 = arith.constant 0 : index
    %353 = vector.load %arg7[%c12_339, %c0_340, %c0_341] : memref<32x10x256xf32, #tpu.memory_space<vmem>>, vector<1x10x256xf32>
    %354 = vector.shape_cast %353 : vector<1x10x256xf32> to vector<10x256xf32>
    %cst_342 = arith.constant dense<0.000000e+00> : vector<1x10xf32>
    %355 = tpu.matmul %352, %354, %cst_342 {dimension_numbers = #tpu.dot_dimension_numbers<[1], [1], [0], [0], [0, 0, 1, 0], [], []>} : vector<1x256xf32>, vector<10x256xf32>, vector<1x10xf32> -> vector<1x10xf32>
    %356 = arith.addf %351, %355 : vector<1x10xf32>
    %c13_343 = arith.constant 13 : index
    %c256_344 = arith.constant 256 : index
    %357 = vector.load %arg12[%c13_343, %c256_344] : memref<32x512xf32, #tpu.memory_space<vmem>>, vector<1x256xf32>
    %c13_345 = arith.constant 13 : index
    %c0_346 = arith.constant 0 : index
    %c0_347 = arith.constant 0 : index
    %358 = vector.load %arg7[%c13_345, %c0_346, %c0_347] : memref<32x10x256xf32, #tpu.memory_space<vmem>>, vector<1x10x256xf32>
    %359 = vector.shape_cast %358 : vector<1x10x256xf32> to vector<10x256xf32>
    %cst_348 = arith.constant dense<0.000000e+00> : vector<1x10xf32>
    %360 = tpu.matmul %357, %359, %cst_348 {dimension_numbers = #tpu.dot_dimension_numbers<[1], [1], [0], [0], [0, 0, 1, 0], [], []>} : vector<1x256xf32>, vector<10x256xf32>, vector<1x10xf32> -> vector<1x10xf32>
    %361 = arith.addf %356, %360 : vector<1x10xf32>
    %c14_349 = arith.constant 14 : index
    %c256_350 = arith.constant 256 : index
    %362 = vector.load %arg12[%c14_349, %c256_350] : memref<32x512xf32, #tpu.memory_space<vmem>>, vector<1x256xf32>
    %c14_351 = arith.constant 14 : index
    %c0_352 = arith.constant 0 : index
    %c0_353 = arith.constant 0 : index
    %363 = vector.load %arg7[%c14_351, %c0_352, %c0_353] : memref<32x10x256xf32, #tpu.memory_space<vmem>>, vector<1x10x256xf32>
    %364 = vector.shape_cast %363 : vector<1x10x256xf32> to vector<10x256xf32>
    %cst_354 = arith.constant dense<0.000000e+00> : vector<1x10xf32>
    %365 = tpu.matmul %362, %364, %cst_354 {dimension_numbers = #tpu.dot_dimension_numbers<[1], [1], [0], [0], [0, 0, 1, 0], [], []>} : vector<1x256xf32>, vector<10x256xf32>, vector<1x10xf32> -> vector<1x10xf32>
    %366 = arith.addf %361, %365 : vector<1x10xf32>
    %c15_355 = arith.constant 15 : index
    %c256_356 = arith.constant 256 : index
    %367 = vector.load %arg12[%c15_355, %c256_356] : memref<32x512xf32, #tpu.memory_space<vmem>>, vector<1x256xf32>
    %c15_357 = arith.constant 15 : index
    %c0_358 = arith.constant 0 : index
    %c0_359 = arith.constant 0 : index
    %368 = vector.load %arg7[%c15_357, %c0_358, %c0_359] : memref<32x10x256xf32, #tpu.memory_space<vmem>>, vector<1x10x256xf32>
    %369 = vector.shape_cast %368 : vector<1x10x256xf32> to vector<10x256xf32>
    %cst_360 = arith.constant dense<0.000000e+00> : vector<1x10xf32>
    %370 = tpu.matmul %367, %369, %cst_360 {dimension_numbers = #tpu.dot_dimension_numbers<[1], [1], [0], [0], [0, 0, 1, 0], [], []>} : vector<1x256xf32>, vector<10x256xf32>, vector<1x10xf32> -> vector<1x10xf32>
    %371 = arith.addf %366, %370 : vector<1x10xf32>
    %c16_361 = arith.constant 16 : index
    %c256_362 = arith.constant 256 : index
    %372 = vector.load %arg12[%c16_361, %c256_362] : memref<32x512xf32, #tpu.memory_space<vmem>>, vector<1x256xf32>
    %c16_363 = arith.constant 16 : index
    %c0_364 = arith.constant 0 : index
    %c0_365 = arith.constant 0 : index
    %373 = vector.load %arg7[%c16_363, %c0_364, %c0_365] : memref<32x10x256xf32, #tpu.memory_space<vmem>>, vector<1x10x256xf32>
    %374 = vector.shape_cast %373 : vector<1x10x256xf32> to vector<10x256xf32>
    %cst_366 = arith.constant dense<0.000000e+00> : vector<1x10xf32>
    %375 = tpu.matmul %372, %374, %cst_366 {dimension_numbers = #tpu.dot_dimension_numbers<[1], [1], [0], [0], [0, 0, 1, 0], [], []>} : vector<1x256xf32>, vector<10x256xf32>, vector<1x10xf32> -> vector<1x10xf32>
    %376 = arith.addf %371, %375 : vector<1x10xf32>
    %c17_367 = arith.constant 17 : index
    %c256_368 = arith.constant 256 : index
    %377 = vector.load %arg12[%c17_367, %c256_368] : memref<32x512xf32, #tpu.memory_space<vmem>>, vector<1x256xf32>
    %c17_369 = arith.constant 17 : index
    %c0_370 = arith.constant 0 : index
    %c0_371 = arith.constant 0 : index
    %378 = vector.load %arg7[%c17_369, %c0_370, %c0_371] : memref<32x10x256xf32, #tpu.memory_space<vmem>>, vector<1x10x256xf32>
    %379 = vector.shape_cast %378 : vector<1x10x256xf32> to vector<10x256xf32>
    %cst_372 = arith.constant dense<0.000000e+00> : vector<1x10xf32>
    %380 = tpu.matmul %377, %379, %cst_372 {dimension_numbers = #tpu.dot_dimension_numbers<[1], [1], [0], [0], [0, 0, 1, 0], [], []>} : vector<1x256xf32>, vector<10x256xf32>, vector<1x10xf32> -> vector<1x10xf32>
    %381 = arith.addf %376, %380 : vector<1x10xf32>
    %c18_373 = arith.constant 18 : index
    %c256_374 = arith.constant 256 : index
    %382 = vector.load %arg12[%c18_373, %c256_374] : memref<32x512xf32, #tpu.memory_space<vmem>>, vector<1x256xf32>
    %c18_375 = arith.constant 18 : index
    %c0_376 = arith.constant 0 : index
    %c0_377 = arith.constant 0 : index
    %383 = vector.load %arg7[%c18_375, %c0_376, %c0_377] : memref<32x10x256xf32, #tpu.memory_space<vmem>>, vector<1x10x256xf32>
    %384 = vector.shape_cast %383 : vector<1x10x256xf32> to vector<10x256xf32>
    %cst_378 = arith.constant dense<0.000000e+00> : vector<1x10xf32>
    %385 = tpu.matmul %382, %384, %cst_378 {dimension_numbers = #tpu.dot_dimension_numbers<[1], [1], [0], [0], [0, 0, 1, 0], [], []>} : vector<1x256xf32>, vector<10x256xf32>, vector<1x10xf32> -> vector<1x10xf32>
    %386 = arith.addf %381, %385 : vector<1x10xf32>
    %c19_379 = arith.constant 19 : index
    %c256_380 = arith.constant 256 : index
    %387 = vector.load %arg12[%c19_379, %c256_380] : memref<32x512xf32, #tpu.memory_space<vmem>>, vector<1x256xf32>
    %c19_381 = arith.constant 19 : index
    %c0_382 = arith.constant 0 : index
    %c0_383 = arith.constant 0 : index
    %388 = vector.load %arg7[%c19_381, %c0_382, %c0_383] : memref<32x10x256xf32, #tpu.memory_space<vmem>>, vector<1x10x256xf32>
    %389 = vector.shape_cast %388 : vector<1x10x256xf32> to vector<10x256xf32>
    %cst_384 = arith.constant dense<0.000000e+00> : vector<1x10xf32>
    %390 = tpu.matmul %387, %389, %cst_384 {dimension_numbers = #tpu.dot_dimension_numbers<[1], [1], [0], [0], [0, 0, 1, 0], [], []>} : vector<1x256xf32>, vector<10x256xf32>, vector<1x10xf32> -> vector<1x10xf32>
    %391 = arith.addf %386, %390 : vector<1x10xf32>
    %c20_385 = arith.constant 20 : index
    %c256_386 = arith.constant 256 : index
    %392 = vector.load %arg12[%c20_385, %c256_386] : memref<32x512xf32, #tpu.memory_space<vmem>>, vector<1x256xf32>
    %c20_387 = arith.constant 20 : index
    %c0_388 = arith.constant 0 : index
    %c0_389 = arith.constant 0 : index
    %393 = vector.load %arg7[%c20_387, %c0_388, %c0_389] : memref<32x10x256xf32, #tpu.memory_space<vmem>>, vector<1x10x256xf32>
    %394 = vector.shape_cast %393 : vector<1x10x256xf32> to vector<10x256xf32>
    %cst_390 = arith.constant dense<0.000000e+00> : vector<1x10xf32>
    %395 = tpu.matmul %392, %394, %cst_390 {dimension_numbers = #tpu.dot_dimension_numbers<[1], [1], [0], [0], [0, 0, 1, 0], [], []>} : vector<1x256xf32>, vector<10x256xf32>, vector<1x10xf32> -> vector<1x10xf32>
    %396 = arith.addf %391, %395 : vector<1x10xf32>
    %c21_391 = arith.constant 21 : index
    %c256_392 = arith.constant 256 : index
    %397 = vector.load %arg12[%c21_391, %c256_392] : memref<32x512xf32, #tpu.memory_space<vmem>>, vector<1x256xf32>
    %c21_393 = arith.constant 21 : index
    %c0_394 = arith.constant 0 : index
    %c0_395 = arith.constant 0 : index
    %398 = vector.load %arg7[%c21_393, %c0_394, %c0_395] : memref<32x10x256xf32, #tpu.memory_space<vmem>>, vector<1x10x256xf32>
    %399 = vector.shape_cast %398 : vector<1x10x256xf32> to vector<10x256xf32>
    %cst_396 = arith.constant dense<0.000000e+00> : vector<1x10xf32>
    %400 = tpu.matmul %397, %399, %cst_396 {dimension_numbers = #tpu.dot_dimension_numbers<[1], [1], [0], [0], [0, 0, 1, 0], [], []>} : vector<1x256xf32>, vector<10x256xf32>, vector<1x10xf32> -> vector<1x10xf32>
    %401 = arith.addf %396, %400 : vector<1x10xf32>
    %c22_397 = arith.constant 22 : index
    %c256_398 = arith.constant 256 : index
    %402 = vector.load %arg12[%c22_397, %c256_398] : memref<32x512xf32, #tpu.memory_space<vmem>>, vector<1x256xf32>
    %c22_399 = arith.constant 22 : index
    %c0_400 = arith.constant 0 : index
    %c0_401 = arith.constant 0 : index
    %403 = vector.load %arg7[%c22_399, %c0_400, %c0_401] : memref<32x10x256xf32, #tpu.memory_space<vmem>>, vector<1x10x256xf32>
    %404 = vector.shape_cast %403 : vector<1x10x256xf32> to vector<10x256xf32>
    %cst_402 = arith.constant dense<0.000000e+00> : vector<1x10xf32>
    %405 = tpu.matmul %402, %404, %cst_402 {dimension_numbers = #tpu.dot_dimension_numbers<[1], [1], [0], [0], [0, 0, 1, 0], [], []>} : vector<1x256xf32>, vector<10x256xf32>, vector<1x10xf32> -> vector<1x10xf32>
    %406 = arith.addf %401, %405 : vector<1x10xf32>
    %c23_403 = arith.constant 23 : index
    %c256_404 = arith.constant 256 : index
    %407 = vector.load %arg12[%c23_403, %c256_404] : memref<32x512xf32, #tpu.memory_space<vmem>>, vector<1x256xf32>
    %c23_405 = arith.constant 23 : index
    %c0_406 = arith.constant 0 : index
    %c0_407 = arith.constant 0 : index
    %408 = vector.load %arg7[%c23_405, %c0_406, %c0_407] : memref<32x10x256xf32, #tpu.memory_space<vmem>>, vector<1x10x256xf32>
    %409 = vector.shape_cast %408 : vector<1x10x256xf32> to vector<10x256xf32>
    %cst_408 = arith.constant dense<0.000000e+00> : vector<1x10xf32>
    %410 = tpu.matmul %407, %409, %cst_408 {dimension_numbers = #tpu.dot_dimension_numbers<[1], [1], [0], [0], [0, 0, 1, 0], [], []>} : vector<1x256xf32>, vector<10x256xf32>, vector<1x10xf32> -> vector<1x10xf32>
    %411 = arith.addf %406, %410 : vector<1x10xf32>
    %c24_409 = arith.constant 24 : index
    %c256_410 = arith.constant 256 : index
    %412 = vector.load %arg12[%c24_409, %c256_410] : memref<32x512xf32, #tpu.memory_space<vmem>>, vector<1x256xf32>
    %c24_411 = arith.constant 24 : index
    %c0_412 = arith.constant 0 : index
    %c0_413 = arith.constant 0 : index
    %413 = vector.load %arg7[%c24_411, %c0_412, %c0_413] : memref<32x10x256xf32, #tpu.memory_space<vmem>>, vector<1x10x256xf32>
    %414 = vector.shape_cast %413 : vector<1x10x256xf32> to vector<10x256xf32>
    %cst_414 = arith.constant dense<0.000000e+00> : vector<1x10xf32>
    %415 = tpu.matmul %412, %414, %cst_414 {dimension_numbers = #tpu.dot_dimension_numbers<[1], [1], [0], [0], [0, 0, 1, 0], [], []>} : vector<1x256xf32>, vector<10x256xf32>, vector<1x10xf32> -> vector<1x10xf32>
    %416 = arith.addf %411, %415 : vector<1x10xf32>
    %c25_415 = arith.constant 25 : index
    %c256_416 = arith.constant 256 : index
    %417 = vector.load %arg12[%c25_415, %c256_416] : memref<32x512xf32, #tpu.memory_space<vmem>>, vector<1x256xf32>
    %c25_417 = arith.constant 25 : index
    %c0_418 = arith.constant 0 : index
    %c0_419 = arith.constant 0 : index
    %418 = vector.load %arg7[%c25_417, %c0_418, %c0_419] : memref<32x10x256xf32, #tpu.memory_space<vmem>>, vector<1x10x256xf32>
    %419 = vector.shape_cast %418 : vector<1x10x256xf32> to vector<10x256xf32>
    %cst_420 = arith.constant dense<0.000000e+00> : vector<1x10xf32>
    %420 = tpu.matmul %417, %419, %cst_420 {dimension_numbers = #tpu.dot_dimension_numbers<[1], [1], [0], [0], [0, 0, 1, 0], [], []>} : vector<1x256xf32>, vector<10x256xf32>, vector<1x10xf32> -> vector<1x10xf32>
    %421 = arith.addf %416, %420 : vector<1x10xf32>
    %c26_421 = arith.constant 26 : index
    %c256_422 = arith.constant 256 : index
    %422 = vector.load %arg12[%c26_421, %c256_422] : memref<32x512xf32, #tpu.memory_space<vmem>>, vector<1x256xf32>
    %c26_423 = arith.constant 26 : index
    %c0_424 = arith.constant 0 : index
    %c0_425 = arith.constant 0 : index
    %423 = vector.load %arg7[%c26_423, %c0_424, %c0_425] : memref<32x10x256xf32, #tpu.memory_space<vmem>>, vector<1x10x256xf32>
    %424 = vector.shape_cast %423 : vector<1x10x256xf32> to vector<10x256xf32>
    %cst_426 = arith.constant dense<0.000000e+00> : vector<1x10xf32>
    %425 = tpu.matmul %422, %424, %cst_426 {dimension_numbers = #tpu.dot_dimension_numbers<[1], [1], [0], [0], [0, 0, 1, 0], [], []>} : vector<1x256xf32>, vector<10x256xf32>, vector<1x10xf32> -> vector<1x10xf32>
    %426 = arith.addf %421, %425 : vector<1x10xf32>
    %c27_427 = arith.constant 27 : index
    %c256_428 = arith.constant 256 : index
    %427 = vector.load %arg12[%c27_427, %c256_428] : memref<32x512xf32, #tpu.memory_space<vmem>>, vector<1x256xf32>
    %c27_429 = arith.constant 27 : index
    %c0_430 = arith.constant 0 : index
    %c0_431 = arith.constant 0 : index
    %428 = vector.load %arg7[%c27_429, %c0_430, %c0_431] : memref<32x10x256xf32, #tpu.memory_space<vmem>>, vector<1x10x256xf32>
    %429 = vector.shape_cast %428 : vector<1x10x256xf32> to vector<10x256xf32>
    %cst_432 = arith.constant dense<0.000000e+00> : vector<1x10xf32>
    %430 = tpu.matmul %427, %429, %cst_432 {dimension_numbers = #tpu.dot_dimension_numbers<[1], [1], [0], [0], [0, 0, 1, 0], [], []>} : vector<1x256xf32>, vector<10x256xf32>, vector<1x10xf32> -> vector<1x10xf32>
    %431 = arith.addf %426, %430 : vector<1x10xf32>
    %c28_433 = arith.constant 28 : index
    %c256_434 = arith.constant 256 : index
    %432 = vector.load %arg12[%c28_433, %c256_434] : memref<32x512xf32, #tpu.memory_space<vmem>>, vector<1x256xf32>
    %c28_435 = arith.constant 28 : index
    %c0_436 = arith.constant 0 : index
    %c0_437 = arith.constant 0 : index
    %433 = vector.load %arg7[%c28_435, %c0_436, %c0_437] : memref<32x10x256xf32, #tpu.memory_space<vmem>>, vector<1x10x256xf32>
    %434 = vector.shape_cast %433 : vector<1x10x256xf32> to vector<10x256xf32>
    %cst_438 = arith.constant dense<0.000000e+00> : vector<1x10xf32>
    %435 = tpu.matmul %432, %434, %cst_438 {dimension_numbers = #tpu.dot_dimension_numbers<[1], [1], [0], [0], [0, 0, 1, 0], [], []>} : vector<1x256xf32>, vector<10x256xf32>, vector<1x10xf32> -> vector<1x10xf32>
    %436 = arith.addf %431, %435 : vector<1x10xf32>
    %c29_439 = arith.constant 29 : index
    %c256_440 = arith.constant 256 : index
    %437 = vector.load %arg12[%c29_439, %c256_440] : memref<32x512xf32, #tpu.memory_space<vmem>>, vector<1x256xf32>
    %c29_441 = arith.constant 29 : index
    %c0_442 = arith.constant 0 : index
    %c0_443 = arith.constant 0 : index
    %438 = vector.load %arg7[%c29_441, %c0_442, %c0_443] : memref<32x10x256xf32, #tpu.memory_space<vmem>>, vector<1x10x256xf32>
    %439 = vector.shape_cast %438 : vector<1x10x256xf32> to vector<10x256xf32>
    %cst_444 = arith.constant dense<0.000000e+00> : vector<1x10xf32>
    %440 = tpu.matmul %437, %439, %cst_444 {dimension_numbers = #tpu.dot_dimension_numbers<[1], [1], [0], [0], [0, 0, 1, 0], [], []>} : vector<1x256xf32>, vector<10x256xf32>, vector<1x10xf32> -> vector<1x10xf32>
    %441 = arith.addf %436, %440 : vector<1x10xf32>
    %c30_445 = arith.constant 30 : index
    %c256_446 = arith.constant 256 : index
    %442 = vector.load %arg12[%c30_445, %c256_446] : memref<32x512xf32, #tpu.memory_space<vmem>>, vector<1x256xf32>
    %c30_447 = arith.constant 30 : index
    %c0_448 = arith.constant 0 : index
    %c0_449 = arith.constant 0 : index
    %443 = vector.load %arg7[%c30_447, %c0_448, %c0_449] : memref<32x10x256xf32, #tpu.memory_space<vmem>>, vector<1x10x256xf32>
    %444 = vector.shape_cast %443 : vector<1x10x256xf32> to vector<10x256xf32>
    %cst_450 = arith.constant dense<0.000000e+00> : vector<1x10xf32>
    %445 = tpu.matmul %442, %444, %cst_450 {dimension_numbers = #tpu.dot_dimension_numbers<[1], [1], [0], [0], [0, 0, 1, 0], [], []>} : vector<1x256xf32>, vector<10x256xf32>, vector<1x10xf32> -> vector<1x10xf32>
    %446 = arith.addf %441, %445 : vector<1x10xf32>
    %c31_451 = arith.constant 31 : index
    %c256_452 = arith.constant 256 : index
    %447 = vector.load %arg12[%c31_451, %c256_452] : memref<32x512xf32, #tpu.memory_space<vmem>>, vector<1x256xf32>
    %c31_453 = arith.constant 31 : index
    %c0_454 = arith.constant 0 : index
    %c0_455 = arith.constant 0 : index
    %448 = vector.load %arg7[%c31_453, %c0_454, %c0_455] : memref<32x10x256xf32, #tpu.memory_space<vmem>>, vector<1x10x256xf32>
    %449 = vector.shape_cast %448 : vector<1x10x256xf32> to vector<10x256xf32>
    %cst_456 = arith.constant dense<0.000000e+00> : vector<1x10xf32>
    %450 = tpu.matmul %447, %449, %cst_456 {dimension_numbers = #tpu.dot_dimension_numbers<[1], [1], [0], [0], [0, 0, 1, 0], [], []>} : vector<1x256xf32>, vector<10x256xf32>, vector<1x10xf32> -> vector<1x10xf32>
    %451 = arith.addf %446, %450 : vector<1x10xf32>
    %452 = tpu.concatenate %290, %451 in 0 : vector<1x10xf32>, vector<1x10xf32> -> vector<2x10xf32>
    %c0_457 = arith.constant 0 : index
    %c0_458 = arith.constant 0 : index
    %453 = vector.load %arg8[%c0_457, %c0_458] : memref<1x10xf32, #tpu.memory_space<vmem>>, vector<1x10xf32>
    %454 = vector.broadcast %453 : vector<1x10xf32> to vector<2x10xf32>
    %455 = arith.addf %452, %454 : vector<2x10xf32>
    %c0_459 = arith.constant 0 : index
    %c0_460 = arith.constant 0 : index
    %456 = vector.load %arg9[%c0_459, %c0_460] : memref<2x10xf32, #tpu.memory_space<vmem>>, vector<2x10xf32>
    tpu.vector_store %arg9[%c0_459, %c0_460], %455 {strides = array<i32>} : memref<2x10xf32, #tpu.memory_space<vmem>>, vector<2x10xf32>,
    return
  }
  func.func @transform_0(%arg0: i32) -> (i32, i32) {
    %c0_i32 = arith.constant 0 : i32
    %c0_i32_0 = arith.constant 0 : i32
    %c0_i32_1 = arith.constant 0 : i32
    return %c0_i32, %c0_i32_0 : i32, i32
  }
  func.func @transform_1(%arg0: i32) -> (i32, i32) {
    %c0_i32 = arith.constant 0 : i32
    %c0_i32_0 = arith.constant 0 : i32
    %c0_i32_1 = arith.constant 0 : i32
    return %c0_i32, %c0_i32_0 : i32, i32
  }
  func.func @transform_2(%arg0: i32) -> (i32, i32) {
    %c0_i32 = arith.constant 0 : i32
    %c0_i32_0 = arith.constant 0 : i32
    %c0_i32_1 = arith.constant 0 : i32
    return %c0_i32, %c0_i32_0 : i32, i32
  }
  func.func @transform_3(%arg0: i32) -> (i32, i32) {
    %c0_i32 = arith.constant 0 : i32
    %c0_i32_0 = arith.constant 0 : i32
    %c0_i32_1 = arith.constant 0 : i32
    return %c0_i32, %c0_i32_0 : i32, i32
  }
  func.func @transform_4(%arg0: i32) -> (i32, i32) {
    %c0_i32 = arith.constant 0 : i32
    %c0_i32_0 = arith.constant 0 : i32
    %c0_i32_1 = arith.constant 0 : i32
    return %c0_i32, %c0_i32_0 : i32, i32
  }
  func.func @transform_5(%arg0: i32) -> (i32, i32) {
    %c0_i32 = arith.constant 0 : i32
    %c0_i32_0 = arith.constant 0 : i32
    %c0_i32_1 = arith.constant 0 : i32
    return %c0_i32, %c0_i32_0 : i32, i32
  }
  func.func @transform_6(%arg0: i32) -> (i32, i32, i32) {
    %c0_i32 = arith.constant 0 : i32
    %c0_i32_0 = arith.constant 0 : i32
    %c0_i32_1 = arith.constant 0 : i32
    %c0_i32_2 = arith.constant 0 : i32
    return %c0_i32, %c0_i32_0, %c0_i32_1 : i32, i32, i32
  }
  func.func @transform_7(%arg0: i32) -> (i32, i32) {
    %c0_i32 = arith.constant 0 : i32
    %c0_i32_0 = arith.constant 0 : i32
    %c0_i32_1 = arith.constant 0 : i32
    return %c0_i32, %c0_i32_0 : i32, i32
  }
  func.func @transform_8(%arg0: i32) -> (i32, i32) {
    %c0_i32 = arith.constant 0 : i32
    %c0_i32_0 = arith.constant 0 : i32
    %c0_i32_1 = arith.constant 0 : i32
    return %c0_i32, %c0_i32_0 : i32, i32
  }
}

</mosaic_0001>

<llo_original>
// kernel: cnn_network1_forward.1
$region0: #{cnn_network1_forward.1}
  #allocation0 [shape = 'u32[]', space=smem, size = 0x4, offset = 0x4, fixed_abs, tag = 'smem constant byte address 0x4 - core index']
  #allocation1 [shape = 'u32[144,128]{1,0:T(1,128)}', space=vmem, size = 0x12000, scoped, tag = 'internal scratch']
  #allocation2 [shape = 'f32[1,768]{1,0:T(1,128)}', space=vmem, size = 0xc00, scoped, tag = 'scratch operand']
  #allocation3 [shape = 'f32[16,768]{1,0:T(8,128)}', space=vmem, size = 0xc000, scoped, tag = 'scratch operand']
  #allocation4 [shape = 'f32[32,512]{1,0:T(8,128)}', space=vmem, size = 0x10000, scoped, tag = 'scratch operand']
  %s0 = inlined_call_operand.vmem [shape: f32[9,512], index: 0, kind: input, shape index: {}]
  %s1 = inlined_call_operand.vmem [shape: f32[1,512], index: 1, kind: input, shape index: {}]
  %s2 = inlined_call_operand.vmem [shape: f32[16,9], index: 2, kind: input, shape index: {}]
  %s3 = inlined_call_operand.vmem [shape: f32[16,1], index: 3, kind: input, shape index: {}]
  %s4 = inlined_call_operand.vmem [shape: f32[32,144], index: 4, kind: input, shape index: {}]
  %s5 = inlined_call_operand.vmem [shape: f32[32,1], index: 5, kind: input, shape index: {}]
  %s6 = inlined_call_operand.vmem [shape: f32[32,10,256], index: 6, kind: input, shape index: {}]
  %s7 = inlined_call_operand.vmem [shape: f32[1,10], index: 7, kind: input, shape index: {}]
  %s8 = inlined_call_operand.hbm [shape: f32[2,10], index: 8, kind: output, shape index: {}]
  %s9 = sld [smem:[#allocation0]]
  $region42: #{cnn_network1_forward.1} parent=0
    _
  %s11 = ssub.s32 1, %s9
  %s12 = scalar_select 0, %s11, %s9
  $region1: #{cnn_network1_forward.1} parent=0
    #allocation5 [shape = 'u8[1024]{0}', space=vmem, size = 0x400, scoped, tag = 'output window, operand 0, single buffered']
    #allocation6 [shape = 's32[1]{0}', space=sflag, size = 0x4, scoped, tag = 'scoped memory for cnn_network1_forward.1']
    %13 = vsyncpa [#allocation6], 0
    // Predicated region
    $region2: #{cnn_network1_forward.1} parent=1 // pred_check
      _
    $region3: #{cnn_network1_forward.1} parent=1 // pred_check_branch
      %15 = sbr.rel (0) target = $region5
    $region4: #{cnn_network1_forward.1} parent=1 // pred_region
      _
    $region5: #{cnn_network1_forward.1} parent=1 // pred_fallthru
      _
    // Predicated region
    $region6: #{cnn_network1_forward.1} parent=1 // pred_check
      _
    $region7: #{cnn_network1_forward.1} parent=1 // pred_check_branch
      %17 = sbr.rel (0) target = $region9
    $region8: #{cnn_network1_forward.1} parent=1 // pred_region
      _
    $region9: #{cnn_network1_forward.1} parent=1 // pred_fallthru
      _
    // Predicated region
    $region10: #{cnn_network1_forward.1} parent=1 // pred_check
      _
    $region11: #{cnn_network1_forward.1} parent=1 // pred_check_branch
      %19 = sbr.rel (0) target = $region13
    $region12: #{cnn_network1_forward.1} parent=1 // pred_region
      _
    $region13: #{cnn_network1_forward.1} parent=1 // pred_fallthru
      _
    // Predicated region
    $region14: #{cnn_network1_forward.1} parent=1 // pred_check
      _
    $region15: #{cnn_network1_forward.1} parent=1 // pred_check_branch
      %21 = sbr.rel (0) target = $region17
    $region16: #{cnn_network1_forward.1} parent=1 // pred_region
      _
    $region17: #{cnn_network1_forward.1} parent=1 // pred_fallthru
      _
    // Predicated region
    $region18: #{cnn_network1_forward.1} parent=1 // pred_check
      _
    $region19: #{cnn_network1_forward.1} parent=1 // pred_check_branch
      %23 = sbr.rel (0) target = $region21
    $region20: #{cnn_network1_forward.1} parent=1 // pred_region
      _
    $region21: #{cnn_network1_forward.1} parent=1 // pred_fallthru
      _
    // Predicated region
    $region22: #{cnn_network1_forward.1} parent=1 // pred_check
      _
    $region23: #{cnn_network1_forward.1} parent=1 // pred_check_branch
      %25 = sbr.rel (0) target = $region25
    $region24: #{cnn_network1_forward.1} parent=1 // pred_region
      _
    $region25: #{cnn_network1_forward.1} parent=1 // pred_fallthru
      _
    // Predicated region
    $region26: #{cnn_network1_forward.1} parent=1 // pred_check
      _
    $region27: #{cnn_network1_forward.1} parent=1 // pred_check_branch
      %27 = sbr.rel (0) target = $region29
    $region28: #{cnn_network1_forward.1} parent=1 // pred_region
      _
    $region29: #{cnn_network1_forward.1} parent=1 // pred_fallthru
      _
    // Predicated region
    $region30: #{cnn_network1_forward.1} parent=1 // pred_check
      _
    $region31: #{cnn_network1_forward.1} parent=1 // pred_check_branch
      %29 = sbr.rel (0) target = $region33
    $region32: #{cnn_network1_forward.1} parent=1 // pred_region
      _
    $region33: #{cnn_network1_forward.1} parent=1 // pred_fallthru
      _
    %v30 = vlaneseq
    %vm31 = vcmp.ge.s32.totalorder %v30, 0
    %vm32 = vcmp.lt.s32.totalorder %v30, 768
    %vm33 = vmand %vm31, %vm32
    %34 = vst.msk [vmem:[#allocation2] sm:$0x3f] %vm33, 0.0
    %v35 = vld [vmem:[%s1] sm:$0xf]
    %vm36 = vcmp.lt.s32.totalorder %v30, 512
    %vm37 = vmand %vm31, %vm36
    %38 = vst.msk [vmem:[#allocation2 + $0x1] sm:$0xf] %vm37, %v35
    %v39 = vld [vmem:[#allocation2] sm:$0x1f]
    %v40 = vld [vmem:[%s0] ss:$8 sm:$0xf]
    %42 = vrot.lane.b32.xlu0 %v40, 111
    %v43 = vpop.permute.xlu0 %42
    %v44 = vrot.slane %v43, 7
    %vm45 = vcmask 908288
    %v46 = vsel %vm45, %v44, %v43
    %v48 = vmul.f32 %v39, %v46
    %v49 = vld [vmem:[%s2] sm:$0xff]
    %v50 = vld [vmem:[%s2 + $0x8] sm:$0xff]
    %52 = vset.pattern.permute.xlu0 0
    %53 = vperm.xlu0 %52, %v49
    %v54 = vpop.permute.xlu0 %53
    %57 = vset.pattern.permute.xlu0 0
    %58 = vperm.xlu0 %57, %v50
    %v59 = vpop.permute.xlu0 %58
    %v62 = vlaneseq
    %v63 = vshrl.u32 %v62, 7
    %v64 = vsub.s32 0, %v63
    %v65 = vrot.slane %v48, %v64
    %v66 = vlaneseq
    %v67 = vshrl.u32 %v66, 7
    %v68 = vsub.s32 1, %v67
    %v69 = vrot.slane %v48, %v68
    %v70 = vlaneseq
    %v71 = vshrl.u32 %v70, 7
    %v72 = vsub.s32 2, %v71
    %v73 = vrot.slane %v48, %v72
    %v74 = vlaneseq
    %v75 = vshrl.u32 %v74, 7
    %v76 = vsub.s32 3, %v75
    %v77 = vrot.slane %v48, %v76
    %v78 = vlaneseq
    %v79 = vshrl.u32 %v78, 7
    %v80 = vsub.s32 4, %v79
    %v81 = vrot.slane %v48, %v80
    %v87 = vmul.f32 %v54, %v65
    %v88 = vmul.f32 %v54, %v69
    %v89 = vmul.f32 %v54, %v73
    %v90 = vmul.f32 %v54, %v77
    %v91 = vmul.f32 %v54, %v81
    %v92 = vmul.f32 %v59, %v65
    %v93 = vmul.f32 %v59, %v69
    %v94 = vmul.f32 %v59, %v73
    %v95 = vmul.f32 %v59, %v77
    %v96 = vmul.f32 %v59, %v81
    %v97 = vadd.f32 %v87, 0.0
    %v98 = vadd.f32 %v88, 0.0
    %v99 = vadd.f32 %v89, 0.0
    %v100 = vadd.f32 %v90, 0.0
    %v101 = vadd.f32 %v91, 0.0
    %v102 = vadd.f32 %v92, 0.0
    %v103 = vadd.f32 %v93, 0.0
    %v104 = vadd.f32 %v94, 0.0
    %v105 = vadd.f32 %v95, 0.0
    %v106 = vadd.f32 %v96, 0.0
    %s107 = scalar_lea.vmem %s0, 1
    %v108 = vld [vmem:[%s107] ss:$8 sm:$0xf]
    %110 = vrot.lane.b32.xlu0 %v108, 112
    %v111 = vpop.permute.xlu0 %110
    %v112 = vrot.slane %v111, 7
    %vm113 = vcmask 916480
    %v114 = vsel %vm113, %v112, %v111
    %v116 = vmul.f32 %v39, %v114
    %117 = vset.pattern.permute.xlu0 1
    %118 = vperm.xlu0 %117, %v49
    %v119 = vpop.permute.xlu0 %118
    %121 = vset.pattern.permute.xlu0 1
    %122 = vperm.xlu0 %121, %v50
    %v123 = vpop.permute.xlu0 %122
    %v126 = vlaneseq
    %v127 = vshrl.u32 %v126, 7
    %v128 = vsub.s32 0, %v127
    %v129 = vrot.slane %v116, %v128
    %v130 = vlaneseq
    %v131 = vshrl.u32 %v130, 7
    %v132 = vsub.s32 1, %v131
    %v133 = vrot.slane %v116, %v132
    %v134 = vlaneseq
    %v135 = vshrl.u32 %v134, 7
    %v136 = vsub.s32 2, %v135
    %v137 = vrot.slane %v116, %v136
    %v138 = vlaneseq
    %v139 = vshrl.u32 %v138, 7
    %v140 = vsub.s32 3, %v139
    %v141 = vrot.slane %v116, %v140
    %v142 = vlaneseq
    %v143 = vshrl.u32 %v142, 7
    %v144 = vsub.s32 4, %v143
    %v145 = vrot.slane %v116, %v144
    %v151 = vmul.f32 %v119, %v129
    %v152 = vmul.f32 %v119, %v133
    %v153 = vmul.f32 %v119, %v137
    %v154 = vmul.f32 %v119, %v141
    %v155 = vmul.f32 %v119, %v145
    %v156 = vmul.f32 %v123, %v129
    %v157 = vmul.f32 %v123, %v133
    %v158 = vmul.f32 %v123, %v137
    %v159 = vmul.f32 %v123, %v141
    %v160 = vmul.f32 %v123, %v145
    %171 = vrot.lane.b32.xlu0 %v151, 127
    %v172 = vpop.permute.xlu0 %171
    %173 = vrot.lane.b32.xlu0 %v152, 127
    %v174 = vpop.permute.xlu0 %173
    %175 = vrot.lane.b32.xlu0 %v153, 127
    %v176 = vpop.permute.xlu0 %175
    %177 = vrot.lane.b32.xlu0 %v154, 127
    %v178 = vpop.permute.xlu0 %177
    %179 = vrot.lane.b32.xlu0 %v155, 127
    %v180 = vpop.permute.xlu0 %179
    %181 = vrot.lane.b32.xlu0 %v156, 127
    %v182 = vpop.permute.xlu0 %181
    %183 = vrot.lane.b32.xlu0 %v157, 127
    %v184 = vpop.permute.xlu0 %183
    %185 = vrot.lane.b32.xlu0 %v158, 127
    %v186 = vpop.permute.xlu0 %185
    %187 = vrot.lane.b32.xlu0 %v159, 127
    %v188 = vpop.permute.xlu0 %187
    %189 = vrot.lane.b32.xlu0 %v160, 127
    %v190 = vpop.permute.xlu0 %189
    %vm191 = vcmask 1039360
    %v192 = vsel %vm191, %v172, %v174
    %v193 = vsel %vm191, %v174, %v176
    %v194 = vsel %vm191, %v176, %v178
    %v195 = vsel %vm191, %v178, %v180
    %v196 = vsel %vm191, %v182, %v184
    %v197 = vsel %vm191, %v184, %v186
    %v198 = vsel %vm191, %v186, %v188
    %v199 = vsel %vm191, %v188, %v190
    %v210 = vadd.f32 %v97, %v192
    %v211 = vadd.f32 %v98, %v193
    %v212 = vadd.f32 %v99, %v194
    %v213 = vadd.f32 %v100, %v195
    %v214 = vadd.f32 %v101, %v180
    %v215 = vadd.f32 %v102, %v196
    %v216 = vadd.f32 %v103, %v197
    %v217 = vadd.f32 %v104, %v198
    %v218 = vadd.f32 %v105, %v199
    %v219 = vadd.f32 %v106, %v190
    %s220 = scalar_lea.vmem %s0, 2
    %v221 = vld [vmem:[%s220] ss:$8 sm:$0xf]
    %223 = vrot.lane.b32.xlu0 %v221, 113
    %v224 = vpop.permute.xlu0 %223
    %v225 = vrot.slane %v224, 7
    %vm226 = vcmask 924672
    %v227 = vsel %vm226, %v225, %v224
    %v229 = vmul.f32 %v39, %v227
    %230 = vset.pattern.permute.xlu0 2
    %231 = vperm.xlu0 %230, %v49
    %v232 = vpop.permute.xlu0 %231
    %234 = vset.pattern.permute.xlu0 2
    %235 = vperm.xlu0 %234, %v50
    %v236 = vpop.permute.xlu0 %235
    %v239 = vlaneseq
    %v240 = vshrl.u32 %v239, 7
    %v241 = vsub.s32 0, %v240
    %v242 = vrot.slane %v229, %v241
    %v243 = vlaneseq
    %v244 = vshrl.u32 %v243, 7
    %v245 = vsub.s32 1, %v244
    %v246 = vrot.slane %v229, %v245
    %v247 = vlaneseq
    %v248 = vshrl.u32 %v247, 7
    %v249 = vsub.s32 2, %v248
    %v250 = vrot.slane %v229, %v249
    %v251 = vlaneseq
    %v252 = vshrl.u32 %v251, 7
    %v253 = vsub.s32 3, %v252
    %v254 = vrot.slane %v229, %v253
    %v255 = vlaneseq
    %v256 = vshrl.u32 %v255, 7
    %v257 = vsub.s32 4, %v256
    %v258 = vrot.slane %v229, %v257
    %v264 = vmul.f32 %v232, %v242
    %v265 = vmul.f32 %v232, %v246
    %v266 = vmul.f32 %v232, %v250
    %v267 = vmul.f32 %v232, %v254
    %v268 = vmul.f32 %v232, %v258
    %v269 = vmul.f32 %v236, %v242
    %v270 = vmul.f32 %v236, %v246
    %v271 = vmul.f32 %v236, %v250
    %v272 = vmul.f32 %v236, %v254
    %v273 = vmul.f32 %v236, %v258
    %284 = vrot.lane.b32.xlu0 %v264, 126
    %v285 = vpop.permute.xlu0 %284
    %286 = vrot.lane.b32.xlu0 %v265, 126
    %v287 = vpop.permute.xlu0 %286
    %288 = vrot.lane.b32.xlu0 %v266, 126
    %v289 = vpop.permute.xlu0 %288
    %290 = vrot.lane.b32.xlu0 %v267, 126
    %v291 = vpop.permute.xlu0 %290
    %292 = vrot.lane.b32.xlu0 %v268, 126
    %v293 = vpop.permute.xlu0 %292
    %294 = vrot.lane.b32.xlu0 %v269, 126
    %v295 = vpop.permute.xlu0 %294
    %296 = vrot.lane.b32.xlu0 %v270, 126
    %v297 = vpop.permute.xlu0 %296
    %298 = vrot.lane.b32.xlu0 %v271, 126
    %v299 = vpop.permute.xlu0 %298
    %300 = vrot.lane.b32.xlu0 %v272, 126
    %v301 = vpop.permute.xlu0 %300
    %302 = vrot.lane.b32.xlu0 %v273, 126
    %v303 = vpop.permute.xlu0 %302
    %vm304 = vcmask 1031168
    %v305 = vsel %vm304, %v285, %v287
    %v306 = vsel %vm304, %v287, %v289
    %v307 = vsel %vm304, %v289, %v291
    %v308 = vsel %vm304, %v291, %v293
    %v309 = vsel %vm304, %v295, %v297
    %v310 = vsel %vm304, %v297, %v299
    %v311 = vsel %vm304, %v299, %v301
    %v312 = vsel %vm304, %v301, %v303
    %v323 = vadd.f32 %v210, %v305
    %v324 = vadd.f32 %v211, %v306
    %v325 = vadd.f32 %v212, %v307
    %v326 = vadd.f32 %v213, %v308
    %v327 = vadd.f32 %v214, %v293
    %v328 = vadd.f32 %v215, %v309
    %v329 = vadd.f32 %v216, %v310
    %v330 = vadd.f32 %v217, %v311
    %v331 = vadd.f32 %v218, %v312
    %v332 = vadd.f32 %v219, %v303
    %s333 = scalar_lea.vmem %s0, 3
    %v334 = vld [vmem:[%s333] ss:$8 sm:$0xf]
    %336 = vrot.lane.b32.xlu0 %v334, 127
    %v337 = vpop.permute.xlu0 %336
    %v338 = vrot.slane %v337, 7
    %v339 = vsel %vm191, %v338, %v337
    %v341 = vmul.f32 %v39, %v339
    %342 = vset.pattern.permute.xlu0 3
    %343 = vperm.xlu0 %342, %v49
    %v344 = vpop.permute.xlu0 %343
    %346 = vset.pattern.permute.xlu0 3
    %347 = vperm.xlu0 %346, %v50
    %v348 = vpop.permute.xlu0 %347
    %v351 = vlaneseq
    %v352 = vshrl.u32 %v351, 7
    %v353 = vsub.s32 0, %v352
    %v354 = vrot.slane %v341, %v353
    %v355 = vlaneseq
    %v356 = vshrl.u32 %v355, 7
    %v357 = vsub.s32 1, %v356
    %v358 = vrot.slane %v341, %v357
    %v359 = vlaneseq
    %v360 = vshrl.u32 %v359, 7
    %v361 = vsub.s32 2, %v360
    %v362 = vrot.slane %v341, %v361
    %v363 = vlaneseq
    %v364 = vshrl.u32 %v363, 7
    %v365 = vsub.s32 3, %v364
    %v366 = vrot.slane %v341, %v365
    %v367 = vlaneseq
    %v368 = vshrl.u32 %v367, 7
    %v369 = vsub.s32 4, %v368
    %v370 = vrot.slane %v341, %v369
    %v376 = vmul.f32 %v344, %v354
    %v377 = vmul.f32 %v344, %v358
    %v378 = vmul.f32 %v344, %v362
    %v379 = vmul.f32 %v344, %v366
    %v380 = vmul.f32 %v344, %v370
    %v381 = vmul.f32 %v348, %v354
    %v382 = vmul.f32 %v348, %v358
    %v383 = vmul.f32 %v348, %v362
    %v384 = vmul.f32 %v348, %v366
    %v385 = vmul.f32 %v348, %v370
    %396 = vrot.lane.b32.xlu0 %v376, 112
    %v397 = vpop.permute.xlu0 %396
    %398 = vrot.lane.b32.xlu0 %v377, 112
    %v399 = vpop.permute.xlu0 %398
    %400 = vrot.lane.b32.xlu0 %v378, 112
    %v401 = vpop.permute.xlu0 %400
    %402 = vrot.lane.b32.xlu0 %v379, 112
    %v403 = vpop.permute.xlu0 %402
    %404 = vrot.lane.b32.xlu0 %v380, 112
    %v405 = vpop.permute.xlu0 %404
    %406 = vrot.lane.b32.xlu0 %v381, 112
    %v407 = vpop.permute.xlu0 %406
    %408 = vrot.lane.b32.xlu0 %v382, 112
    %v409 = vpop.permute.xlu0 %408
    %410 = vrot.lane.b32.xlu0 %v383, 112
    %v411 = vpop.permute.xlu0 %410
    %412 = vrot.lane.b32.xlu0 %v384, 112
    %v413 = vpop.permute.xlu0 %412
    %414 = vrot.lane.b32.xlu0 %v385, 112
    %v415 = vpop.permute.xlu0 %414
    %v416 = vsel %vm113, %v397, %v399
    %v417 = vsel %vm113, %v399, %v401
    %v418 = vsel %vm113, %v401, %v403
    %v419 = vsel %vm113, %v403, %v405
    %v420 = vsel %vm113, %v407, %v409
    %v421 = vsel %vm113, %v409, %v411
    %v422 = vsel %vm113, %v411, %v413
    %v423 = vsel %vm113, %v413, %v415
    %v434 = vadd.f32 %v323, %v416
    %v435 = vadd.f32 %v324, %v417
    %v436 = vadd.f32 %v325, %v418
    %v437 = vadd.f32 %v326, %v419
    %v438 = vadd.f32 %v327, %v405
    %v439 = vadd.f32 %v328, %v420
    %v440 = vadd.f32 %v329, %v421
    %v441 = vadd.f32 %v330, %v422
    %v442 = vadd.f32 %v331, %v423
    %v443 = vadd.f32 %v332, %v415
    %v444 = vld [vmem:[#allocation2 + $0x1] sm:$0xf]
    %s445 = scalar_lea.vmem %s0, 4
    %v446 = vld [vmem:[%s445] ss:$8 sm:$0xf]
    %v447 = vmul.f32 %v444, %v446
    %448 = vset.pattern.permute.xlu0 4
    %449 = vperm.xlu0 %448, %v49
    %v450 = vpop.permute.xlu0 %449
    %452 = vset.pattern.permute.xlu0 4
    %453 = vperm.xlu0 %452, %v50
    %v454 = vpop.permute.xlu0 %453
    %v457 = vlaneseq
    %v458 = vshrl.u32 %v457, 7
    %v459 = vsub.s32 0, %v458
    %v460 = vrot.slane %v447, %v459
    %v461 = vlaneseq
    %v462 = vshrl.u32 %v461, 7
    %v463 = vsub.s32 1, %v462
    %v464 = vrot.slane %v447, %v463
    %v465 = vlaneseq
    %v466 = vshrl.u32 %v465, 7
    %v467 = vsub.s32 2, %v466
    %v468 = vrot.slane %v447, %v467
    %v469 = vlaneseq
    %v470 = vshrl.u32 %v469, 7
    %v471 = vsub.s32 3, %v470
    %v472 = vrot.slane %v447, %v471
    %v477 = vmul.f32 %v450, %v460
    %v478 = vmul.f32 %v450, %v464
    %v479 = vmul.f32 %v450, %v468
    %v480 = vmul.f32 %v450, %v472
    %v481 = vmul.f32 %v454, %v460
    %v482 = vmul.f32 %v454, %v464
    %v483 = vmul.f32 %v454, %v468
    %v484 = vmul.f32 %v454, %v472
    %493 = vrot.lane.b32.xlu0 %v477, 111
    %v494 = vpop.permute.xlu0 %493
    %495 = vrot.lane.b32.xlu0 %v478, 111
    %v496 = vpop.permute.xlu0 %495
    %497 = vrot.lane.b32.xlu0 %v479, 111
    %v498 = vpop.permute.xlu0 %497
    %499 = vrot.lane.b32.xlu0 %v480, 111
    %v500 = vpop.permute.xlu0 %499
    %501 = vrot.lane.b32.xlu0 %v481, 111
    %v502 = vpop.permute.xlu0 %501
    %503 = vrot.lane.b32.xlu0 %v482, 111
    %v504 = vpop.permute.xlu0 %503
    %505 = vrot.lane.b32.xlu0 %v483, 111
    %v506 = vpop.permute.xlu0 %505
    %507 = vrot.lane.b32.xlu0 %v484, 111
    %v508 = vpop.permute.xlu0 %507
    %v509 = vsel %vm45, %v494, %v496
    %v510 = vsel %vm45, %v496, %v498
    %v511 = vsel %vm45, %v498, %v500
    %v512 = vsel %vm45, %v502, %v504
    %v513 = vsel %vm45, %v504, %v506
    %v514 = vsel %vm45, %v506, %v508
    %v525 = vadd.f32 %v434, %v494
    %v526 = vadd.f32 %v435, %v509
    %v527 = vadd.f32 %v436, %v510
    %v528 = vadd.f32 %v437, %v511
    %v529 = vadd.f32 %v438, %v500
    %v530 = vadd.f32 %v439, %v502
    %v531 = vadd.f32 %v440, %v512
    %v532 = vadd.f32 %v441, %v513
    %v533 = vadd.f32 %v442, %v514
    %v534 = vadd.f32 %v443, %v508
    %v535 = vld [vmem:[#allocation2 + $0x1] sm:$0x1f]
    %s536 = scalar_lea.vmem %s0, 5
    %v537 = vld [vmem:[%s536] ss:$8 sm:$0xf]
    %539 = vrot.lane.b32.xlu0 %v537, 1
    %v540 = vpop.permute.xlu0 %539
    %v541 = vrot.slane %v540, 7
    %vm542 = vcmask 7168
    %v543 = vsel %vm542, %v541, %v540
    %v545 = vmul.f32 %v535, %v543
    %546 = vset.pattern.permute.xlu0 5
    %547 = vperm.xlu0 %546, %v49
    %v548 = vpop.permute.xlu0 %547
    %550 = vset.pattern.permute.xlu0 5
    %551 = vperm.xlu0 %550, %v50
    %v552 = vpop.permute.xlu0 %551
    %v555 = vlaneseq
    %v556 = vshrl.u32 %v555, 7
    %v557 = vsub.s32 0, %v556
    %v558 = vrot.slane %v545, %v557
    %v559 = vlaneseq
    %v560 = vshrl.u32 %v559, 7
    %v561 = vsub.s32 1, %v560
    %v562 = vrot.slane %v545, %v561
    %v563 = vlaneseq
    %v564 = vshrl.u32 %v563, 7
    %v565 = vsub.s32 2, %v564
    %v566 = vrot.slane %v545, %v565
    %v567 = vlaneseq
    %v568 = vshrl.u32 %v567, 7
    %v569 = vsub.s32 3, %v568
    %v570 = vrot.slane %v545, %v569
    %v571 = vlaneseq
    %v572 = vshrl.u32 %v571, 7
    %v573 = vsub.s32 4, %v572
    %v574 = vrot.slane %v545, %v573
    %v580 = vmul.f32 %v548, %v558
    %v581 = vmul.f32 %v548, %v562
    %v582 = vmul.f32 %v548, %v566
    %v583 = vmul.f32 %v548, %v570
    %v584 = vmul.f32 %v548, %v574
    %v585 = vmul.f32 %v552, %v558
    %v586 = vmul.f32 %v552, %v562
    %v587 = vmul.f32 %v552, %v566
    %v588 = vmul.f32 %v552, %v570
    %v589 = vmul.f32 %v552, %v574
    %600 = vrot.lane.b32.xlu0 %v580, 110
    %v601 = vpop.permute.xlu0 %600
    %602 = vrot.lane.b32.xlu0 %v581, 110
    %v603 = vpop.permute.xlu0 %602
    %604 = vrot.lane.b32.xlu0 %v582, 110
    %v605 = vpop.permute.xlu0 %604
    %606 = vrot.lane.b32.xlu0 %v583, 110
    %v607 = vpop.permute.xlu0 %606
    %608 = vrot.lane.b32.xlu0 %v584, 110
    %v609 = vpop.permute.xlu0 %608
    %610 = vrot.lane.b32.xlu0 %v585, 110
    %v611 = vpop.permute.xlu0 %610
    %612 = vrot.lane.b32.xlu0 %v586, 110
    %v613 = vpop.permute.xlu0 %612
    %614 = vrot.lane.b32.xlu0 %v587, 110
    %v615 = vpop.permute.xlu0 %614
    %616 = vrot.lane.b32.xlu0 %v588, 110
    %v617 = vpop.permute.xlu0 %616
    %618 = vrot.lane.b32.xlu0 %v589, 110
    %v619 = vpop.permute.xlu0 %618
    %vm620 = vcmask 900096
    %v621 = vsel %vm620, %v601, %v603
    %v622 = vsel %vm620, %v603, %v605
    %v623 = vsel %vm620, %v605, %v607
    %v624 = vsel %vm620, %v607, %v609
    %v625 = vsel %vm620, %v611, %v613
    %v626 = vsel %vm620, %v613, %v615
    %v627 = vsel %vm620, %v615, %v617
    %v628 = vsel %vm620, %v617, %v619
    %v639 = vadd.f32 %v525, %v601
    %v640 = vadd.f32 %v526, %v621
    %v641 = vadd.f32 %v527, %v622
    %v642 = vadd.f32 %v528, %v623
    %v643 = vadd.f32 %v529, %v624
    %v644 = vadd.f32 %v530, %v611
    %v645 = vadd.f32 %v531, %v625
    %v646 = vadd.f32 %v532, %v626
    %v647 = vadd.f32 %v533, %v627
    %v648 = vadd.f32 %v534, %v628
    %s649 = scalar_lea.vmem %s0, 6
    %v650 = vld [vmem:[%s649] ss:$8 sm:$0xf]
    %652 = vrot.lane.b32.xlu0 %v650, 15
    %v653 = vpop.permute.xlu0 %652
    %v654 = vrot.slane %v653, 7
    %vm655 = vcmask 121856
    %v656 = vsel %vm655, %v654, %v653
    %v658 = vmul.f32 %v535, %v656
    %659 = vset.pattern.permute.xlu0 6
    %660 = vperm.xlu0 %659, %v49
    %v661 = vpop.permute.xlu0 %660
    %663 = vset.pattern.permute.xlu0 6
    %664 = vperm.xlu0 %663, %v50
    %v665 = vpop.permute.xlu0 %664
    %v668 = vlaneseq
    %v669 = vshrl.u32 %v668, 7
    %v670 = vsub.s32 0, %v669
    %v671 = vrot.slane %v658, %v670
    %v672 = vlaneseq
    %v673 = vshrl.u32 %v672, 7
    %v674 = vsub.s32 1, %v673
    %v675 = vrot.slane %v658, %v674
    %v676 = vlaneseq
    %v677 = vshrl.u32 %v676, 7
    %v678 = vsub.s32 2, %v677
    %v679 = vrot.slane %v658, %v678
    %v680 = vlaneseq
    %v681 = vshrl.u32 %v680, 7
    %v682 = vsub.s32 3, %v681
    %v683 = vrot.slane %v658, %v682
    %v684 = vlaneseq
    %v685 = vshrl.u32 %v684, 7
    %v686 = vsub.s32 4, %v685
    %v687 = vrot.slane %v658, %v686
    %v693 = vmul.f32 %v661, %v671
    %v694 = vmul.f32 %v661, %v675
    %v695 = vmul.f32 %v661, %v679
    %v696 = vmul.f32 %v661, %v683
    %v697 = vmul.f32 %v661, %v687
    %v698 = vmul.f32 %v665, %v671
    %v699 = vmul.f32 %v665, %v675
    %v700 = vmul.f32 %v665, %v679
    %v701 = vmul.f32 %v665, %v683
    %v702 = vmul.f32 %v665, %v687
    %713 = vrot.lane.b32.xlu0 %v693, 96
    %v714 = vpop.permute.xlu0 %713
    %715 = vrot.lane.b32.xlu0 %v694, 96
    %v716 = vpop.permute.xlu0 %715
    %717 = vrot.lane.b32.xlu0 %v695, 96
    %v718 = vpop.permute.xlu0 %717
    %719 = vrot.lane.b32.xlu0 %v696, 96
    %v720 = vpop.permute.xlu0 %719
    %721 = vrot.lane.b32.xlu0 %v697, 96
    %v722 = vpop.permute.xlu0 %721
    %723 = vrot.lane.b32.xlu0 %v698, 96
    %v724 = vpop.permute.xlu0 %723
    %725 = vrot.lane.b32.xlu0 %v699, 96
    %v726 = vpop.permute.xlu0 %725
    %727 = vrot.lane.b32.xlu0 %v700, 96
    %v728 = vpop.permute.xlu0 %727
    %729 = vrot.lane.b32.xlu0 %v701, 96
    %v730 = vpop.permute.xlu0 %729
    %731 = vrot.lane.b32.xlu0 %v702, 96
    %v732 = vpop.permute.xlu0 %731
    %vm733 = vcmask 785408
    %v734 = vsel %vm733, %v714, %v716
    %v735 = vsel %vm733, %v716, %v718
    %v736 = vsel %vm733, %v718, %v720
    %v737 = vsel %vm733, %v720, %v722
    %v738 = vsel %vm733, %v724, %v726
    %v739 = vsel %vm733, %v726, %v728
    %v740 = vsel %vm733, %v728, %v730
    %v741 = vsel %vm733, %v730, %v732
    %v752 = vadd.f32 %v639, %v714
    %v753 = vadd.f32 %v640, %v734
    %v754 = vadd.f32 %v641, %v735
    %v755 = vadd.f32 %v642, %v736
    %v756 = vadd.f32 %v643, %v737
    %v757 = vadd.f32 %v644, %v724
    %v758 = vadd.f32 %v645, %v738
    %v759 = vadd.f32 %v646, %v739
    %v760 = vadd.f32 %v647, %v740
    %v761 = vadd.f32 %v648, %v741
    %s762 = scalar_lea.vmem %s0, 7
    %v763 = vld [vmem:[%s762] ss:$8 sm:$0xf]
    %765 = vrot.lane.b32.xlu0 %v763, 16
    %v766 = vpop.permute.xlu0 %765
    %v767 = vrot.slane %v766, 7
    %vm768 = vcmask 130048
    %v769 = vsel %vm768, %v767, %v766
    %v771 = vmul.f32 %v535, %v769
    %772 = vset.pattern.permute.xlu0 7
    %773 = vperm.xlu0 %772, %v49
    %v774 = vpop.permute.xlu0 %773
    %776 = vset.pattern.permute.xlu0 7
    %777 = vperm.xlu0 %776, %v50
    %v778 = vpop.permute.xlu0 %777
    %v781 = vlaneseq
    %v782 = vshrl.u32 %v781, 7
    %v783 = vsub.s32 0, %v782
    %v784 = vrot.slane %v771, %v783
    %v785 = vlaneseq
    %v786 = vshrl.u32 %v785, 7
    %v787 = vsub.s32 1, %v786
    %v788 = vrot.slane %v771, %v787
    %v789 = vlaneseq
    %v790 = vshrl.u32 %v789, 7
    %v791 = vsub.s32 2, %v790
    %v792 = vrot.slane %v771, %v791
    %v793 = vlaneseq
    %v794 = vshrl.u32 %v793, 7
    %v795 = vsub.s32 3, %v794
    %v796 = vrot.slane %v771, %v795
    %v797 = vlaneseq
    %v798 = vshrl.u32 %v797, 7
    %v799 = vsub.s32 4, %v798
    %v800 = vrot.slane %v771, %v799
    %v806 = vmul.f32 %v774, %v784
    %v807 = vmul.f32 %v774, %v788
    %v808 = vmul.f32 %v774, %v792
    %v809 = vmul.f32 %v774, %v796
    %v810 = vmul.f32 %v774, %v800
    %v811 = vmul.f32 %v778, %v784
    %v812 = vmul.f32 %v778, %v788
    %v813 = vmul.f32 %v778, %v792
    %v814 = vmul.f32 %v778, %v796
    %v815 = vmul.f32 %v778, %v800
    %826 = vrot.lane.b32.xlu0 %v806, 95
    %v827 = vpop.permute.xlu0 %826
    %828 = vrot.lane.b32.xlu0 %v807, 95
    %v829 = vpop.permute.xlu0 %828
    %830 = vrot.lane.b32.xlu0 %v808, 95
    %v831 = vpop.permute.xlu0 %830
    %832 = vrot.lane.b32.xlu0 %v809, 95
    %v833 = vpop.permute.xlu0 %832
    %834 = vrot.lane.b32.xlu0 %v810, 95
    %v835 = vpop.permute.xlu0 %834
    %836 = vrot.lane.b32.xlu0 %v811, 95
    %v837 = vpop.permute.xlu0 %836
    %838 = vrot.lane.b32.xlu0 %v812, 95
    %v839 = vpop.permute.xlu0 %838
    %840 = vrot.lane.b32.xlu0 %v813, 95
    %v841 = vpop.permute.xlu0 %840
    %842 = vrot.lane.b32.xlu0 %v814, 95
    %v843 = vpop.permute.xlu0 %842
    %844 = vrot.lane.b32.xlu0 %v815, 95
    %v845 = vpop.permute.xlu0 %844
    %vm846 = vcmask 777216
    %v847 = vsel %vm846, %v827, %v829
    %v848 = vsel %vm846, %v829, %v831
    %v849 = vsel %vm846, %v831, %v833
    %v850 = vsel %vm846, %v833, %v835
    %v851 = vsel %vm846, %v837, %v839
    %v852 = vsel %vm846, %v839, %v841
    %v853 = vsel %vm846, %v841, %v843
    %v854 = vsel %vm846, %v843, %v845
    %v865 = vadd.f32 %v752, %v827
    %v866 = vadd.f32 %v753, %v847
    %v867 = vadd.f32 %v754, %v848
    %v868 = vadd.f32 %v755, %v849
    %v869 = vadd.f32 %v756, %v850
    %v870 = vadd.f32 %v757, %v837
    %v871 = vadd.f32 %v758, %v851
    %v872 = vadd.f32 %v759, %v852
    %v873 = vadd.f32 %v760, %v853
    %v874 = vadd.f32 %v761, %v854
    %s875 = scalar_lea.vmem %s0, 32
    %v876 = vld [vmem:[%s875] ss:$8 sm:$0xf]
    %878 = vrot.lane.b32.xlu0 %v876, 17
    %v879 = vpop.permute.xlu0 %878
    %v880 = vrot.slane %v879, 7
    %vm881 = vcmask 138240
    %v882 = vsel %vm881, %v880, %v879
    %v884 = vmul.f32 %v535, %v882
    %885 = vset.pattern.permute.xlu0 8
    %886 = vperm.xlu0 %885, %v49
    %v887 = vpop.permute.xlu0 %886
    %889 = vset.pattern.permute.xlu0 8
    %890 = vperm.xlu0 %889, %v50
    %v891 = vpop.permute.xlu0 %890
    %v894 = vlaneseq
    %v895 = vshrl.u32 %v894, 7
    %v896 = vsub.s32 0, %v895
    %v897 = vrot.slane %v884, %v896
    %v898 = vlaneseq
    %v899 = vshrl.u32 %v898, 7
    %v900 = vsub.s32 1, %v899
    %v901 = vrot.slane %v884, %v900
    %v902 = vlaneseq
    %v903 = vshrl.u32 %v902, 7
    %v904 = vsub.s32 2, %v903
    %v905 = vrot.slane %v884, %v904
    %v906 = vlaneseq
    %v907 = vshrl.u32 %v906, 7
    %v908 = vsub.s32 3, %v907
    %v909 = vrot.slane %v884, %v908
    %v910 = vlaneseq
    %v911 = vshrl.u32 %v910, 7
    %v912 = vsub.s32 4, %v911
    %v913 = vrot.slane %v884, %v912
    %v919 = vmul.f32 %v887, %v897
    %v920 = vmul.f32 %v887, %v901
    %v921 = vmul.f32 %v887, %v905
    %v922 = vmul.f32 %v887, %v909
    %v923 = vmul.f32 %v887, %v913
    %v924 = vmul.f32 %v891, %v897
    %v925 = vmul.f32 %v891, %v901
    %v926 = vmul.f32 %v891, %v905
    %v927 = vmul.f32 %v891, %v909
    %v928 = vmul.f32 %v891, %v913
    %939 = vrot.lane.b32.xlu0 %v919, 94
    %v940 = vpop.permute.xlu0 %939
    %941 = vrot.lane.b32.xlu0 %v920, 94
    %v942 = vpop.permute.xlu0 %941
    %943 = vrot.lane.b32.xlu0 %v921, 94
    %v944 = vpop.permute.xlu0 %943
    %945 = vrot.lane.b32.xlu0 %v922, 94
    %v946 = vpop.permute.xlu0 %945
    %947 = vrot.lane.b32.xlu0 %v923, 94
    %v948 = vpop.permute.xlu0 %947
    %949 = vrot.lane.b32.xlu0 %v924, 94
    %v950 = vpop.permute.xlu0 %949
    %951 = vrot.lane.b32.xlu0 %v925, 94
    %v952 = vpop.permute.xlu0 %951
    %953 = vrot.lane.b32.xlu0 %v926, 94
    %v954 = vpop.permute.xlu0 %953
    %955 = vrot.lane.b32.xlu0 %v927, 94
    %v956 = vpop.permute.xlu0 %955
    %957 = vrot.lane.b32.xlu0 %v928, 94
    %v958 = vpop.permute.xlu0 %957
    %vm959 = vcmask 769024
    %v960 = vsel %vm959, %v940, %v942
    %v961 = vsel %vm959, %v942, %v944
    %v962 = vsel %vm959, %v944, %v946
    %v963 = vsel %vm959, %v946, %v948
    %v964 = vsel %vm959, %v950, %v952
    %v965 = vsel %vm959, %v952, %v954
    %v966 = vsel %vm959, %v954, %v956
    %v967 = vsel %vm959, %v956, %v958
    %v978 = vadd.f32 %v865, %v940
    %v979 = vadd.f32 %v866, %v960
    %v980 = vadd.f32 %v867, %v961
    %v981 = vadd.f32 %v868, %v962
    %v982 = vadd.f32 %v869, %v963
    %v983 = vadd.f32 %v870, %v950
    %v984 = vadd.f32 %v871, %v964
    %v985 = vadd.f32 %v872, %v965
    %v986 = vadd.f32 %v873, %v966
    %v987 = vadd.f32 %v874, %v967
    %v988 = vld [vmem:[%s3] sm:$0xff]
    %v989 = vld [vmem:[%s3 + $0x8] sm:$0xff]
    %991 = vset.pattern.permute.xlu0 0
    %992 = vperm.xlu0 %991, %v988
    %v993 = vpop.permute.xlu0 %992
    %996 = vset.pattern.permute.xlu0 0
    %997 = vperm.xlu0 %996, %v989
    %v998 = vpop.permute.xlu0 %997
    %v1000 = vadd.f32 %v978, %v993
    %v1001 = vadd.f32 %v979, %v993
    %v1002 = vadd.f32 %v980, %v993
    %v1003 = vadd.f32 %v981, %v993
    %v1004 = vadd.f32 %v982, %v993
    %v1005 = vadd.f32 %v983, %v998
    %v1006 = vadd.f32 %v984, %v998
    %v1007 = vadd.f32 %v985, %v998
    %v1008 = vadd.f32 %v986, %v998
    %v1009 = vadd.f32 %v987, %v998
    %v1010 = vmax.f32 %v1000, 0.0
    %v1011 = vmax.f32 %v1001, 0.0
    %v1012 = vmax.f32 %v1002, 0.0
    %v1013 = vmax.f32 %v1003, 0.0
    %v1014 = vmax.f32 %v1004, 0.0
    %v1015 = vmax.f32 %v1005, 0.0
    %v1016 = vmax.f32 %v1006, 0.0
    %v1017 = vmax.f32 %v1007, 0.0
    %v1018 = vmax.f32 %v1008, 0.0
    %v1019 = vmax.f32 %v1009, 0.0
    %1020 = vst [vmem:[#allocation3] sm:$0xff] 0.0
    %1021 = vst [vmem:[#allocation3 + $0x8] sm:$0xff] 0.0
    %1022 = vst [vmem:[#allocation3 + $0x10] sm:$0xff] 0.0
    %1023 = vst [vmem:[#allocation3 + $0x18] sm:$0xff] 0.0
    %1024 = vst [vmem:[#allocation3 + $0x20] sm:$0xff] 0.0
    %1025 = vst [vmem:[#allocation3 + $0x28] sm:$0xff] 0.0
    %1026 = vst [vmem:[#allocation3 + $0x30] sm:$0xff] 0.0
    %1027 = vst [vmem:[#allocation3 + $0x38] sm:$0xff] 0.0
    %1028 = vst [vmem:[#allocation3 + $0x40] sm:$0xff] 0.0
    %1029 = vst [vmem:[#allocation3 + $0x48] sm:$0xff] 0.0
    %1030 = vst [vmem:[#allocation3 + $0x50] sm:$0xff] 0.0
    %1031 = vst [vmem:[#allocation3 + $0x58] sm:$0xff] 0.0
    %1042 = vrot.lane.b32.xlu0 %v1010, 17
    %v1043 = vpop.permute.xlu0 %1042
    %1044 = vrot.lane.b32.xlu0 %v1011, 17
    %v1045 = vpop.permute.xlu0 %1044
    %1046 = vrot.lane.b32.xlu0 %v1012, 17
    %v1047 = vpop.permute.xlu0 %1046
    %1048 = vrot.lane.b32.xlu0 %v1013, 17
    %v1049 = vpop.permute.xlu0 %1048
    %1050 = vrot.lane.b32.xlu0 %v1014, 17
    %v1051 = vpop.permute.xlu0 %1050
    %1052 = vrot.lane.b32.xlu0 %v1015, 17
    %v1053 = vpop.permute.xlu0 %1052
    %1054 = vrot.lane.b32.xlu0 %v1016, 17
    %v1055 = vpop.permute.xlu0 %1054
    %1056 = vrot.lane.b32.xlu0 %v1017, 17
    %v1057 = vpop.permute.xlu0 %1056
    %1058 = vrot.lane.b32.xlu0 %v1018, 17
    %v1059 = vpop.permute.xlu0 %1058
    %1060 = vrot.lane.b32.xlu0 %v1019, 17
    %v1061 = vpop.permute.xlu0 %1060
    %v1062 = vsel %vm881, %v1043, %v1045
    %v1063 = vsel %vm881, %v1045, %v1047
    %v1064 = vsel %vm881, %v1047, %v1049
    %v1065 = vsel %vm881, %v1049, %v1051
    %v1066 = vsel %vm881, %v1053, %v1055
    %v1067 = vsel %vm881, %v1055, %v1057
    %v1068 = vsel %vm881, %v1057, %v1059
    %v1069 = vsel %vm881, %v1059, %v1061
    %1078 = vst [vmem:[#allocation3 + $0x8] sm:$0xff] %v1062
    %1079 = vst [vmem:[#allocation3 + $0x10] sm:$0xff] %v1063
    %1080 = vst [vmem:[#allocation3 + $0x18] sm:$0xff] %v1064
    %1081 = vst [vmem:[#allocation3 + $0x20] sm:$0xff] %v1065
    %1082 = vst [vmem:[#allocation3 + $0x38] sm:$0xff] %v1066
    %1083 = vst [vmem:[#allocation3 + $0x40] sm:$0xff] %v1067
    %1084 = vst [vmem:[#allocation3 + $0x48] sm:$0xff] %v1068
    %1085 = vst [vmem:[#allocation3 + $0x50] sm:$0xff] %v1069
    %v1086 = vld [vmem:[#allocation3] sm:$0xff]
    %v1087 = vld [vmem:[#allocation3 + $0x8] sm:$0xff]
    %v1088 = vld [vmem:[#allocation3 + $0x10] sm:$0xff]
    %v1089 = vld [vmem:[#allocation3 + $0x18] sm:$0xff]
    %v1090 = vld [vmem:[#allocation3 + $0x20] sm:$0xff]
    %v1091 = vld [vmem:[#allocation3 + $0x30] sm:$0xff]
    %v1092 = vld [vmem:[#allocation3 + $0x38] sm:$0xff]
    %v1093 = vld [vmem:[#allocation3 + $0x40] sm:$0xff]
    %v1094 = vld [vmem:[#allocation3 + $0x48] sm:$0xff]
    %v1095 = vld [vmem:[#allocation3 + $0x50] sm:$0xff]
    %v1096 = vld [vmem:[%s0] ss:$8 sm:$0xf]
    %v1098 = vlaneseq
    %v1099 = vshrl.u32 %v1098, 7
    %v1100 = vsub.s32 0, %v1099
    %v1101 = vrot.slane %v1096, %v1100
    %v1102 = vlaneseq
    %v1103 = vshrl.u32 %v1102, 7
    %v1104 = vsub.s32 1, %v1103
    %v1105 = vrot.slane %v1096, %v1104
    %v1106 = vlaneseq
    %v1107 = vshrl.u32 %v1106, 7
    %v1108 = vsub.s32 2, %v1107
    %v1109 = vrot.slane %v1096, %v1108
    %v1110 = vlaneseq
    %v1111 = vshrl.u32 %v1110, 7
    %v1112 = vsub.s32 3, %v1111
    %v1113 = vrot.slane %v1096, %v1112
    %1114 = vrot.lane.b32.xlu0 %v1101, 111
    %v1115 = vpop.permute.xlu0 %1114
    %1116 = vrot.lane.b32.xlu0 %v1105, 111
    %v1117 = vpop.permute.xlu0 %1116
    %1118 = vrot.lane.b32.xlu0 %v1109, 111
    %v1119 = vpop.permute.xlu0 %1118
    %1120 = vrot.lane.b32.xlu0 %v1113, 111
    %v1121 = vpop.permute.xlu0 %1120
    %v1122 = vsel %vm45, %v1115, %v1117
    %v1123 = vsel %vm45, %v1117, %v1119
    %v1124 = vsel %vm45, %v1119, %v1121
    %v1130 = vmul.f32 %v1086, %v1115
    %v1131 = vmul.f32 %v1087, %v1122
    %v1132 = vmul.f32 %v1088, %v1123
    %v1133 = vmul.f32 %v1089, %v1124
    %v1134 = vmul.f32 %v1090, %v1121
    %v1135 = vmul.f32 %v1091, %v1115
    %v1136 = vmul.f32 %v1092, %v1122
    %v1137 = vmul.f32 %v1093, %v1123
    %v1138 = vmul.f32 %v1094, %v1124
    %v1139 = vmul.f32 %v1095, %v1121
    %v1140 = vld [vmem:[%s107] ss:$8 sm:$0xf]
    %v1142 = vlaneseq
    %v1143 = vshrl.u32 %v1142, 7
    %v1144 = vsub.s32 0, %v1143
    %v1145 = vrot.slane %v1140, %v1144
    %v1146 = vlaneseq
    %v1147 = vshrl.u32 %v1146, 7
    %v1148 = vsub.s32 1, %v1147
    %v1149 = vrot.slane %v1140, %v1148
    %v1150 = vlaneseq
    %v1151 = vshrl.u32 %v1150, 7
    %v1152 = vsub.s32 2, %v1151
    %v1153 = vrot.slane %v1140, %v1152
    %v1154 = vlaneseq
    %v1155 = vshrl.u32 %v1154, 7
    %v1156 = vsub.s32 3, %v1155
    %v1157 = vrot.slane %v1140, %v1156
    %1158 = vrot.lane.b32.xlu0 %v1145, 112
    %v1159 = vpop.permute.xlu0 %1158
    %1160 = vrot.lane.b32.xlu0 %v1149, 112
    %v1161 = vpop.permute.xlu0 %1160
    %1162 = vrot.lane.b32.xlu0 %v1153, 112
    %v1163 = vpop.permute.xlu0 %1162
    %1164 = vrot.lane.b32.xlu0 %v1157, 112
    %v1165 = vpop.permute.xlu0 %1164
    %v1166 = vsel %vm113, %v1159, %v1161
    %v1167 = vsel %vm113, %v1161, %v1163
    %v1168 = vsel %vm113, %v1163, %v1165
    %v1174 = vmul.f32 %v1086, %v1159
    %v1175 = vmul.f32 %v1087, %v1166
    %v1176 = vmul.f32 %v1088, %v1167
    %v1177 = vmul.f32 %v1089, %v1168
    %v1178 = vmul.f32 %v1090, %v1165
    %v1179 = vmul.f32 %v1091, %v1159
    %v1180 = vmul.f32 %v1092, %v1166
    %v1181 = vmul.f32 %v1093, %v1167
    %v1182 = vmul.f32 %v1094, %v1168
    %v1183 = vmul.f32 %v1095, %v1165
    %v1184 = vld [vmem:[%s220] ss:$8 sm:$0xf]
    %v1186 = vlaneseq
    %v1187 = vshrl.u32 %v1186, 7
    %v1188 = vsub.s32 0, %v1187
    %v1189 = vrot.slane %v1184, %v1188
    %v1190 = vlaneseq
    %v1191 = vshrl.u32 %v1190, 7
    %v1192 = vsub.s32 1, %v1191
    %v1193 = vrot.slane %v1184, %v1192
    %v1194 = vlaneseq
    %v1195 = vshrl.u32 %v1194, 7
    %v1196 = vsub.s32 2, %v1195
    %v1197 = vrot.slane %v1184, %v1196
    %v1198 = vlaneseq
    %v1199 = vshrl.u32 %v1198, 7
    %v1200 = vsub.s32 3, %v1199
    %v1201 = vrot.slane %v1184, %v1200
    %1202 = vrot.lane.b32.xlu0 %v1189, 113
    %v1203 = vpop.permute.xlu0 %1202
    %1204 = vrot.lane.b32.xlu0 %v1193, 113
    %v1205 = vpop.permute.xlu0 %1204
    %1206 = vrot.lane.b32.xlu0 %v1197, 113
    %v1207 = vpop.permute.xlu0 %1206
    %1208 = vrot.lane.b32.xlu0 %v1201, 113
    %v1209 = vpop.permute.xlu0 %1208
    %v1210 = vsel %vm226, %v1203, %v1205
    %v1211 = vsel %vm226, %v1205, %v1207
    %v1212 = vsel %vm226, %v1207, %v1209
    %v1218 = vmul.f32 %v1086, %v1203
    %v1219 = vmul.f32 %v1087, %v1210
    %v1220 = vmul.f32 %v1088, %v1211
    %v1221 = vmul.f32 %v1089, %v1212
    %v1222 = vmul.f32 %v1090, %v1209
    %v1223 = vmul.f32 %v1091, %v1203
    %v1224 = vmul.f32 %v1092, %v1210
    %v1225 = vmul.f32 %v1093, %v1211
    %v1226 = vmul.f32 %v1094, %v1212
    %v1227 = vmul.f32 %v1095, %v1209
    %v1228 = vld [vmem:[%s333] ss:$8 sm:$0xf]
    %v1230 = vlaneseq
    %v1231 = vshrl.u32 %v1230, 7
    %v1232 = vsub.s32 0, %v1231
    %v1233 = vrot.slane %v1228, %v1232
    %v1234 = vlaneseq
    %v1235 = vshrl.u32 %v1234, 7
    %v1236 = vsub.s32 1, %v1235
    %v1237 = vrot.slane %v1228, %v1236
    %v1238 = vlaneseq
    %v1239 = vshrl.u32 %v1238, 7
    %v1240 = vsub.s32 2, %v1239
    %v1241 = vrot.slane %v1228, %v1240
    %v1242 = vlaneseq
    %v1243 = vshrl.u32 %v1242, 7
    %v1244 = vsub.s32 3, %v1243
    %v1245 = vrot.slane %v1228, %v1244
    %1246 = vrot.lane.b32.xlu0 %v1233, 127
    %v1247 = vpop.permute.xlu0 %1246
    %1248 = vrot.lane.b32.xlu0 %v1237, 127
    %v1249 = vpop.permute.xlu0 %1248
    %1250 = vrot.lane.b32.xlu0 %v1241, 127
    %v1251 = vpop.permute.xlu0 %1250
    %1252 = vrot.lane.b32.xlu0 %v1245, 127
    %v1253 = vpop.permute.xlu0 %1252
    %v1254 = vsel %vm191, %v1247, %v1249
    %v1255 = vsel %vm191, %v1249, %v1251
    %v1256 = vsel %vm191, %v1251, %v1253
    %v1262 = vmul.f32 %v1086, %v1247
    %v1263 = vmul.f32 %v1087, %v1254
    %v1264 = vmul.f32 %v1088, %v1255
    %v1265 = vmul.f32 %v1089, %v1256
    %v1266 = vmul.f32 %v1090, %v1253
    %v1267 = vmul.f32 %v1091, %v1247
    %v1268 = vmul.f32 %v1092, %v1254
    %v1269 = vmul.f32 %v1093, %v1255
    %v1270 = vmul.f32 %v1094, %v1256
    %v1271 = vmul.f32 %v1095, %v1253
    %v1272 = vld [vmem:[%s445] ss:$8 sm:$0xf]
    %v1274 = vlaneseq
    %v1275 = vshrl.u32 %v1274, 7
    %v1276 = vsub.s32 0, %v1275
    %v1277 = vrot.slane %v1272, %v1276
    %v1278 = vlaneseq
    %v1279 = vshrl.u32 %v1278, 7
    %v1280 = vsub.s32 1, %v1279
    %v1281 = vrot.slane %v1272, %v1280
    %v1282 = vlaneseq
    %v1283 = vshrl.u32 %v1282, 7
    %v1284 = vsub.s32 2, %v1283
    %v1285 = vrot.slane %v1272, %v1284
    %v1286 = vlaneseq
    %v1287 = vshrl.u32 %v1286, 7
    %v1288 = vsub.s32 3, %v1287
    %v1289 = vrot.slane %v1272, %v1288
    %v1294 = vmul.f32 %v1087, %v1277
    %v1295 = vmul.f32 %v1088, %v1281
    %v1296 = vmul.f32 %v1089, %v1285
    %v1297 = vmul.f32 %v1090, %v1289
    %v1298 = vmul.f32 %v1092, %v1277
    %v1299 = vmul.f32 %v1093, %v1281
    %v1300 = vmul.f32 %v1094, %v1285
    %v1301 = vmul.f32 %v1095, %v1289
    %v1302 = vld [vmem:[#allocation3 + $0x8] sm:$0xff]
    %v1303 = vld [vmem:[#allocation3 + $0x10] sm:$0xff]
    %v1304 = vld [vmem:[#allocation3 + $0x18] sm:$0xff]
    %v1305 = vld [vmem:[#allocation3 + $0x20] sm:$0xff]
    %v1306 = vld [vmem:[#allocation3 + $0x28] sm:$0xff]
    %v1307 = vld [vmem:[#allocation3 + $0x38] sm:$0xff]
    %v1308 = vld [vmem:[#allocation3 + $0x40] sm:$0xff]
    %v1309 = vld [vmem:[#allocation3 + $0x48] sm:$0xff]
    %v1310 = vld [vmem:[#allocation3 + $0x50] sm:$0xff]
    %v1311 = vld [vmem:[#allocation3 + $0x58] sm:$0xff]
    %v1312 = vld [vmem:[%s536] ss:$8 sm:$0xf]
    %v1314 = vlaneseq
    %v1315 = vshrl.u32 %v1314, 7
    %v1316 = vsub.s32 0, %v1315
    %v1317 = vrot.slane %v1312, %v1316
    %v1318 = vlaneseq
    %v1319 = vshrl.u32 %v1318, 7
    %v1320 = vsub.s32 1, %v1319
    %v1321 = vrot.slane %v1312, %v1320
    %v1322 = vlaneseq
    %v1323 = vshrl.u32 %v1322, 7
    %v1324 = vsub.s32 2, %v1323
    %v1325 = vrot.slane %v1312, %v1324
    %v1326 = vlaneseq
    %v1327 = vshrl.u32 %v1326, 7
    %v1328 = vsub.s32 3, %v1327
    %v1329 = vrot.slane %v1312, %v1328
    %1330 = vrot.lane.b32.xlu0 %v1317, 1
    %v1331 = vpop.permute.xlu0 %1330
    %1332 = vrot.lane.b32.xlu0 %v1321, 1
    %v1333 = vpop.permute.xlu0 %1332
    %1334 = vrot.lane.b32.xlu0 %v1325, 1
    %v1335 = vpop.permute.xlu0 %1334
    %1336 = vrot.lane.b32.xlu0 %v1329, 1
    %v1337 = vpop.permute.xlu0 %1336
    %v1338 = vsel %vm542, %v1331, %v1333
    %v1339 = vsel %vm542, %v1333, %v1335
    %v1340 = vsel %vm542, %v1335, %v1337
    %v1346 = vmul.f32 %v1302, %v1331
    %v1347 = vmul.f32 %v1303, %v1338
    %v1348 = vmul.f32 %v1304, %v1339
    %v1349 = vmul.f32 %v1305, %v1340
    %v1350 = vmul.f32 %v1306, %v1337
    %v1351 = vmul.f32 %v1307, %v1331
    %v1352 = vmul.f32 %v1308, %v1338
    %v1353 = vmul.f32 %v1309, %v1339
    %v1354 = vmul.f32 %v1310, %v1340
    %v1355 = vmul.f32 %v1311, %v1337
    %v1356 = vld [vmem:[%s649] ss:$8 sm:$0xf]
    %v1358 = vlaneseq
    %v1359 = vshrl.u32 %v1358, 7
    %v1360 = vsub.s32 0, %v1359
    %v1361 = vrot.slane %v1356, %v1360
    %v1362 = vlaneseq
    %v1363 = vshrl.u32 %v1362, 7
    %v1364 = vsub.s32 1, %v1363
    %v1365 = vrot.slane %v1356, %v1364
    %v1366 = vlaneseq
    %v1367 = vshrl.u32 %v1366, 7
    %v1368 = vsub.s32 2, %v1367
    %v1369 = vrot.slane %v1356, %v1368
    %v1370 = vlaneseq
    %v1371 = vshrl.u32 %v1370, 7
    %v1372 = vsub.s32 3, %v1371
    %v1373 = vrot.slane %v1356, %v1372
    %1374 = vrot.lane.b32.xlu0 %v1361, 15
    %v1375 = vpop.permute.xlu0 %1374
    %1376 = vrot.lane.b32.xlu0 %v1365, 15
    %v1377 = vpop.permute.xlu0 %1376
    %1378 = vrot.lane.b32.xlu0 %v1369, 15
    %v1379 = vpop.permute.xlu0 %1378
    %1380 = vrot.lane.b32.xlu0 %v1373, 15
    %v1381 = vpop.permute.xlu0 %1380
    %v1382 = vsel %vm655, %v1375, %v1377
    %v1383 = vsel %vm655, %v1377, %v1379
    %v1384 = vsel %vm655, %v1379, %v1381
    %v1390 = vmul.f32 %v1302, %v1375
    %v1391 = vmul.f32 %v1303, %v1382
    %v1392 = vmul.f32 %v1304, %v1383
    %v1393 = vmul.f32 %v1305, %v1384
    %v1394 = vmul.f32 %v1306, %v1381
    %v1395 = vmul.f32 %v1307, %v1375
    %v1396 = vmul.f32 %v1308, %v1382
    %v1397 = vmul.f32 %v1309, %v1383
    %v1398 = vmul.f32 %v1310, %v1384
    %v1399 = vmul.f32 %v1311, %v1381
    %v1400 = vld [vmem:[%s762] ss:$8 sm:$0xf]
    %v1402 = vlaneseq
    %v1403 = vshrl.u32 %v1402, 7
    %v1404 = vsub.s32 0, %v1403
    %v1405 = vrot.slane %v1400, %v1404
    %v1406 = vlaneseq
    %v1407 = vshrl.u32 %v1406, 7
    %v1408 = vsub.s32 1, %v1407
    %v1409 = vrot.slane %v1400, %v1408
    %v1410 = vlaneseq
    %v1411 = vshrl.u32 %v1410, 7
    %v1412 = vsub.s32 2, %v1411
    %v1413 = vrot.slane %v1400, %v1412
    %v1414 = vlaneseq
    %v1415 = vshrl.u32 %v1414, 7
    %v1416 = vsub.s32 3, %v1415
    %v1417 = vrot.slane %v1400, %v1416
    %1418 = vrot.lane.b32.xlu0 %v1405, 16
    %v1419 = vpop.permute.xlu0 %1418
    %1420 = vrot.lane.b32.xlu0 %v1409, 16
    %v1421 = vpop.permute.xlu0 %1420
    %1422 = vrot.lane.b32.xlu0 %v1413, 16
    %v1423 = vpop.permute.xlu0 %1422
    %1424 = vrot.lane.b32.xlu0 %v1417, 16
    %v1425 = vpop.permute.xlu0 %1424
    %v1426 = vsel %vm768, %v1419, %v1421
    %v1427 = vsel %vm768, %v1421, %v1423
    %v1428 = vsel %vm768, %v1423, %v1425
    %v1434 = vmul.f32 %v1302, %v1419
    %v1435 = vmul.f32 %v1303, %v1426
    %v1436 = vmul.f32 %v1304, %v1427
    %v1437 = vmul.f32 %v1305, %v1428
    %v1438 = vmul.f32 %v1306, %v1425
    %v1439 = vmul.f32 %v1307, %v1419
    %v1440 = vmul.f32 %v1308, %v1426
    %v1441 = vmul.f32 %v1309, %v1427
    %v1442 = vmul.f32 %v1310, %v1428
    %v1443 = vmul.f32 %v1311, %v1425
    %v1444 = vld [vmem:[%s875] ss:$8 sm:$0xf]
    %v1446 = vlaneseq
    %v1447 = vshrl.u32 %v1446, 7
    %v1448 = vsub.s32 0, %v1447
    %v1449 = vrot.slane %v1444, %v1448
    %v1450 = vlaneseq
    %v1451 = vshrl.u32 %v1450, 7
    %v1452 = vsub.s32 1, %v1451
    %v1453 = vrot.slane %v1444, %v1452
    %v1454 = vlaneseq
    %v1455 = vshrl.u32 %v1454, 7
    %v1456 = vsub.s32 2, %v1455
    %v1457 = vrot.slane %v1444, %v1456
    %v1458 = vlaneseq
    %v1459 = vshrl.u32 %v1458, 7
    %v1460 = vsub.s32 3, %v1459
    %v1461 = vrot.slane %v1444, %v1460
    %1462 = vrot.lane.b32.xlu0 %v1449, 17
    %v1463 = vpop.permute.xlu0 %1462
    %1464 = vrot.lane.b32.xlu0 %v1453, 17
    %v1465 = vpop.permute.xlu0 %1464
    %1466 = vrot.lane.b32.xlu0 %v1457, 17
    %v1467 = vpop.permute.xlu0 %1466
    %1468 = vrot.lane.b32.xlu0 %v1461, 17
    %v1469 = vpop.permute.xlu0 %1468
    %v1470 = vsel %vm881, %v1463, %v1465
    %v1471 = vsel %vm881, %v1465, %v1467
    %v1472 = vsel %vm881, %v1467, %v1469
    %v1478 = vmul.f32 %v1302, %v1463
    %v1479 = vmul.f32 %v1303, %v1470
    %v1480 = vmul.f32 %v1304, %v1471
    %v1481 = vmul.f32 %v1305, %v1472
    %v1482 = vmul.f32 %v1306, %v1469
    %v1483 = vmul.f32 %v1307, %v1463
    %v1484 = vmul.f32 %v1308, %v1470
    %v1485 = vmul.f32 %v1309, %v1471
    %v1486 = vmul.f32 %v1310, %v1472
    %v1487 = vmul.f32 %v1311, %v1469
    %1498 = vrot.lane.b32.xlu0 %v1174, 127
    %v1499 = vpop.permute.xlu0 %1498
    %1500 = vrot.lane.b32.xlu0 %v1175, 127
    %v1501 = vpop.permute.xlu0 %1500
    %1502 = vrot.lane.b32.xlu0 %v1176, 127
    %v1503 = vpop.permute.xlu0 %1502
    %1504 = vrot.lane.b32.xlu0 %v1177, 127
    %v1505 = vpop.permute.xlu0 %1504
    %1506 = vrot.lane.b32.xlu0 %v1178, 127
    %v1507 = vpop.permute.xlu0 %1506
    %1508 = vrot.lane.b32.xlu0 %v1179, 127
    %v1509 = vpop.permute.xlu0 %1508
    %1510 = vrot.lane.b32.xlu0 %v1180, 127
    %v1511 = vpop.permute.xlu0 %1510
    %1512 = vrot.lane.b32.xlu0 %v1181, 127
    %v1513 = vpop.permute.xlu0 %1512
    %1514 = vrot.lane.b32.xlu0 %v1182, 127
    %v1515 = vpop.permute.xlu0 %1514
    %1516 = vrot.lane.b32.xlu0 %v1183, 127
    %v1517 = vpop.permute.xlu0 %1516
    %v1518 = vsel %vm191, %v1499, %v1501
    %v1519 = vsel %vm191, %v1501, %v1503
    %v1520 = vsel %vm191, %v1503, %v1505
    %v1521 = vsel %vm191, %v1505, %v1507
    %v1522 = vsel %vm191, %v1509, %v1511
    %v1523 = vsel %vm191, %v1511, %v1513
    %v1524 = vsel %vm191, %v1513, %v1515
    %v1525 = vsel %vm191, %v1515, %v1517
    %1536 = vrot.lane.b32.xlu0 %v1218, 126
    %v1537 = vpop.permute.xlu0 %1536
    %1538 = vrot.lane.b32.xlu0 %v1219, 126
    %v1539 = vpop.permute.xlu0 %1538
    %1540 = vrot.lane.b32.xlu0 %v1220, 126
    %v1541 = vpop.permute.xlu0 %1540
    %1542 = vrot.lane.b32.xlu0 %v1221, 126
    %v1543 = vpop.permute.xlu0 %1542
    %1544 = vrot.lane.b32.xlu0 %v1222, 126
    %v1545 = vpop.permute.xlu0 %1544
    %1546 = vrot.lane.b32.xlu0 %v1223, 126
    %v1547 = vpop.permute.xlu0 %1546
    %1548 = vrot.lane.b32.xlu0 %v1224, 126
    %v1549 = vpop.permute.xlu0 %1548
    %1550 = vrot.lane.b32.xlu0 %v1225, 126
    %v1551 = vpop.permute.xlu0 %1550
    %1552 = vrot.lane.b32.xlu0 %v1226, 126
    %v1553 = vpop.permute.xlu0 %1552
    %1554 = vrot.lane.b32.xlu0 %v1227, 126
    %v1555 = vpop.permute.xlu0 %1554
    %v1556 = vsel %vm304, %v1537, %v1539
    %v1557 = vsel %vm304, %v1539, %v1541
    %v1558 = vsel %vm304, %v1541, %v1543
    %v1559 = vsel %vm304, %v1543, %v1545
    %v1560 = vsel %vm304, %v1547, %v1549
    %v1561 = vsel %vm304, %v1549, %v1551
    %v1562 = vsel %vm304, %v1551, %v1553
    %v1563 = vsel %vm304, %v1553, %v1555
    %1574 = vrot.lane.b32.xlu0 %v1262, 112
    %v1575 = vpop.permute.xlu0 %1574
    %1576 = vrot.lane.b32.xlu0 %v1263, 112
    %v1577 = vpop.permute.xlu0 %1576
    %1578 = vrot.lane.b32.xlu0 %v1264, 112
    %v1579 = vpop.permute.xlu0 %1578
    %1580 = vrot.lane.b32.xlu0 %v1265, 112
    %v1581 = vpop.permute.xlu0 %1580
    %1582 = vrot.lane.b32.xlu0 %v1266, 112
    %v1583 = vpop.permute.xlu0 %1582
    %1584 = vrot.lane.b32.xlu0 %v1267, 112
    %v1585 = vpop.permute.xlu0 %1584
    %1586 = vrot.lane.b32.xlu0 %v1268, 112
    %v1587 = vpop.permute.xlu0 %1586
    %1588 = vrot.lane.b32.xlu0 %v1269, 112
    %v1589 = vpop.permute.xlu0 %1588
    %1590 = vrot.lane.b32.xlu0 %v1270, 112
    %v1591 = vpop.permute.xlu0 %1590
    %1592 = vrot.lane.b32.xlu0 %v1271, 112
    %v1593 = vpop.permute.xlu0 %1592
    %v1594 = vsel %vm113, %v1575, %v1577
    %v1595 = vsel %vm113, %v1577, %v1579
    %v1596 = vsel %vm113, %v1579, %v1581
    %v1597 = vsel %vm113, %v1581, %v1583
    %v1598 = vsel %vm113, %v1585, %v1587
    %v1599 = vsel %vm113, %v1587, %v1589
    %v1600 = vsel %vm113, %v1589, %v1591
    %v1601 = vsel %vm113, %v1591, %v1593
    %1610 = vrot.lane.b32.xlu0 %v1294, 111
    %v1611 = vpop.permute.xlu0 %1610
    %1612 = vrot.lane.b32.xlu0 %v1295, 111
    %v1613 = vpop.permute.xlu0 %1612
    %1614 = vrot.lane.b32.xlu0 %v1296, 111
    %v1615 = vpop.permute.xlu0 %1614
    %1616 = vrot.lane.b32.xlu0 %v1297, 111
    %v1617 = vpop.permute.xlu0 %1616
    %1618 = vrot.lane.b32.xlu0 %v1298, 111
    %v1619 = vpop.permute.xlu0 %1618
    %1620 = vrot.lane.b32.xlu0 %v1299, 111
    %v1621 = vpop.permute.xlu0 %1620
    %1622 = vrot.lane.b32.xlu0 %v1300, 111
    %v1623 = vpop.permute.xlu0 %1622
    %1624 = vrot.lane.b32.xlu0 %v1301, 111
    %v1625 = vpop.permute.xlu0 %1624
    %v1626 = vsel %vm45, %v1611, %v1613
    %v1627 = vsel %vm45, %v1613, %v1615
    %v1628 = vsel %vm45, %v1615, %v1617
    %v1629 = vsel %vm45, %v1619, %v1621
    %v1630 = vsel %vm45, %v1621, %v1623
    %v1631 = vsel %vm45, %v1623, %v1625
    %1642 = vrot.lane.b32.xlu0 %v1346, 110
    %v1643 = vpop.permute.xlu0 %1642
    %1644 = vrot.lane.b32.xlu0 %v1347, 110
    %v1645 = vpop.permute.xlu0 %1644
    %1646 = vrot.lane.b32.xlu0 %v1348, 110
    %v1647 = vpop.permute.xlu0 %1646
    %1648 = vrot.lane.b32.xlu0 %v1349, 110
    %v1649 = vpop.permute.xlu0 %1648
    %1650 = vrot.lane.b32.xlu0 %v1350, 110
    %v1651 = vpop.permute.xlu0 %1650
    %1652 = vrot.lane.b32.xlu0 %v1351, 110
    %v1653 = vpop.permute.xlu0 %1652
    %1654 = vrot.lane.b32.xlu0 %v1352, 110
    %v1655 = vpop.permute.xlu0 %1654
    %1656 = vrot.lane.b32.xlu0 %v1353, 110
    %v1657 = vpop.permute.xlu0 %1656
    %1658 = vrot.lane.b32.xlu0 %v1354, 110
    %v1659 = vpop.permute.xlu0 %1658
    %1660 = vrot.lane.b32.xlu0 %v1355, 110
    %v1661 = vpop.permute.xlu0 %1660
    %v1662 = vsel %vm620, %v1643, %v1645
    %v1663 = vsel %vm620, %v1645, %v1647
    %v1664 = vsel %vm620, %v1647, %v1649
    %v1665 = vsel %vm620, %v1649, %v1651
    %v1666 = vsel %vm620, %v1653, %v1655
    %v1667 = vsel %vm620, %v1655, %v1657
    %v1668 = vsel %vm620, %v1657, %v1659
    %v1669 = vsel %vm620, %v1659, %v1661
    %1680 = vrot.lane.b32.xlu0 %v1390, 96
    %v1681 = vpop.permute.xlu0 %1680
    %1682 = vrot.lane.b32.xlu0 %v1391, 96
    %v1683 = vpop.permute.xlu0 %1682
    %1684 = vrot.lane.b32.xlu0 %v1392, 96
    %v1685 = vpop.permute.xlu0 %1684
    %1686 = vrot.lane.b32.xlu0 %v1393, 96
    %v1687 = vpop.permute.xlu0 %1686
    %1688 = vrot.lane.b32.xlu0 %v1394, 96
    %v1689 = vpop.permute.xlu0 %1688
    %1690 = vrot.lane.b32.xlu0 %v1395, 96
    %v1691 = vpop.permute.xlu0 %1690
    %1692 = vrot.lane.b32.xlu0 %v1396, 96
    %v1693 = vpop.permute.xlu0 %1692
    %1694 = vrot.lane.b32.xlu0 %v1397, 96
    %v1695 = vpop.permute.xlu0 %1694
    %1696 = vrot.lane.b32.xlu0 %v1398, 96
    %v1697 = vpop.permute.xlu0 %1696
    %1698 = vrot.lane.b32.xlu0 %v1399, 96
    %v1699 = vpop.permute.xlu0 %1698
    %v1700 = vsel %vm733, %v1681, %v1683
    %v1701 = vsel %vm733, %v1683, %v1685
    %v1702 = vsel %vm733, %v1685, %v1687
    %v1703 = vsel %vm733, %v1687, %v1689
    %v1704 = vsel %vm733, %v1691, %v1693
    %v1705 = vsel %vm733, %v1693, %v1695
    %v1706 = vsel %vm733, %v1695, %v1697
    %v1707 = vsel %vm733, %v1697, %v1699
    %1718 = vrot.lane.b32.xlu0 %v1434, 95
    %v1719 = vpop.permute.xlu0 %1718
    %1720 = vrot.lane.b32.xlu0 %v1435, 95
    %v1721 = vpop.permute.xlu0 %1720
    %1722 = vrot.lane.b32.xlu0 %v1436, 95
    %v1723 = vpop.permute.xlu0 %1722
    %1724 = vrot.lane.b32.xlu0 %v1437, 95
    %v1725 = vpop.permute.xlu0 %1724
    %1726 = vrot.lane.b32.xlu0 %v1438, 95
    %v1727 = vpop.permute.xlu0 %1726
    %1728 = vrot.lane.b32.xlu0 %v1439, 95
    %v1729 = vpop.permute.xlu0 %1728
    %1730 = vrot.lane.b32.xlu0 %v1440, 95
    %v1731 = vpop.permute.xlu0 %1730
    %1732 = vrot.lane.b32.xlu0 %v1441, 95
    %v1733 = vpop.permute.xlu0 %1732
    %1734 = vrot.lane.b32.xlu0 %v1442, 95
    %v1735 = vpop.permute.xlu0 %1734
    %1736 = vrot.lane.b32.xlu0 %v1443, 95
    %v1737 = vpop.permute.xlu0 %1736
    %v1738 = vsel %vm846, %v1719, %v1721
    %v1739 = vsel %vm846, %v1721, %v1723
    %v1740 = vsel %vm846, %v1723, %v1725
    %v1741 = vsel %vm846, %v1725, %v1727
    %v1742 = vsel %vm846, %v1729, %v1731
    %v1743 = vsel %vm846, %v1731, %v1733
    %v1744 = vsel %vm846, %v1733, %v1735
    %v1745 = vsel %vm846, %v1735, %v1737
    %1756 = vrot.lane.b32.xlu0 %v1478, 94
    %v1757 = vpop.permute.xlu0 %1756
    %1758 = vrot.lane.b32.xlu0 %v1479, 94
    %v1759 = vpop.permute.xlu0 %1758
    %1760 = vrot.lane.b32.xlu0 %v1480, 94
    %v1761 = vpop.permute.xlu0 %1760
    %1762 = vrot.lane.b32.xlu0 %v1481, 94
    %v1763 = vpop.permute.xlu0 %1762
    %1764 = vrot.lane.b32.xlu0 %v1482, 94
    %v1765 = vpop.permute.xlu0 %1764
    %1766 = vrot.lane.b32.xlu0 %v1483, 94
    %v1767 = vpop.permute.xlu0 %1766
    %1768 = vrot.lane.b32.xlu0 %v1484, 94
    %v1769 = vpop.permute.xlu0 %1768
    %1770 = vrot.lane.b32.xlu0 %v1485, 94
    %v1771 = vpop.permute.xlu0 %1770
    %1772 = vrot.lane.b32.xlu0 %v1486, 94
    %v1773 = vpop.permute.xlu0 %1772
    %1774 = vrot.lane.b32.xlu0 %v1487, 94
    %v1775 = vpop.permute.xlu0 %1774
    %v1776 = vsel %vm959, %v1757, %v1759
    %v1777 = vsel %vm959, %v1759, %v1761
    %v1778 = vsel %vm959, %v1761, %v1763
    %v1779 = vsel %vm959, %v1763, %v1765
    %v1780 = vsel %vm959, %v1767, %v1769
    %v1781 = vsel %vm959, %v1769, %v1771
    %v1782 = vsel %vm959, %v1771, %v1773
    %v1783 = vsel %vm959, %v1773, %v1775
    %v1784 = vld [vmem:[%s4] sm:$0xff]
    %v1785 = vld [vmem:[%s4 + $0x8] sm:$0xff]
    %v1786 = vld [vmem:[%s4 + $0x10] sm:$0xff]
    %v1787 = vld [vmem:[%s4 + $0x18] sm:$0xff]
    %v1788 = vld [vmem:[%s4 + $0x20] sm:$0xff]
    %v1789 = vld [vmem:[%s4 + $0x28] sm:$0xff]
    %v1790 = vld [vmem:[%s4 + $0x30] sm:$0xff]
    %v1791 = vld [vmem:[%s4 + $0x38] sm:$0xff]
    %v1792 = vld [vmem:[%s5] sm:$0xff]
    %v1793 = vld [vmem:[%s5 + $0x8] sm:$0xff]
    %v1794 = vld [vmem:[%s5 + $0x10] sm:$0xff]
    %v1795 = vld [vmem:[%s5 + $0x18] sm:$0xff]
    %1797 = vset.pattern.permute.xlu0 0
    %1798 = vperm.xlu0 %1797, %v1792
    %v1799 = vpop.permute.xlu0 %1798
    %1802 = vset.pattern.permute.xlu0 0
    %1803 = vperm.xlu0 %1802, %v1793
    %v1804 = vpop.permute.xlu0 %1803
    %1807 = vset.pattern.permute.xlu0 0
    %1808 = vperm.xlu0 %1807, %v1794
    %v1809 = vpop.permute.xlu0 %1808
    %1812 = vset.pattern.permute.xlu0 0
    %1813 = vperm.xlu0 %1812, %v1795
    %v1814 = vpop.permute.xlu0 %1813
    %1826 = vrot.lane.b32.xlu0 %v1130, 17
    %v1827 = vpop.permute.xlu0 %1826
    %1828 = vrot.lane.b32.xlu0 %v1131, 17
    %v1829 = vpop.permute.xlu0 %1828
    %1830 = vrot.lane.b32.xlu0 %v1132, 17
    %v1831 = vpop.permute.xlu0 %1830
    %1832 = vrot.lane.b32.xlu0 %v1133, 17
    %v1833 = vpop.permute.xlu0 %1832
    %1834 = vrot.lane.b32.xlu0 %v1134, 17
    %v1835 = vpop.permute.xlu0 %1834
    %1836 = vrot.lane.b32.xlu0 %v1135, 17
    %v1837 = vpop.permute.xlu0 %1836
    %1838 = vrot.lane.b32.xlu0 %v1136, 17
    %v1839 = vpop.permute.xlu0 %1838
    %1840 = vrot.lane.b32.xlu0 %v1137, 17
    %v1841 = vpop.permute.xlu0 %1840
    %1842 = vrot.lane.b32.xlu0 %v1138, 17
    %v1843 = vpop.permute.xlu0 %1842
    %1844 = vrot.lane.b32.xlu0 %v1139, 17
    %v1845 = vpop.permute.xlu0 %1844
    %1846 = vrot.lane.b32.xlu0 %v1518, 17
    %v1847 = vpop.permute.xlu0 %1846
    %1848 = vrot.lane.b32.xlu0 %v1519, 17
    %v1849 = vpop.permute.xlu0 %1848
    %1850 = vrot.lane.b32.xlu0 %v1520, 17
    %v1851 = vpop.permute.xlu0 %1850
    %1852 = vrot.lane.b32.xlu0 %v1521, 17
    %v1853 = vpop.permute.xlu0 %1852
    %1854 = vrot.lane.b32.xlu0 %v1507, 17
    %v1855 = vpop.permute.xlu0 %1854
    %1856 = vrot.lane.b32.xlu0 %v1522, 17
    %v1857 = vpop.permute.xlu0 %1856
    %1858 = vrot.lane.b32.xlu0 %v1523, 17
    %v1859 = vpop.permute.xlu0 %1858
    %1860 = vrot.lane.b32.xlu0 %v1524, 17
    %v1861 = vpop.permute.xlu0 %1860
    %1862 = vrot.lane.b32.xlu0 %v1525, 17
    %v1863 = vpop.permute.xlu0 %1862
    %1864 = vrot.lane.b32.xlu0 %v1517, 17
    %v1865 = vpop.permute.xlu0 %1864
    %1866 = vrot.lane.b32.xlu0 %v1556, 17
    %v1867 = vpop.permute.xlu0 %1866
    %1868 = vrot.lane.b32.xlu0 %v1557, 17
    %v1869 = vpop.permute.xlu0 %1868
    %1870 = vrot.lane.b32.xlu0 %v1558, 17
    %v1871 = vpop.permute.xlu0 %1870
    %1872 = vrot.lane.b32.xlu0 %v1559, 17
    %v1873 = vpop.permute.xlu0 %1872
    %1874 = vrot.lane.b32.xlu0 %v1545, 17
    %v1875 = vpop.permute.xlu0 %1874
    %1876 = vrot.lane.b32.xlu0 %v1560, 17
    %v1877 = vpop.permute.xlu0 %1876
    %1878 = vrot.lane.b32.xlu0 %v1561, 17
    %v1879 = vpop.permute.xlu0 %1878
    %1880 = vrot.lane.b32.xlu0 %v1562, 17
    %v1881 = vpop.permute.xlu0 %1880
    %1882 = vrot.lane.b32.xlu0 %v1563, 17
    %v1883 = vpop.permute.xlu0 %1882
    %1884 = vrot.lane.b32.xlu0 %v1555, 17
    %v1885 = vpop.permute.xlu0 %1884
    %1886 = vrot.lane.b32.xlu0 %v1594, 17
    %v1887 = vpop.permute.xlu0 %1886
    %1888 = vrot.lane.b32.xlu0 %v1595, 17
    %v1889 = vpop.permute.xlu0 %1888
    %1890 = vrot.lane.b32.xlu0 %v1596, 17
    %v1891 = vpop.permute.xlu0 %1890
    %1892 = vrot.lane.b32.xlu0 %v1597, 17
    %v1893 = vpop.permute.xlu0 %1892
    %1894 = vrot.lane.b32.xlu0 %v1583, 17
    %v1895 = vpop.permute.xlu0 %1894
    %1896 = vrot.lane.b32.xlu0 %v1598, 17
    %v1897 = vpop.permute.xlu0 %1896
    %1898 = vrot.lane.b32.xlu0 %v1599, 17
    %v1899 = vpop.permute.xlu0 %1898
    %1900 = vrot.lane.b32.xlu0 %v1600, 17
    %v1901 = vpop.permute.xlu0 %1900
    %1902 = vrot.lane.b32.xlu0 %v1601, 17
    %v1903 = vpop.permute.xlu0 %1902
    %1904 = vrot.lane.b32.xlu0 %v1593, 17
    %v1905 = vpop.permute.xlu0 %1904
    %1906 = vrot.lane.b32.xlu0 %v1611, 17
    %v1907 = vpop.permute.xlu0 %1906
    %1908 = vrot.lane.b32.xlu0 %v1626, 17
    %v1909 = vpop.permute.xlu0 %1908
    %1910 = vrot.lane.b32.xlu0 %v1627, 17
    %v1911 = vpop.permute.xlu0 %1910
    %1912 = vrot.lane.b32.xlu0 %v1628, 17
    %v1913 = vpop.permute.xlu0 %1912
    %1914 = vrot.lane.b32.xlu0 %v1617, 17
    %v1915 = vpop.permute.xlu0 %1914
    %1916 = vrot.lane.b32.xlu0 %v1619, 17
    %v1917 = vpop.permute.xlu0 %1916
    %1918 = vrot.lane.b32.xlu0 %v1629, 17
    %v1919 = vpop.permute.xlu0 %1918
    %1920 = vrot.lane.b32.xlu0 %v1630, 17
    %v1921 = vpop.permute.xlu0 %1920
    %1922 = vrot.lane.b32.xlu0 %v1631, 17
    %v1923 = vpop.permute.xlu0 %1922
    %1924 = vrot.lane.b32.xlu0 %v1625, 17
    %v1925 = vpop.permute.xlu0 %1924
    %1926 = vrot.lane.b32.xlu0 %v1643, 17
    %v1927 = vpop.permute.xlu0 %1926
    %1928 = vrot.lane.b32.xlu0 %v1662, 17
    %v1929 = vpop.permute.xlu0 %1928
    %1930 = vrot.lane.b32.xlu0 %v1663, 17
    %v1931 = vpop.permute.xlu0 %1930
    %1932 = vrot.lane.b32.xlu0 %v1664, 17
    %v1933 = vpop.permute.xlu0 %1932
    %1934 = vrot.lane.b32.xlu0 %v1665, 17
    %v1935 = vpop.permute.xlu0 %1934
    %1936 = vrot.lane.b32.xlu0 %v1653, 17
    %v1937 = vpop.permute.xlu0 %1936
    %1938 = vrot.lane.b32.xlu0 %v1666, 17
    %v1939 = vpop.permute.xlu0 %1938
    %1940 = vrot.lane.b32.xlu0 %v1667, 17
    %v1941 = vpop.permute.xlu0 %1940
    %1942 = vrot.lane.b32.xlu0 %v1668, 17
    %v1943 = vpop.permute.xlu0 %1942
    %1944 = vrot.lane.b32.xlu0 %v1669, 17
    %v1945 = vpop.permute.xlu0 %1944
    %1946 = vrot.lane.b32.xlu0 %v1681, 17
    %v1947 = vpop.permute.xlu0 %1946
    %1948 = vrot.lane.b32.xlu0 %v1700, 17
    %v1949 = vpop.permute.xlu0 %1948
    %1950 = vrot.lane.b32.xlu0 %v1701, 17
    %v1951 = vpop.permute.xlu0 %1950
    %1952 = vrot.lane.b32.xlu0 %v1702, 17
    %v1953 = vpop.permute.xlu0 %1952
    %1954 = vrot.lane.b32.xlu0 %v1703, 17
    %v1955 = vpop.permute.xlu0 %1954
    %1956 = vrot.lane.b32.xlu0 %v1691, 17
    %v1957 = vpop.permute.xlu0 %1956
    %1958 = vrot.lane.b32.xlu0 %v1704, 17
    %v1959 = vpop.permute.xlu0 %1958
    %1960 = vrot.lane.b32.xlu0 %v1705, 17
    %v1961 = vpop.permute.xlu0 %1960
    %1962 = vrot.lane.b32.xlu0 %v1706, 17
    %v1963 = vpop.permute.xlu0 %1962
    %1964 = vrot.lane.b32.xlu0 %v1707, 17
    %v1965 = vpop.permute.xlu0 %1964
    %1966 = vrot.lane.b32.xlu0 %v1719, 17
    %v1967 = vpop.permute.xlu0 %1966
    %1968 = vrot.lane.b32.xlu0 %v1738, 17
    %v1969 = vpop.permute.xlu0 %1968
    %1970 = vrot.lane.b32.xlu0 %v1739, 17
    %v1971 = vpop.permute.xlu0 %1970
    %1972 = vrot.lane.b32.xlu0 %v1740, 17
    %v1973 = vpop.permute.xlu0 %1972
    %1974 = vrot.lane.b32.xlu0 %v1741, 17
    %v1975 = vpop.permute.xlu0 %1974
    %1976 = vrot.lane.b32.xlu0 %v1729, 17
    %v1977 = vpop.permute.xlu0 %1976
    %1978 = vrot.lane.b32.xlu0 %v1742, 17
    %v1979 = vpop.permute.xlu0 %1978
    %1980 = vrot.lane.b32.xlu0 %v1743, 17
    %v1981 = vpop.permute.xlu0 %1980
    %1982 = vrot.lane.b32.xlu0 %v1744, 17
    %v1983 = vpop.permute.xlu0 %1982
    %1984 = vrot.lane.b32.xlu0 %v1745, 17
    %v1985 = vpop.permute.xlu0 %1984
    %1986 = vrot.lane.b32.xlu0 %v1757, 17
    %v1987 = vpop.permute.xlu0 %1986
    %1988 = vrot.lane.b32.xlu0 %v1776, 17
    %v1989 = vpop.permute.xlu0 %1988
    %1990 = vrot.lane.b32.xlu0 %v1777, 17
    %v1991 = vpop.permute.xlu0 %1990
    %1992 = vrot.lane.b32.xlu0 %v1778, 17
    %v1993 = vpop.permute.xlu0 %1992
    %1994 = vrot.lane.b32.xlu0 %v1779, 17
    %v1995 = vpop.permute.xlu0 %1994
    %1996 = vrot.lane.b32.xlu0 %v1767, 17
    %v1997 = vpop.permute.xlu0 %1996
    %1998 = vrot.lane.b32.xlu0 %v1780, 17
    %v1999 = vpop.permute.xlu0 %1998
    %2000 = vrot.lane.b32.xlu0 %v1781, 17
    %v2001 = vpop.permute.xlu0 %2000
    %2002 = vrot.lane.b32.xlu0 %v1782, 17
    %v2003 = vpop.permute.xlu0 %2002
    %2004 = vrot.lane.b32.xlu0 %v1783, 17
    %v2005 = vpop.permute.xlu0 %2004
    %v2006 = vsel %vm881, %v1827, %v1829
    %v2007 = vsel %vm881, %v1829, %v1831
    %v2008 = vsel %vm881, %v1831, %v1833
    %v2009 = vsel %vm881, %v1833, %v1835
    %v2010 = vsel %vm881, %v1837, %v1839
    %v2011 = vsel %vm881, %v1839, %v1841
    %v2012 = vsel %vm881, %v1841, %v1843
    %v2013 = vsel %vm881, %v1843, %v1845
    %v2014 = vsel %vm881, %v1847, %v1849
    %v2015 = vsel %vm881, %v1849, %v1851
    %v2016 = vsel %vm881, %v1851, %v1853
    %v2017 = vsel %vm881, %v1853, %v1855
    %v2018 = vsel %vm881, %v1857, %v1859
    %v2019 = vsel %vm881, %v1859, %v1861
    %v2020 = vsel %vm881, %v1861, %v1863
    %v2021 = vsel %vm881, %v1863, %v1865
    %v2022 = vsel %vm881, %v1867, %v1869
    %v2023 = vsel %vm881, %v1869, %v1871
    %v2024 = vsel %vm881, %v1871, %v1873
    %v2025 = vsel %vm881, %v1873, %v1875
    %v2026 = vsel %vm881, %v1877, %v1879
    %v2027 = vsel %vm881, %v1879, %v1881
    %v2028 = vsel %vm881, %v1881, %v1883
    %v2029 = vsel %vm881, %v1883, %v1885
    %v2030 = vsel %vm881, %v1887, %v1889
    %v2031 = vsel %vm881, %v1889, %v1891
    %v2032 = vsel %vm881, %v1891, %v1893
    %v2033 = vsel %vm881, %v1893, %v1895
    %v2034 = vsel %vm881, %v1897, %v1899
    %v2035 = vsel %vm881, %v1899, %v1901
    %v2036 = vsel %vm881, %v1901, %v1903
    %v2037 = vsel %vm881, %v1903, %v1905
    %v2038 = vsel %vm881, %v1907, %v1909
    %v2039 = vsel %vm881, %v1909, %v1911
    %v2040 = vsel %vm881, %v1911, %v1913
    %v2041 = vsel %vm881, %v1913, %v1915
    %v2042 = vsel %vm881, %v1917, %v1919
    %v2043 = vsel %vm881, %v1919, %v1921
    %v2044 = vsel %vm881, %v1921, %v1923
    %v2045 = vsel %vm881, %v1923, %v1925
    %v2046 = vsel %vm881, %v1927, %v1929
    %v2047 = vsel %vm881, %v1929, %v1931
    %v2048 = vsel %vm881, %v1931, %v1933
    %v2049 = vsel %vm881, %v1933, %v1935
    %v2050 = vsel %vm881, %v1937, %v1939
    %v2051 = vsel %vm881, %v1939, %v1941
    %v2052 = vsel %vm881, %v1941, %v1943
    %v2053 = vsel %vm881, %v1943, %v1945
    %v2054 = vsel %vm881, %v1947, %v1949
    %v2055 = vsel %vm881, %v1949, %v1951
    %v2056 = vsel %vm881, %v1951, %v1953
    %v2057 = vsel %vm881, %v1953, %v1955
    %v2058 = vsel %vm881, %v1957, %v1959
    %v2059 = vsel %vm881, %v1959, %v1961
    %v2060 = vsel %vm881, %v1961, %v1963
    %v2061 = vsel %vm881, %v1963, %v1965
    %v2062 = vsel %vm881, %v1967, %v1969
    %v2063 = vsel %vm881, %v1969, %v1971
    %v2064 = vsel %vm881, %v1971, %v1973
    %v2065 = vsel %vm881, %v1973, %v1975
    %v2066 = vsel %vm881, %v1977, %v1979
    %v2067 = vsel %vm881, %v1979, %v1981
    %v2068 = vsel %vm881, %v1981, %v1983
    %v2069 = vsel %vm881, %v1983, %v1985
    %v2070 = vsel %vm881, %v1987, %v1989
    %v2071 = vsel %vm881, %v1989, %v1991
    %v2072 = vsel %vm881, %v1991, %v1993
    %v2073 = vsel %vm881, %v1993, %v1995
    %v2074 = vsel %vm881, %v1997, %v1999
    %v2075 = vsel %vm881, %v1999, %v2001
    %v2076 = vsel %vm881, %v2001, %v2003
    %v2077 = vsel %vm881, %v2003, %v2005
    %v2151 = vsel %vm768, %v1785, 0
    %v2154 = vsel %vm768, %v1787, 0
    %v2157 = vsel %vm768, %v1789, 0
    %v2160 = vsel %vm768, %v1791, 0
    %2162 = vmatprep.subr.mxu0 %v2007
    %2163 = vmatpush1.msra.mxu0 %v2006
    %2164 = vmatprep.subr.mxu0 %v2011
    %2165 = vmatpush1.msra.mxu0 %v2010
    %2166 = vmatprep.subr.mxu0 %v2015
    %2167 = vmatpush1.msra.mxu0 %v2014
    %2168 = vmatprep.subr.mxu0 %v2019
    %2169 = vmatpush1.msra.mxu0 %v2018
    %2170 = vmatprep.subr.mxu0 %v2023
    %2171 = vmatpush1.msra.mxu0 %v2022
    %2172 = vmatprep.subr.mxu0 %v2027
    %2173 = vmatpush1.msra.mxu0 %v2026
    %2174 = vmatprep.subr.mxu0 %v2031
    %2175 = vmatpush1.msra.mxu0 %v2030
    %2176 = vmatprep.subr.mxu0 %v2035
    %2177 = vmatpush1.msra.mxu0 %v2034
    %2178 = vmatprep.subr.mxu0 %v2039
    %2179 = vmatpush1.msra.mxu0 %v2038
    %2180 = vmatprep.subr.mxu0 %v2043
    %2181 = vmatpush1.msra.mxu0 %v2042
    %2182 = vmatprep.subr.mxu0 %v2047
    %2183 = vmatpush1.msra.mxu0 %v2046
    %2184 = vmatprep.subr.mxu0 %v2051
    %2185 = vmatpush1.msra.mxu0 %v2050
    %2186 = vmatprep.subr.mxu0 %v2055
    %2187 = vmatpush1.msra.mxu0 %v2054
    %2188 = vmatprep.subr.mxu0 %v2059
    %2189 = vmatpush1.msra.mxu0 %v2058
    %2190 = vmatprep.subr.mxu0 %v2063
    %2191 = vmatpush1.msra.mxu0 %v2062
    %2192 = vmatprep.subr.mxu0 %v2067
    %2193 = vmatpush1.msra.mxu0 %v2066
    %2194 = vmatprep.subr.mxu0 %v2071
    %2195 = vmatpush1.msra.mxu0 %v2070
    %2196 = vmatprep.subr.mxu0 %v2075
    %2197 = vmatpush1.msra.mxu0 %v2074
    %2198 = vmatprep.subr.mxu0 0.0
    %2199 = vmatpush1.msra.mxu0 0.0
    %2200 = vmatprep.subr.mxu0 0.0
    %2201 = vmatpush1.msra.mxu0 0.0
    %2202 = vmatprep.subr.mxu0 0.0
    %2203 = vmatpush1.msra.mxu0 0.0
    %2204 = vmatprep.subr.mxu0 0.0
    %2205 = vmatpush1.msra.mxu0 0.0
    %2206 = vmatprep.subr.mxu0 0.0
    %2207 = vmatpush1.msra.mxu0 0.0
    %2208 = vmatprep.subr.mxu0 0.0
    %2209 = vmatpush1.msra.mxu0 0.0
    %2210 = vmatprep.subr.mxu0 0.0
    %2211 = vmatpush1.msra.mxu0 0.0
    %2212 = vmatprep.subr.mxu0 0.0
    %2213 = vmatpush1.msra.mxu0 0.0
    %2214 = vmatprep.subr.mxu0 0.0
    %2215 = vmatpush1.msra.mxu0 0.0
    %2216 = vmatprep.subr.mxu0 0.0
    %2217 = vmatpush1.msra.mxu0 0.0
    %2218 = vmatprep.subr.mxu0 0.0
    %2219 = vmatpush1.msra.mxu0 0.0
    %2220 = vmatprep.subr.mxu0 0.0
    %2221 = vmatpush1.msra.mxu0 0.0
    %2222 = vmatprep.subr.mxu0 0.0
    %2223 = vmatpush1.msra.mxu0 0.0
    %2224 = vmatprep.subr.mxu0 0.0
    %2225 = vmatpush1.msra.mxu0 0.0
    %2226 = vmatprep.mubr.f32.mxu0 %v2151
    %2227 = vmatmul.mubr.f32.gmra.mrb[0].mxu0 %v1784
    %v2228 = vpop.f32.mrb[0].mxu0
    %v2229 = vadd.f32 %v1799, %v2228
    %v2230 = vpop.f32.mrb[0].mxu0
    %v2231 = vadd.f32 %v1799, %v2230
    %2232 = vmatprep.mubr.f32.mxu0 %v2154
    %2233 = vmatmul.mubr.f32.gmra.mrb[0].mxu0 %v1786
    %v2234 = vpop.f32.mrb[0].mxu0
    %v2235 = vadd.f32 %v1804, %v2234
    %v2236 = vpop.f32.mrb[0].mxu0
    %v2237 = vadd.f32 %v1804, %v2236
    %2238 = vmatprep.mubr.f32.mxu0 %v2157
    %2239 = vmatmul.mubr.f32.gmra.mrb[0].mxu0 %v1788
    %v2240 = vpop.f32.mrb[0].mxu0
    %v2241 = vadd.f32 %v1809, %v2240
    %v2242 = vpop.f32.mrb[0].mxu0
    %v2243 = vadd.f32 %v1809, %v2242
    %2244 = vmatprep.mubr.f32.mxu0 %v2160
    %2245 = vmatmul.mubr.f32.gmra.mrb[0].mxu0 %v1790
    %v2246 = vpop.f32.mrb[0].mxu0
    %v2247 = vadd.f32 %v1814, %v2246
    %v2248 = vpop.f32.mrb[0].mxu0
    %v2249 = vadd.f32 %v1814, %v2248
    %2250 = vdwg.mxu0
    %2251 = vmatprep.subr.mxu0 %v2009
    %2252 = vmatpush1.msra.mxu0 %v2008
    %2253 = vmatprep.subr.mxu0 %v2013
    %2254 = vmatpush1.msra.mxu0 %v2012
    %2255 = vmatprep.subr.mxu0 %v2017
    %2256 = vmatpush1.msra.mxu0 %v2016
    %2257 = vmatprep.subr.mxu0 %v2021
    %2258 = vmatpush1.msra.mxu0 %v2020
    %2259 = vmatprep.subr.mxu0 %v2025
    %2260 = vmatpush1.msra.mxu0 %v2024
    %2261 = vmatprep.subr.mxu0 %v2029
    %2262 = vmatpush1.msra.mxu0 %v2028
    %2263 = vmatprep.subr.mxu0 %v2033
    %2264 = vmatpush1.msra.mxu0 %v2032
    %2265 = vmatprep.subr.mxu0 %v2037
    %2266 = vmatpush1.msra.mxu0 %v2036
    %2267 = vmatprep.subr.mxu0 %v2041
    %2268 = vmatpush1.msra.mxu0 %v2040
    %2269 = vmatprep.subr.mxu0 %v2045
    %2270 = vmatpush1.msra.mxu0 %v2044
    %2271 = vmatprep.subr.mxu0 %v2049
    %2272 = vmatpush1.msra.mxu0 %v2048
    %2273 = vmatprep.subr.mxu0 %v2053
    %2274 = vmatpush1.msra.mxu0 %v2052
    %2275 = vmatprep.subr.mxu0 %v2057
    %2276 = vmatpush1.msra.mxu0 %v2056
    %2277 = vmatprep.subr.mxu0 %v2061
    %2278 = vmatpush1.msra.mxu0 %v2060
    %2279 = vmatprep.subr.mxu0 %v2065
    %2280 = vmatpush1.msra.mxu0 %v2064
    %2281 = vmatprep.subr.mxu0 %v2069
    %2282 = vmatpush1.msra.mxu0 %v2068
    %2283 = vmatprep.subr.mxu0 %v2073
    %2284 = vmatpush1.msra.mxu0 %v2072
    %2285 = vmatprep.subr.mxu0 %v2077
    %2286 = vmatpush1.msra.mxu0 %v2076
    %2287 = vmatprep.subr.mxu0 0.0
    %2288 = vmatpush1.msra.mxu0 0.0
    %2289 = vmatprep.subr.mxu0 0.0
    %2290 = vmatpush1.msra.mxu0 0.0
    %2291 = vmatprep.subr.mxu0 0.0
    %2292 = vmatpush1.msra.mxu0 0.0
    %2293 = vmatprep.subr.mxu0 0.0
    %2294 = vmatpush1.msra.mxu0 0.0
    %2295 = vmatprep.subr.mxu0 0.0
    %2296 = vmatpush1.msra.mxu0 0.0
    %2297 = vmatprep.subr.mxu0 0.0
    %2298 = vmatpush1.msra.mxu0 0.0
    %2299 = vmatprep.subr.mxu0 0.0
    %2300 = vmatpush1.msra.mxu0 0.0
    %2301 = vmatprep.subr.mxu0 0.0
    %2302 = vmatpush1.msra.mxu0 0.0
    %2303 = vmatprep.subr.mxu0 0.0
    %2304 = vmatpush1.msra.mxu0 0.0
    %2305 = vmatprep.subr.mxu0 0.0
    %2306 = vmatpush1.msra.mxu0 0.0
    %2307 = vmatprep.subr.mxu0 0.0
    %2308 = vmatpush1.msra.mxu0 0.0
    %2309 = vmatprep.subr.mxu0 0.0
    %2310 = vmatpush1.msra.mxu0 0.0
    %2311 = vmatprep.subr.mxu0 0.0
    %2312 = vmatpush1.msra.mxu0 0.0
    %2313 = vmatprep.subr.mxu0 0.0
    %2314 = vmatpush1.msra.mxu0 0.0
    %2315 = vmatprep.mubr.f32.mxu0 %v2151
    %2316 = vmatmul.mubr.f32.gmra.mrb[0].mxu0 %v1784
    %v2317 = vpop.f32.mrb[0].mxu0
    %v2318 = vadd.f32 %v1799, %v2317
    %v2319 = vpop.f32.mrb[0].mxu0
    %v2320 = vadd.f32 %v1799, %v2319
    %2321 = vmatprep.mubr.f32.mxu0 %v2154
    %2322 = vmatmul.mubr.f32.gmra.mrb[0].mxu0 %v1786
    %v2323 = vpop.f32.mrb[0].mxu0
    %v2324 = vadd.f32 %v1804, %v2323
    %v2325 = vpop.f32.mrb[0].mxu0
    %v2326 = vadd.f32 %v1804, %v2325
    %2327 = vmatprep.mubr.f32.mxu0 %v2157
    %2328 = vmatmul.mubr.f32.gmra.mrb[0].mxu0 %v1788
    %v2329 = vpop.f32.mrb[0].mxu0
    %v2330 = vadd.f32 %v1809, %v2329
    %v2331 = vpop.f32.mrb[0].mxu0
    %v2332 = vadd.f32 %v1809, %v2331
    %2333 = vmatprep.mubr.f32.mxu0 %v2160
    %2334 = vmatmul.mubr.f32.gmra.mrb[0].mxu0 %v1790
    %v2335 = vpop.f32.mrb[0].mxu0
    %v2336 = vadd.f32 %v1814, %v2335
    %v2337 = vpop.f32.mrb[0].mxu0
    %v2338 = vadd.f32 %v1814, %v2337
    %2339 = vdwg.mxu0
    %v2340 = vmax.f32 %v2229, 0.0
    %v2341 = vmax.f32 %v2231, 0.0
    %v2342 = vmax.f32 %v2318, 0.0
    %v2343 = vmax.f32 %v2320, 0.0
    %v2344 = vmax.f32 %v2235, 0.0
    %v2345 = vmax.f32 %v2237, 0.0
    %v2346 = vmax.f32 %v2324, 0.0
    %v2347 = vmax.f32 %v2326, 0.0
    %v2348 = vmax.f32 %v2241, 0.0
    %v2349 = vmax.f32 %v2243, 0.0
    %v2350 = vmax.f32 %v2330, 0.0
    %v2351 = vmax.f32 %v2332, 0.0
    %v2352 = vmax.f32 %v2247, 0.0
    %v2353 = vmax.f32 %v2249, 0.0
    %v2354 = vmax.f32 %v2336, 0.0
    %v2355 = vmax.f32 %v2338, 0.0
    %2356 = vst [vmem:[#allocation4] sm:$0xff] %v2340
    %2357 = vst [vmem:[#allocation4 + $0x8] sm:$0xff] %v2341
    %2358 = vst [vmem:[#allocation4 + $0x10] sm:$0xff] %v2342
    %2359 = vst [vmem:[#allocation4 + $0x18] sm:$0xff] %v2343
    %2360 = vst [vmem:[#allocation4 + $0x20] sm:$0xff] %v2344
    %2361 = vst [vmem:[#allocation4 + $0x28] sm:$0xff] %v2345
    %2362 = vst [vmem:[#allocation4 + $0x30] sm:$0xff] %v2346
    %2363 = vst [vmem:[#allocation4 + $0x38] sm:$0xff] %v2347
    %2364 = vst [vmem:[#allocation4 + $0x40] sm:$0xff] %v2348
    %2365 = vst [vmem:[#allocation4 + $0x48] sm:$0xff] %v2349
    %2366 = vst [vmem:[#allocation4 + $0x50] sm:$0xff] %v2350
    %2367 = vst [vmem:[#allocation4 + $0x58] sm:$0xff] %v2351
    %2368 = vst [vmem:[#allocation4 + $0x60] sm:$0xff] %v2352
    %2369 = vst [vmem:[#allocation4 + $0x68] sm:$0xff] %v2353
    %2370 = vst [vmem:[#allocation4 + $0x70] sm:$0xff] %v2354
    %2371 = vst [vmem:[#allocation4 + $0x78] sm:$0xff] %v2355
    %v2372 = vld [vmem:[#allocation4] ss:$8 sm:$0x3]
    %v2373 = vld [vmem:[%s6] sm:$0xff]
    %v2374 = vld [vmem:[%s6 + $0x8] sm:$0xff]
    %v2375 = vld [vmem:[%s6 + $0x10] sm:$0x3]
    %v2376 = vld [vmem:[%s6 + $0x18] sm:$0x3]
    %s2377 = scalar_lea.vmem [#allocation4], 1
    %v2378 = vld [vmem:[%s2377] ss:$8 sm:$0x3]
    %s2379 = scalar_lea.vmem %s6, 32
    %v2380 = vld [vmem:[%s2379] sm:$0xff]
    %v2381 = vld [vmem:[%s2379 + $0x8] sm:$0xff]
    %v2382 = vld [vmem:[%s2379 + $0x10] sm:$0x3]
    %v2383 = vld [vmem:[%s2379 + $0x18] sm:$0x3]
    %v2385 = vlaneseq
    %v2386 = vshrl.u32 %v2385, 7
    %v2387 = vsub.s32 0, %v2386
    %v2388 = vrot.slane %v2378, %v2387
    %v2389 = vlaneseq
    %v2390 = vshrl.u32 %v2389, 7
    %v2391 = vsub.s32 1, %v2390
    %v2392 = vrot.slane %v2378, %v2391
    %2395 = vmatprep.subr.mxu0 %v2381
    %2396 = vmatpush1.xpose.msra.mxu0 %v2380
    %2397 = vmatprep.subr.mxu0 %v2383
    %2398 = vmatpush1.xpose.msra.mxu0 %v2382
    %2399 = vmatprep.subr.mxu0 0.0
    %2400 = vmatpush1.xpose.msra.mxu0 0.0
    %2401 = vmatprep.subr.mxu0 0.0
    %2402 = vmatpush1.xpose.msra.mxu0 0.0
    %2403 = vmatprep.subr.mxu0 0.0
    %2404 = vmatpush1.xpose.msra.mxu0 0.0
    %2405 = vmatprep.subr.mxu0 0.0
    %2406 = vmatpush1.xpose.msra.mxu0 0.0
    %2407 = vmatprep.subr.mxu0 0.0
    %2408 = vmatpush1.xpose.msra.mxu0 0.0
    %2409 = vmatprep.subr.mxu0 0.0
    %2410 = vmatpush1.xpose.msra.mxu0 0.0
    %2411 = vmatprep.subr.mxu0 0.0
    %2412 = vmatpush1.xpose.msra.mxu0 0.0
    %2413 = vmatprep.subr.mxu0 0.0
    %2414 = vmatpush1.xpose.msra.mxu0 0.0
    %2415 = vmatprep.subr.mxu0 0.0
    %2416 = vmatpush1.xpose.msra.mxu0 0.0
    %2417 = vmatprep.subr.mxu0 0.0
    %2418 = vmatpush1.xpose.msra.mxu0 0.0
    %2419 = vmatprep.subr.mxu0 0.0
    %2420 = vmatpush1.xpose.msra.mxu0 0.0
    %2421 = vmatprep.subr.mxu0 0.0
    %2422 = vmatpush1.xpose.msra.mxu0 0.0
    %2423 = vmatprep.subr.mxu0 0.0
    %2424 = vmatpush1.xpose.msra.mxu0 0.0
    %2425 = vmatprep.subr.mxu0 0.0
    %2426 = vmatpush1.xpose.msra.mxu0 0.0
    %2427 = vmatprep.subr.mxu0 0.0
    %2428 = vmatpush1.xpose.msra.mxu0 0.0
    %2429 = vmatprep.subr.mxu0 0.0
    %2430 = vmatpush1.xpose.msra.mxu0 0.0
    %2431 = vmatprep.subr.mxu0 0.0
    %2432 = vmatpush1.xpose.msra.mxu0 0.0
    %2433 = vmatprep.subr.mxu0 0.0
    %2434 = vmatpush1.xpose.msra.mxu0 0.0
    %2435 = vmatprep.subr.mxu0 0.0
    %2436 = vmatpush1.xpose.msra.mxu0 0.0
    %2437 = vmatprep.subr.mxu0 0.0
    %2438 = vmatpush1.xpose.msra.mxu0 0.0
    %2439 = vmatprep.subr.mxu0 0.0
    %2440 = vmatpush1.xpose.msra.mxu0 0.0
    %2441 = vmatprep.subr.mxu0 0.0
    %2442 = vmatpush1.xpose.msra.mxu0 0.0
    %2443 = vmatprep.subr.mxu0 0.0
    %2444 = vmatpush1.xpose.msra.mxu0 0.0
    %2445 = vmatprep.subr.mxu0 0.0
    %2446 = vmatpush1.xpose.msra.mxu0 0.0
    %2447 = vmatprep.subr.mxu0 0.0
    %2448 = vmatpush1.xpose.msra.mxu0 0.0
    %2449 = vmatprep.subr.mxu0 0.0
    %2450 = vmatpush1.xpose.msra.mxu0 0.0
    %2451 = vmatprep.subr.mxu0 0.0
    %2452 = vmatpush1.xpose.msra.mxu0 0.0
    %2453 = vmatprep.subr.mxu0 0.0
    %2454 = vmatpush1.xpose.msra.mxu0 0.0
    %2455 = vmatprep.subr.mxu0 0.0
    %2456 = vmatpush1.xpose.msra.mxu0 0.0
    %2457 = vmatprep.subr.mxu0 0.0
    %2458 = vmatpush1.xpose.msra.mxu0 0.0
    %2459 = vmatprep.mubr.f32.mxu0 %v2392
    %2460 = vmatmul.mubr.f32.gmra.mrb[0].mxu0 %v2388
    %v2461 = vpop.f32.mrb[0].mxu0
    %v2462 = vadd.f32 0.0, %v2461
    %v2463 = vpop.f32.mrb[0].mxu0
    %2464 = vdwg.mxu0
    %v2466 = vlaneseq
    %v2467 = vshrl.u32 %v2466, 7
    %v2468 = vsub.s32 0, %v2467
    %v2469 = vrot.slane %v2372, %v2468
    %v2470 = vlaneseq
    %v2471 = vshrl.u32 %v2470, 7
    %v2472 = vsub.s32 1, %v2471
    %v2473 = vrot.slane %v2372, %v2472
    %2476 = vmatprep.subr.mxu0 %v2374
    %2477 = vmatpush1.xpose.msra.mxu0 %v2373
    %2478 = vmatprep.subr.mxu0 %v2376
    %2479 = vmatpush1.xpose.msra.mxu0 %v2375
    %2480 = vmatprep.subr.mxu0 0.0
    %2481 = vmatpush1.xpose.msra.mxu0 0.0
    %2482 = vmatprep.subr.mxu0 0.0
    %2483 = vmatpush1.xpose.msra.mxu0 0.0
    %2484 = vmatprep.subr.mxu0 0.0
    %2485 = vmatpush1.xpose.msra.mxu0 0.0
    %2486 = vmatprep.subr.mxu0 0.0
    %2487 = vmatpush1.xpose.msra.mxu0 0.0
    %2488 = vmatprep.subr.mxu0 0.0
    %2489 = vmatpush1.xpose.msra.mxu0 0.0
    %2490 = vmatprep.subr.mxu0 0.0
    %2491 = vmatpush1.xpose.msra.mxu0 0.0
    %2492 = vmatprep.subr.mxu0 0.0
    %2493 = vmatpush1.xpose.msra.mxu0 0.0
    %2494 = vmatprep.subr.mxu0 0.0
    %2495 = vmatpush1.xpose.msra.mxu0 0.0
    %2496 = vmatprep.subr.mxu0 0.0
    %2497 = vmatpush1.xpose.msra.mxu0 0.0
    %2498 = vmatprep.subr.mxu0 0.0
    %2499 = vmatpush1.xpose.msra.mxu0 0.0
    %2500 = vmatprep.subr.mxu0 0.0
    %2501 = vmatpush1.xpose.msra.mxu0 0.0
    %2502 = vmatprep.subr.mxu0 0.0
    %2503 = vmatpush1.xpose.msra.mxu0 0.0
    %2504 = vmatprep.subr.mxu0 0.0
    %2505 = vmatpush1.xpose.msra.mxu0 0.0
    %2506 = vmatprep.subr.mxu0 0.0
    %2507 = vmatpush1.xpose.msra.mxu0 0.0
    %2508 = vmatprep.subr.mxu0 0.0
    %2509 = vmatpush1.xpose.msra.mxu0 0.0
    %2510 = vmatprep.subr.mxu0 0.0
    %2511 = vmatpush1.xpose.msra.mxu0 0.0
    %2512 = vmatprep.subr.mxu0 0.0
    %2513 = vmatpush1.xpose.msra.mxu0 0.0
    %2514 = vmatprep.subr.mxu0 0.0
    %2515 = vmatpush1.xpose.msra.mxu0 0.0
    %2516 = vmatprep.subr.mxu0 0.0
    %2517 = vmatpush1.xpose.msra.mxu0 0.0
    %2518 = vmatprep.subr.mxu0 0.0
    %2519 = vmatpush1.xpose.msra.mxu0 0.0
    %2520 = vmatprep.subr.mxu0 0.0
    %2521 = vmatpush1.xpose.msra.mxu0 0.0
    %2522 = vmatprep.subr.mxu0 0.0
    %2523 = vmatpush1.xpose.msra.mxu0 0.0
    %2524 = vmatprep.subr.mxu0 0.0
    %2525 = vmatpush1.xpose.msra.mxu0 0.0
    %2526 = vmatprep.subr.mxu0 0.0
    %2527 = vmatpush1.xpose.msra.mxu0 0.0
    %2528 = vmatprep.subr.mxu0 0.0
    %2529 = vmatpush1.xpose.msra.mxu0 0.0
    %2530 = vmatprep.subr.mxu0 0.0
    %2531 = vmatpush1.xpose.msra.mxu0 0.0
    %2532 = vmatprep.subr.mxu0 0.0
    %2533 = vmatpush1.xpose.msra.mxu0 0.0
    %2534 = vmatprep.subr.mxu0 0.0
    %2535 = vmatpush1.xpose.msra.mxu0 0.0
    %2536 = vmatprep.subr.mxu0 0.0
    %2537 = vmatpush1.xpose.msra.mxu0 0.0
    %2538 = vmatprep.subr.mxu0 0.0
    %2539 = vmatpush1.xpose.msra.mxu0 0.0
    %2540 = vmatprep.mubr.f32.mxu0 %v2473
    %2541 = vmatmul.mubr.f32.gmra.mrb[0].mxu0 %v2469
    %v2542 = vpop.f32.mrb[0].mxu0
    %v2543 = vadd.f32 %v2462, %v2542
    %v2544 = vpop.f32.mrb[0].mxu0
    %2545 = vdwg.mxu0
    %s2546 = scalar_lea.vmem [#allocation4], 2
    %v2547 = vld [vmem:[%s2546] ss:$8 sm:$0x3]
    %s2548 = scalar_lea.vmem %s6, 64
    %v2549 = vld [vmem:[%s2548] sm:$0xff]
    %v2550 = vld [vmem:[%s2548 + $0x8] sm:$0xff]
    %v2551 = vld [vmem:[%s2548 + $0x10] sm:$0x3]
    %v2552 = vld [vmem:[%s2548 + $0x18] sm:$0x3]
    %v2554 = vlaneseq
    %v2555 = vshrl.u32 %v2554, 7
    %v2556 = vsub.s32 0, %v2555
    %v2557 = vrot.slane %v2547, %v2556
    %v2558 = vlaneseq
    %v2559 = vshrl.u32 %v2558, 7
    %v2560 = vsub.s32 1, %v2559
    %v2561 = vrot.slane %v2547, %v2560
    %2564 = vmatprep.subr.mxu0 %v2550
    %2565 = vmatpush1.xpose.msra.mxu0 %v2549
    %2566 = vmatprep.subr.mxu0 %v2552
    %2567 = vmatpush1.xpose.msra.mxu0 %v2551
    %2568 = vmatprep.subr.mxu0 0.0
    %2569 = vmatpush1.xpose.msra.mxu0 0.0
    %2570 = vmatprep.subr.mxu0 0.0
    %2571 = vmatpush1.xpose.msra.mxu0 0.0
    %2572 = vmatprep.subr.mxu0 0.0
    %2573 = vmatpush1.xpose.msra.mxu0 0.0
    %2574 = vmatprep.subr.mxu0 0.0
    %2575 = vmatpush1.xpose.msra.mxu0 0.0
    %2576 = vmatprep.subr.mxu0 0.0
    %2577 = vmatpush1.xpose.msra.mxu0 0.0
    %2578 = vmatprep.subr.mxu0 0.0
    %2579 = vmatpush1.xpose.msra.mxu0 0.0
    %2580 = vmatprep.subr.mxu0 0.0
    %2581 = vmatpush1.xpose.msra.mxu0 0.0
    %2582 = vmatprep.subr.mxu0 0.0
    %2583 = vmatpush1.xpose.msra.mxu0 0.0
    %2584 = vmatprep.subr.mxu0 0.0
    %2585 = vmatpush1.xpose.msra.mxu0 0.0
    %2586 = vmatprep.subr.mxu0 0.0
    %2587 = vmatpush1.xpose.msra.mxu0 0.0
    %2588 = vmatprep.subr.mxu0 0.0
    %2589 = vmatpush1.xpose.msra.mxu0 0.0
    %2590 = vmatprep.subr.mxu0 0.0
    %2591 = vmatpush1.xpose.msra.mxu0 0.0
    %2592 = vmatprep.subr.mxu0 0.0
    %2593 = vmatpush1.xpose.msra.mxu0 0.0
    %2594 = vmatprep.subr.mxu0 0.0
    %2595 = vmatpush1.xpose.msra.mxu0 0.0
    %2596 = vmatprep.subr.mxu0 0.0
    %2597 = vmatpush1.xpose.msra.mxu0 0.0
    %2598 = vmatprep.subr.mxu0 0.0
    %2599 = vmatpush1.xpose.msra.mxu0 0.0
    %2600 = vmatprep.subr.mxu0 0.0
    %2601 = vmatpush1.xpose.msra.mxu0 0.0
    %2602 = vmatprep.subr.mxu0 0.0
    %2603 = vmatpush1.xpose.msra.mxu0 0.0
    %2604 = vmatprep.subr.mxu0 0.0
    %2605 = vmatpush1.xpose.msra.mxu0 0.0
    %2606 = vmatprep.subr.mxu0 0.0
    %2607 = vmatpush1.xpose.msra.mxu0 0.0
    %2608 = vmatprep.subr.mxu0 0.0
    %2609 = vmatpush1.xpose.msra.mxu0 0.0
    %2610 = vmatprep.subr.mxu0 0.0
    %2611 = vmatpush1.xpose.msra.mxu0 0.0
    %2612 = vmatprep.subr.mxu0 0.0
    %2613 = vmatpush1.xpose.msra.mxu0 0.0
    %2614 = vmatprep.subr.mxu0 0.0
    %2615 = vmatpush1.xpose.msra.mxu0 0.0
    %2616 = vmatprep.subr.mxu0 0.0
    %2617 = vmatpush1.xpose.msra.mxu0 0.0
    %2618 = vmatprep.subr.mxu0 0.0
    %2619 = vmatpush1.xpose.msra.mxu0 0.0
    %2620 = vmatprep.subr.mxu0 0.0
    %2621 = vmatpush1.xpose.msra.mxu0 0.0
    %2622 = vmatprep.subr.mxu0 0.0
    %2623 = vmatpush1.xpose.msra.mxu0 0.0
    %2624 = vmatprep.subr.mxu0 0.0
    %2625 = vmatpush1.xpose.msra.mxu0 0.0
    %2626 = vmatprep.subr.mxu0 0.0
    %2627 = vmatpush1.xpose.msra.mxu0 0.0
    %2628 = vmatprep.mubr.f32.mxu0 %v2561
    %2629 = vmatmul.mubr.f32.gmra.mrb[0].mxu0 %v2557
    %v2630 = vpop.f32.mrb[0].mxu0
    %v2631 = vadd.f32 0.0, %v2630
    %v2632 = vpop.f32.mrb[0].mxu0
    %2633 = vdwg.mxu0
    %v2634 = vadd.f32 %v2543, %v2631
    %s2635 = scalar_lea.vmem [#allocation4], 3
    %v2636 = vld [vmem:[%s2635] ss:$8 sm:$0x3]
    %s2637 = scalar_lea.vmem %s6, 96
    %v2638 = vld [vmem:[%s2637] sm:$0xff]
    %v2639 = vld [vmem:[%s2637 + $0x8] sm:$0xff]
    %v2640 = vld [vmem:[%s2637 + $0x10] sm:$0x3]
    %v2641 = vld [vmem:[%s2637 + $0x18] sm:$0x3]
    %v2643 = vlaneseq
    %v2644 = vshrl.u32 %v2643, 7
    %v2645 = vsub.s32 0, %v2644
    %v2646 = vrot.slane %v2636, %v2645
    %v2647 = vlaneseq
    %v2648 = vshrl.u32 %v2647, 7
    %v2649 = vsub.s32 1, %v2648
    %v2650 = vrot.slane %v2636, %v2649
    %2653 = vmatprep.subr.mxu0 %v2639
    %2654 = vmatpush1.xpose.msra.mxu0 %v2638
    %2655 = vmatprep.subr.mxu0 %v2641
    %2656 = vmatpush1.xpose.msra.mxu0 %v2640
    %2657 = vmatprep.subr.mxu0 0.0
    %2658 = vmatpush1.xpose.msra.mxu0 0.0
    %2659 = vmatprep.subr.mxu0 0.0
    %2660 = vmatpush1.xpose.msra.mxu0 0.0
    %2661 = vmatprep.subr.mxu0 0.0
    %2662 = vmatpush1.xpose.msra.mxu0 0.0
    %2663 = vmatprep.subr.mxu0 0.0
    %2664 = vmatpush1.xpose.msra.mxu0 0.0
    %2665 = vmatprep.subr.mxu0 0.0
    %2666 = vmatpush1.xpose.msra.mxu0 0.0
    %2667 = vmatprep.subr.mxu0 0.0
    %2668 = vmatpush1.xpose.msra.mxu0 0.0
    %2669 = vmatprep.subr.mxu0 0.0
    %2670 = vmatpush1.xpose.msra.mxu0 0.0
    %2671 = vmatprep.subr.mxu0 0.0
    %2672 = vmatpush1.xpose.msra.mxu0 0.0
    %2673 = vmatprep.subr.mxu0 0.0
    %2674 = vmatpush1.xpose.msra.mxu0 0.0
    %2675 = vmatprep.subr.mxu0 0.0
    %2676 = vmatpush1.xpose.msra.mxu0 0.0
    %2677 = vmatprep.subr.mxu0 0.0
    %2678 = vmatpush1.xpose.msra.mxu0 0.0
    %2679 = vmatprep.subr.mxu0 0.0
    %2680 = vmatpush1.xpose.msra.mxu0 0.0
    %2681 = vmatprep.subr.mxu0 0.0
    %2682 = vmatpush1.xpose.msra.mxu0 0.0
    %2683 = vmatprep.subr.mxu0 0.0
    %2684 = vmatpush1.xpose.msra.mxu0 0.0
    %2685 = vmatprep.subr.mxu0 0.0
    %2686 = vmatpush1.xpose.msra.mxu0 0.0
    %2687 = vmatprep.subr.mxu0 0.0
    %2688 = vmatpush1.xpose.msra.mxu0 0.0
    %2689 = vmatprep.subr.mxu0 0.0
    %2690 = vmatpush1.xpose.msra.mxu0 0.0
    %2691 = vmatprep.subr.mxu0 0.0
    %2692 = vmatpush1.xpose.msra.mxu0 0.0
    %2693 = vmatprep.subr.mxu0 0.0
    %2694 = vmatpush1.xpose.msra.mxu0 0.0
    %2695 = vmatprep.subr.mxu0 0.0
    %2696 = vmatpush1.xpose.msra.mxu0 0.0
    %2697 = vmatprep.subr.mxu0 0.0
    %2698 = vmatpush1.xpose.msra.mxu0 0.0
    %2699 = vmatprep.subr.mxu0 0.0
    %2700 = vmatpush1.xpose.msra.mxu0 0.0
    %2701 = vmatprep.subr.mxu0 0.0
    %2702 = vmatpush1.xpose.msra.mxu0 0.0
    %2703 = vmatprep.subr.mxu0 0.0
    %2704 = vmatpush1.xpose.msra.mxu0 0.0
    %2705 = vmatprep.subr.mxu0 0.0
    %2706 = vmatpush1.xpose.msra.mxu0 0.0
    %2707 = vmatprep.subr.mxu0 0.0
    %2708 = vmatpush1.xpose.msra.mxu0 0.0
    %2709 = vmatprep.subr.mxu0 0.0
    %2710 = vmatpush1.xpose.msra.mxu0 0.0
    %2711 = vmatprep.subr.mxu0 0.0
    %2712 = vmatpush1.xpose.msra.mxu0 0.0
    %2713 = vmatprep.subr.mxu0 0.0
    %2714 = vmatpush1.xpose.msra.mxu0 0.0
    %2715 = vmatprep.subr.mxu0 0.0
    %2716 = vmatpush1.xpose.msra.mxu0 0.0
    %2717 = vmatprep.mubr.f32.mxu0 %v2650
    %2718 = vmatmul.mubr.f32.gmra.mrb[0].mxu0 %v2646
    %v2719 = vpop.f32.mrb[0].mxu0
    %v2720 = vadd.f32 0.0, %v2719
    %v2721 = vpop.f32.mrb[0].mxu0
    %2722 = vdwg.mxu0
    %v2723 = vadd.f32 %v2634, %v2720
    %s2724 = scalar_lea.vmem [#allocation4], 4
    %v2725 = vld [vmem:[%s2724] ss:$8 sm:$0x3]
    %s2726 = scalar_lea.vmem %s6, 128
    %v2727 = vld [vmem:[%s2726] sm:$0xff]
    %v2728 = vld [vmem:[%s2726 + $0x8] sm:$0xff]
    %v2729 = vld [vmem:[%s2726 + $0x10] sm:$0x3]
    %v2730 = vld [vmem:[%s2726 + $0x18] sm:$0x3]
    %v2732 = vlaneseq
    %v2733 = vshrl.u32 %v2732, 7
    %v2734 = vsub.s32 0, %v2733
    %v2735 = vrot.slane %v2725, %v2734
    %v2736 = vlaneseq
    %v2737 = vshrl.u32 %v2736, 7
    %v2738 = vsub.s32 1, %v2737
    %v2739 = vrot.slane %v2725, %v2738
    %2742 = vmatprep.subr.mxu0 %v2728
    %2743 = vmatpush1.xpose.msra.mxu0 %v2727
    %2744 = vmatprep.subr.mxu0 %v2730
    %2745 = vmatpush1.xpose.msra.mxu0 %v2729
    %2746 = vmatprep.subr.mxu0 0.0
    %2747 = vmatpush1.xpose.msra.mxu0 0.0
    %2748 = vmatprep.subr.mxu0 0.0
    %2749 = vmatpush1.xpose.msra.mxu0 0.0
    %2750 = vmatprep.subr.mxu0 0.0
    %2751 = vmatpush1.xpose.msra.mxu0 0.0
    %2752 = vmatprep.subr.mxu0 0.0
    %2753 = vmatpush1.xpose.msra.mxu0 0.0
    %2754 = vmatprep.subr.mxu0 0.0
    %2755 = vmatpush1.xpose.msra.mxu0 0.0
    %2756 = vmatprep.subr.mxu0 0.0
    %2757 = vmatpush1.xpose.msra.mxu0 0.0
    %2758 = vmatprep.subr.mxu0 0.0
    %2759 = vmatpush1.xpose.msra.mxu0 0.0
    %2760 = vmatprep.subr.mxu0 0.0
    %2761 = vmatpush1.xpose.msra.mxu0 0.0
    %2762 = vmatprep.subr.mxu0 0.0
    %2763 = vmatpush1.xpose.msra.mxu0 0.0
    %2764 = vmatprep.subr.mxu0 0.0
    %2765 = vmatpush1.xpose.msra.mxu0 0.0
    %2766 = vmatprep.subr.mxu0 0.0
    %2767 = vmatpush1.xpose.msra.mxu0 0.0
    %2768 = vmatprep.subr.mxu0 0.0
    %2769 = vmatpush1.xpose.msra.mxu0 0.0
    %2770 = vmatprep.subr.mxu0 0.0
    %2771 = vmatpush1.xpose.msra.mxu0 0.0
    %2772 = vmatprep.subr.mxu0 0.0
    %2773 = vmatpush1.xpose.msra.mxu0 0.0
    %2774 = vmatprep.subr.mxu0 0.0
    %2775 = vmatpush1.xpose.msra.mxu0 0.0
    %2776 = vmatprep.subr.mxu0 0.0
    %2777 = vmatpush1.xpose.msra.mxu0 0.0
    %2778 = vmatprep.subr.mxu0 0.0
    %2779 = vmatpush1.xpose.msra.mxu0 0.0
    %2780 = vmatprep.subr.mxu0 0.0
    %2781 = vmatpush1.xpose.msra.mxu0 0.0
    %2782 = vmatprep.subr.mxu0 0.0
    %2783 = vmatpush1.xpose.msra.mxu0 0.0
    %2784 = vmatprep.subr.mxu0 0.0
    %2785 = vmatpush1.xpose.msra.mxu0 0.0
    %2786 = vmatprep.subr.mxu0 0.0
    %2787 = vmatpush1.xpose.msra.mxu0 0.0
    %2788 = vmatprep.subr.mxu0 0.0
    %2789 = vmatpush1.xpose.msra.mxu0 0.0
    %2790 = vmatprep.subr.mxu0 0.0
    %2791 = vmatpush1.xpose.msra.mxu0 0.0
    %2792 = vmatprep.subr.mxu0 0.0
    %2793 = vmatpush1.xpose.msra.mxu0 0.0
    %2794 = vmatprep.subr.mxu0 0.0
    %2795 = vmatpush1.xpose.msra.mxu0 0.0
    %2796 = vmatprep.subr.mxu0 0.0
    %2797 = vmatpush1.xpose.msra.mxu0 0.0
    %2798 = vmatprep.subr.mxu0 0.0
    %2799 = vmatpush1.xpose.msra.mxu0 0.0
    %2800 = vmatprep.subr.mxu0 0.0
    %2801 = vmatpush1.xpose.msra.mxu0 0.0
    %2802 = vmatprep.subr.mxu0 0.0
    %2803 = vmatpush1.xpose.msra.mxu0 0.0
    %2804 = vmatprep.subr.mxu0 0.0
    %2805 = vmatpush1.xpose.msra.mxu0 0.0
    %2806 = vmatprep.mubr.f32.mxu0 %v2739
    %2807 = vmatmul.mubr.f32.gmra.mrb[0].mxu0 %v2735
    %v2808 = vpop.f32.mrb[0].mxu0
    %v2809 = vadd.f32 0.0, %v2808
    %v2810 = vpop.f32.mrb[0].mxu0
    %2811 = vdwg.mxu0
    %v2812 = vadd.f32 %v2723, %v2809
    %s2813 = scalar_lea.vmem [#allocation4], 5
    %v2814 = vld [vmem:[%s2813] ss:$8 sm:$0x3]
    %s2815 = scalar_lea.vmem %s6, 160
    %v2816 = vld [vmem:[%s2815] sm:$0xff]
    %v2817 = vld [vmem:[%s2815 + $0x8] sm:$0xff]
    %v2818 = vld [vmem:[%s2815 + $0x10] sm:$0x3]
    %v2819 = vld [vmem:[%s2815 + $0x18] sm:$0x3]
    %v2821 = vlaneseq
    %v2822 = vshrl.u32 %v2821, 7
    %v2823 = vsub.s32 0, %v2822
    %v2824 = vrot.slane %v2814, %v2823
    %v2825 = vlaneseq
    %v2826 = vshrl.u32 %v2825, 7
    %v2827 = vsub.s32 1, %v2826
    %v2828 = vrot.slane %v2814, %v2827
    %2831 = vmatprep.subr.mxu0 %v2817
    %2832 = vmatpush1.xpose.msra.mxu0 %v2816
    %2833 = vmatprep.subr.mxu0 %v2819
    %2834 = vmatpush1.xpose.msra.mxu0 %v2818
    %2835 = vmatprep.subr.mxu0 0.0
    %2836 = vmatpush1.xpose.msra.mxu0 0.0
    %2837 = vmatprep.subr.mxu0 0.0
    %2838 = vmatpush1.xpose.msra.mxu0 0.0
    %2839 = vmatprep.subr.mxu0 0.0
    %2840 = vmatpush1.xpose.msra.mxu0 0.0
    %2841 = vmatprep.subr.mxu0 0.0
    %2842 = vmatpush1.xpose.msra.mxu0 0.0
    %2843 = vmatprep.subr.mxu0 0.0
    %2844 = vmatpush1.xpose.msra.mxu0 0.0
    %2845 = vmatprep.subr.mxu0 0.0
    %2846 = vmatpush1.xpose.msra.mxu0 0.0
    %2847 = vmatprep.subr.mxu0 0.0
    %2848 = vmatpush1.xpose.msra.mxu0 0.0
    %2849 = vmatprep.subr.mxu0 0.0
    %2850 = vmatpush1.xpose.msra.mxu0 0.0
    %2851 = vmatprep.subr.mxu0 0.0
    %2852 = vmatpush1.xpose.msra.mxu0 0.0
    %2853 = vmatprep.subr.mxu0 0.0
    %2854 = vmatpush1.xpose.msra.mxu0 0.0
    %2855 = vmatprep.subr.mxu0 0.0
    %2856 = vmatpush1.xpose.msra.mxu0 0.0
    %2857 = vmatprep.subr.mxu0 0.0
    %2858 = vmatpush1.xpose.msra.mxu0 0.0
    %2859 = vmatprep.subr.mxu0 0.0
    %2860 = vmatpush1.xpose.msra.mxu0 0.0
    %2861 = vmatprep.subr.mxu0 0.0
    %2862 = vmatpush1.xpose.msra.mxu0 0.0
    %2863 = vmatprep.subr.mxu0 0.0
    %2864 = vmatpush1.xpose.msra.mxu0 0.0
    %2865 = vmatprep.subr.mxu0 0.0
    %2866 = vmatpush1.xpose.msra.mxu0 0.0
    %2867 = vmatprep.subr.mxu0 0.0
    %2868 = vmatpush1.xpose.msra.mxu0 0.0
    %2869 = vmatprep.subr.mxu0 0.0
    %2870 = vmatpush1.xpose.msra.mxu0 0.0
    %2871 = vmatprep.subr.mxu0 0.0
    %2872 = vmatpush1.xpose.msra.mxu0 0.0
    %2873 = vmatprep.subr.mxu0 0.0
    %2874 = vmatpush1.xpose.msra.mxu0 0.0
    %2875 = vmatprep.subr.mxu0 0.0
    %2876 = vmatpush1.xpose.msra.mxu0 0.0
    %2877 = vmatprep.subr.mxu0 0.0
    %2878 = vmatpush1.xpose.msra.mxu0 0.0
    %2879 = vmatprep.subr.mxu0 0.0
    %2880 = vmatpush1.xpose.msra.mxu0 0.0
    %2881 = vmatprep.subr.mxu0 0.0
    %2882 = vmatpush1.xpose.msra.mxu0 0.0
    %2883 = vmatprep.subr.mxu0 0.0
    %2884 = vmatpush1.xpose.msra.mxu0 0.0
    %2885 = vmatprep.subr.mxu0 0.0
    %2886 = vmatpush1.xpose.msra.mxu0 0.0
    %2887 = vmatprep.subr.mxu0 0.0
    %2888 = vmatpush1.xpose.msra.mxu0 0.0
    %2889 = vmatprep.subr.mxu0 0.0
    %2890 = vmatpush1.xpose.msra.mxu0 0.0
    %2891 = vmatprep.subr.mxu0 0.0
    %2892 = vmatpush1.xpose.msra.mxu0 0.0
    %2893 = vmatprep.subr.mxu0 0.0
    %2894 = vmatpush1.xpose.msra.mxu0 0.0
    %2895 = vmatprep.mubr.f32.mxu0 %v2828
    %2896 = vmatmul.mubr.f32.gmra.mrb[0].mxu0 %v2824
    %v2897 = vpop.f32.mrb[0].mxu0
    %v2898 = vadd.f32 0.0, %v2897
    %v2899 = vpop.f32.mrb[0].mxu0
    %2900 = vdwg.mxu0
    %v2901 = vadd.f32 %v2812, %v2898
    %s2902 = scalar_lea.vmem [#allocation4], 6
    %v2903 = vld [vmem:[%s2902] ss:$8 sm:$0x3]
    %s2904 = scalar_lea.vmem %s6, 192
    %v2905 = vld [vmem:[%s2904] sm:$0xff]
    %v2906 = vld [vmem:[%s2904 + $0x8] sm:$0xff]
    %v2907 = vld [vmem:[%s2904 + $0x10] sm:$0x3]
    %v2908 = vld [vmem:[%s2904 + $0x18] sm:$0x3]
    %v2910 = vlaneseq
    %v2911 = vshrl.u32 %v2910, 7
    %v2912 = vsub.s32 0, %v2911
    %v2913 = vrot.slane %v2903, %v2912
    %v2914 = vlaneseq
    %v2915 = vshrl.u32 %v2914, 7
    %v2916 = vsub.s32 1, %v2915
    %v2917 = vrot.slane %v2903, %v2916
    %2920 = vmatprep.subr.mxu0 %v2906
    %2921 = vmatpush1.xpose.msra.mxu0 %v2905
    %2922 = vmatprep.subr.mxu0 %v2908
    %2923 = vmatpush1.xpose.msra.mxu0 %v2907
    %2924 = vmatprep.subr.mxu0 0.0
    %2925 = vmatpush1.xpose.msra.mxu0 0.0
    %2926 = vmatprep.subr.mxu0 0.0
    %2927 = vmatpush1.xpose.msra.mxu0 0.0
    %2928 = vmatprep.subr.mxu0 0.0
    %2929 = vmatpush1.xpose.msra.mxu0 0.0
    %2930 = vmatprep.subr.mxu0 0.0
    %2931 = vmatpush1.xpose.msra.mxu0 0.0
    %2932 = vmatprep.subr.mxu0 0.0
    %2933 = vmatpush1.xpose.msra.mxu0 0.0
    %2934 = vmatprep.subr.mxu0 0.0
    %2935 = vmatpush1.xpose.msra.mxu0 0.0
    %2936 = vmatprep.subr.mxu0 0.0
    %2937 = vmatpush1.xpose.msra.mxu0 0.0
    %2938 = vmatprep.subr.mxu0 0.0
    %2939 = vmatpush1.xpose.msra.mxu0 0.0
    %2940 = vmatprep.subr.mxu0 0.0
    %2941 = vmatpush1.xpose.msra.mxu0 0.0
    %2942 = vmatprep.subr.mxu0 0.0
    %2943 = vmatpush1.xpose.msra.mxu0 0.0
    %2944 = vmatprep.subr.mxu0 0.0
    %2945 = vmatpush1.xpose.msra.mxu0 0.0
    %2946 = vmatprep.subr.mxu0 0.0
    %2947 = vmatpush1.xpose.msra.mxu0 0.0
    %2948 = vmatprep.subr.mxu0 0.0
    %2949 = vmatpush1.xpose.msra.mxu0 0.0
    %2950 = vmatprep.subr.mxu0 0.0
    %2951 = vmatpush1.xpose.msra.mxu0 0.0
    %2952 = vmatprep.subr.mxu0 0.0
    %2953 = vmatpush1.xpose.msra.mxu0 0.0
    %2954 = vmatprep.subr.mxu0 0.0
    %2955 = vmatpush1.xpose.msra.mxu0 0.0
    %2956 = vmatprep.subr.mxu0 0.0
    %2957 = vmatpush1.xpose.msra.mxu0 0.0
    %2958 = vmatprep.subr.mxu0 0.0
    %2959 = vmatpush1.xpose.msra.mxu0 0.0
    %2960 = vmatprep.subr.mxu0 0.0
    %2961 = vmatpush1.xpose.msra.mxu0 0.0
    %2962 = vmatprep.subr.mxu0 0.0
    %2963 = vmatpush1.xpose.msra.mxu0 0.0
    %2964 = vmatprep.subr.mxu0 0.0
    %2965 = vmatpush1.xpose.msra.mxu0 0.0
    %2966 = vmatprep.subr.mxu0 0.0
    %2967 = vmatpush1.xpose.msra.mxu0 0.0
    %2968 = vmatprep.subr.mxu0 0.0
    %2969 = vmatpush1.xpose.msra.mxu0 0.0
    %2970 = vmatprep.subr.mxu0 0.0
    %2971 = vmatpush1.xpose.msra.mxu0 0.0
    %2972 = vmatprep.subr.mxu0 0.0
    %2973 = vmatpush1.xpose.msra.mxu0 0.0
    %2974 = vmatprep.subr.mxu0 0.0
    %2975 = vmatpush1.xpose.msra.mxu0 0.0
    %2976 = vmatprep.subr.mxu0 0.0
    %2977 = vmatpush1.xpose.msra.mxu0 0.0
    %2978 = vmatprep.subr.mxu0 0.0
    %2979 = vmatpush1.xpose.msra.mxu0 0.0
    %2980 = vmatprep.subr.mxu0 0.0
    %2981 = vmatpush1.xpose.msra.mxu0 0.0
    %2982 = vmatprep.subr.mxu0 0.0
    %2983 = vmatpush1.xpose.msra.mxu0 0.0
    %2984 = vmatprep.mubr.f32.mxu0 %v2917
    %2985 = vmatmul.mubr.f32.gmra.mrb[0].mxu0 %v2913
    %v2986 = vpop.f32.mrb[0].mxu0
    %v2987 = vadd.f32 0.0, %v2986
    %v2988 = vpop.f32.mrb[0].mxu0
    %2989 = vdwg.mxu0
    %v2990 = vadd.f32 %v2901, %v2987
    %s2991 = scalar_lea.vmem [#allocation4], 7
    %v2992 = vld [vmem:[%s2991] ss:$8 sm:$0x3]
    %s2993 = scalar_lea.vmem %s6, 224
    %v2994 = vld [vmem:[%s2993] sm:$0xff]
    %v2995 = vld [vmem:[%s2993 + $0x8] sm:$0xff]
    %v2996 = vld [vmem:[%s2993 + $0x10] sm:$0x3]
    %v2997 = vld [vmem:[%s2993 + $0x18] sm:$0x3]
    %v2999 = vlaneseq
    %v3000 = vshrl.u32 %v2999, 7
    %v3001 = vsub.s32 0, %v3000
    %v3002 = vrot.slane %v2992, %v3001
    %v3003 = vlaneseq
    %v3004 = vshrl.u32 %v3003, 7
    %v3005 = vsub.s32 1, %v3004
    %v3006 = vrot.slane %v2992, %v3005
    %3009 = vmatprep.subr.mxu0 %v2995
    %3010 = vmatpush1.xpose.msra.mxu0 %v2994
    %3011 = vmatprep.subr.mxu0 %v2997
    %3012 = vmatpush1.xpose.msra.mxu0 %v2996
    %3013 = vmatprep.subr.mxu0 0.0
    %3014 = vmatpush1.xpose.msra.mxu0 0.0
    %3015 = vmatprep.subr.mxu0 0.0
    %3016 = vmatpush1.xpose.msra.mxu0 0.0
    %3017 = vmatprep.subr.mxu0 0.0
    %3018 = vmatpush1.xpose.msra.mxu0 0.0
    %3019 = vmatprep.subr.mxu0 0.0
    %3020 = vmatpush1.xpose.msra.mxu0 0.0
    %3021 = vmatprep.subr.mxu0 0.0
    %3022 = vmatpush1.xpose.msra.mxu0 0.0
    %3023 = vmatprep.subr.mxu0 0.0
    %3024 = vmatpush1.xpose.msra.mxu0 0.0
    %3025 = vmatprep.subr.mxu0 0.0
    %3026 = vmatpush1.xpose.msra.mxu0 0.0
    %3027 = vmatprep.subr.mxu0 0.0
    %3028 = vmatpush1.xpose.msra.mxu0 0.0
    %3029 = vmatprep.subr.mxu0 0.0
    %3030 = vmatpush1.xpose.msra.mxu0 0.0
    %3031 = vmatprep.subr.mxu0 0.0
    %3032 = vmatpush1.xpose.msra.mxu0 0.0
    %3033 = vmatprep.subr.mxu0 0.0
    %3034 = vmatpush1.xpose.msra.mxu0 0.0
    %3035 = vmatprep.subr.mxu0 0.0
    %3036 = vmatpush1.xpose.msra.mxu0 0.0
    %3037 = vmatprep.subr.mxu0 0.0
    %3038 = vmatpush1.xpose.msra.mxu0 0.0
    %3039 = vmatprep.subr.mxu0 0.0
    %3040 = vmatpush1.xpose.msra.mxu0 0.0
    %3041 = vmatprep.subr.mxu0 0.0
    %3042 = vmatpush1.xpose.msra.mxu0 0.0
    %3043 = vmatprep.subr.mxu0 0.0
    %3044 = vmatpush1.xpose.msra.mxu0 0.0
    %3045 = vmatprep.subr.mxu0 0.0
    %3046 = vmatpush1.xpose.msra.mxu0 0.0
    %3047 = vmatprep.subr.mxu0 0.0
    %3048 = vmatpush1.xpose.msra.mxu0 0.0
    %3049 = vmatprep.subr.mxu0 0.0
    %3050 = vmatpush1.xpose.msra.mxu0 0.0
    %3051 = vmatprep.subr.mxu0 0.0
    %3052 = vmatpush1.xpose.msra.mxu0 0.0
    %3053 = vmatprep.subr.mxu0 0.0
    %3054 = vmatpush1.xpose.msra.mxu0 0.0
    %3055 = vmatprep.subr.mxu0 0.0
    %3056 = vmatpush1.xpose.msra.mxu0 0.0
    %3057 = vmatprep.subr.mxu0 0.0
    %3058 = vmatpush1.xpose.msra.mxu0 0.0
    %3059 = vmatprep.subr.mxu0 0.0
    %3060 = vmatpush1.xpose.msra.mxu0 0.0
    %3061 = vmatprep.subr.mxu0 0.0
    %3062 = vmatpush1.xpose.msra.mxu0 0.0
    %3063 = vmatprep.subr.mxu0 0.0
    %3064 = vmatpush1.xpose.msra.mxu0 0.0
    %3065 = vmatprep.subr.mxu0 0.0
    %3066 = vmatpush1.xpose.msra.mxu0 0.0
    %3067 = vmatprep.subr.mxu0 0.0
    %3068 = vmatpush1.xpose.msra.mxu0 0.0
    %3069 = vmatprep.subr.mxu0 0.0
    %3070 = vmatpush1.xpose.msra.mxu0 0.0
    %3071 = vmatprep.subr.mxu0 0.0
    %3072 = vmatpush1.xpose.msra.mxu0 0.0
    %3073 = vmatprep.mubr.f32.mxu0 %v3006
    %3074 = vmatmul.mubr.f32.gmra.mrb[0].mxu0 %v3002
    %v3075 = vpop.f32.mrb[0].mxu0
    %v3076 = vadd.f32 0.0, %v3075
    %v3077 = vpop.f32.mrb[0].mxu0
    %3078 = vdwg.mxu0
    %v3079 = vadd.f32 %v2990, %v3076
    %s3080 = scalar_lea.vmem [#allocation4], 32
    %v3081 = vld [vmem:[%s3080] ss:$8 sm:$0x3]
    %s3082 = scalar_lea.vmem %s6, 256
    %v3083 = vld [vmem:[%s3082] sm:$0xff]
    %v3084 = vld [vmem:[%s3082 + $0x8] sm:$0xff]
    %v3085 = vld [vmem:[%s3082 + $0x10] sm:$0x3]
    %v3086 = vld [vmem:[%s3082 + $0x18] sm:$0x3]
    %v3088 = vlaneseq
    %v3089 = vshrl.u32 %v3088, 7
    %v3090 = vsub.s32 0, %v3089
    %v3091 = vrot.slane %v3081, %v3090
    %v3092 = vlaneseq
    %v3093 = vshrl.u32 %v3092, 7
    %v3094 = vsub.s32 1, %v3093
    %v3095 = vrot.slane %v3081, %v3094
    %3098 = vmatprep.subr.mxu0 %v3084
    %3099 = vmatpush1.xpose.msra.mxu0 %v3083
    %3100 = vmatprep.subr.mxu0 %v3086
    %3101 = vmatpush1.xpose.msra.mxu0 %v3085
    %3102 = vmatprep.subr.mxu0 0.0
    %3103 = vmatpush1.xpose.msra.mxu0 0.0
    %3104 = vmatprep.subr.mxu0 0.0
    %3105 = vmatpush1.xpose.msra.mxu0 0.0
    %3106 = vmatprep.subr.mxu0 0.0
    %3107 = vmatpush1.xpose.msra.mxu0 0.0
    %3108 = vmatprep.subr.mxu0 0.0
    %3109 = vmatpush1.xpose.msra.mxu0 0.0
    %3110 = vmatprep.subr.mxu0 0.0
    %3111 = vmatpush1.xpose.msra.mxu0 0.0
    %3112 = vmatprep.subr.mxu0 0.0
    %3113 = vmatpush1.xpose.msra.mxu0 0.0
    %3114 = vmatprep.subr.mxu0 0.0
    %3115 = vmatpush1.xpose.msra.mxu0 0.0
    %3116 = vmatprep.subr.mxu0 0.0
    %3117 = vmatpush1.xpose.msra.mxu0 0.0
    %3118 = vmatprep.subr.mxu0 0.0
    %3119 = vmatpush1.xpose.msra.mxu0 0.0
    %3120 = vmatprep.subr.mxu0 0.0
    %3121 = vmatpush1.xpose.msra.mxu0 0.0
    %3122 = vmatprep.subr.mxu0 0.0
    %3123 = vmatpush1.xpose.msra.mxu0 0.0
    %3124 = vmatprep.subr.mxu0 0.0
    %3125 = vmatpush1.xpose.msra.mxu0 0.0
    %3126 = vmatprep.subr.mxu0 0.0
    %3127 = vmatpush1.xpose.msra.mxu0 0.0
    %3128 = vmatprep.subr.mxu0 0.0
    %3129 = vmatpush1.xpose.msra.mxu0 0.0
    %3130 = vmatprep.subr.mxu0 0.0
    %3131 = vmatpush1.xpose.msra.mxu0 0.0
    %3132 = vmatprep.subr.mxu0 0.0
    %3133 = vmatpush1.xpose.msra.mxu0 0.0
    %3134 = vmatprep.subr.mxu0 0.0
    %3135 = vmatpush1.xpose.msra.mxu0 0.0
    %3136 = vmatprep.subr.mxu0 0.0
    %3137 = vmatpush1.xpose.msra.mxu0 0.0
    %3138 = vmatprep.subr.mxu0 0.0
    %3139 = vmatpush1.xpose.msra.mxu0 0.0
    %3140 = vmatprep.subr.mxu0 0.0
    %3141 = vmatpush1.xpose.msra.mxu0 0.0
    %3142 = vmatprep.subr.mxu0 0.0
    %3143 = vmatpush1.xpose.msra.mxu0 0.0
    %3144 = vmatprep.subr.mxu0 0.0
    %3145 = vmatpush1.xpose.msra.mxu0 0.0
    %3146 = vmatprep.subr.mxu0 0.0
    %3147 = vmatpush1.xpose.msra.mxu0 0.0
    %3148 = vmatprep.subr.mxu0 0.0
    %3149 = vmatpush1.xpose.msra.mxu0 0.0
    %3150 = vmatprep.subr.mxu0 0.0
    %3151 = vmatpush1.xpose.msra.mxu0 0.0
    %3152 = vmatprep.subr.mxu0 0.0
    %3153 = vmatpush1.xpose.msra.mxu0 0.0
    %3154 = vmatprep.subr.mxu0 0.0
    %3155 = vmatpush1.xpose.msra.mxu0 0.0
    %3156 = vmatprep.subr.mxu0 0.0
    %3157 = vmatpush1.xpose.msra.mxu0 0.0
    %3158 = vmatprep.subr.mxu0 0.0
    %3159 = vmatpush1.xpose.msra.mxu0 0.0
    %3160 = vmatprep.subr.mxu0 0.0
    %3161 = vmatpush1.xpose.msra.mxu0 0.0
    %3162 = vmatprep.mubr.f32.mxu0 %v3095
    %3163 = vmatmul.mubr.f32.gmra.mrb[0].mxu0 %v3091
    %v3164 = vpop.f32.mrb[0].mxu0
    %v3165 = vadd.f32 0.0, %v3164
    %v3166 = vpop.f32.mrb[0].mxu0
    %3167 = vdwg.mxu0
    %v3168 = vadd.f32 %v3079, %v3165
    %s3169 = scalar_lea.vmem [#allocation4], 33
    %v3170 = vld [vmem:[%s3169] ss:$8 sm:$0x3]
    %s3171 = scalar_lea.vmem %s6, 288
    %v3172 = vld [vmem:[%s3171] sm:$0xff]
    %v3173 = vld [vmem:[%s3171 + $0x8] sm:$0xff]
    %v3174 = vld [vmem:[%s3171 + $0x10] sm:$0x3]
    %v3175 = vld [vmem:[%s3171 + $0x18] sm:$0x3]
    %v3177 = vlaneseq
    %v3178 = vshrl.u32 %v3177, 7
    %v3179 = vsub.s32 0, %v3178
    %v3180 = vrot.slane %v3170, %v3179
    %v3181 = vlaneseq
    %v3182 = vshrl.u32 %v3181, 7
    %v3183 = vsub.s32 1, %v3182
    %v3184 = vrot.slane %v3170, %v3183
    %3187 = vmatprep.subr.mxu0 %v3173
    %3188 = vmatpush1.xpose.msra.mxu0 %v3172
    %3189 = vmatprep.subr.mxu0 %v3175
    %3190 = vmatpush1.xpose.msra.mxu0 %v3174
    %3191 = vmatprep.subr.mxu0 0.0
    %3192 = vmatpush1.xpose.msra.mxu0 0.0
    %3193 = vmatprep.subr.mxu0 0.0
    %3194 = vmatpush1.xpose.msra.mxu0 0.0
    %3195 = vmatprep.subr.mxu0 0.0
    %3196 = vmatpush1.xpose.msra.mxu0 0.0
    %3197 = vmatprep.subr.mxu0 0.0
    %3198 = vmatpush1.xpose.msra.mxu0 0.0
    %3199 = vmatprep.subr.mxu0 0.0
    %3200 = vmatpush1.xpose.msra.mxu0 0.0
    %3201 = vmatprep.subr.mxu0 0.0
    %3202 = vmatpush1.xpose.msra.mxu0 0.0
    %3203 = vmatprep.subr.mxu0 0.0
    %3204 = vmatpush1.xpose.msra.mxu0 0.0
    %3205 = vmatprep.subr.mxu0 0.0
    %3206 = vmatpush1.xpose.msra.mxu0 0.0
    %3207 = vmatprep.subr.mxu0 0.0
    %3208 = vmatpush1.xpose.msra.mxu0 0.0
    %3209 = vmatprep.subr.mxu0 0.0
    %3210 = vmatpush1.xpose.msra.mxu0 0.0
    %3211 = vmatprep.subr.mxu0 0.0
    %3212 = vmatpush1.xpose.msra.mxu0 0.0
    %3213 = vmatprep.subr.mxu0 0.0
    %3214 = vmatpush1.xpose.msra.mxu0 0.0
    %3215 = vmatprep.subr.mxu0 0.0
    %3216 = vmatpush1.xpose.msra.mxu0 0.0
    %3217 = vmatprep.subr.mxu0 0.0
    %3218 = vmatpush1.xpose.msra.mxu0 0.0
    %3219 = vmatprep.subr.mxu0 0.0
    %3220 = vmatpush1.xpose.msra.mxu0 0.0
    %3221 = vmatprep.subr.mxu0 0.0
    %3222 = vmatpush1.xpose.msra.mxu0 0.0
    %3223 = vmatprep.subr.mxu0 0.0
    %3224 = vmatpush1.xpose.msra.mxu0 0.0
    %3225 = vmatprep.subr.mxu0 0.0
    %3226 = vmatpush1.xpose.msra.mxu0 0.0
    %3227 = vmatprep.subr.mxu0 0.0
    %3228 = vmatpush1.xpose.msra.mxu0 0.0
    %3229 = vmatprep.subr.mxu0 0.0
    %3230 = vmatpush1.xpose.msra.mxu0 0.0
    %3231 = vmatprep.subr.mxu0 0.0
    %3232 = vmatpush1.xpose.msra.mxu0 0.0
    %3233 = vmatprep.subr.mxu0 0.0
    %3234 = vmatpush1.xpose.msra.mxu0 0.0
    %3235 = vmatprep.subr.mxu0 0.0
    %3236 = vmatpush1.xpose.msra.mxu0 0.0
    %3237 = vmatprep.subr.mxu0 0.0
    %3238 = vmatpush1.xpose.msra.mxu0 0.0
    %3239 = vmatprep.subr.mxu0 0.0
    %3240 = vmatpush1.xpose.msra.mxu0 0.0
    %3241 = vmatprep.subr.mxu0 0.0
    %3242 = vmatpush1.xpose.msra.mxu0 0.0
    %3243 = vmatprep.subr.mxu0 0.0
    %3244 = vmatpush1.xpose.msra.mxu0 0.0
    %3245 = vmatprep.subr.mxu0 0.0
    %3246 = vmatpush1.xpose.msra.mxu0 0.0
    %3247 = vmatprep.subr.mxu0 0.0
    %3248 = vmatpush1.xpose.msra.mxu0 0.0
    %3249 = vmatprep.subr.mxu0 0.0
    %3250 = vmatpush1.xpose.msra.mxu0 0.0
    %3251 = vmatprep.mubr.f32.mxu0 %v3184
    %3252 = vmatmul.mubr.f32.gmra.mrb[0].mxu0 %v3180
    %v3253 = vpop.f32.mrb[0].mxu0
    %v3254 = vadd.f32 0.0, %v3253
    %v3255 = vpop.f32.mrb[0].mxu0
    %3256 = vdwg.mxu0
    %v3257 = vadd.f32 %v3168, %v3254
    %s3258 = scalar_lea.vmem [#allocation4], 34
    %v3259 = vld [vmem:[%s3258] ss:$8 sm:$0x3]
    %s3260 = scalar_lea.vmem %s6, 320
    %v3261 = vld [vmem:[%s3260] sm:$0xff]
    %v3262 = vld [vmem:[%s3260 + $0x8] sm:$0xff]
    %v3263 = vld [vmem:[%s3260 + $0x10] sm:$0x3]
    %v3264 = vld [vmem:[%s3260 + $0x18] sm:$0x3]
    %v3266 = vlaneseq
    %v3267 = vshrl.u32 %v3266, 7
    %v3268 = vsub.s32 0, %v3267
    %v3269 = vrot.slane %v3259, %v3268
    %v3270 = vlaneseq
    %v3271 = vshrl.u32 %v3270, 7
    %v3272 = vsub.s32 1, %v3271
    %v3273 = vrot.slane %v3259, %v3272
    %3276 = vmatprep.subr.mxu0 %v3262
    %3277 = vmatpush1.xpose.msra.mxu0 %v3261
    %3278 = vmatprep.subr.mxu0 %v3264
    %3279 = vmatpush1.xpose.msra.mxu0 %v3263
    %3280 = vmatprep.subr.mxu0 0.0
    %3281 = vmatpush1.xpose.msra.mxu0 0.0
    %3282 = vmatprep.subr.mxu0 0.0
    %3283 = vmatpush1.xpose.msra.mxu0 0.0
    %3284 = vmatprep.subr.mxu0 0.0
    %3285 = vmatpush1.xpose.msra.mxu0 0.0
    %3286 = vmatprep.subr.mxu0 0.0
    %3287 = vmatpush1.xpose.msra.mxu0 0.0
    %3288 = vmatprep.subr.mxu0 0.0
    %3289 = vmatpush1.xpose.msra.mxu0 0.0
    %3290 = vmatprep.subr.mxu0 0.0
    %3291 = vmatpush1.xpose.msra.mxu0 0.0
    %3292 = vmatprep.subr.mxu0 0.0
    %3293 = vmatpush1.xpose.msra.mxu0 0.0
    %3294 = vmatprep.subr.mxu0 0.0
    %3295 = vmatpush1.xpose.msra.mxu0 0.0
    %3296 = vmatprep.subr.mxu0 0.0
    %3297 = vmatpush1.xpose.msra.mxu0 0.0
    %3298 = vmatprep.subr.mxu0 0.0
    %3299 = vmatpush1.xpose.msra.mxu0 0.0
    %3300 = vmatprep.subr.mxu0 0.0
    %3301 = vmatpush1.xpose.msra.mxu0 0.0
    %3302 = vmatprep.subr.mxu0 0.0
    %3303 = vmatpush1.xpose.msra.mxu0 0.0
    %3304 = vmatprep.subr.mxu0 0.0
    %3305 = vmatpush1.xpose.msra.mxu0 0.0
    %3306 = vmatprep.subr.mxu0 0.0
    %3307 = vmatpush1.xpose.msra.mxu0 0.0
    %3308 = vmatprep.subr.mxu0 0.0
    %3309 = vmatpush1.xpose.msra.mxu0 0.0
    %3310 = vmatprep.subr.mxu0 0.0
    %3311 = vmatpush1.xpose.msra.mxu0 0.0
    %3312 = vmatprep.subr.mxu0 0.0
    %3313 = vmatpush1.xpose.msra.mxu0 0.0
    %3314 = vmatprep.subr.mxu0 0.0
    %3315 = vmatpush1.xpose.msra.mxu0 0.0
    %3316 = vmatprep.subr.mxu0 0.0
    %3317 = vmatpush1.xpose.msra.mxu0 0.0
    %3318 = vmatprep.subr.mxu0 0.0
    %3319 = vmatpush1.xpose.msra.mxu0 0.0
    %3320 = vmatprep.subr.mxu0 0.0
    %3321 = vmatpush1.xpose.msra.mxu0 0.0
    %3322 = vmatprep.subr.mxu0 0.0
    %3323 = vmatpush1.xpose.msra.mxu0 0.0
    %3324 = vmatprep.subr.mxu0 0.0
    %3325 = vmatpush1.xpose.msra.mxu0 0.0
    %3326 = vmatprep.subr.mxu0 0.0
    %3327 = vmatpush1.xpose.msra.mxu0 0.0
    %3328 = vmatprep.subr.mxu0 0.0
    %3329 = vmatpush1.xpose.msra.mxu0 0.0
    %3330 = vmatprep.subr.mxu0 0.0
    %3331 = vmatpush1.xpose.msra.mxu0 0.0
    %3332 = vmatprep.subr.mxu0 0.0
    %3333 = vmatpush1.xpose.msra.mxu0 0.0
    %3334 = vmatprep.subr.mxu0 0.0
    %3335 = vmatpush1.xpose.msra.mxu0 0.0
    %3336 = vmatprep.subr.mxu0 0.0
    %3337 = vmatpush1.xpose.msra.mxu0 0.0
    %3338 = vmatprep.subr.mxu0 0.0
    %3339 = vmatpush1.xpose.msra.mxu0 0.0
    %3340 = vmatprep.mubr.f32.mxu0 %v3273
    %3341 = vmatmul.mubr.f32.gmra.mrb[0].mxu0 %v3269
    %v3342 = vpop.f32.mrb[0].mxu0
    %v3343 = vadd.f32 0.0, %v3342
    %v3344 = vpop.f32.mrb[0].mxu0
    %3345 = vdwg.mxu0
    %v3346 = vadd.f32 %v3257, %v3343
    %s3347 = scalar_lea.vmem [#allocation4], 35
    %v3348 = vld [vmem:[%s3347] ss:$8 sm:$0x3]
    %s3349 = scalar_lea.vmem %s6, 352
    %v3350 = vld [vmem:[%s3349] sm:$0xff]
    %v3351 = vld [vmem:[%s3349 + $0x8] sm:$0xff]
    %v3352 = vld [vmem:[%s3349 + $0x10] sm:$0x3]
    %v3353 = vld [vmem:[%s3349 + $0x18] sm:$0x3]
    %v3355 = vlaneseq
    %v3356 = vshrl.u32 %v3355, 7
    %v3357 = vsub.s32 0, %v3356
    %v3358 = vrot.slane %v3348, %v3357
    %v3359 = vlaneseq
    %v3360 = vshrl.u32 %v3359, 7
    %v3361 = vsub.s32 1, %v3360
    %v3362 = vrot.slane %v3348, %v3361
    %3365 = vmatprep.subr.mxu0 %v3351
    %3366 = vmatpush1.xpose.msra.mxu0 %v3350
    %3367 = vmatprep.subr.mxu0 %v3353
    %3368 = vmatpush1.xpose.msra.mxu0 %v3352
    %3369 = vmatprep.subr.mxu0 0.0
    %3370 = vmatpush1.xpose.msra.mxu0 0.0
    %3371 = vmatprep.subr.mxu0 0.0
    %3372 = vmatpush1.xpose.msra.mxu0 0.0
    %3373 = vmatprep.subr.mxu0 0.0
    %3374 = vmatpush1.xpose.msra.mxu0 0.0
    %3375 = vmatprep.subr.mxu0 0.0
    %3376 = vmatpush1.xpose.msra.mxu0 0.0
    %3377 = vmatprep.subr.mxu0 0.0
    %3378 = vmatpush1.xpose.msra.mxu0 0.0
    %3379 = vmatprep.subr.mxu0 0.0
    %3380 = vmatpush1.xpose.msra.mxu0 0.0
    %3381 = vmatprep.subr.mxu0 0.0
    %3382 = vmatpush1.xpose.msra.mxu0 0.0
    %3383 = vmatprep.subr.mxu0 0.0
    %3384 = vmatpush1.xpose.msra.mxu0 0.0
    %3385 = vmatprep.subr.mxu0 0.0
    %3386 = vmatpush1.xpose.msra.mxu0 0.0
    %3387 = vmatprep.subr.mxu0 0.0
    %3388 = vmatpush1.xpose.msra.mxu0 0.0
    %3389 = vmatprep.subr.mxu0 0.0
    %3390 = vmatpush1.xpose.msra.mxu0 0.0
    %3391 = vmatprep.subr.mxu0 0.0
    %3392 = vmatpush1.xpose.msra.mxu0 0.0
    %3393 = vmatprep.subr.mxu0 0.0
    %3394 = vmatpush1.xpose.msra.mxu0 0.0
    %3395 = vmatprep.subr.mxu0 0.0
    %3396 = vmatpush1.xpose.msra.mxu0 0.0
    %3397 = vmatprep.subr.mxu0 0.0
    %3398 = vmatpush1.xpose.msra.mxu0 0.0
    %3399 = vmatprep.subr.mxu0 0.0
    %3400 = vmatpush1.xpose.msra.mxu0 0.0
    %3401 = vmatprep.subr.mxu0 0.0
    %3402 = vmatpush1.xpose.msra.mxu0 0.0
    %3403 = vmatprep.subr.mxu0 0.0
    %3404 = vmatpush1.xpose.msra.mxu0 0.0
    %3405 = vmatprep.subr.mxu0 0.0
    %3406 = vmatpush1.xpose.msra.mxu0 0.0
    %3407 = vmatprep.subr.mxu0 0.0
    %3408 = vmatpush1.xpose.msra.mxu0 0.0
    %3409 = vmatprep.subr.mxu0 0.0
    %3410 = vmatpush1.xpose.msra.mxu0 0.0
    %3411 = vmatprep.subr.mxu0 0.0
    %3412 = vmatpush1.xpose.msra.mxu0 0.0
    %3413 = vmatprep.subr.mxu0 0.0
    %3414 = vmatpush1.xpose.msra.mxu0 0.0
    %3415 = vmatprep.subr.mxu0 0.0
    %3416 = vmatpush1.xpose.msra.mxu0 0.0
    %3417 = vmatprep.subr.mxu0 0.0
    %3418 = vmatpush1.xpose.msra.mxu0 0.0
    %3419 = vmatprep.subr.mxu0 0.0
    %3420 = vmatpush1.xpose.msra.mxu0 0.0
    %3421 = vmatprep.subr.mxu0 0.0
    %3422 = vmatpush1.xpose.msra.mxu0 0.0
    %3423 = vmatprep.subr.mxu0 0.0
    %3424 = vmatpush1.xpose.msra.mxu0 0.0
    %3425 = vmatprep.subr.mxu0 0.0
    %3426 = vmatpush1.xpose.msra.mxu0 0.0
    %3427 = vmatprep.subr.mxu0 0.0
    %3428 = vmatpush1.xpose.msra.mxu0 0.0
    %3429 = vmatprep.mubr.f32.mxu0 %v3362
    %3430 = vmatmul.mubr.f32.gmra.mrb[0].mxu0 %v3358
    %v3431 = vpop.f32.mrb[0].mxu0
    %v3432 = vadd.f32 0.0, %v3431
    %v3433 = vpop.f32.mrb[0].mxu0
    %3434 = vdwg.mxu0
    %v3435 = vadd.f32 %v3346, %v3432
    %s3436 = scalar_lea.vmem [#allocation4], 36
    %v3437 = vld [vmem:[%s3436] ss:$8 sm:$0x3]
    %s3438 = scalar_lea.vmem %s6, 384
    %v3439 = vld [vmem:[%s3438] sm:$0xff]
    %v3440 = vld [vmem:[%s3438 + $0x8] sm:$0xff]
    %v3441 = vld [vmem:[%s3438 + $0x10] sm:$0x3]
    %v3442 = vld [vmem:[%s3438 + $0x18] sm:$0x3]
    %v3444 = vlaneseq
    %v3445 = vshrl.u32 %v3444, 7
    %v3446 = vsub.s32 0, %v3445
    %v3447 = vrot.slane %v3437, %v3446
    %v3448 = vlaneseq
    %v3449 = vshrl.u32 %v3448, 7
    %v3450 = vsub.s32 1, %v3449
    %v3451 = vrot.slane %v3437, %v3450
    %3454 = vmatprep.subr.mxu0 %v3440
    %3455 = vmatpush1.xpose.msra.mxu0 %v3439
    %3456 = vmatprep.subr.mxu0 %v3442
    %3457 = vmatpush1.xpose.msra.mxu0 %v3441
    %3458 = vmatprep.subr.mxu0 0.0
    %3459 = vmatpush1.xpose.msra.mxu0 0.0
    %3460 = vmatprep.subr.mxu0 0.0
    %3461 = vmatpush1.xpose.msra.mxu0 0.0
    %3462 = vmatprep.subr.mxu0 0.0
    %3463 = vmatpush1.xpose.msra.mxu0 0.0
    %3464 = vmatprep.subr.mxu0 0.0
    %3465 = vmatpush1.xpose.msra.mxu0 0.0
    %3466 = vmatprep.subr.mxu0 0.0
    %3467 = vmatpush1.xpose.msra.mxu0 0.0
    %3468 = vmatprep.subr.mxu0 0.0
    %3469 = vmatpush1.xpose.msra.mxu0 0.0
    %3470 = vmatprep.subr.mxu0 0.0
    %3471 = vmatpush1.xpose.msra.mxu0 0.0
    %3472 = vmatprep.subr.mxu0 0.0
    %3473 = vmatpush1.xpose.msra.mxu0 0.0
    %3474 = vmatprep.subr.mxu0 0.0
    %3475 = vmatpush1.xpose.msra.mxu0 0.0
    %3476 = vmatprep.subr.mxu0 0.0
    %3477 = vmatpush1.xpose.msra.mxu0 0.0
    %3478 = vmatprep.subr.mxu0 0.0
    %3479 = vmatpush1.xpose.msra.mxu0 0.0
    %3480 = vmatprep.subr.mxu0 0.0
    %3481 = vmatpush1.xpose.msra.mxu0 0.0
    %3482 = vmatprep.subr.mxu0 0.0
    %3483 = vmatpush1.xpose.msra.mxu0 0.0
    %3484 = vmatprep.subr.mxu0 0.0
    %3485 = vmatpush1.xpose.msra.mxu0 0.0
    %3486 = vmatprep.subr.mxu0 0.0
    %3487 = vmatpush1.xpose.msra.mxu0 0.0
    %3488 = vmatprep.subr.mxu0 0.0
    %3489 = vmatpush1.xpose.msra.mxu0 0.0
    %3490 = vmatprep.subr.mxu0 0.0
    %3491 = vmatpush1.xpose.msra.mxu0 0.0
    %3492 = vmatprep.subr.mxu0 0.0
    %3493 = vmatpush1.xpose.msra.mxu0 0.0
    %3494 = vmatprep.subr.mxu0 0.0
    %3495 = vmatpush1.xpose.msra.mxu0 0.0
    %3496 = vmatprep.subr.mxu0 0.0
    %3497 = vmatpush1.xpose.msra.mxu0 0.0
    %3498 = vmatprep.subr.mxu0 0.0
    %3499 = vmatpush1.xpose.msra.mxu0 0.0
    %3500 = vmatprep.subr.mxu0 0.0
    %3501 = vmatpush1.xpose.msra.mxu0 0.0
    %3502 = vmatprep.subr.mxu0 0.0
    %3503 = vmatpush1.xpose.msra.mxu0 0.0
    %3504 = vmatprep.subr.mxu0 0.0
    %3505 = vmatpush1.xpose.msra.mxu0 0.0
    %3506 = vmatprep.subr.mxu0 0.0
    %3507 = vmatpush1.xpose.msra.mxu0 0.0
    %3508 = vmatprep.subr.mxu0 0.0
    %3509 = vmatpush1.xpose.msra.mxu0 0.0
    %3510 = vmatprep.subr.mxu0 0.0
    %3511 = vmatpush1.xpose.msra.mxu0 0.0
    %3512 = vmatprep.subr.mxu0 0.0
    %3513 = vmatpush1.xpose.msra.mxu0 0.0
    %3514 = vmatprep.subr.mxu0 0.0
    %3515 = vmatpush1.xpose.msra.mxu0 0.0
    %3516 = vmatprep.subr.mxu0 0.0
    %3517 = vmatpush1.xpose.msra.mxu0 0.0
    %3518 = vmatprep.mubr.f32.mxu0 %v3451
    %3519 = vmatmul.mubr.f32.gmra.mrb[0].mxu0 %v3447
    %v3520 = vpop.f32.mrb[0].mxu0
    %v3521 = vadd.f32 0.0, %v3520
    %v3522 = vpop.f32.mrb[0].mxu0
    %3523 = vdwg.mxu0
    %v3524 = vadd.f32 %v3435, %v3521
    %s3525 = scalar_lea.vmem [#allocation4], 37
    %v3526 = vld [vmem:[%s3525] ss:$8 sm:$0x3]
    %s3527 = scalar_lea.vmem %s6, 416
    %v3528 = vld [vmem:[%s3527] sm:$0xff]
    %v3529 = vld [vmem:[%s3527 + $0x8] sm:$0xff]
    %v3530 = vld [vmem:[%s3527 + $0x10] sm:$0x3]
    %v3531 = vld [vmem:[%s3527 + $0x18] sm:$0x3]
    %v3533 = vlaneseq
    %v3534 = vshrl.u32 %v3533, 7
    %v3535 = vsub.s32 0, %v3534
    %v3536 = vrot.slane %v3526, %v3535
    %v3537 = vlaneseq
    %v3538 = vshrl.u32 %v3537, 7
    %v3539 = vsub.s32 1, %v3538
    %v3540 = vrot.slane %v3526, %v3539
    %3543 = vmatprep.subr.mxu0 %v3529
    %3544 = vmatpush1.xpose.msra.mxu0 %v3528
    %3545 = vmatprep.subr.mxu0 %v3531
    %3546 = vmatpush1.xpose.msra.mxu0 %v3530
    %3547 = vmatprep.subr.mxu0 0.0
    %3548 = vmatpush1.xpose.msra.mxu0 0.0
    %3549 = vmatprep.subr.mxu0 0.0
    %3550 = vmatpush1.xpose.msra.mxu0 0.0
    %3551 = vmatprep.subr.mxu0 0.0
    %3552 = vmatpush1.xpose.msra.mxu0 0.0
    %3553 = vmatprep.subr.mxu0 0.0
    %3554 = vmatpush1.xpose.msra.mxu0 0.0
    %3555 = vmatprep.subr.mxu0 0.0
    %3556 = vmatpush1.xpose.msra.mxu0 0.0
    %3557 = vmatprep.subr.mxu0 0.0
    %3558 = vmatpush1.xpose.msra.mxu0 0.0
    %3559 = vmatprep.subr.mxu0 0.0
    %3560 = vmatpush1.xpose.msra.mxu0 0.0
    %3561 = vmatprep.subr.mxu0 0.0
    %3562 = vmatpush1.xpose.msra.mxu0 0.0
    %3563 = vmatprep.subr.mxu0 0.0
    %3564 = vmatpush1.xpose.msra.mxu0 0.0
    %3565 = vmatprep.subr.mxu0 0.0
    %3566 = vmatpush1.xpose.msra.mxu0 0.0
    %3567 = vmatprep.subr.mxu0 0.0
    %3568 = vmatpush1.xpose.msra.mxu0 0.0
    %3569 = vmatprep.subr.mxu0 0.0
    %3570 = vmatpush1.xpose.msra.mxu0 0.0
    %3571 = vmatprep.subr.mxu0 0.0
    %3572 = vmatpush1.xpose.msra.mxu0 0.0
    %3573 = vmatprep.subr.mxu0 0.0
    %3574 = vmatpush1.xpose.msra.mxu0 0.0
    %3575 = vmatprep.subr.mxu0 0.0
    %3576 = vmatpush1.xpose.msra.mxu0 0.0
    %3577 = vmatprep.subr.mxu0 0.0
    %3578 = vmatpush1.xpose.msra.mxu0 0.0
    %3579 = vmatprep.subr.mxu0 0.0
    %3580 = vmatpush1.xpose.msra.mxu0 0.0
    %3581 = vmatprep.subr.mxu0 0.0
    %3582 = vmatpush1.xpose.msra.mxu0 0.0
    %3583 = vmatprep.subr.mxu0 0.0
    %3584 = vmatpush1.xpose.msra.mxu0 0.0
    %3585 = vmatprep.subr.mxu0 0.0
    %3586 = vmatpush1.xpose.msra.mxu0 0.0
    %3587 = vmatprep.subr.mxu0 0.0
    %3588 = vmatpush1.xpose.msra.mxu0 0.0
    %3589 = vmatprep.subr.mxu0 0.0
    %3590 = vmatpush1.xpose.msra.mxu0 0.0
    %3591 = vmatprep.subr.mxu0 0.0
    %3592 = vmatpush1.xpose.msra.mxu0 0.0
    %3593 = vmatprep.subr.mxu0 0.0
    %3594 = vmatpush1.xpose.msra.mxu0 0.0
    %3595 = vmatprep.subr.mxu0 0.0
    %3596 = vmatpush1.xpose.msra.mxu0 0.0
    %3597 = vmatprep.subr.mxu0 0.0
    %3598 = vmatpush1.xpose.msra.mxu0 0.0
    %3599 = vmatprep.subr.mxu0 0.0
    %3600 = vmatpush1.xpose.msra.mxu0 0.0
    %3601 = vmatprep.subr.mxu0 0.0
    %3602 = vmatpush1.xpose.msra.mxu0 0.0
    %3603 = vmatprep.subr.mxu0 0.0
    %3604 = vmatpush1.xpose.msra.mxu0 0.0
    %3605 = vmatprep.subr.mxu0 0.0
    %3606 = vmatpush1.xpose.msra.mxu0 0.0
    %3607 = vmatprep.mubr.f32.mxu0 %v3540
    %3608 = vmatmul.mubr.f32.gmra.mrb[0].mxu0 %v3536
    %v3609 = vpop.f32.mrb[0].mxu0
    %v3610 = vadd.f32 0.0, %v3609
    %v3611 = vpop.f32.mrb[0].mxu0
    %3612 = vdwg.mxu0
    %v3613 = vadd.f32 %v3524, %v3610
    %s3614 = scalar_lea.vmem [#allocation4], 38
    %v3615 = vld [vmem:[%s3614] ss:$8 sm:$0x3]
    %s3616 = scalar_lea.vmem %s6, 448
    %v3617 = vld [vmem:[%s3616] sm:$0xff]
    %v3618 = vld [vmem:[%s3616 + $0x8] sm:$0xff]
    %v3619 = vld [vmem:[%s3616 + $0x10] sm:$0x3]
    %v3620 = vld [vmem:[%s3616 + $0x18] sm:$0x3]
    %v3622 = vlaneseq
    %v3623 = vshrl.u32 %v3622, 7
    %v3624 = vsub.s32 0, %v3623
    %v3625 = vrot.slane %v3615, %v3624
    %v3626 = vlaneseq
    %v3627 = vshrl.u32 %v3626, 7
    %v3628 = vsub.s32 1, %v3627
    %v3629 = vrot.slane %v3615, %v3628
    %3632 = vmatprep.subr.mxu0 %v3618
    %3633 = vmatpush1.xpose.msra.mxu0 %v3617
    %3634 = vmatprep.subr.mxu0 %v3620
    %3635 = vmatpush1.xpose.msra.mxu0 %v3619
    %3636 = vmatprep.subr.mxu0 0.0
    %3637 = vmatpush1.xpose.msra.mxu0 0.0
    %3638 = vmatprep.subr.mxu0 0.0
    %3639 = vmatpush1.xpose.msra.mxu0 0.0
    %3640 = vmatprep.subr.mxu0 0.0
    %3641 = vmatpush1.xpose.msra.mxu0 0.0
    %3642 = vmatprep.subr.mxu0 0.0
    %3643 = vmatpush1.xpose.msra.mxu0 0.0
    %3644 = vmatprep.subr.mxu0 0.0
    %3645 = vmatpush1.xpose.msra.mxu0 0.0
    %3646 = vmatprep.subr.mxu0 0.0
    %3647 = vmatpush1.xpose.msra.mxu0 0.0
    %3648 = vmatprep.subr.mxu0 0.0
    %3649 = vmatpush1.xpose.msra.mxu0 0.0
    %3650 = vmatprep.subr.mxu0 0.0
    %3651 = vmatpush1.xpose.msra.mxu0 0.0
    %3652 = vmatprep.subr.mxu0 0.0
    %3653 = vmatpush1.xpose.msra.mxu0 0.0
    %3654 = vmatprep.subr.mxu0 0.0
    %3655 = vmatpush1.xpose.msra.mxu0 0.0
    %3656 = vmatprep.subr.mxu0 0.0
    %3657 = vmatpush1.xpose.msra.mxu0 0.0
    %3658 = vmatprep.subr.mxu0 0.0
    %3659 = vmatpush1.xpose.msra.mxu0 0.0
    %3660 = vmatprep.subr.mxu0 0.0
    %3661 = vmatpush1.xpose.msra.mxu0 0.0
    %3662 = vmatprep.subr.mxu0 0.0
    %3663 = vmatpush1.xpose.msra.mxu0 0.0
    %3664 = vmatprep.subr.mxu0 0.0
    %3665 = vmatpush1.xpose.msra.mxu0 0.0
    %3666 = vmatprep.subr.mxu0 0.0
    %3667 = vmatpush1.xpose.msra.mxu0 0.0
    %3668 = vmatprep.subr.mxu0 0.0
    %3669 = vmatpush1.xpose.msra.mxu0 0.0
    %3670 = vmatprep.subr.mxu0 0.0
    %3671 = vmatpush1.xpose.msra.mxu0 0.0
    %3672 = vmatprep.subr.mxu0 0.0
    %3673 = vmatpush1.xpose.msra.mxu0 0.0
    %3674 = vmatprep.subr.mxu0 0.0
    %3675 = vmatpush1.xpose.msra.mxu0 0.0
    %3676 = vmatprep.subr.mxu0 0.0
    %3677 = vmatpush1.xpose.msra.mxu0 0.0
    %3678 = vmatprep.subr.mxu0 0.0
    %3679 = vmatpush1.xpose.msra.mxu0 0.0
    %3680 = vmatprep.subr.mxu0 0.0
    %3681 = vmatpush1.xpose.msra.mxu0 0.0
    %3682 = vmatprep.subr.mxu0 0.0
    %3683 = vmatpush1.xpose.msra.mxu0 0.0
    %3684 = vmatprep.subr.mxu0 0.0
    %3685 = vmatpush1.xpose.msra.mxu0 0.0
    %3686 = vmatprep.subr.mxu0 0.0
    %3687 = vmatpush1.xpose.msra.mxu0 0.0
    %3688 = vmatprep.subr.mxu0 0.0
    %3689 = vmatpush1.xpose.msra.mxu0 0.0
    %3690 = vmatprep.subr.mxu0 0.0
    %3691 = vmatpush1.xpose.msra.mxu0 0.0
    %3692 = vmatprep.subr.mxu0 0.0
    %3693 = vmatpush1.xpose.msra.mxu0 0.0
    %3694 = vmatprep.subr.mxu0 0.0
    %3695 = vmatpush1.xpose.msra.mxu0 0.0
    %3696 = vmatprep.mubr.f32.mxu0 %v3629
    %3697 = vmatmul.mubr.f32.gmra.mrb[0].mxu0 %v3625
    %v3698 = vpop.f32.mrb[0].mxu0
    %v3699 = vadd.f32 0.0, %v3698
    %v3700 = vpop.f32.mrb[0].mxu0
    %3701 = vdwg.mxu0
    %v3702 = vadd.f32 %v3613, %v3699
    %s3703 = scalar_lea.vmem [#allocation4], 39
    %v3704 = vld [vmem:[%s3703] ss:$8 sm:$0x3]
    %s3705 = scalar_lea.vmem %s6, 480
    %v3706 = vld [vmem:[%s3705] sm:$0xff]
    %v3707 = vld [vmem:[%s3705 + $0x8] sm:$0xff]
    %v3708 = vld [vmem:[%s3705 + $0x10] sm:$0x3]
    %v3709 = vld [vmem:[%s3705 + $0x18] sm:$0x3]
    %v3711 = vlaneseq
    %v3712 = vshrl.u32 %v3711, 7
    %v3713 = vsub.s32 0, %v3712
    %v3714 = vrot.slane %v3704, %v3713
    %v3715 = vlaneseq
    %v3716 = vshrl.u32 %v3715, 7
    %v3717 = vsub.s32 1, %v3716
    %v3718 = vrot.slane %v3704, %v3717
    %3721 = vmatprep.subr.mxu0 %v3707
    %3722 = vmatpush1.xpose.msra.mxu0 %v3706
    %3723 = vmatprep.subr.mxu0 %v3709
    %3724 = vmatpush1.xpose.msra.mxu0 %v3708
    %3725 = vmatprep.subr.mxu0 0.0
    %3726 = vmatpush1.xpose.msra.mxu0 0.0
    %3727 = vmatprep.subr.mxu0 0.0
    %3728 = vmatpush1.xpose.msra.mxu0 0.0
    %3729 = vmatprep.subr.mxu0 0.0
    %3730 = vmatpush1.xpose.msra.mxu0 0.0
    %3731 = vmatprep.subr.mxu0 0.0
    %3732 = vmatpush1.xpose.msra.mxu0 0.0
    %3733 = vmatprep.subr.mxu0 0.0
    %3734 = vmatpush1.xpose.msra.mxu0 0.0
    %3735 = vmatprep.subr.mxu0 0.0
    %3736 = vmatpush1.xpose.msra.mxu0 0.0
    %3737 = vmatprep.subr.mxu0 0.0
    %3738 = vmatpush1.xpose.msra.mxu0 0.0
    %3739 = vmatprep.subr.mxu0 0.0
    %3740 = vmatpush1.xpose.msra.mxu0 0.0
    %3741 = vmatprep.subr.mxu0 0.0
    %3742 = vmatpush1.xpose.msra.mxu0 0.0
    %3743 = vmatprep.subr.mxu0 0.0
    %3744 = vmatpush1.xpose.msra.mxu0 0.0
    %3745 = vmatprep.subr.mxu0 0.0
    %3746 = vmatpush1.xpose.msra.mxu0 0.0
    %3747 = vmatprep.subr.mxu0 0.0
    %3748 = vmatpush1.xpose.msra.mxu0 0.0
    %3749 = vmatprep.subr.mxu0 0.0
    %3750 = vmatpush1.xpose.msra.mxu0 0.0
    %3751 = vmatprep.subr.mxu0 0.0
    %3752 = vmatpush1.xpose.msra.mxu0 0.0
    %3753 = vmatprep.subr.mxu0 0.0
    %3754 = vmatpush1.xpose.msra.mxu0 0.0
    %3755 = vmatprep.subr.mxu0 0.0
    %3756 = vmatpush1.xpose.msra.mxu0 0.0
    %3757 = vmatprep.subr.mxu0 0.0
    %3758 = vmatpush1.xpose.msra.mxu0 0.0
    %3759 = vmatprep.subr.mxu0 0.0
    %3760 = vmatpush1.xpose.msra.mxu0 0.0
    %3761 = vmatprep.subr.mxu0 0.0
    %3762 = vmatpush1.xpose.msra.mxu0 0.0
    %3763 = vmatprep.subr.mxu0 0.0
    %3764 = vmatpush1.xpose.msra.mxu0 0.0
    %3765 = vmatprep.subr.mxu0 0.0
    %3766 = vmatpush1.xpose.msra.mxu0 0.0
    %3767 = vmatprep.subr.mxu0 0.0
    %3768 = vmatpush1.xpose.msra.mxu0 0.0
    %3769 = vmatprep.subr.mxu0 0.0
    %3770 = vmatpush1.xpose.msra.mxu0 0.0
    %3771 = vmatprep.subr.mxu0 0.0
    %3772 = vmatpush1.xpose.msra.mxu0 0.0
    %3773 = vmatprep.subr.mxu0 0.0
    %3774 = vmatpush1.xpose.msra.mxu0 0.0
    %3775 = vmatprep.subr.mxu0 0.0
    %3776 = vmatpush1.xpose.msra.mxu0 0.0
    %3777 = vmatprep.subr.mxu0 0.0
    %3778 = vmatpush1.xpose.msra.mxu0 0.0
    %3779 = vmatprep.subr.mxu0 0.0
    %3780 = vmatpush1.xpose.msra.mxu0 0.0
    %3781 = vmatprep.subr.mxu0 0.0
    %3782 = vmatpush1.xpose.msra.mxu0 0.0
    %3783 = vmatprep.subr.mxu0 0.0
    %3784 = vmatpush1.xpose.msra.mxu0 0.0
    %3785 = vmatprep.mubr.f32.mxu0 %v3718
    %3786 = vmatmul.mubr.f32.gmra.mrb[0].mxu0 %v3714
    %v3787 = vpop.f32.mrb[0].mxu0
    %v3788 = vadd.f32 0.0, %v3787
    %v3789 = vpop.f32.mrb[0].mxu0
    %3790 = vdwg.mxu0
    %v3791 = vadd.f32 %v3702, %v3788
    %s3792 = scalar_lea.vmem [#allocation4], 64
    %v3793 = vld [vmem:[%s3792] ss:$8 sm:$0x3]
    %s3794 = scalar_lea.vmem %s6, 512
    %v3795 = vld [vmem:[%s3794] sm:$0xff]
    %v3796 = vld [vmem:[%s3794 + $0x8] sm:$0xff]
    %v3797 = vld [vmem:[%s3794 + $0x10] sm:$0x3]
    %v3798 = vld [vmem:[%s3794 + $0x18] sm:$0x3]
    %v3800 = vlaneseq
    %v3801 = vshrl.u32 %v3800, 7
    %v3802 = vsub.s32 0, %v3801
    %v3803 = vrot.slane %v3793, %v3802
    %v3804 = vlaneseq
    %v3805 = vshrl.u32 %v3804, 7
    %v3806 = vsub.s32 1, %v3805
    %v3807 = vrot.slane %v3793, %v3806
    %3810 = vmatprep.subr.mxu0 %v3796
    %3811 = vmatpush1.xpose.msra.mxu0 %v3795
    %3812 = vmatprep.subr.mxu0 %v3798
    %3813 = vmatpush1.xpose.msra.mxu0 %v3797
    %3814 = vmatprep.subr.mxu0 0.0
    %3815 = vmatpush1.xpose.msra.mxu0 0.0
    %3816 = vmatprep.subr.mxu0 0.0
    %3817 = vmatpush1.xpose.msra.mxu0 0.0
    %3818 = vmatprep.subr.mxu0 0.0
    %3819 = vmatpush1.xpose.msra.mxu0 0.0
    %3820 = vmatprep.subr.mxu0 0.0
    %3821 = vmatpush1.xpose.msra.mxu0 0.0
    %3822 = vmatprep.subr.mxu0 0.0
    %3823 = vmatpush1.xpose.msra.mxu0 0.0
    %3824 = vmatprep.subr.mxu0 0.0
    %3825 = vmatpush1.xpose.msra.mxu0 0.0
    %3826 = vmatprep.subr.mxu0 0.0
    %3827 = vmatpush1.xpose.msra.mxu0 0.0
    %3828 = vmatprep.subr.mxu0 0.0
    %3829 = vmatpush1.xpose.msra.mxu0 0.0
    %3830 = vmatprep.subr.mxu0 0.0
    %3831 = vmatpush1.xpose.msra.mxu0 0.0
    %3832 = vmatprep.subr.mxu0 0.0
    %3833 = vmatpush1.xpose.msra.mxu0 0.0
    %3834 = vmatprep.subr.mxu0 0.0
    %3835 = vmatpush1.xpose.msra.mxu0 0.0
    %3836 = vmatprep.subr.mxu0 0.0
    %3837 = vmatpush1.xpose.msra.mxu0 0.0
    %3838 = vmatprep.subr.mxu0 0.0
    %3839 = vmatpush1.xpose.msra.mxu0 0.0
    %3840 = vmatprep.subr.mxu0 0.0
    %3841 = vmatpush1.xpose.msra.mxu0 0.0
    %3842 = vmatprep.subr.mxu0 0.0
    %3843 = vmatpush1.xpose.msra.mxu0 0.0
    %3844 = vmatprep.subr.mxu0 0.0
    %3845 = vmatpush1.xpose.msra.mxu0 0.0
    %3846 = vmatprep.subr.mxu0 0.0
    %3847 = vmatpush1.xpose.msra.mxu0 0.0
    %3848 = vmatprep.subr.mxu0 0.0
    %3849 = vmatpush1.xpose.msra.mxu0 0.0
    %3850 = vmatprep.subr.mxu0 0.0
    %3851 = vmatpush1.xpose.msra.mxu0 0.0
    %3852 = vmatprep.subr.mxu0 0.0
    %3853 = vmatpush1.xpose.msra.mxu0 0.0
    %3854 = vmatprep.subr.mxu0 0.0
    %3855 = vmatpush1.xpose.msra.mxu0 0.0
    %3856 = vmatprep.subr.mxu0 0.0
    %3857 = vmatpush1.xpose.msra.mxu0 0.0
    %3858 = vmatprep.subr.mxu0 0.0
    %3859 = vmatpush1.xpose.msra.mxu0 0.0
    %3860 = vmatprep.subr.mxu0 0.0
    %3861 = vmatpush1.xpose.msra.mxu0 0.0
    %3862 = vmatprep.subr.mxu0 0.0
    %3863 = vmatpush1.xpose.msra.mxu0 0.0
    %3864 = vmatprep.subr.mxu0 0.0
    %3865 = vmatpush1.xpose.msra.mxu0 0.0
    %3866 = vmatprep.subr.mxu0 0.0
    %3867 = vmatpush1.xpose.msra.mxu0 0.0
    %3868 = vmatprep.subr.mxu0 0.0
    %3869 = vmatpush1.xpose.msra.mxu0 0.0
    %3870 = vmatprep.subr.mxu0 0.0
    %3871 = vmatpush1.xpose.msra.mxu0 0.0
    %3872 = vmatprep.subr.mxu0 0.0
    %3873 = vmatpush1.xpose.msra.mxu0 0.0
    %3874 = vmatprep.mubr.f32.mxu0 %v3807
    %3875 = vmatmul.mubr.f32.gmra.mrb[0].mxu0 %v3803
    %v3876 = vpop.f32.mrb[0].mxu0
    %v3877 = vadd.f32 0.0, %v3876
    %v3878 = vpop.f32.mrb[0].mxu0
    %3879 = vdwg.mxu0
    %v3880 = vadd.f32 %v3791, %v3877
    %s3881 = scalar_lea.vmem [#allocation4], 65
    %v3882 = vld [vmem:[%s3881] ss:$8 sm:$0x3]
    %s3883 = scalar_lea.vmem %s6, 544
    %v3884 = vld [vmem:[%s3883] sm:$0xff]
    %v3885 = vld [vmem:[%s3883 + $0x8] sm:$0xff]
    %v3886 = vld [vmem:[%s3883 + $0x10] sm:$0x3]
    %v3887 = vld [vmem:[%s3883 + $0x18] sm:$0x3]
    %v3889 = vlaneseq
    %v3890 = vshrl.u32 %v3889, 7
    %v3891 = vsub.s32 0, %v3890
    %v3892 = vrot.slane %v3882, %v3891
    %v3893 = vlaneseq
    %v3894 = vshrl.u32 %v3893, 7
    %v3895 = vsub.s32 1, %v3894
    %v3896 = vrot.slane %v3882, %v3895
    %3899 = vmatprep.subr.mxu0 %v3885
    %3900 = vmatpush1.xpose.msra.mxu0 %v3884
    %3901 = vmatprep.subr.mxu0 %v3887
    %3902 = vmatpush1.xpose.msra.mxu0 %v3886
    %3903 = vmatprep.subr.mxu0 0.0
    %3904 = vmatpush1.xpose.msra.mxu0 0.0
    %3905 = vmatprep.subr.mxu0 0.0
    %3906 = vmatpush1.xpose.msra.mxu0 0.0
    %3907 = vmatprep.subr.mxu0 0.0
    %3908 = vmatpush1.xpose.msra.mxu0 0.0
    %3909 = vmatprep.subr.mxu0 0.0
    %3910 = vmatpush1.xpose.msra.mxu0 0.0
    %3911 = vmatprep.subr.mxu0 0.0
    %3912 = vmatpush1.xpose.msra.mxu0 0.0
    %3913 = vmatprep.subr.mxu0 0.0
    %3914 = vmatpush1.xpose.msra.mxu0 0.0
    %3915 = vmatprep.subr.mxu0 0.0
    %3916 = vmatpush1.xpose.msra.mxu0 0.0
    %3917 = vmatprep.subr.mxu0 0.0
    %3918 = vmatpush1.xpose.msra.mxu0 0.0
    %3919 = vmatprep.subr.mxu0 0.0
    %3920 = vmatpush1.xpose.msra.mxu0 0.0
    %3921 = vmatprep.subr.mxu0 0.0
    %3922 = vmatpush1.xpose.msra.mxu0 0.0
    %3923 = vmatprep.subr.mxu0 0.0
    %3924 = vmatpush1.xpose.msra.mxu0 0.0
    %3925 = vmatprep.subr.mxu0 0.0
    %3926 = vmatpush1.xpose.msra.mxu0 0.0
    %3927 = vmatprep.subr.mxu0 0.0
    %3928 = vmatpush1.xpose.msra.mxu0 0.0
    %3929 = vmatprep.subr.mxu0 0.0
    %3930 = vmatpush1.xpose.msra.mxu0 0.0
    %3931 = vmatprep.subr.mxu0 0.0
    %3932 = vmatpush1.xpose.msra.mxu0 0.0
    %3933 = vmatprep.subr.mxu0 0.0
    %3934 = vmatpush1.xpose.msra.mxu0 0.0
    %3935 = vmatprep.subr.mxu0 0.0
    %3936 = vmatpush1.xpose.msra.mxu0 0.0
    %3937 = vmatprep.subr.mxu0 0.0
    %3938 = vmatpush1.xpose.msra.mxu0 0.0
    %3939 = vmatprep.subr.mxu0 0.0
    %3940 = vmatpush1.xpose.msra.mxu0 0.0
    %3941 = vmatprep.subr.mxu0 0.0
    %3942 = vmatpush1.xpose.msra.mxu0 0.0
    %3943 = vmatprep.subr.mxu0 0.0
    %3944 = vmatpush1.xpose.msra.mxu0 0.0
    %3945 = vmatprep.subr.mxu0 0.0
    %3946 = vmatpush1.xpose.msra.mxu0 0.0
    %3947 = vmatprep.subr.mxu0 0.0
    %3948 = vmatpush1.xpose.msra.mxu0 0.0
    %3949 = vmatprep.subr.mxu0 0.0
    %3950 = vmatpush1.xpose.msra.mxu0 0.0
    %3951 = vmatprep.subr.mxu0 0.0
    %3952 = vmatpush1.xpose.msra.mxu0 0.0
    %3953 = vmatprep.subr.mxu0 0.0
    %3954 = vmatpush1.xpose.msra.mxu0 0.0
    %3955 = vmatprep.subr.mxu0 0.0
    %3956 = vmatpush1.xpose.msra.mxu0 0.0
    %3957 = vmatprep.subr.mxu0 0.0
    %3958 = vmatpush1.xpose.msra.mxu0 0.0
    %3959 = vmatprep.subr.mxu0 0.0
    %3960 = vmatpush1.xpose.msra.mxu0 0.0
    %3961 = vmatprep.subr.mxu0 0.0
    %3962 = vmatpush1.xpose.msra.mxu0 0.0
    %3963 = vmatprep.mubr.f32.mxu0 %v3896
    %3964 = vmatmul.mubr.f32.gmra.mrb[0].mxu0 %v3892
    %v3965 = vpop.f32.mrb[0].mxu0
    %v3966 = vadd.f32 0.0, %v3965
    %v3967 = vpop.f32.mrb[0].mxu0
    %3968 = vdwg.mxu0
    %v3969 = vadd.f32 %v3880, %v3966
    %s3970 = scalar_lea.vmem [#allocation4], 66
    %v3971 = vld [vmem:[%s3970] ss:$8 sm:$0x3]
    %s3972 = scalar_lea.vmem %s6, 576
    %v3973 = vld [vmem:[%s3972] sm:$0xff]
    %v3974 = vld [vmem:[%s3972 + $0x8] sm:$0xff]
    %v3975 = vld [vmem:[%s3972 + $0x10] sm:$0x3]
    %v3976 = vld [vmem:[%s3972 + $0x18] sm:$0x3]
    %v3978 = vlaneseq
    %v3979 = vshrl.u32 %v3978, 7
    %v3980 = vsub.s32 0, %v3979
    %v3981 = vrot.slane %v3971, %v3980
    %v3982 = vlaneseq
    %v3983 = vshrl.u32 %v3982, 7
    %v3984 = vsub.s32 1, %v3983
    %v3985 = vrot.slane %v3971, %v3984
    %3988 = vmatprep.subr.mxu0 %v3974
    %3989 = vmatpush1.xpose.msra.mxu0 %v3973
    %3990 = vmatprep.subr.mxu0 %v3976
    %3991 = vmatpush1.xpose.msra.mxu0 %v3975
    %3992 = vmatprep.subr.mxu0 0.0
    %3993 = vmatpush1.xpose.msra.mxu0 0.0
    %3994 = vmatprep.subr.mxu0 0.0
    %3995 = vmatpush1.xpose.msra.mxu0 0.0
    %3996 = vmatprep.subr.mxu0 0.0
    %3997 = vmatpush1.xpose.msra.mxu0 0.0
    %3998 = vmatprep.subr.mxu0 0.0
    %3999 = vmatpush1.xpose.msra.mxu0 0.0
    %4000 = vmatprep.subr.mxu0 0.0
    %4001 = vmatpush1.xpose.msra.mxu0 0.0
    %4002 = vmatprep.subr.mxu0 0.0
    %4003 = vmatpush1.xpose.msra.mxu0 0.0
    %4004 = vmatprep.subr.mxu0 0.0
    %4005 = vmatpush1.xpose.msra.mxu0 0.0
    %4006 = vmatprep.subr.mxu0 0.0
    %4007 = vmatpush1.xpose.msra.mxu0 0.0
    %4008 = vmatprep.subr.mxu0 0.0
    %4009 = vmatpush1.xpose.msra.mxu0 0.0
    %4010 = vmatprep.subr.mxu0 0.0
    %4011 = vmatpush1.xpose.msra.mxu0 0.0
    %4012 = vmatprep.subr.mxu0 0.0
    %4013 = vmatpush1.xpose.msra.mxu0 0.0
    %4014 = vmatprep.subr.mxu0 0.0
    %4015 = vmatpush1.xpose.msra.mxu0 0.0
    %4016 = vmatprep.subr.mxu0 0.0
    %4017 = vmatpush1.xpose.msra.mxu0 0.0
    %4018 = vmatprep.subr.mxu0 0.0
    %4019 = vmatpush1.xpose.msra.mxu0 0.0
    %4020 = vmatprep.subr.mxu0 0.0
    %4021 = vmatpush1.xpose.msra.mxu0 0.0
    %4022 = vmatprep.subr.mxu0 0.0
    %4023 = vmatpush1.xpose.msra.mxu0 0.0
    %4024 = vmatprep.subr.mxu0 0.0
    %4025 = vmatpush1.xpose.msra.mxu0 0.0
    %4026 = vmatprep.subr.mxu0 0.0
    %4027 = vmatpush1.xpose.msra.mxu0 0.0
    %4028 = vmatprep.subr.mxu0 0.0
    %4029 = vmatpush1.xpose.msra.mxu0 0.0
    %4030 = vmatprep.subr.mxu0 0.0
    %4031 = vmatpush1.xpose.msra.mxu0 0.0
    %4032 = vmatprep.subr.mxu0 0.0
    %4033 = vmatpush1.xpose.msra.mxu0 0.0
    %4034 = vmatprep.subr.mxu0 0.0
    %4035 = vmatpush1.xpose.msra.mxu0 0.0
    %4036 = vmatprep.subr.mxu0 0.0
    %4037 = vmatpush1.xpose.msra.mxu0 0.0
    %4038 = vmatprep.subr.mxu0 0.0
    %4039 = vmatpush1.xpose.msra.mxu0 0.0
    %4040 = vmatprep.subr.mxu0 0.0
    %4041 = vmatpush1.xpose.msra.mxu0 0.0
    %4042 = vmatprep.subr.mxu0 0.0
    %4043 = vmatpush1.xpose.msra.mxu0 0.0
    %4044 = vmatprep.subr.mxu0 0.0
    %4045 = vmatpush1.xpose.msra.mxu0 0.0
    %4046 = vmatprep.subr.mxu0 0.0
    %4047 = vmatpush1.xpose.msra.mxu0 0.0
    %4048 = vmatprep.subr.mxu0 0.0
    %4049 = vmatpush1.xpose.msra.mxu0 0.0
    %4050 = vmatprep.subr.mxu0 0.0
    %4051 = vmatpush1.xpose.msra.mxu0 0.0
    %4052 = vmatprep.mubr.f32.mxu0 %v3985
    %4053 = vmatmul.mubr.f32.gmra.mrb[0].mxu0 %v3981
    %v4054 = vpop.f32.mrb[0].mxu0
    %v4055 = vadd.f32 0.0, %v4054
    %v4056 = vpop.f32.mrb[0].mxu0
    %4057 = vdwg.mxu0
    %v4058 = vadd.f32 %v3969, %v4055
    %s4059 = scalar_lea.vmem [#allocation4], 67
    %v4060 = vld [vmem:[%s4059] ss:$8 sm:$0x3]
    %s4061 = scalar_lea.vmem %s6, 608
    %v4062 = vld [vmem:[%s4061] sm:$0xff]
    %v4063 = vld [vmem:[%s4061 + $0x8] sm:$0xff]
    %v4064 = vld [vmem:[%s4061 + $0x10] sm:$0x3]
    %v4065 = vld [vmem:[%s4061 + $0x18] sm:$0x3]
    %v4067 = vlaneseq
    %v4068 = vshrl.u32 %v4067, 7
    %v4069 = vsub.s32 0, %v4068
    %v4070 = vrot.slane %v4060, %v4069
    %v4071 = vlaneseq
    %v4072 = vshrl.u32 %v4071, 7
    %v4073 = vsub.s32 1, %v4072
    %v4074 = vrot.slane %v4060, %v4073
    %4077 = vmatprep.subr.mxu0 %v4063
    %4078 = vmatpush1.xpose.msra.mxu0 %v4062
    %4079 = vmatprep.subr.mxu0 %v4065
    %4080 = vmatpush1.xpose.msra.mxu0 %v4064
    %4081 = vmatprep.subr.mxu0 0.0
    %4082 = vmatpush1.xpose.msra.mxu0 0.0
    %4083 = vmatprep.subr.mxu0 0.0
    %4084 = vmatpush1.xpose.msra.mxu0 0.0
    %4085 = vmatprep.subr.mxu0 0.0
    %4086 = vmatpush1.xpose.msra.mxu0 0.0
    %4087 = vmatprep.subr.mxu0 0.0
    %4088 = vmatpush1.xpose.msra.mxu0 0.0
    %4089 = vmatprep.subr.mxu0 0.0
    %4090 = vmatpush1.xpose.msra.mxu0 0.0
    %4091 = vmatprep.subr.mxu0 0.0
    %4092 = vmatpush1.xpose.msra.mxu0 0.0
    %4093 = vmatprep.subr.mxu0 0.0
    %4094 = vmatpush1.xpose.msra.mxu0 0.0
    %4095 = vmatprep.subr.mxu0 0.0
    %4096 = vmatpush1.xpose.msra.mxu0 0.0
    %4097 = vmatprep.subr.mxu0 0.0
    %4098 = vmatpush1.xpose.msra.mxu0 0.0
    %4099 = vmatprep.subr.mxu0 0.0
    %4100 = vmatpush1.xpose.msra.mxu0 0.0
    %4101 = vmatprep.subr.mxu0 0.0
    %4102 = vmatpush1.xpose.msra.mxu0 0.0
    %4103 = vmatprep.subr.mxu0 0.0
    %4104 = vmatpush1.xpose.msra.mxu0 0.0
    %4105 = vmatprep.subr.mxu0 0.0
    %4106 = vmatpush1.xpose.msra.mxu0 0.0
    %4107 = vmatprep.subr.mxu0 0.0
    %4108 = vmatpush1.xpose.msra.mxu0 0.0
    %4109 = vmatprep.subr.mxu0 0.0
    %4110 = vmatpush1.xpose.msra.mxu0 0.0
    %4111 = vmatprep.subr.mxu0 0.0
    %4112 = vmatpush1.xpose.msra.mxu0 0.0
    %4113 = vmatprep.subr.mxu0 0.0
    %4114 = vmatpush1.xpose.msra.mxu0 0.0
    %4115 = vmatprep.subr.mxu0 0.0
    %4116 = vmatpush1.xpose.msra.mxu0 0.0
    %4117 = vmatprep.subr.mxu0 0.0
    %4118 = vmatpush1.xpose.msra.mxu0 0.0
    %4119 = vmatprep.subr.mxu0 0.0
    %4120 = vmatpush1.xpose.msra.mxu0 0.0
    %4121 = vmatprep.subr.mxu0 0.0
    %4122 = vmatpush1.xpose.msra.mxu0 0.0
    %4123 = vmatprep.subr.mxu0 0.0
    %4124 = vmatpush1.xpose.msra.mxu0 0.0
    %4125 = vmatprep.subr.mxu0 0.0
    %4126 = vmatpush1.xpose.msra.mxu0 0.0
    %4127 = vmatprep.subr.mxu0 0.0
    %4128 = vmatpush1.xpose.msra.mxu0 0.0
    %4129 = vmatprep.subr.mxu0 0.0
    %4130 = vmatpush1.xpose.msra.mxu0 0.0
    %4131 = vmatprep.subr.mxu0 0.0
    %4132 = vmatpush1.xpose.msra.mxu0 0.0
    %4133 = vmatprep.subr.mxu0 0.0
    %4134 = vmatpush1.xpose.msra.mxu0 0.0
    %4135 = vmatprep.subr.mxu0 0.0
    %4136 = vmatpush1.xpose.msra.mxu0 0.0
    %4137 = vmatprep.subr.mxu0 0.0
    %4138 = vmatpush1.xpose.msra.mxu0 0.0
    %4139 = vmatprep.subr.mxu0 0.0
    %4140 = vmatpush1.xpose.msra.mxu0 0.0
    %4141 = vmatprep.mubr.f32.mxu0 %v4074
    %4142 = vmatmul.mubr.f32.gmra.mrb[0].mxu0 %v4070
    %v4143 = vpop.f32.mrb[0].mxu0
    %v4144 = vadd.f32 0.0, %v4143
    %v4145 = vpop.f32.mrb[0].mxu0
    %4146 = vdwg.mxu0
    %v4147 = vadd.f32 %v4058, %v4144
    %s4148 = scalar_lea.vmem [#allocation4], 68
    %v4149 = vld [vmem:[%s4148] ss:$8 sm:$0x3]
    %s4150 = scalar_lea.vmem %s6, 640
    %v4151 = vld [vmem:[%s4150] sm:$0xff]
    %v4152 = vld [vmem:[%s4150 + $0x8] sm:$0xff]
    %v4153 = vld [vmem:[%s4150 + $0x10] sm:$0x3]
    %v4154 = vld [vmem:[%s4150 + $0x18] sm:$0x3]
    %v4156 = vlaneseq
    %v4157 = vshrl.u32 %v4156, 7
    %v4158 = vsub.s32 0, %v4157
    %v4159 = vrot.slane %v4149, %v4158
    %v4160 = vlaneseq
    %v4161 = vshrl.u32 %v4160, 7
    %v4162 = vsub.s32 1, %v4161
    %v4163 = vrot.slane %v4149, %v4162
    %4166 = vmatprep.subr.mxu0 %v4152
    %4167 = vmatpush1.xpose.msra.mxu0 %v4151
    %4168 = vmatprep.subr.mxu0 %v4154
    %4169 = vmatpush1.xpose.msra.mxu0 %v4153
    %4170 = vmatprep.subr.mxu0 0.0
    %4171 = vmatpush1.xpose.msra.mxu0 0.0
    %4172 = vmatprep.subr.mxu0 0.0
    %4173 = vmatpush1.xpose.msra.mxu0 0.0
    %4174 = vmatprep.subr.mxu0 0.0
    %4175 = vmatpush1.xpose.msra.mxu0 0.0
    %4176 = vmatprep.subr.mxu0 0.0
    %4177 = vmatpush1.xpose.msra.mxu0 0.0
    %4178 = vmatprep.subr.mxu0 0.0
    %4179 = vmatpush1.xpose.msra.mxu0 0.0
    %4180 = vmatprep.subr.mxu0 0.0
    %4181 = vmatpush1.xpose.msra.mxu0 0.0
    %4182 = vmatprep.subr.mxu0 0.0
    %4183 = vmatpush1.xpose.msra.mxu0 0.0
    %4184 = vmatprep.subr.mxu0 0.0
    %4185 = vmatpush1.xpose.msra.mxu0 0.0
    %4186 = vmatprep.subr.mxu0 0.0
    %4187 = vmatpush1.xpose.msra.mxu0 0.0
    %4188 = vmatprep.subr.mxu0 0.0
    %4189 = vmatpush1.xpose.msra.mxu0 0.0
    %4190 = vmatprep.subr.mxu0 0.0
    %4191 = vmatpush1.xpose.msra.mxu0 0.0
    %4192 = vmatprep.subr.mxu0 0.0
    %4193 = vmatpush1.xpose.msra.mxu0 0.0
    %4194 = vmatprep.subr.mxu0 0.0
    %4195 = vmatpush1.xpose.msra.mxu0 0.0
    %4196 = vmatprep.subr.mxu0 0.0
    %4197 = vmatpush1.xpose.msra.mxu0 0.0
    %4198 = vmatprep.subr.mxu0 0.0
    %4199 = vmatpush1.xpose.msra.mxu0 0.0
    %4200 = vmatprep.subr.mxu0 0.0
    %4201 = vmatpush1.xpose.msra.mxu0 0.0
    %4202 = vmatprep.subr.mxu0 0.0
    %4203 = vmatpush1.xpose.msra.mxu0 0.0
    %4204 = vmatprep.subr.mxu0 0.0
    %4205 = vmatpush1.xpose.msra.mxu0 0.0
    %4206 = vmatprep.subr.mxu0 0.0
    %4207 = vmatpush1.xpose.msra.mxu0 0.0
    %4208 = vmatprep.subr.mxu0 0.0
    %4209 = vmatpush1.xpose.msra.mxu0 0.0
    %4210 = vmatprep.subr.mxu0 0.0
    %4211 = vmatpush1.xpose.msra.mxu0 0.0
    %4212 = vmatprep.subr.mxu0 0.0
    %4213 = vmatpush1.xpose.msra.mxu0 0.0
    %4214 = vmatprep.subr.mxu0 0.0
    %4215 = vmatpush1.xpose.msra.mxu0 0.0
    %4216 = vmatprep.subr.mxu0 0.0
    %4217 = vmatpush1.xpose.msra.mxu0 0.0
    %4218 = vmatprep.subr.mxu0 0.0
    %4219 = vmatpush1.xpose.msra.mxu0 0.0
    %4220 = vmatprep.subr.mxu0 0.0
    %4221 = vmatpush1.xpose.msra.mxu0 0.0
    %4222 = vmatprep.subr.mxu0 0.0
    %4223 = vmatpush1.xpose.msra.mxu0 0.0
    %4224 = vmatprep.subr.mxu0 0.0
    %4225 = vmatpush1.xpose.msra.mxu0 0.0
    %4226 = vmatprep.subr.mxu0 0.0
    %4227 = vmatpush1.xpose.msra.mxu0 0.0
    %4228 = vmatprep.subr.mxu0 0.0
    %4229 = vmatpush1.xpose.msra.mxu0 0.0
    %4230 = vmatprep.mubr.f32.mxu0 %v4163
    %4231 = vmatmul.mubr.f32.gmra.mrb[0].mxu0 %v4159
    %v4232 = vpop.f32.mrb[0].mxu0
    %v4233 = vadd.f32 0.0, %v4232
    %v4234 = vpop.f32.mrb[0].mxu0
    %4235 = vdwg.mxu0
    %v4236 = vadd.f32 %v4147, %v4233
    %s4237 = scalar_lea.vmem [#allocation4], 69
    %v4238 = vld [vmem:[%s4237] ss:$8 sm:$0x3]
    %s4239 = scalar_lea.vmem %s6, 672
    %v4240 = vld [vmem:[%s4239] sm:$0xff]
    %v4241 = vld [vmem:[%s4239 + $0x8] sm:$0xff]
    %v4242 = vld [vmem:[%s4239 + $0x10] sm:$0x3]
    %v4243 = vld [vmem:[%s4239 + $0x18] sm:$0x3]
    %v4245 = vlaneseq
    %v4246 = vshrl.u32 %v4245, 7
    %v4247 = vsub.s32 0, %v4246
    %v4248 = vrot.slane %v4238, %v4247
    %v4249 = vlaneseq
    %v4250 = vshrl.u32 %v4249, 7
    %v4251 = vsub.s32 1, %v4250
    %v4252 = vrot.slane %v4238, %v4251
    %4255 = vmatprep.subr.mxu0 %v4241
    %4256 = vmatpush1.xpose.msra.mxu0 %v4240
    %4257 = vmatprep.subr.mxu0 %v4243
    %4258 = vmatpush1.xpose.msra.mxu0 %v4242
    %4259 = vmatprep.subr.mxu0 0.0
    %4260 = vmatpush1.xpose.msra.mxu0 0.0
    %4261 = vmatprep.subr.mxu0 0.0
    %4262 = vmatpush1.xpose.msra.mxu0 0.0
    %4263 = vmatprep.subr.mxu0 0.0
    %4264 = vmatpush1.xpose.msra.mxu0 0.0
    %4265 = vmatprep.subr.mxu0 0.0
    %4266 = vmatpush1.xpose.msra.mxu0 0.0
    %4267 = vmatprep.subr.mxu0 0.0
    %4268 = vmatpush1.xpose.msra.mxu0 0.0
    %4269 = vmatprep.subr.mxu0 0.0
    %4270 = vmatpush1.xpose.msra.mxu0 0.0
    %4271 = vmatprep.subr.mxu0 0.0
    %4272 = vmatpush1.xpose.msra.mxu0 0.0
    %4273 = vmatprep.subr.mxu0 0.0
    %4274 = vmatpush1.xpose.msra.mxu0 0.0
    %4275 = vmatprep.subr.mxu0 0.0
    %4276 = vmatpush1.xpose.msra.mxu0 0.0
    %4277 = vmatprep.subr.mxu0 0.0
    %4278 = vmatpush1.xpose.msra.mxu0 0.0
    %4279 = vmatprep.subr.mxu0 0.0
    %4280 = vmatpush1.xpose.msra.mxu0 0.0
    %4281 = vmatprep.subr.mxu0 0.0
    %4282 = vmatpush1.xpose.msra.mxu0 0.0
    %4283 = vmatprep.subr.mxu0 0.0
    %4284 = vmatpush1.xpose.msra.mxu0 0.0
    %4285 = vmatprep.subr.mxu0 0.0
    %4286 = vmatpush1.xpose.msra.mxu0 0.0
    %4287 = vmatprep.subr.mxu0 0.0
    %4288 = vmatpush1.xpose.msra.mxu0 0.0
    %4289 = vmatprep.subr.mxu0 0.0
    %4290 = vmatpush1.xpose.msra.mxu0 0.0
    %4291 = vmatprep.subr.mxu0 0.0
    %4292 = vmatpush1.xpose.msra.mxu0 0.0
    %4293 = vmatprep.subr.mxu0 0.0
    %4294 = vmatpush1.xpose.msra.mxu0 0.0
    %4295 = vmatprep.subr.mxu0 0.0
    %4296 = vmatpush1.xpose.msra.mxu0 0.0
    %4297 = vmatprep.subr.mxu0 0.0
    %4298 = vmatpush1.xpose.msra.mxu0 0.0
    %4299 = vmatprep.subr.mxu0 0.0
    %4300 = vmatpush1.xpose.msra.mxu0 0.0
    %4301 = vmatprep.subr.mxu0 0.0
    %4302 = vmatpush1.xpose.msra.mxu0 0.0
    %4303 = vmatprep.subr.mxu0 0.0
    %4304 = vmatpush1.xpose.msra.mxu0 0.0
    %4305 = vmatprep.subr.mxu0 0.0
    %4306 = vmatpush1.xpose.msra.mxu0 0.0
    %4307 = vmatprep.subr.mxu0 0.0
    %4308 = vmatpush1.xpose.msra.mxu0 0.0
    %4309 = vmatprep.subr.mxu0 0.0
    %4310 = vmatpush1.xpose.msra.mxu0 0.0
    %4311 = vmatprep.subr.mxu0 0.0
    %4312 = vmatpush1.xpose.msra.mxu0 0.0
    %4313 = vmatprep.subr.mxu0 0.0
    %4314 = vmatpush1.xpose.msra.mxu0 0.0
    %4315 = vmatprep.subr.mxu0 0.0
    %4316 = vmatpush1.xpose.msra.mxu0 0.0
    %4317 = vmatprep.subr.mxu0 0.0
    %4318 = vmatpush1.xpose.msra.mxu0 0.0
    %4319 = vmatprep.mubr.f32.mxu0 %v4252
    %4320 = vmatmul.mubr.f32.gmra.mrb[0].mxu0 %v4248
    %v4321 = vpop.f32.mrb[0].mxu0
    %v4322 = vadd.f32 0.0, %v4321
    %v4323 = vpop.f32.mrb[0].mxu0
    %4324 = vdwg.mxu0
    %v4325 = vadd.f32 %v4236, %v4322
    %s4326 = scalar_lea.vmem [#allocation4], 70
    %v4327 = vld [vmem:[%s4326] ss:$8 sm:$0x3]
    %s4328 = scalar_lea.vmem %s6, 704
    %v4329 = vld [vmem:[%s4328] sm:$0xff]
    %v4330 = vld [vmem:[%s4328 + $0x8] sm:$0xff]
    %v4331 = vld [vmem:[%s4328 + $0x10] sm:$0x3]
    %v4332 = vld [vmem:[%s4328 + $0x18] sm:$0x3]
    %v4334 = vlaneseq
    %v4335 = vshrl.u32 %v4334, 7
    %v4336 = vsub.s32 0, %v4335
    %v4337 = vrot.slane %v4327, %v4336
    %v4338 = vlaneseq
    %v4339 = vshrl.u32 %v4338, 7
    %v4340 = vsub.s32 1, %v4339
    %v4341 = vrot.slane %v4327, %v4340
    %4344 = vmatprep.subr.mxu0 %v4330
    %4345 = vmatpush1.xpose.msra.mxu0 %v4329
    %4346 = vmatprep.subr.mxu0 %v4332
    %4347 = vmatpush1.xpose.msra.mxu0 %v4331
    %4348 = vmatprep.subr.mxu0 0.0
    %4349 = vmatpush1.xpose.msra.mxu0 0.0
    %4350 = vmatprep.subr.mxu0 0.0
    %4351 = vmatpush1.xpose.msra.mxu0 0.0
    %4352 = vmatprep.subr.mxu0 0.0
    %4353 = vmatpush1.xpose.msra.mxu0 0.0
    %4354 = vmatprep.subr.mxu0 0.0
    %4355 = vmatpush1.xpose.msra.mxu0 0.0
    %4356 = vmatprep.subr.mxu0 0.0
    %4357 = vmatpush1.xpose.msra.mxu0 0.0
    %4358 = vmatprep.subr.mxu0 0.0
    %4359 = vmatpush1.xpose.msra.mxu0 0.0
    %4360 = vmatprep.subr.mxu0 0.0
    %4361 = vmatpush1.xpose.msra.mxu0 0.0
    %4362 = vmatprep.subr.mxu0 0.0
    %4363 = vmatpush1.xpose.msra.mxu0 0.0
    %4364 = vmatprep.subr.mxu0 0.0
    %4365 = vmatpush1.xpose.msra.mxu0 0.0
    %4366 = vmatprep.subr.mxu0 0.0
    %4367 = vmatpush1.xpose.msra.mxu0 0.0
    %4368 = vmatprep.subr.mxu0 0.0
    %4369 = vmatpush1.xpose.msra.mxu0 0.0
    %4370 = vmatprep.subr.mxu0 0.0
    %4371 = vmatpush1.xpose.msra.mxu0 0.0
    %4372 = vmatprep.subr.mxu0 0.0
    %4373 = vmatpush1.xpose.msra.mxu0 0.0
    %4374 = vmatprep.subr.mxu0 0.0
    %4375 = vmatpush1.xpose.msra.mxu0 0.0
    %4376 = vmatprep.subr.mxu0 0.0
    %4377 = vmatpush1.xpose.msra.mxu0 0.0
    %4378 = vmatprep.subr.mxu0 0.0
    %4379 = vmatpush1.xpose.msra.mxu0 0.0
    %4380 = vmatprep.subr.mxu0 0.0
    %4381 = vmatpush1.xpose.msra.mxu0 0.0
    %4382 = vmatprep.subr.mxu0 0.0
    %4383 = vmatpush1.xpose.msra.mxu0 0.0
    %4384 = vmatprep.subr.mxu0 0.0
    %4385 = vmatpush1.xpose.msra.mxu0 0.0
    %4386 = vmatprep.subr.mxu0 0.0
    %4387 = vmatpush1.xpose.msra.mxu0 0.0
    %4388 = vmatprep.subr.mxu0 0.0
    %4389 = vmatpush1.xpose.msra.mxu0 0.0
    %4390 = vmatprep.subr.mxu0 0.0
    %4391 = vmatpush1.xpose.msra.mxu0 0.0
    %4392 = vmatprep.subr.mxu0 0.0
    %4393 = vmatpush1.xpose.msra.mxu0 0.0
    %4394 = vmatprep.subr.mxu0 0.0
    %4395 = vmatpush1.xpose.msra.mxu0 0.0
    %4396 = vmatprep.subr.mxu0 0.0
    %4397 = vmatpush1.xpose.msra.mxu0 0.0
    %4398 = vmatprep.subr.mxu0 0.0
    %4399 = vmatpush1.xpose.msra.mxu0 0.0
    %4400 = vmatprep.subr.mxu0 0.0
    %4401 = vmatpush1.xpose.msra.mxu0 0.0
    %4402 = vmatprep.subr.mxu0 0.0
    %4403 = vmatpush1.xpose.msra.mxu0 0.0
    %4404 = vmatprep.subr.mxu0 0.0
    %4405 = vmatpush1.xpose.msra.mxu0 0.0
    %4406 = vmatprep.subr.mxu0 0.0
    %4407 = vmatpush1.xpose.msra.mxu0 0.0
    %4408 = vmatprep.mubr.f32.mxu0 %v4341
    %4409 = vmatmul.mubr.f32.gmra.mrb[0].mxu0 %v4337
    %v4410 = vpop.f32.mrb[0].mxu0
    %v4411 = vadd.f32 0.0, %v4410
    %v4412 = vpop.f32.mrb[0].mxu0
    %4413 = vdwg.mxu0
    %v4414 = vadd.f32 %v4325, %v4411
    %s4415 = scalar_lea.vmem [#allocation4], 71
    %v4416 = vld [vmem:[%s4415] ss:$8 sm:$0x3]
    %s4417 = scalar_lea.vmem %s6, 736
    %v4418 = vld [vmem:[%s4417] sm:$0xff]
    %v4419 = vld [vmem:[%s4417 + $0x8] sm:$0xff]
    %v4420 = vld [vmem:[%s4417 + $0x10] sm:$0x3]
    %v4421 = vld [vmem:[%s4417 + $0x18] sm:$0x3]
    %v4423 = vlaneseq
    %v4424 = vshrl.u32 %v4423, 7
    %v4425 = vsub.s32 0, %v4424
    %v4426 = vrot.slane %v4416, %v4425
    %v4427 = vlaneseq
    %v4428 = vshrl.u32 %v4427, 7
    %v4429 = vsub.s32 1, %v4428
    %v4430 = vrot.slane %v4416, %v4429
    %4433 = vmatprep.subr.mxu0 %v4419
    %4434 = vmatpush1.xpose.msra.mxu0 %v4418
    %4435 = vmatprep.subr.mxu0 %v4421
    %4436 = vmatpush1.xpose.msra.mxu0 %v4420
    %4437 = vmatprep.subr.mxu0 0.0
    %4438 = vmatpush1.xpose.msra.mxu0 0.0
    %4439 = vmatprep.subr.mxu0 0.0
    %4440 = vmatpush1.xpose.msra.mxu0 0.0
    %4441 = vmatprep.subr.mxu0 0.0
    %4442 = vmatpush1.xpose.msra.mxu0 0.0
    %4443 = vmatprep.subr.mxu0 0.0
    %4444 = vmatpush1.xpose.msra.mxu0 0.0
    %4445 = vmatprep.subr.mxu0 0.0
    %4446 = vmatpush1.xpose.msra.mxu0 0.0
    %4447 = vmatprep.subr.mxu0 0.0
    %4448 = vmatpush1.xpose.msra.mxu0 0.0
    %4449 = vmatprep.subr.mxu0 0.0
    %4450 = vmatpush1.xpose.msra.mxu0 0.0
    %4451 = vmatprep.subr.mxu0 0.0
    %4452 = vmatpush1.xpose.msra.mxu0 0.0
    %4453 = vmatprep.subr.mxu0 0.0
    %4454 = vmatpush1.xpose.msra.mxu0 0.0
    %4455 = vmatprep.subr.mxu0 0.0
    %4456 = vmatpush1.xpose.msra.mxu0 0.0
    %4457 = vmatprep.subr.mxu0 0.0
    %4458 = vmatpush1.xpose.msra.mxu0 0.0
    %4459 = vmatprep.subr.mxu0 0.0
    %4460 = vmatpush1.xpose.msra.mxu0 0.0
    %4461 = vmatprep.subr.mxu0 0.0
    %4462 = vmatpush1.xpose.msra.mxu0 0.0
    %4463 = vmatprep.subr.mxu0 0.0
    %4464 = vmatpush1.xpose.msra.mxu0 0.0
    %4465 = vmatprep.subr.mxu0 0.0
    %4466 = vmatpush1.xpose.msra.mxu0 0.0
    %4467 = vmatprep.subr.mxu0 0.0
    %4468 = vmatpush1.xpose.msra.mxu0 0.0
    %4469 = vmatprep.subr.mxu0 0.0
    %4470 = vmatpush1.xpose.msra.mxu0 0.0
    %4471 = vmatprep.subr.mxu0 0.0
    %4472 = vmatpush1.xpose.msra.mxu0 0.0
    %4473 = vmatprep.subr.mxu0 0.0
    %4474 = vmatpush1.xpose.msra.mxu0 0.0
    %4475 = vmatprep.subr.mxu0 0.0
    %4476 = vmatpush1.xpose.msra.mxu0 0.0
    %4477 = vmatprep.subr.mxu0 0.0
    %4478 = vmatpush1.xpose.msra.mxu0 0.0
    %4479 = vmatprep.subr.mxu0 0.0
    %4480 = vmatpush1.xpose.msra.mxu0 0.0
    %4481 = vmatprep.subr.mxu0 0.0
    %4482 = vmatpush1.xpose.msra.mxu0 0.0
    %4483 = vmatprep.subr.mxu0 0.0
    %4484 = vmatpush1.xpose.msra.mxu0 0.0
    %4485 = vmatprep.subr.mxu0 0.0
    %4486 = vmatpush1.xpose.msra.mxu0 0.0
    %4487 = vmatprep.subr.mxu0 0.0
    %4488 = vmatpush1.xpose.msra.mxu0 0.0
    %4489 = vmatprep.subr.mxu0 0.0
    %4490 = vmatpush1.xpose.msra.mxu0 0.0
    %4491 = vmatprep.subr.mxu0 0.0
    %4492 = vmatpush1.xpose.msra.mxu0 0.0
    %4493 = vmatprep.subr.mxu0 0.0
    %4494 = vmatpush1.xpose.msra.mxu0 0.0
    %4495 = vmatprep.subr.mxu0 0.0
    %4496 = vmatpush1.xpose.msra.mxu0 0.0
    %4497 = vmatprep.mubr.f32.mxu0 %v4430
    %4498 = vmatmul.mubr.f32.gmra.mrb[0].mxu0 %v4426
    %v4499 = vpop.f32.mrb[0].mxu0
    %v4500 = vadd.f32 0.0, %v4499
    %v4501 = vpop.f32.mrb[0].mxu0
    %4502 = vdwg.mxu0
    %v4503 = vadd.f32 %v4414, %v4500
    %s4504 = scalar_lea.vmem [#allocation4], 96
    %v4505 = vld [vmem:[%s4504] ss:$8 sm:$0x3]
    %s4506 = scalar_lea.vmem %s6, 768
    %v4507 = vld [vmem:[%s4506] sm:$0xff]
    %v4508 = vld [vmem:[%s4506 + $0x8] sm:$0xff]
    %v4509 = vld [vmem:[%s4506 + $0x10] sm:$0x3]
    %v4510 = vld [vmem:[%s4506 + $0x18] sm:$0x3]
    %v4512 = vlaneseq
    %v4513 = vshrl.u32 %v4512, 7
    %v4514 = vsub.s32 0, %v4513
    %v4515 = vrot.slane %v4505, %v4514
    %v4516 = vlaneseq
    %v4517 = vshrl.u32 %v4516, 7
    %v4518 = vsub.s32 1, %v4517
    %v4519 = vrot.slane %v4505, %v4518
    %4522 = vmatprep.subr.mxu0 %v4508
    %4523 = vmatpush1.xpose.msra.mxu0 %v4507
    %4524 = vmatprep.subr.mxu0 %v4510
    %4525 = vmatpush1.xpose.msra.mxu0 %v4509
    %4526 = vmatprep.subr.mxu0 0.0
    %4527 = vmatpush1.xpose.msra.mxu0 0.0
    %4528 = vmatprep.subr.mxu0 0.0
    %4529 = vmatpush1.xpose.msra.mxu0 0.0
    %4530 = vmatprep.subr.mxu0 0.0
    %4531 = vmatpush1.xpose.msra.mxu0 0.0
    %4532 = vmatprep.subr.mxu0 0.0
    %4533 = vmatpush1.xpose.msra.mxu0 0.0
    %4534 = vmatprep.subr.mxu0 0.0
    %4535 = vmatpush1.xpose.msra.mxu0 0.0
    %4536 = vmatprep.subr.mxu0 0.0
    %4537 = vmatpush1.xpose.msra.mxu0 0.0
    %4538 = vmatprep.subr.mxu0 0.0
    %4539 = vmatpush1.xpose.msra.mxu0 0.0
    %4540 = vmatprep.subr.mxu0 0.0
    %4541 = vmatpush1.xpose.msra.mxu0 0.0
    %4542 = vmatprep.subr.mxu0 0.0
    %4543 = vmatpush1.xpose.msra.mxu0 0.0
    %4544 = vmatprep.subr.mxu0 0.0
    %4545 = vmatpush1.xpose.msra.mxu0 0.0
    %4546 = vmatprep.subr.mxu0 0.0
    %4547 = vmatpush1.xpose.msra.mxu0 0.0
    %4548 = vmatprep.subr.mxu0 0.0
    %4549 = vmatpush1.xpose.msra.mxu0 0.0
    %4550 = vmatprep.subr.mxu0 0.0
    %4551 = vmatpush1.xpose.msra.mxu0 0.0
    %4552 = vmatprep.subr.mxu0 0.0
    %4553 = vmatpush1.xpose.msra.mxu0 0.0
    %4554 = vmatprep.subr.mxu0 0.0
    %4555 = vmatpush1.xpose.msra.mxu0 0.0
    %4556 = vmatprep.subr.mxu0 0.0
    %4557 = vmatpush1.xpose.msra.mxu0 0.0
    %4558 = vmatprep.subr.mxu0 0.0
    %4559 = vmatpush1.xpose.msra.mxu0 0.0
    %4560 = vmatprep.subr.mxu0 0.0
    %4561 = vmatpush1.xpose.msra.mxu0 0.0
    %4562 = vmatprep.subr.mxu0 0.0
    %4563 = vmatpush1.xpose.msra.mxu0 0.0
    %4564 = vmatprep.subr.mxu0 0.0
    %4565 = vmatpush1.xpose.msra.mxu0 0.0
    %4566 = vmatprep.subr.mxu0 0.0
    %4567 = vmatpush1.xpose.msra.mxu0 0.0
    %4568 = vmatprep.subr.mxu0 0.0
    %4569 = vmatpush1.xpose.msra.mxu0 0.0
    %4570 = vmatprep.subr.mxu0 0.0
    %4571 = vmatpush1.xpose.msra.mxu0 0.0
    %4572 = vmatprep.subr.mxu0 0.0
    %4573 = vmatpush1.xpose.msra.mxu0 0.0
    %4574 = vmatprep.subr.mxu0 0.0
    %4575 = vmatpush1.xpose.msra.mxu0 0.0
    %4576 = vmatprep.subr.mxu0 0.0
    %4577 = vmatpush1.xpose.msra.mxu0 0.0
    %4578 = vmatprep.subr.mxu0 0.0
    %4579 = vmatpush1.xpose.msra.mxu0 0.0
    %4580 = vmatprep.subr.mxu0 0.0
    %4581 = vmatpush1.xpose.msra.mxu0 0.0
    %4582 = vmatprep.subr.mxu0 0.0
    %4583 = vmatpush1.xpose.msra.mxu0 0.0
    %4584 = vmatprep.subr.mxu0 0.0
    %4585 = vmatpush1.xpose.msra.mxu0 0.0
    %4586 = vmatprep.mubr.f32.mxu0 %v4519
    %4587 = vmatmul.mubr.f32.gmra.mrb[0].mxu0 %v4515
    %v4588 = vpop.f32.mrb[0].mxu0
    %v4589 = vadd.f32 0.0, %v4588
    %v4590 = vpop.f32.mrb[0].mxu0
    %4591 = vdwg.mxu0
    %v4592 = vadd.f32 %v4503, %v4589
    %s4593 = scalar_lea.vmem [#allocation4], 97
    %v4594 = vld [vmem:[%s4593] ss:$8 sm:$0x3]
    %s4595 = scalar_lea.vmem %s6, 800
    %v4596 = vld [vmem:[%s4595] sm:$0xff]
    %v4597 = vld [vmem:[%s4595 + $0x8] sm:$0xff]
    %v4598 = vld [vmem:[%s4595 + $0x10] sm:$0x3]
    %v4599 = vld [vmem:[%s4595 + $0x18] sm:$0x3]
    %v4601 = vlaneseq
    %v4602 = vshrl.u32 %v4601, 7
    %v4603 = vsub.s32 0, %v4602
    %v4604 = vrot.slane %v4594, %v4603
    %v4605 = vlaneseq
    %v4606 = vshrl.u32 %v4605, 7
    %v4607 = vsub.s32 1, %v4606
    %v4608 = vrot.slane %v4594, %v4607
    %4611 = vmatprep.subr.mxu0 %v4597
    %4612 = vmatpush1.xpose.msra.mxu0 %v4596
    %4613 = vmatprep.subr.mxu0 %v4599
    %4614 = vmatpush1.xpose.msra.mxu0 %v4598
    %4615 = vmatprep.subr.mxu0 0.0
    %4616 = vmatpush1.xpose.msra.mxu0 0.0
    %4617 = vmatprep.subr.mxu0 0.0
    %4618 = vmatpush1.xpose.msra.mxu0 0.0
    %4619 = vmatprep.subr.mxu0 0.0
    %4620 = vmatpush1.xpose.msra.mxu0 0.0
    %4621 = vmatprep.subr.mxu0 0.0
    %4622 = vmatpush1.xpose.msra.mxu0 0.0
    %4623 = vmatprep.subr.mxu0 0.0
    %4624 = vmatpush1.xpose.msra.mxu0 0.0
    %4625 = vmatprep.subr.mxu0 0.0
    %4626 = vmatpush1.xpose.msra.mxu0 0.0
    %4627 = vmatprep.subr.mxu0 0.0
    %4628 = vmatpush1.xpose.msra.mxu0 0.0
    %4629 = vmatprep.subr.mxu0 0.0
    %4630 = vmatpush1.xpose.msra.mxu0 0.0
    %4631 = vmatprep.subr.mxu0 0.0
    %4632 = vmatpush1.xpose.msra.mxu0 0.0
    %4633 = vmatprep.subr.mxu0 0.0
    %4634 = vmatpush1.xpose.msra.mxu0 0.0
    %4635 = vmatprep.subr.mxu0 0.0
    %4636 = vmatpush1.xpose.msra.mxu0 0.0
    %4637 = vmatprep.subr.mxu0 0.0
    %4638 = vmatpush1.xpose.msra.mxu0 0.0
    %4639 = vmatprep.subr.mxu0 0.0
    %4640 = vmatpush1.xpose.msra.mxu0 0.0
    %4641 = vmatprep.subr.mxu0 0.0
    %4642 = vmatpush1.xpose.msra.mxu0 0.0
    %4643 = vmatprep.subr.mxu0 0.0
    %4644 = vmatpush1.xpose.msra.mxu0 0.0
    %4645 = vmatprep.subr.mxu0 0.0
    %4646 = vmatpush1.xpose.msra.mxu0 0.0
    %4647 = vmatprep.subr.mxu0 0.0
    %4648 = vmatpush1.xpose.msra.mxu0 0.0
    %4649 = vmatprep.subr.mxu0 0.0
    %4650 = vmatpush1.xpose.msra.mxu0 0.0
    %4651 = vmatprep.subr.mxu0 0.0
    %4652 = vmatpush1.xpose.msra.mxu0 0.0
    %4653 = vmatprep.subr.mxu0 0.0
    %4654 = vmatpush1.xpose.msra.mxu0 0.0
    %4655 = vmatprep.subr.mxu0 0.0
    %4656 = vmatpush1.xpose.msra.mxu0 0.0
    %4657 = vmatprep.subr.mxu0 0.0
    %4658 = vmatpush1.xpose.msra.mxu0 0.0
    %4659 = vmatprep.subr.mxu0 0.0
    %4660 = vmatpush1.xpose.msra.mxu0 0.0
    %4661 = vmatprep.subr.mxu0 0.0
    %4662 = vmatpush1.xpose.msra.mxu0 0.0
    %4663 = vmatprep.subr.mxu0 0.0
    %4664 = vmatpush1.xpose.msra.mxu0 0.0
    %4665 = vmatprep.subr.mxu0 0.0
    %4666 = vmatpush1.xpose.msra.mxu0 0.0
    %4667 = vmatprep.subr.mxu0 0.0
    %4668 = vmatpush1.xpose.msra.mxu0 0.0
    %4669 = vmatprep.subr.mxu0 0.0
    %4670 = vmatpush1.xpose.msra.mxu0 0.0
    %4671 = vmatprep.subr.mxu0 0.0
    %4672 = vmatpush1.xpose.msra.mxu0 0.0
    %4673 = vmatprep.subr.mxu0 0.0
    %4674 = vmatpush1.xpose.msra.mxu0 0.0
    %4675 = vmatprep.mubr.f32.mxu0 %v4608
    %4676 = vmatmul.mubr.f32.gmra.mrb[0].mxu0 %v4604
    %v4677 = vpop.f32.mrb[0].mxu0
    %v4678 = vadd.f32 0.0, %v4677
    %v4679 = vpop.f32.mrb[0].mxu0
    %4680 = vdwg.mxu0
    %v4681 = vadd.f32 %v4592, %v4678
    %s4682 = scalar_lea.vmem [#allocation4], 98
    %v4683 = vld [vmem:[%s4682] ss:$8 sm:$0x3]
    %s4684 = scalar_lea.vmem %s6, 832
    %v4685 = vld [vmem:[%s4684] sm:$0xff]
    %v4686 = vld [vmem:[%s4684 + $0x8] sm:$0xff]
    %v4687 = vld [vmem:[%s4684 + $0x10] sm:$0x3]
    %v4688 = vld [vmem:[%s4684 + $0x18] sm:$0x3]
    %v4690 = vlaneseq
    %v4691 = vshrl.u32 %v4690, 7
    %v4692 = vsub.s32 0, %v4691
    %v4693 = vrot.slane %v4683, %v4692
    %v4694 = vlaneseq
    %v4695 = vshrl.u32 %v4694, 7
    %v4696 = vsub.s32 1, %v4695
    %v4697 = vrot.slane %v4683, %v4696
    %4700 = vmatprep.subr.mxu0 %v4686
    %4701 = vmatpush1.xpose.msra.mxu0 %v4685
    %4702 = vmatprep.subr.mxu0 %v4688
    %4703 = vmatpush1.xpose.msra.mxu0 %v4687
    %4704 = vmatprep.subr.mxu0 0.0
    %4705 = vmatpush1.xpose.msra.mxu0 0.0
    %4706 = vmatprep.subr.mxu0 0.0
    %4707 = vmatpush1.xpose.msra.mxu0 0.0
    %4708 = vmatprep.subr.mxu0 0.0
    %4709 = vmatpush1.xpose.msra.mxu0 0.0
    %4710 = vmatprep.subr.mxu0 0.0
    %4711 = vmatpush1.xpose.msra.mxu0 0.0
    %4712 = vmatprep.subr.mxu0 0.0
    %4713 = vmatpush1.xpose.msra.mxu0 0.0
    %4714 = vmatprep.subr.mxu0 0.0
    %4715 = vmatpush1.xpose.msra.mxu0 0.0
    %4716 = vmatprep.subr.mxu0 0.0
    %4717 = vmatpush1.xpose.msra.mxu0 0.0
    %4718 = vmatprep.subr.mxu0 0.0
    %4719 = vmatpush1.xpose.msra.mxu0 0.0
    %4720 = vmatprep.subr.mxu0 0.0
    %4721 = vmatpush1.xpose.msra.mxu0 0.0
    %4722 = vmatprep.subr.mxu0 0.0
    %4723 = vmatpush1.xpose.msra.mxu0 0.0
    %4724 = vmatprep.subr.mxu0 0.0
    %4725 = vmatpush1.xpose.msra.mxu0 0.0
    %4726 = vmatprep.subr.mxu0 0.0
    %4727 = vmatpush1.xpose.msra.mxu0 0.0
    %4728 = vmatprep.subr.mxu0 0.0
    %4729 = vmatpush1.xpose.msra.mxu0 0.0
    %4730 = vmatprep.subr.mxu0 0.0
    %4731 = vmatpush1.xpose.msra.mxu0 0.0
    %4732 = vmatprep.subr.mxu0 0.0
    %4733 = vmatpush1.xpose.msra.mxu0 0.0
    %4734 = vmatprep.subr.mxu0 0.0
    %4735 = vmatpush1.xpose.msra.mxu0 0.0
    %4736 = vmatprep.subr.mxu0 0.0
    %4737 = vmatpush1.xpose.msra.mxu0 0.0
    %4738 = vmatprep.subr.mxu0 0.0
    %4739 = vmatpush1.xpose.msra.mxu0 0.0
    %4740 = vmatprep.subr.mxu0 0.0
    %4741 = vmatpush1.xpose.msra.mxu0 0.0
    %4742 = vmatprep.subr.mxu0 0.0
    %4743 = vmatpush1.xpose.msra.mxu0 0.0
    %4744 = vmatprep.subr.mxu0 0.0
    %4745 = vmatpush1.xpose.msra.mxu0 0.0
    %4746 = vmatprep.subr.mxu0 0.0
    %4747 = vmatpush1.xpose.msra.mxu0 0.0
    %4748 = vmatprep.subr.mxu0 0.0
    %4749 = vmatpush1.xpose.msra.mxu0 0.0
    %4750 = vmatprep.subr.mxu0 0.0
    %4751 = vmatpush1.xpose.msra.mxu0 0.0
    %4752 = vmatprep.subr.mxu0 0.0
    %4753 = vmatpush1.xpose.msra.mxu0 0.0
    %4754 = vmatprep.subr.mxu0 0.0
    %4755 = vmatpush1.xpose.msra.mxu0 0.0
    %4756 = vmatprep.subr.mxu0 0.0
    %4757 = vmatpush1.xpose.msra.mxu0 0.0
    %4758 = vmatprep.subr.mxu0 0.0
    %4759 = vmatpush1.xpose.msra.mxu0 0.0
    %4760 = vmatprep.subr.mxu0 0.0
    %4761 = vmatpush1.xpose.msra.mxu0 0.0
    %4762 = vmatprep.subr.mxu0 0.0
    %4763 = vmatpush1.xpose.msra.mxu0 0.0
    %4764 = vmatprep.mubr.f32.mxu0 %v4697
    %4765 = vmatmul.mubr.f32.gmra.mrb[0].mxu0 %v4693
    %v4766 = vpop.f32.mrb[0].mxu0
    %v4767 = vadd.f32 0.0, %v4766
    %v4768 = vpop.f32.mrb[0].mxu0
    %4769 = vdwg.mxu0
    %v4770 = vadd.f32 %v4681, %v4767
    %s4771 = scalar_lea.vmem [#allocation4], 99
    %v4772 = vld [vmem:[%s4771] ss:$8 sm:$0x3]
    %s4773 = scalar_lea.vmem %s6, 864
    %v4774 = vld [vmem:[%s4773] sm:$0xff]
    %v4775 = vld [vmem:[%s4773 + $0x8] sm:$0xff]
    %v4776 = vld [vmem:[%s4773 + $0x10] sm:$0x3]
    %v4777 = vld [vmem:[%s4773 + $0x18] sm:$0x3]
    %v4779 = vlaneseq
    %v4780 = vshrl.u32 %v4779, 7
    %v4781 = vsub.s32 0, %v4780
    %v4782 = vrot.slane %v4772, %v4781
    %v4783 = vlaneseq
    %v4784 = vshrl.u32 %v4783, 7
    %v4785 = vsub.s32 1, %v4784
    %v4786 = vrot.slane %v4772, %v4785
    %4789 = vmatprep.subr.mxu0 %v4775
    %4790 = vmatpush1.xpose.msra.mxu0 %v4774
    %4791 = vmatprep.subr.mxu0 %v4777
    %4792 = vmatpush1.xpose.msra.mxu0 %v4776
    %4793 = vmatprep.subr.mxu0 0.0
    %4794 = vmatpush1.xpose.msra.mxu0 0.0
    %4795 = vmatprep.subr.mxu0 0.0
    %4796 = vmatpush1.xpose.msra.mxu0 0.0
    %4797 = vmatprep.subr.mxu0 0.0
    %4798 = vmatpush1.xpose.msra.mxu0 0.0
    %4799 = vmatprep.subr.mxu0 0.0
    %4800 = vmatpush1.xpose.msra.mxu0 0.0
    %4801 = vmatprep.subr.mxu0 0.0
    %4802 = vmatpush1.xpose.msra.mxu0 0.0
    %4803 = vmatprep.subr.mxu0 0.0
    %4804 = vmatpush1.xpose.msra.mxu0 0.0
    %4805 = vmatprep.subr.mxu0 0.0
    %4806 = vmatpush1.xpose.msra.mxu0 0.0
    %4807 = vmatprep.subr.mxu0 0.0
    %4808 = vmatpush1.xpose.msra.mxu0 0.0
    %4809 = vmatprep.subr.mxu0 0.0
    %4810 = vmatpush1.xpose.msra.mxu0 0.0
    %4811 = vmatprep.subr.mxu0 0.0
    %4812 = vmatpush1.xpose.msra.mxu0 0.0
    %4813 = vmatprep.subr.mxu0 0.0
    %4814 = vmatpush1.xpose.msra.mxu0 0.0
    %4815 = vmatprep.subr.mxu0 0.0
    %4816 = vmatpush1.xpose.msra.mxu0 0.0
    %4817 = vmatprep.subr.mxu0 0.0
    %4818 = vmatpush1.xpose.msra.mxu0 0.0
    %4819 = vmatprep.subr.mxu0 0.0
    %4820 = vmatpush1.xpose.msra.mxu0 0.0
    %4821 = vmatprep.subr.mxu0 0.0
    %4822 = vmatpush1.xpose.msra.mxu0 0.0
    %4823 = vmatprep.subr.mxu0 0.0
    %4824 = vmatpush1.xpose.msra.mxu0 0.0
    %4825 = vmatprep.subr.mxu0 0.0
    %4826 = vmatpush1.xpose.msra.mxu0 0.0
    %4827 = vmatprep.subr.mxu0 0.0
    %4828 = vmatpush1.xpose.msra.mxu0 0.0
    %4829 = vmatprep.subr.mxu0 0.0
    %4830 = vmatpush1.xpose.msra.mxu0 0.0
    %4831 = vmatprep.subr.mxu0 0.0
    %4832 = vmatpush1.xpose.msra.mxu0 0.0
    %4833 = vmatprep.subr.mxu0 0.0
    %4834 = vmatpush1.xpose.msra.mxu0 0.0
    %4835 = vmatprep.subr.mxu0 0.0
    %4836 = vmatpush1.xpose.msra.mxu0 0.0
    %4837 = vmatprep.subr.mxu0 0.0
    %4838 = vmatpush1.xpose.msra.mxu0 0.0
    %4839 = vmatprep.subr.mxu0 0.0
    %4840 = vmatpush1.xpose.msra.mxu0 0.0
    %4841 = vmatprep.subr.mxu0 0.0
    %4842 = vmatpush1.xpose.msra.mxu0 0.0
    %4843 = vmatprep.subr.mxu0 0.0
    %4844 = vmatpush1.xpose.msra.mxu0 0.0
    %4845 = vmatprep.subr.mxu0 0.0
    %4846 = vmatpush1.xpose.msra.mxu0 0.0
    %4847 = vmatprep.subr.mxu0 0.0
    %4848 = vmatpush1.xpose.msra.mxu0 0.0
    %4849 = vmatprep.subr.mxu0 0.0
    %4850 = vmatpush1.xpose.msra.mxu0 0.0
    %4851 = vmatprep.subr.mxu0 0.0
    %4852 = vmatpush1.xpose.msra.mxu0 0.0
    %4853 = vmatprep.mubr.f32.mxu0 %v4786
    %4854 = vmatmul.mubr.f32.gmra.mrb[0].mxu0 %v4782
    %v4855 = vpop.f32.mrb[0].mxu0
    %v4856 = vadd.f32 0.0, %v4855
    %v4857 = vpop.f32.mrb[0].mxu0
    %4858 = vdwg.mxu0
    %v4859 = vadd.f32 %v4770, %v4856
    %s4860 = scalar_lea.vmem [#allocation4], 100
    %v4861 = vld [vmem:[%s4860] ss:$8 sm:$0x3]
    %s4862 = scalar_lea.vmem %s6, 896
    %v4863 = vld [vmem:[%s4862] sm:$0xff]
    %v4864 = vld [vmem:[%s4862 + $0x8] sm:$0xff]
    %v4865 = vld [vmem:[%s4862 + $0x10] sm:$0x3]
    %v4866 = vld [vmem:[%s4862 + $0x18] sm:$0x3]
    %v4868 = vlaneseq
    %v4869 = vshrl.u32 %v4868, 7
    %v4870 = vsub.s32 0, %v4869
    %v4871 = vrot.slane %v4861, %v4870
    %v4872 = vlaneseq
    %v4873 = vshrl.u32 %v4872, 7
    %v4874 = vsub.s32 1, %v4873
    %v4875 = vrot.slane %v4861, %v4874
    %4878 = vmatprep.subr.mxu0 %v4864
    %4879 = vmatpush1.xpose.msra.mxu0 %v4863
    %4880 = vmatprep.subr.mxu0 %v4866
    %4881 = vmatpush1.xpose.msra.mxu0 %v4865
    %4882 = vmatprep.subr.mxu0 0.0
    %4883 = vmatpush1.xpose.msra.mxu0 0.0
    %4884 = vmatprep.subr.mxu0 0.0
    %4885 = vmatpush1.xpose.msra.mxu0 0.0
    %4886 = vmatprep.subr.mxu0 0.0
    %4887 = vmatpush1.xpose.msra.mxu0 0.0
    %4888 = vmatprep.subr.mxu0 0.0
    %4889 = vmatpush1.xpose.msra.mxu0 0.0
    %4890 = vmatprep.subr.mxu0 0.0
    %4891 = vmatpush1.xpose.msra.mxu0 0.0
    %4892 = vmatprep.subr.mxu0 0.0
    %4893 = vmatpush1.xpose.msra.mxu0 0.0
    %4894 = vmatprep.subr.mxu0 0.0
    %4895 = vmatpush1.xpose.msra.mxu0 0.0
    %4896 = vmatprep.subr.mxu0 0.0
    %4897 = vmatpush1.xpose.msra.mxu0 0.0
    %4898 = vmatprep.subr.mxu0 0.0
    %4899 = vmatpush1.xpose.msra.mxu0 0.0
    %4900 = vmatprep.subr.mxu0 0.0
    %4901 = vmatpush1.xpose.msra.mxu0 0.0
    %4902 = vmatprep.subr.mxu0 0.0
    %4903 = vmatpush1.xpose.msra.mxu0 0.0
    %4904 = vmatprep.subr.mxu0 0.0
    %4905 = vmatpush1.xpose.msra.mxu0 0.0
    %4906 = vmatprep.subr.mxu0 0.0
    %4907 = vmatpush1.xpose.msra.mxu0 0.0
    %4908 = vmatprep.subr.mxu0 0.0
    %4909 = vmatpush1.xpose.msra.mxu0 0.0
    %4910 = vmatprep.subr.mxu0 0.0
    %4911 = vmatpush1.xpose.msra.mxu0 0.0
    %4912 = vmatprep.subr.mxu0 0.0
    %4913 = vmatpush1.xpose.msra.mxu0 0.0
    %4914 = vmatprep.subr.mxu0 0.0
    %4915 = vmatpush1.xpose.msra.mxu0 0.0
    %4916 = vmatprep.subr.mxu0 0.0
    %4917 = vmatpush1.xpose.msra.mxu0 0.0
    %4918 = vmatprep.subr.mxu0 0.0
    %4919 = vmatpush1.xpose.msra.mxu0 0.0
    %4920 = vmatprep.subr.mxu0 0.0
    %4921 = vmatpush1.xpose.msra.mxu0 0.0
    %4922 = vmatprep.subr.mxu0 0.0
    %4923 = vmatpush1.xpose.msra.mxu0 0.0
    %4924 = vmatprep.subr.mxu0 0.0
    %4925 = vmatpush1.xpose.msra.mxu0 0.0
    %4926 = vmatprep.subr.mxu0 0.0
    %4927 = vmatpush1.xpose.msra.mxu0 0.0
    %4928 = vmatprep.subr.mxu0 0.0
    %4929 = vmatpush1.xpose.msra.mxu0 0.0
    %4930 = vmatprep.subr.mxu0 0.0
    %4931 = vmatpush1.xpose.msra.mxu0 0.0
    %4932 = vmatprep.subr.mxu0 0.0
    %4933 = vmatpush1.xpose.msra.mxu0 0.0
    %4934 = vmatprep.subr.mxu0 0.0
    %4935 = vmatpush1.xpose.msra.mxu0 0.0
    %4936 = vmatprep.subr.mxu0 0.0
    %4937 = vmatpush1.xpose.msra.mxu0 0.0
    %4938 = vmatprep.subr.mxu0 0.0
    %4939 = vmatpush1.xpose.msra.mxu0 0.0
    %4940 = vmatprep.subr.mxu0 0.0
    %4941 = vmatpush1.xpose.msra.mxu0 0.0
    %4942 = vmatprep.mubr.f32.mxu0 %v4875
    %4943 = vmatmul.mubr.f32.gmra.mrb[0].mxu0 %v4871
    %v4944 = vpop.f32.mrb[0].mxu0
    %v4945 = vadd.f32 0.0, %v4944
    %v4946 = vpop.f32.mrb[0].mxu0
    %4947 = vdwg.mxu0
    %v4948 = vadd.f32 %v4859, %v4945
    %s4949 = scalar_lea.vmem [#allocation4], 101
    %v4950 = vld [vmem:[%s4949] ss:$8 sm:$0x3]
    %s4951 = scalar_lea.vmem %s6, 928
    %v4952 = vld [vmem:[%s4951] sm:$0xff]
    %v4953 = vld [vmem:[%s4951 + $0x8] sm:$0xff]
    %v4954 = vld [vmem:[%s4951 + $0x10] sm:$0x3]
    %v4955 = vld [vmem:[%s4951 + $0x18] sm:$0x3]
    %v4957 = vlaneseq
    %v4958 = vshrl.u32 %v4957, 7
    %v4959 = vsub.s32 0, %v4958
    %v4960 = vrot.slane %v4950, %v4959
    %v4961 = vlaneseq
    %v4962 = vshrl.u32 %v4961, 7
    %v4963 = vsub.s32 1, %v4962
    %v4964 = vrot.slane %v4950, %v4963
    %4967 = vmatprep.subr.mxu0 %v4953
    %4968 = vmatpush1.xpose.msra.mxu0 %v4952
    %4969 = vmatprep.subr.mxu0 %v4955
    %4970 = vmatpush1.xpose.msra.mxu0 %v4954
    %4971 = vmatprep.subr.mxu0 0.0
    %4972 = vmatpush1.xpose.msra.mxu0 0.0
    %4973 = vmatprep.subr.mxu0 0.0
    %4974 = vmatpush1.xpose.msra.mxu0 0.0
    %4975 = vmatprep.subr.mxu0 0.0
    %4976 = vmatpush1.xpose.msra.mxu0 0.0
    %4977 = vmatprep.subr.mxu0 0.0
    %4978 = vmatpush1.xpose.msra.mxu0 0.0
    %4979 = vmatprep.subr.mxu0 0.0
    %4980 = vmatpush1.xpose.msra.mxu0 0.0
    %4981 = vmatprep.subr.mxu0 0.0
    %4982 = vmatpush1.xpose.msra.mxu0 0.0
    %4983 = vmatprep.subr.mxu0 0.0
    %4984 = vmatpush1.xpose.msra.mxu0 0.0
    %4985 = vmatprep.subr.mxu0 0.0
    %4986 = vmatpush1.xpose.msra.mxu0 0.0
    %4987 = vmatprep.subr.mxu0 0.0
    %4988 = vmatpush1.xpose.msra.mxu0 0.0
    %4989 = vmatprep.subr.mxu0 0.0
    %4990 = vmatpush1.xpose.msra.mxu0 0.0
    %4991 = vmatprep.subr.mxu0 0.0
    %4992 = vmatpush1.xpose.msra.mxu0 0.0
    %4993 = vmatprep.subr.mxu0 0.0
    %4994 = vmatpush1.xpose.msra.mxu0 0.0
    %4995 = vmatprep.subr.mxu0 0.0
    %4996 = vmatpush1.xpose.msra.mxu0 0.0
    %4997 = vmatprep.subr.mxu0 0.0
    %4998 = vmatpush1.xpose.msra.mxu0 0.0
    %4999 = vmatprep.subr.mxu0 0.0
    %5000 = vmatpush1.xpose.msra.mxu0 0.0
    %5001 = vmatprep.subr.mxu0 0.0
    %5002 = vmatpush1.xpose.msra.mxu0 0.0
    %5003 = vmatprep.subr.mxu0 0.0
    %5004 = vmatpush1.xpose.msra.mxu0 0.0
    %5005 = vmatprep.subr.mxu0 0.0
    %5006 = vmatpush1.xpose.msra.mxu0 0.0
    %5007 = vmatprep.subr.mxu0 0.0
    %5008 = vmatpush1.xpose.msra.mxu0 0.0
    %5009 = vmatprep.subr.mxu0 0.0
    %5010 = vmatpush1.xpose.msra.mxu0 0.0
    %5011 = vmatprep.subr.mxu0 0.0
    %5012 = vmatpush1.xpose.msra.mxu0 0.0
    %5013 = vmatprep.subr.mxu0 0.0
    %5014 = vmatpush1.xpose.msra.mxu0 0.0
    %5015 = vmatprep.subr.mxu0 0.0
    %5016 = vmatpush1.xpose.msra.mxu0 0.0
    %5017 = vmatprep.subr.mxu0 0.0
    %5018 = vmatpush1.xpose.msra.mxu0 0.0
    %5019 = vmatprep.subr.mxu0 0.0
    %5020 = vmatpush1.xpose.msra.mxu0 0.0
    %5021 = vmatprep.subr.mxu0 0.0
    %5022 = vmatpush1.xpose.msra.mxu0 0.0
    %5023 = vmatprep.subr.mxu0 0.0
    %5024 = vmatpush1.xpose.msra.mxu0 0.0
    %5025 = vmatprep.subr.mxu0 0.0
    %5026 = vmatpush1.xpose.msra.mxu0 0.0
    %5027 = vmatprep.subr.mxu0 0.0
    %5028 = vmatpush1.xpose.msra.mxu0 0.0
    %5029 = vmatprep.subr.mxu0 0.0
    %5030 = vmatpush1.xpose.msra.mxu0 0.0
    %5031 = vmatprep.mubr.f32.mxu0 %v4964
    %5032 = vmatmul.mubr.f32.gmra.mrb[0].mxu0 %v4960
    %v5033 = vpop.f32.mrb[0].mxu0
    %v5034 = vadd.f32 0.0, %v5033
    %v5035 = vpop.f32.mrb[0].mxu0
    %5036 = vdwg.mxu0
    %v5037 = vadd.f32 %v4948, %v5034
    %s5038 = scalar_lea.vmem [#allocation4], 102
    %v5039 = vld [vmem:[%s5038] ss:$8 sm:$0x3]
    %s5040 = scalar_lea.vmem %s6, 960
    %v5041 = vld [vmem:[%s5040] sm:$0xff]
    %v5042 = vld [vmem:[%s5040 + $0x8] sm:$0xff]
    %v5043 = vld [vmem:[%s5040 + $0x10] sm:$0x3]
    %v5044 = vld [vmem:[%s5040 + $0x18] sm:$0x3]
    %v5046 = vlaneseq
    %v5047 = vshrl.u32 %v5046, 7
    %v5048 = vsub.s32 0, %v5047
    %v5049 = vrot.slane %v5039, %v5048
    %v5050 = vlaneseq
    %v5051 = vshrl.u32 %v5050, 7
    %v5052 = vsub.s32 1, %v5051
    %v5053 = vrot.slane %v5039, %v5052
    %5056 = vmatprep.subr.mxu0 %v5042
    %5057 = vmatpush1.xpose.msra.mxu0 %v5041
    %5058 = vmatprep.subr.mxu0 %v5044
    %5059 = vmatpush1.xpose.msra.mxu0 %v5043
    %5060 = vmatprep.subr.mxu0 0.0
    %5061 = vmatpush1.xpose.msra.mxu0 0.0
    %5062 = vmatprep.subr.mxu0 0.0
    %5063 = vmatpush1.xpose.msra.mxu0 0.0
    %5064 = vmatprep.subr.mxu0 0.0
    %5065 = vmatpush1.xpose.msra.mxu0 0.0
    %5066 = vmatprep.subr.mxu0 0.0
    %5067 = vmatpush1.xpose.msra.mxu0 0.0
    %5068 = vmatprep.subr.mxu0 0.0
    %5069 = vmatpush1.xpose.msra.mxu0 0.0
    %5070 = vmatprep.subr.mxu0 0.0
    %5071 = vmatpush1.xpose.msra.mxu0 0.0
    %5072 = vmatprep.subr.mxu0 0.0
    %5073 = vmatpush1.xpose.msra.mxu0 0.0
    %5074 = vmatprep.subr.mxu0 0.0
    %5075 = vmatpush1.xpose.msra.mxu0 0.0
    %5076 = vmatprep.subr.mxu0 0.0
    %5077 = vmatpush1.xpose.msra.mxu0 0.0
    %5078 = vmatprep.subr.mxu0 0.0
    %5079 = vmatpush1.xpose.msra.mxu0 0.0
    %5080 = vmatprep.subr.mxu0 0.0
    %5081 = vmatpush1.xpose.msra.mxu0 0.0
    %5082 = vmatprep.subr.mxu0 0.0
    %5083 = vmatpush1.xpose.msra.mxu0 0.0
    %5084 = vmatprep.subr.mxu0 0.0
    %5085 = vmatpush1.xpose.msra.mxu0 0.0
    %5086 = vmatprep.subr.mxu0 0.0
    %5087 = vmatpush1.xpose.msra.mxu0 0.0
    %5088 = vmatprep.subr.mxu0 0.0
    %5089 = vmatpush1.xpose.msra.mxu0 0.0
    %5090 = vmatprep.subr.mxu0 0.0
    %5091 = vmatpush1.xpose.msra.mxu0 0.0
    %5092 = vmatprep.subr.mxu0 0.0
    %5093 = vmatpush1.xpose.msra.mxu0 0.0
    %5094 = vmatprep.subr.mxu0 0.0
    %5095 = vmatpush1.xpose.msra.mxu0 0.0
    %5096 = vmatprep.subr.mxu0 0.0
    %5097 = vmatpush1.xpose.msra.mxu0 0.0
    %5098 = vmatprep.subr.mxu0 0.0
    %5099 = vmatpush1.xpose.msra.mxu0 0.0
    %5100 = vmatprep.subr.mxu0 0.0
    %5101 = vmatpush1.xpose.msra.mxu0 0.0
    %5102 = vmatprep.subr.mxu0 0.0
    %5103 = vmatpush1.xpose.msra.mxu0 0.0
    %5104 = vmatprep.subr.mxu0 0.0
    %5105 = vmatpush1.xpose.msra.mxu0 0.0
    %5106 = vmatprep.subr.mxu0 0.0
    %5107 = vmatpush1.xpose.msra.mxu0 0.0
    %5108 = vmatprep.subr.mxu0 0.0
    %5109 = vmatpush1.xpose.msra.mxu0 0.0
    %5110 = vmatprep.subr.mxu0 0.0
    %5111 = vmatpush1.xpose.msra.mxu0 0.0
    %5112 = vmatprep.subr.mxu0 0.0
    %5113 = vmatpush1.xpose.msra.mxu0 0.0
    %5114 = vmatprep.subr.mxu0 0.0
    %5115 = vmatpush1.xpose.msra.mxu0 0.0
    %5116 = vmatprep.subr.mxu0 0.0
    %5117 = vmatpush1.xpose.msra.mxu0 0.0
    %5118 = vmatprep.subr.mxu0 0.0
    %5119 = vmatpush1.xpose.msra.mxu0 0.0
    %5120 = vmatprep.mubr.f32.mxu0 %v5053
    %5121 = vmatmul.mubr.f32.gmra.mrb[0].mxu0 %v5049
    %v5122 = vpop.f32.mrb[0].mxu0
    %v5123 = vadd.f32 0.0, %v5122
    %v5124 = vpop.f32.mrb[0].mxu0
    %5125 = vdwg.mxu0
    %v5126 = vadd.f32 %v5037, %v5123
    %s5127 = scalar_lea.vmem [#allocation4], 103
    %v5128 = vld [vmem:[%s5127] ss:$8 sm:$0x3]
    %s5129 = scalar_lea.vmem %s6, 992
    %v5130 = vld [vmem:[%s5129] sm:$0xff]
    %v5131 = vld [vmem:[%s5129 + $0x8] sm:$0xff]
    %v5132 = vld [vmem:[%s5129 + $0x10] sm:$0x3]
    %v5133 = vld [vmem:[%s5129 + $0x18] sm:$0x3]
    %v5135 = vlaneseq
    %v5136 = vshrl.u32 %v5135, 7
    %v5137 = vsub.s32 0, %v5136
    %v5138 = vrot.slane %v5128, %v5137
    %v5139 = vlaneseq
    %v5140 = vshrl.u32 %v5139, 7
    %v5141 = vsub.s32 1, %v5140
    %v5142 = vrot.slane %v5128, %v5141
    %5145 = vmatprep.subr.mxu0 %v5131
    %5146 = vmatpush1.xpose.msra.mxu0 %v5130
    %5147 = vmatprep.subr.mxu0 %v5133
    %5148 = vmatpush1.xpose.msra.mxu0 %v5132
    %5149 = vmatprep.subr.mxu0 0.0
    %5150 = vmatpush1.xpose.msra.mxu0 0.0
    %5151 = vmatprep.subr.mxu0 0.0
    %5152 = vmatpush1.xpose.msra.mxu0 0.0
    %5153 = vmatprep.subr.mxu0 0.0
    %5154 = vmatpush1.xpose.msra.mxu0 0.0
    %5155 = vmatprep.subr.mxu0 0.0
    %5156 = vmatpush1.xpose.msra.mxu0 0.0
    %5157 = vmatprep.subr.mxu0 0.0
    %5158 = vmatpush1.xpose.msra.mxu0 0.0
    %5159 = vmatprep.subr.mxu0 0.0
    %5160 = vmatpush1.xpose.msra.mxu0 0.0
    %5161 = vmatprep.subr.mxu0 0.0
    %5162 = vmatpush1.xpose.msra.mxu0 0.0
    %5163 = vmatprep.subr.mxu0 0.0
    %5164 = vmatpush1.xpose.msra.mxu0 0.0
    %5165 = vmatprep.subr.mxu0 0.0
    %5166 = vmatpush1.xpose.msra.mxu0 0.0
    %5167 = vmatprep.subr.mxu0 0.0
    %5168 = vmatpush1.xpose.msra.mxu0 0.0
    %5169 = vmatprep.subr.mxu0 0.0
    %5170 = vmatpush1.xpose.msra.mxu0 0.0
    %5171 = vmatprep.subr.mxu0 0.0
    %5172 = vmatpush1.xpose.msra.mxu0 0.0
    %5173 = vmatprep.subr.mxu0 0.0
    %5174 = vmatpush1.xpose.msra.mxu0 0.0
    %5175 = vmatprep.subr.mxu0 0.0
    %5176 = vmatpush1.xpose.msra.mxu0 0.0
    %5177 = vmatprep.subr.mxu0 0.0
    %5178 = vmatpush1.xpose.msra.mxu0 0.0
    %5179 = vmatprep.subr.mxu0 0.0
    %5180 = vmatpush1.xpose.msra.mxu0 0.0
    %5181 = vmatprep.subr.mxu0 0.0
    %5182 = vmatpush1.xpose.msra.mxu0 0.0
    %5183 = vmatprep.subr.mxu0 0.0
    %5184 = vmatpush1.xpose.msra.mxu0 0.0
    %5185 = vmatprep.subr.mxu0 0.0
    %5186 = vmatpush1.xpose.msra.mxu0 0.0
    %5187 = vmatprep.subr.mxu0 0.0
    %5188 = vmatpush1.xpose.msra.mxu0 0.0
    %5189 = vmatprep.subr.mxu0 0.0
    %5190 = vmatpush1.xpose.msra.mxu0 0.0
    %5191 = vmatprep.subr.mxu0 0.0
    %5192 = vmatpush1.xpose.msra.mxu0 0.0
    %5193 = vmatprep.subr.mxu0 0.0
    %5194 = vmatpush1.xpose.msra.mxu0 0.0
    %5195 = vmatprep.subr.mxu0 0.0
    %5196 = vmatpush1.xpose.msra.mxu0 0.0
    %5197 = vmatprep.subr.mxu0 0.0
    %5198 = vmatpush1.xpose.msra.mxu0 0.0
    %5199 = vmatprep.subr.mxu0 0.0
    %5200 = vmatpush1.xpose.msra.mxu0 0.0
    %5201 = vmatprep.subr.mxu0 0.0
    %5202 = vmatpush1.xpose.msra.mxu0 0.0
    %5203 = vmatprep.subr.mxu0 0.0
    %5204 = vmatpush1.xpose.msra.mxu0 0.0
    %5205 = vmatprep.subr.mxu0 0.0
    %5206 = vmatpush1.xpose.msra.mxu0 0.0
    %5207 = vmatprep.subr.mxu0 0.0
    %5208 = vmatpush1.xpose.msra.mxu0 0.0
    %5209 = vmatprep.mubr.f32.mxu0 %v5142
    %5210 = vmatmul.mubr.f32.gmra.mrb[0].mxu0 %v5138
    %v5211 = vpop.f32.mrb[0].mxu0
    %v5212 = vadd.f32 0.0, %v5211
    %v5213 = vpop.f32.mrb[0].mxu0
    %5214 = vdwg.mxu0
    %v5215 = vadd.f32 %v5126, %v5212
    %s5216 = scalar_lea.vmem [#allocation4], 16
    %v5217 = vld [vmem:[%s5216] ss:$8 sm:$0x3]
    %s5218 = scalar_lea.vmem [#allocation4], 17
    %v5219 = vld [vmem:[%s5218] ss:$8 sm:$0x3]
    %v5221 = vlaneseq
    %v5222 = vshrl.u32 %v5221, 7
    %v5223 = vsub.s32 0, %v5222
    %v5224 = vrot.slane %v5219, %v5223
    %v5225 = vlaneseq
    %v5226 = vshrl.u32 %v5225, 7
    %v5227 = vsub.s32 1, %v5226
    %v5228 = vrot.slane %v5219, %v5227
    %5231 = vmatprep.subr.mxu0 %v2381
    %5232 = vmatpush1.xpose.msra.mxu0 %v2380
    %5233 = vmatprep.subr.mxu0 %v2383
    %5234 = vmatpush1.xpose.msra.mxu0 %v2382
    %5235 = vmatprep.subr.mxu0 0.0
    %5236 = vmatpush1.xpose.msra.mxu0 0.0
    %5237 = vmatprep.subr.mxu0 0.0
    %5238 = vmatpush1.xpose.msra.mxu0 0.0
    %5239 = vmatprep.subr.mxu0 0.0
    %5240 = vmatpush1.xpose.msra.mxu0 0.0
    %5241 = vmatprep.subr.mxu0 0.0
    %5242 = vmatpush1.xpose.msra.mxu0 0.0
    %5243 = vmatprep.subr.mxu0 0.0
    %5244 = vmatpush1.xpose.msra.mxu0 0.0
    %5245 = vmatprep.subr.mxu0 0.0
    %5246 = vmatpush1.xpose.msra.mxu0 0.0
    %5247 = vmatprep.subr.mxu0 0.0
    %5248 = vmatpush1.xpose.msra.mxu0 0.0
    %5249 = vmatprep.subr.mxu0 0.0
    %5250 = vmatpush1.xpose.msra.mxu0 0.0
    %5251 = vmatprep.subr.mxu0 0.0
    %5252 = vmatpush1.xpose.msra.mxu0 0.0
    %5253 = vmatprep.subr.mxu0 0.0
    %5254 = vmatpush1.xpose.msra.mxu0 0.0
    %5255 = vmatprep.subr.mxu0 0.0
    %5256 = vmatpush1.xpose.msra.mxu0 0.0
    %5257 = vmatprep.subr.mxu0 0.0
    %5258 = vmatpush1.xpose.msra.mxu0 0.0
    %5259 = vmatprep.subr.mxu0 0.0
    %5260 = vmatpush1.xpose.msra.mxu0 0.0
    %5261 = vmatprep.subr.mxu0 0.0
    %5262 = vmatpush1.xpose.msra.mxu0 0.0
    %5263 = vmatprep.subr.mxu0 0.0
    %5264 = vmatpush1.xpose.msra.mxu0 0.0
    %5265 = vmatprep.subr.mxu0 0.0
    %5266 = vmatpush1.xpose.msra.mxu0 0.0
    %5267 = vmatprep.subr.mxu0 0.0
    %5268 = vmatpush1.xpose.msra.mxu0 0.0
    %5269 = vmatprep.subr.mxu0 0.0
    %5270 = vmatpush1.xpose.msra.mxu0 0.0
    %5271 = vmatprep.subr.mxu0 0.0
    %5272 = vmatpush1.xpose.msra.mxu0 0.0
    %5273 = vmatprep.subr.mxu0 0.0
    %5274 = vmatpush1.xpose.msra.mxu0 0.0
    %5275 = vmatprep.subr.mxu0 0.0
    %5276 = vmatpush1.xpose.msra.mxu0 0.0
    %5277 = vmatprep.subr.mxu0 0.0
    %5278 = vmatpush1.xpose.msra.mxu0 0.0
    %5279 = vmatprep.subr.mxu0 0.0
    %5280 = vmatpush1.xpose.msra.mxu0 0.0
    %5281 = vmatprep.subr.mxu0 0.0
    %5282 = vmatpush1.xpose.msra.mxu0 0.0
    %5283 = vmatprep.subr.mxu0 0.0
    %5284 = vmatpush1.xpose.msra.mxu0 0.0
    %5285 = vmatprep.subr.mxu0 0.0
    %5286 = vmatpush1.xpose.msra.mxu0 0.0
    %5287 = vmatprep.subr.mxu0 0.0
    %5288 = vmatpush1.xpose.msra.mxu0 0.0
    %5289 = vmatprep.subr.mxu0 0.0
    %5290 = vmatpush1.xpose.msra.mxu0 0.0
    %5291 = vmatprep.subr.mxu0 0.0
    %5292 = vmatpush1.xpose.msra.mxu0 0.0
    %5293 = vmatprep.subr.mxu0 0.0
    %5294 = vmatpush1.xpose.msra.mxu0 0.0
    %5295 = vmatprep.mubr.f32.mxu0 %v5228
    %5296 = vmatmul.mubr.f32.gmra.mrb[0].mxu0 %v5224
    %v5297 = vpop.f32.mrb[0].mxu0
    %v5298 = vadd.f32 0.0, %v5297
    %v5299 = vpop.f32.mrb[0].mxu0
    %5300 = vdwg.mxu0
    %v5302 = vlaneseq
    %v5303 = vshrl.u32 %v5302, 7
    %v5304 = vsub.s32 0, %v5303
    %v5305 = vrot.slane %v5217, %v5304
    %v5306 = vlaneseq
    %v5307 = vshrl.u32 %v5306, 7
    %v5308 = vsub.s32 1, %v5307
    %v5309 = vrot.slane %v5217, %v5308
    %5312 = vmatprep.subr.mxu0 %v2374
    %5313 = vmatpush1.xpose.msra.mxu0 %v2373
    %5314 = vmatprep.subr.mxu0 %v2376
    %5315 = vmatpush1.xpose.msra.mxu0 %v2375
    %5316 = vmatprep.subr.mxu0 0.0
    %5317 = vmatpush1.xpose.msra.mxu0 0.0
    %5318 = vmatprep.subr.mxu0 0.0
    %5319 = vmatpush1.xpose.msra.mxu0 0.0
    %5320 = vmatprep.subr.mxu0 0.0
    %5321 = vmatpush1.xpose.msra.mxu0 0.0
    %5322 = vmatprep.subr.mxu0 0.0
    %5323 = vmatpush1.xpose.msra.mxu0 0.0
    %5324 = vmatprep.subr.mxu0 0.0
    %5325 = vmatpush1.xpose.msra.mxu0 0.0
    %5326 = vmatprep.subr.mxu0 0.0
    %5327 = vmatpush1.xpose.msra.mxu0 0.0
    %5328 = vmatprep.subr.mxu0 0.0
    %5329 = vmatpush1.xpose.msra.mxu0 0.0
    %5330 = vmatprep.subr.mxu0 0.0
    %5331 = vmatpush1.xpose.msra.mxu0 0.0
    %5332 = vmatprep.subr.mxu0 0.0
    %5333 = vmatpush1.xpose.msra.mxu0 0.0
    %5334 = vmatprep.subr.mxu0 0.0
    %5335 = vmatpush1.xpose.msra.mxu0 0.0
    %5336 = vmatprep.subr.mxu0 0.0
    %5337 = vmatpush1.xpose.msra.mxu0 0.0
    %5338 = vmatprep.subr.mxu0 0.0
    %5339 = vmatpush1.xpose.msra.mxu0 0.0
    %5340 = vmatprep.subr.mxu0 0.0
    %5341 = vmatpush1.xpose.msra.mxu0 0.0
    %5342 = vmatprep.subr.mxu0 0.0
    %5343 = vmatpush1.xpose.msra.mxu0 0.0
    %5344 = vmatprep.subr.mxu0 0.0
    %5345 = vmatpush1.xpose.msra.mxu0 0.0
    %5346 = vmatprep.subr.mxu0 0.0
    %5347 = vmatpush1.xpose.msra.mxu0 0.0
    %5348 = vmatprep.subr.mxu0 0.0
    %5349 = vmatpush1.xpose.msra.mxu0 0.0
    %5350 = vmatprep.subr.mxu0 0.0
    %5351 = vmatpush1.xpose.msra.mxu0 0.0
    %5352 = vmatprep.subr.mxu0 0.0
    %5353 = vmatpush1.xpose.msra.mxu0 0.0
    %5354 = vmatprep.subr.mxu0 0.0
    %5355 = vmatpush1.xpose.msra.mxu0 0.0
    %5356 = vmatprep.subr.mxu0 0.0
    %5357 = vmatpush1.xpose.msra.mxu0 0.0
    %5358 = vmatprep.subr.mxu0 0.0
    %5359 = vmatpush1.xpose.msra.mxu0 0.0
    %5360 = vmatprep.subr.mxu0 0.0
    %5361 = vmatpush1.xpose.msra.mxu0 0.0
    %5362 = vmatprep.subr.mxu0 0.0
    %5363 = vmatpush1.xpose.msra.mxu0 0.0
    %5364 = vmatprep.subr.mxu0 0.0
    %5365 = vmatpush1.xpose.msra.mxu0 0.0
    %5366 = vmatprep.subr.mxu0 0.0
    %5367 = vmatpush1.xpose.msra.mxu0 0.0
    %5368 = vmatprep.subr.mxu0 0.0
    %5369 = vmatpush1.xpose.msra.mxu0 0.0
    %5370 = vmatprep.subr.mxu0 0.0
    %5371 = vmatpush1.xpose.msra.mxu0 0.0
    %5372 = vmatprep.subr.mxu0 0.0
    %5373 = vmatpush1.xpose.msra.mxu0 0.0
    %5374 = vmatprep.subr.mxu0 0.0
    %5375 = vmatpush1.xpose.msra.mxu0 0.0
    %5376 = vmatprep.mubr.f32.mxu0 %v5309
    %5377 = vmatmul.mubr.f32.gmra.mrb[0].mxu0 %v5305
    %v5378 = vpop.f32.mrb[0].mxu0
    %v5379 = vadd.f32 %v5298, %v5378
    %v5380 = vpop.f32.mrb[0].mxu0
    %5381 = vdwg.mxu0
    %s5382 = scalar_lea.vmem [#allocation4], 18
    %v5383 = vld [vmem:[%s5382] ss:$8 sm:$0x3]
    %v5385 = vlaneseq
    %v5386 = vshrl.u32 %v5385, 7
    %v5387 = vsub.s32 0, %v5386
    %v5388 = vrot.slane %v5383, %v5387
    %v5389 = vlaneseq
    %v5390 = vshrl.u32 %v5389, 7
    %v5391 = vsub.s32 1, %v5390
    %v5392 = vrot.slane %v5383, %v5391
    %5395 = vmatprep.subr.mxu0 %v2550
    %5396 = vmatpush1.xpose.msra.mxu0 %v2549
    %5397 = vmatprep.subr.mxu0 %v2552
    %5398 = vmatpush1.xpose.msra.mxu0 %v2551
    %5399 = vmatprep.subr.mxu0 0.0
    %5400 = vmatpush1.xpose.msra.mxu0 0.0
    %5401 = vmatprep.subr.mxu0 0.0
    %5402 = vmatpush1.xpose.msra.mxu0 0.0
    %5403 = vmatprep.subr.mxu0 0.0
    %5404 = vmatpush1.xpose.msra.mxu0 0.0
    %5405 = vmatprep.subr.mxu0 0.0
    %5406 = vmatpush1.xpose.msra.mxu0 0.0
    %5407 = vmatprep.subr.mxu0 0.0
    %5408 = vmatpush1.xpose.msra.mxu0 0.0
    %5409 = vmatprep.subr.mxu0 0.0
    %5410 = vmatpush1.xpose.msra.mxu0 0.0
    %5411 = vmatprep.subr.mxu0 0.0
    %5412 = vmatpush1.xpose.msra.mxu0 0.0
    %5413 = vmatprep.subr.mxu0 0.0
    %5414 = vmatpush1.xpose.msra.mxu0 0.0
    %5415 = vmatprep.subr.mxu0 0.0
    %5416 = vmatpush1.xpose.msra.mxu0 0.0
    %5417 = vmatprep.subr.mxu0 0.0
    %5418 = vmatpush1.xpose.msra.mxu0 0.0
    %5419 = vmatprep.subr.mxu0 0.0
    %5420 = vmatpush1.xpose.msra.mxu0 0.0
    %5421 = vmatprep.subr.mxu0 0.0
    %5422 = vmatpush1.xpose.msra.mxu0 0.0
    %5423 = vmatprep.subr.mxu0 0.0
    %5424 = vmatpush1.xpose.msra.mxu0 0.0
    %5425 = vmatprep.subr.mxu0 0.0
    %5426 = vmatpush1.xpose.msra.mxu0 0.0
    %5427 = vmatprep.subr.mxu0 0.0
    %5428 = vmatpush1.xpose.msra.mxu0 0.0
    %5429 = vmatprep.subr.mxu0 0.0
    %5430 = vmatpush1.xpose.msra.mxu0 0.0
    %5431 = vmatprep.subr.mxu0 0.0
    %5432 = vmatpush1.xpose.msra.mxu0 0.0
    %5433 = vmatprep.subr.mxu0 0.0
    %5434 = vmatpush1.xpose.msra.mxu0 0.0
    %5435 = vmatprep.subr.mxu0 0.0
    %5436 = vmatpush1.xpose.msra.mxu0 0.0
    %5437 = vmatprep.subr.mxu0 0.0
    %5438 = vmatpush1.xpose.msra.mxu0 0.0
    %5439 = vmatprep.subr.mxu0 0.0
    %5440 = vmatpush1.xpose.msra.mxu0 0.0
    %5441 = vmatprep.subr.mxu0 0.0
    %5442 = vmatpush1.xpose.msra.mxu0 0.0
    %5443 = vmatprep.subr.mxu0 0.0
    %5444 = vmatpush1.xpose.msra.mxu0 0.0
    %5445 = vmatprep.subr.mxu0 0.0
    %5446 = vmatpush1.xpose.msra.mxu0 0.0
    %5447 = vmatprep.subr.mxu0 0.0
    %5448 = vmatpush1.xpose.msra.mxu0 0.0
    %5449 = vmatprep.subr.mxu0 0.0
    %5450 = vmatpush1.xpose.msra.mxu0 0.0
    %5451 = vmatprep.subr.mxu0 0.0
    %5452 = vmatpush1.xpose.msra.mxu0 0.0
    %5453 = vmatprep.subr.mxu0 0.0
    %5454 = vmatpush1.xpose.msra.mxu0 0.0
    %5455 = vmatprep.subr.mxu0 0.0
    %5456 = vmatpush1.xpose.msra.mxu0 0.0
    %5457 = vmatprep.subr.mxu0 0.0
    %5458 = vmatpush1.xpose.msra.mxu0 0.0
    %5459 = vmatprep.mubr.f32.mxu0 %v5392
    %5460 = vmatmul.mubr.f32.gmra.mrb[0].mxu0 %v5388
    %v5461 = vpop.f32.mrb[0].mxu0
    %v5462 = vadd.f32 0.0, %v5461
    %v5463 = vpop.f32.mrb[0].mxu0
    %5464 = vdwg.mxu0
    %v5465 = vadd.f32 %v5379, %v5462
    %s5466 = scalar_lea.vmem [#allocation4], 19
    %v5467 = vld [vmem:[%s5466] ss:$8 sm:$0x3]
    %v5469 = vlaneseq
    %v5470 = vshrl.u32 %v5469, 7
    %v5471 = vsub.s32 0, %v5470
    %v5472 = vrot.slane %v5467, %v5471
    %v5473 = vlaneseq
    %v5474 = vshrl.u32 %v5473, 7
    %v5475 = vsub.s32 1, %v5474
    %v5476 = vrot.slane %v5467, %v5475
    %5479 = vmatprep.subr.mxu0 %v2639
    %5480 = vmatpush1.xpose.msra.mxu0 %v2638
    %5481 = vmatprep.subr.mxu0 %v2641
    %5482 = vmatpush1.xpose.msra.mxu0 %v2640
    %5483 = vmatprep.subr.mxu0 0.0
    %5484 = vmatpush1.xpose.msra.mxu0 0.0
    %5485 = vmatprep.subr.mxu0 0.0
    %5486 = vmatpush1.xpose.msra.mxu0 0.0
    %5487 = vmatprep.subr.mxu0 0.0
    %5488 = vmatpush1.xpose.msra.mxu0 0.0
    %5489 = vmatprep.subr.mxu0 0.0
    %5490 = vmatpush1.xpose.msra.mxu0 0.0
    %5491 = vmatprep.subr.mxu0 0.0
    %5492 = vmatpush1.xpose.msra.mxu0 0.0
    %5493 = vmatprep.subr.mxu0 0.0
    %5494 = vmatpush1.xpose.msra.mxu0 0.0
    %5495 = vmatprep.subr.mxu0 0.0
    %5496 = vmatpush1.xpose.msra.mxu0 0.0
    %5497 = vmatprep.subr.mxu0 0.0
    %5498 = vmatpush1.xpose.msra.mxu0 0.0
    %5499 = vmatprep.subr.mxu0 0.0
    %5500 = vmatpush1.xpose.msra.mxu0 0.0
    %5501 = vmatprep.subr.mxu0 0.0
    %5502 = vmatpush1.xpose.msra.mxu0 0.0
    %5503 = vmatprep.subr.mxu0 0.0
    %5504 = vmatpush1.xpose.msra.mxu0 0.0
    %5505 = vmatprep.subr.mxu0 0.0
    %5506 = vmatpush1.xpose.msra.mxu0 0.0
    %5507 = vmatprep.subr.mxu0 0.0
    %5508 = vmatpush1.xpose.msra.mxu0 0.0
    %5509 = vmatprep.subr.mxu0 0.0
    %5510 = vmatpush1.xpose.msra.mxu0 0.0
    %5511 = vmatprep.subr.mxu0 0.0
    %5512 = vmatpush1.xpose.msra.mxu0 0.0
    %5513 = vmatprep.subr.mxu0 0.0
    %5514 = vmatpush1.xpose.msra.mxu0 0.0
    %5515 = vmatprep.subr.mxu0 0.0
    %5516 = vmatpush1.xpose.msra.mxu0 0.0
    %5517 = vmatprep.subr.mxu0 0.0
    %5518 = vmatpush1.xpose.msra.mxu0 0.0
    %5519 = vmatprep.subr.mxu0 0.0
    %5520 = vmatpush1.xpose.msra.mxu0 0.0
    %5521 = vmatprep.subr.mxu0 0.0
    %5522 = vmatpush1.xpose.msra.mxu0 0.0
    %5523 = vmatprep.subr.mxu0 0.0
    %5524 = vmatpush1.xpose.msra.mxu0 0.0
    %5525 = vmatprep.subr.mxu0 0.0
    %5526 = vmatpush1.xpose.msra.mxu0 0.0
    %5527 = vmatprep.subr.mxu0 0.0
    %5528 = vmatpush1.xpose.msra.mxu0 0.0
    %5529 = vmatprep.subr.mxu0 0.0
    %5530 = vmatpush1.xpose.msra.mxu0 0.0
    %5531 = vmatprep.subr.mxu0 0.0
    %5532 = vmatpush1.xpose.msra.mxu0 0.0
    %5533 = vmatprep.subr.mxu0 0.0
    %5534 = vmatpush1.xpose.msra.mxu0 0.0
    %5535 = vmatprep.subr.mxu0 0.0
    %5536 = vmatpush1.xpose.msra.mxu0 0.0
    %5537 = vmatprep.subr.mxu0 0.0
    %5538 = vmatpush1.xpose.msra.mxu0 0.0
    %5539 = vmatprep.subr.mxu0 0.0
    %5540 = vmatpush1.xpose.msra.mxu0 0.0
    %5541 = vmatprep.subr.mxu0 0.0
    %5542 = vmatpush1.xpose.msra.mxu0 0.0
    %5543 = vmatprep.mubr.f32.mxu0 %v5476
    %5544 = vmatmul.mubr.f32.gmra.mrb[0].mxu0 %v5472
    %v5545 = vpop.f32.mrb[0].mxu0
    %v5546 = vadd.f32 0.0, %v5545
    %v5547 = vpop.f32.mrb[0].mxu0
    %5548 = vdwg.mxu0
    %v5549 = vadd.f32 %v5465, %v5546
    %s5550 = scalar_lea.vmem [#allocation4], 20
    %v5551 = vld [vmem:[%s5550] ss:$8 sm:$0x3]
    %v5553 = vlaneseq
    %v5554 = vshrl.u32 %v5553, 7
    %v5555 = vsub.s32 0, %v5554
    %v5556 = vrot.slane %v5551, %v5555
    %v5557 = vlaneseq
    %v5558 = vshrl.u32 %v5557, 7
    %v5559 = vsub.s32 1, %v5558
    %v5560 = vrot.slane %v5551, %v5559
    %5563 = vmatprep.subr.mxu0 %v2728
    %5564 = vmatpush1.xpose.msra.mxu0 %v2727
    %5565 = vmatprep.subr.mxu0 %v2730
    %5566 = vmatpush1.xpose.msra.mxu0 %v2729
    %5567 = vmatprep.subr.mxu0 0.0
    %5568 = vmatpush1.xpose.msra.mxu0 0.0
    %5569 = vmatprep.subr.mxu0 0.0
    %5570 = vmatpush1.xpose.msra.mxu0 0.0
    %5571 = vmatprep.subr.mxu0 0.0
    %5572 = vmatpush1.xpose.msra.mxu0 0.0
    %5573 = vmatprep.subr.mxu0 0.0
    %5574 = vmatpush1.xpose.msra.mxu0 0.0
    %5575 = vmatprep.subr.mxu0 0.0
    %5576 = vmatpush1.xpose.msra.mxu0 0.0
    %5577 = vmatprep.subr.mxu0 0.0
    %5578 = vmatpush1.xpose.msra.mxu0 0.0
    %5579 = vmatprep.subr.mxu0 0.0
    %5580 = vmatpush1.xpose.msra.mxu0 0.0
    %5581 = vmatprep.subr.mxu0 0.0
    %5582 = vmatpush1.xpose.msra.mxu0 0.0
    %5583 = vmatprep.subr.mxu0 0.0
    %5584 = vmatpush1.xpose.msra.mxu0 0.0
    %5585 = vmatprep.subr.mxu0 0.0
    %5586 = vmatpush1.xpose.msra.mxu0 0.0
    %5587 = vmatprep.subr.mxu0 0.0
    %5588 = vmatpush1.xpose.msra.mxu0 0.0
    %5589 = vmatprep.subr.mxu0 0.0
    %5590 = vmatpush1.xpose.msra.mxu0 0.0
    %5591 = vmatprep.subr.mxu0 0.0
    %5592 = vmatpush1.xpose.msra.mxu0 0.0
    %5593 = vmatprep.subr.mxu0 0.0
    %5594 = vmatpush1.xpose.msra.mxu0 0.0
    %5595 = vmatprep.subr.mxu0 0.0
    %5596 = vmatpush1.xpose.msra.mxu0 0.0
    %5597 = vmatprep.subr.mxu0 0.0
    %5598 = vmatpush1.xpose.msra.mxu0 0.0
    %5599 = vmatprep.subr.mxu0 0.0
    %5600 = vmatpush1.xpose.msra.mxu0 0.0
    %5601 = vmatprep.subr.mxu0 0.0
    %5602 = vmatpush1.xpose.msra.mxu0 0.0
    %5603 = vmatprep.subr.mxu0 0.0
    %5604 = vmatpush1.xpose.msra.mxu0 0.0
    %5605 = vmatprep.subr.mxu0 0.0
    %5606 = vmatpush1.xpose.msra.mxu0 0.0
    %5607 = vmatprep.subr.mxu0 0.0
    %5608 = vmatpush1.xpose.msra.mxu0 0.0
    %5609 = vmatprep.subr.mxu0 0.0
    %5610 = vmatpush1.xpose.msra.mxu0 0.0
    %5611 = vmatprep.subr.mxu0 0.0
    %5612 = vmatpush1.xpose.msra.mxu0 0.0
    %5613 = vmatprep.subr.mxu0 0.0
    %5614 = vmatpush1.xpose.msra.mxu0 0.0
    %5615 = vmatprep.subr.mxu0 0.0
    %5616 = vmatpush1.xpose.msra.mxu0 0.0
    %5617 = vmatprep.subr.mxu0 0.0
    %5618 = vmatpush1.xpose.msra.mxu0 0.0
    %5619 = vmatprep.subr.mxu0 0.0
    %5620 = vmatpush1.xpose.msra.mxu0 0.0
    %5621 = vmatprep.subr.mxu0 0.0
    %5622 = vmatpush1.xpose.msra.mxu0 0.0
    %5623 = vmatprep.subr.mxu0 0.0
    %5624 = vmatpush1.xpose.msra.mxu0 0.0
    %5625 = vmatprep.subr.mxu0 0.0
    %5626 = vmatpush1.xpose.msra.mxu0 0.0
    %5627 = vmatprep.mubr.f32.mxu0 %v5560
    %5628 = vmatmul.mubr.f32.gmra.mrb[0].mxu0 %v5556
    %v5629 = vpop.f32.mrb[0].mxu0
    %v5630 = vadd.f32 0.0, %v5629
    %v5631 = vpop.f32.mrb[0].mxu0
    %5632 = vdwg.mxu0
    %v5633 = vadd.f32 %v5549, %v5630
    %s5634 = scalar_lea.vmem [#allocation4], 21
    %v5635 = vld [vmem:[%s5634] ss:$8 sm:$0x3]
    %v5637 = vlaneseq
    %v5638 = vshrl.u32 %v5637, 7
    %v5639 = vsub.s32 0, %v5638
    %v5640 = vrot.slane %v5635, %v5639
    %v5641 = vlaneseq
    %v5642 = vshrl.u32 %v5641, 7
    %v5643 = vsub.s32 1, %v5642
    %v5644 = vrot.slane %v5635, %v5643
    %5647 = vmatprep.subr.mxu0 %v2817
    %5648 = vmatpush1.xpose.msra.mxu0 %v2816
    %5649 = vmatprep.subr.mxu0 %v2819
    %5650 = vmatpush1.xpose.msra.mxu0 %v2818
    %5651 = vmatprep.subr.mxu0 0.0
    %5652 = vmatpush1.xpose.msra.mxu0 0.0
    %5653 = vmatprep.subr.mxu0 0.0
    %5654 = vmatpush1.xpose.msra.mxu0 0.0
    %5655 = vmatprep.subr.mxu0 0.0
    %5656 = vmatpush1.xpose.msra.mxu0 0.0
    %5657 = vmatprep.subr.mxu0 0.0
    %5658 = vmatpush1.xpose.msra.mxu0 0.0
    %5659 = vmatprep.subr.mxu0 0.0
    %5660 = vmatpush1.xpose.msra.mxu0 0.0
    %5661 = vmatprep.subr.mxu0 0.0
    %5662 = vmatpush1.xpose.msra.mxu0 0.0
    %5663 = vmatprep.subr.mxu0 0.0
    %5664 = vmatpush1.xpose.msra.mxu0 0.0
    %5665 = vmatprep.subr.mxu0 0.0
    %5666 = vmatpush1.xpose.msra.mxu0 0.0
    %5667 = vmatprep.subr.mxu0 0.0
    %5668 = vmatpush1.xpose.msra.mxu0 0.0
    %5669 = vmatprep.subr.mxu0 0.0
    %5670 = vmatpush1.xpose.msra.mxu0 0.0
    %5671 = vmatprep.subr.mxu0 0.0
    %5672 = vmatpush1.xpose.msra.mxu0 0.0
    %5673 = vmatprep.subr.mxu0 0.0
    %5674 = vmatpush1.xpose.msra.mxu0 0.0
    %5675 = vmatprep.subr.mxu0 0.0
    %5676 = vmatpush1.xpose.msra.mxu0 0.0
    %5677 = vmatprep.subr.mxu0 0.0
    %5678 = vmatpush1.xpose.msra.mxu0 0.0
    %5679 = vmatprep.subr.mxu0 0.0
    %5680 = vmatpush1.xpose.msra.mxu0 0.0
    %5681 = vmatprep.subr.mxu0 0.0
    %5682 = vmatpush1.xpose.msra.mxu0 0.0
    %5683 = vmatprep.subr.mxu0 0.0
    %5684 = vmatpush1.xpose.msra.mxu0 0.0
    %5685 = vmatprep.subr.mxu0 0.0
    %5686 = vmatpush1.xpose.msra.mxu0 0.0
    %5687 = vmatprep.subr.mxu0 0.0
    %5688 = vmatpush1.xpose.msra.mxu0 0.0
    %5689 = vmatprep.subr.mxu0 0.0
    %5690 = vmatpush1.xpose.msra.mxu0 0.0
    %5691 = vmatprep.subr.mxu0 0.0
    %5692 = vmatpush1.xpose.msra.mxu0 0.0
    %5693 = vmatprep.subr.mxu0 0.0
    %5694 = vmatpush1.xpose.msra.mxu0 0.0
    %5695 = vmatprep.subr.mxu0 0.0
    %5696 = vmatpush1.xpose.msra.mxu0 0.0
    %5697 = vmatprep.subr.mxu0 0.0
    %5698 = vmatpush1.xpose.msra.mxu0 0.0
    %5699 = vmatprep.subr.mxu0 0.0
    %5700 = vmatpush1.xpose.msra.mxu0 0.0
    %5701 = vmatprep.subr.mxu0 0.0
    %5702 = vmatpush1.xpose.msra.mxu0 0.0
    %5703 = vmatprep.subr.mxu0 0.0
    %5704 = vmatpush1.xpose.msra.mxu0 0.0
    %5705 = vmatprep.subr.mxu0 0.0
    %5706 = vmatpush1.xpose.msra.mxu0 0.0
    %5707 = vmatprep.subr.mxu0 0.0
    %5708 = vmatpush1.xpose.msra.mxu0 0.0
    %5709 = vmatprep.subr.mxu0 0.0
    %5710 = vmatpush1.xpose.msra.mxu0 0.0
    %5711 = vmatprep.mubr.f32.mxu0 %v5644
    %5712 = vmatmul.mubr.f32.gmra.mrb[0].mxu0 %v5640
    %v5713 = vpop.f32.mrb[0].mxu0
    %v5714 = vadd.f32 0.0, %v5713
    %v5715 = vpop.f32.mrb[0].mxu0
    %5716 = vdwg.mxu0
    %v5717 = vadd.f32 %v5633, %v5714
    %s5718 = scalar_lea.vmem [#allocation4], 22
    %v5719 = vld [vmem:[%s5718] ss:$8 sm:$0x3]
    %v5721 = vlaneseq
    %v5722 = vshrl.u32 %v5721, 7
    %v5723 = vsub.s32 0, %v5722
    %v5724 = vrot.slane %v5719, %v5723
    %v5725 = vlaneseq
    %v5726 = vshrl.u32 %v5725, 7
    %v5727 = vsub.s32 1, %v5726
    %v5728 = vrot.slane %v5719, %v5727
    %5731 = vmatprep.subr.mxu0 %v2906
    %5732 = vmatpush1.xpose.msra.mxu0 %v2905
    %5733 = vmatprep.subr.mxu0 %v2908
    %5734 = vmatpush1.xpose.msra.mxu0 %v2907
    %5735 = vmatprep.subr.mxu0 0.0
    %5736 = vmatpush1.xpose.msra.mxu0 0.0
    %5737 = vmatprep.subr.mxu0 0.0
    %5738 = vmatpush1.xpose.msra.mxu0 0.0
    %5739 = vmatprep.subr.mxu0 0.0
    %5740 = vmatpush1.xpose.msra.mxu0 0.0
    %5741 = vmatprep.subr.mxu0 0.0
    %5742 = vmatpush1.xpose.msra.mxu0 0.0
    %5743 = vmatprep.subr.mxu0 0.0
    %5744 = vmatpush1.xpose.msra.mxu0 0.0
    %5745 = vmatprep.subr.mxu0 0.0
    %5746 = vmatpush1.xpose.msra.mxu0 0.0
    %5747 = vmatprep.subr.mxu0 0.0
    %5748 = vmatpush1.xpose.msra.mxu0 0.0
    %5749 = vmatprep.subr.mxu0 0.0
    %5750 = vmatpush1.xpose.msra.mxu0 0.0
    %5751 = vmatprep.subr.mxu0 0.0
    %5752 = vmatpush1.xpose.msra.mxu0 0.0
    %5753 = vmatprep.subr.mxu0 0.0
    %5754 = vmatpush1.xpose.msra.mxu0 0.0
    %5755 = vmatprep.subr.mxu0 0.0
    %5756 = vmatpush1.xpose.msra.mxu0 0.0
    %5757 = vmatprep.subr.mxu0 0.0
    %5758 = vmatpush1.xpose.msra.mxu0 0.0
    %5759 = vmatprep.subr.mxu0 0.0
    %5760 = vmatpush1.xpose.msra.mxu0 0.0
    %5761 = vmatprep.subr.mxu0 0.0
    %5762 = vmatpush1.xpose.msra.mxu0 0.0
    %5763 = vmatprep.subr.mxu0 0.0
    %5764 = vmatpush1.xpose.msra.mxu0 0.0
    %5765 = vmatprep.subr.mxu0 0.0
    %5766 = vmatpush1.xpose.msra.mxu0 0.0
    %5767 = vmatprep.subr.mxu0 0.0
    %5768 = vmatpush1.xpose.msra.mxu0 0.0
    %5769 = vmatprep.subr.mxu0 0.0
    %5770 = vmatpush1.xpose.msra.mxu0 0.0
    %5771 = vmatprep.subr.mxu0 0.0
    %5772 = vmatpush1.xpose.msra.mxu0 0.0
    %5773 = vmatprep.subr.mxu0 0.0
    %5774 = vmatpush1.xpose.msra.mxu0 0.0
    %5775 = vmatprep.subr.mxu0 0.0
    %5776 = vmatpush1.xpose.msra.mxu0 0.0
    %5777 = vmatprep.subr.mxu0 0.0
    %5778 = vmatpush1.xpose.msra.mxu0 0.0
    %5779 = vmatprep.subr.mxu0 0.0
    %5780 = vmatpush1.xpose.msra.mxu0 0.0
    %5781 = vmatprep.subr.mxu0 0.0
    %5782 = vmatpush1.xpose.msra.mxu0 0.0
    %5783 = vmatprep.subr.mxu0 0.0
    %5784 = vmatpush1.xpose.msra.mxu0 0.0
    %5785 = vmatprep.subr.mxu0 0.0
    %5786 = vmatpush1.xpose.msra.mxu0 0.0
    %5787 = vmatprep.subr.mxu0 0.0
    %5788 = vmatpush1.xpose.msra.mxu0 0.0
    %5789 = vmatprep.subr.mxu0 0.0
    %5790 = vmatpush1.xpose.msra.mxu0 0.0
    %5791 = vmatprep.subr.mxu0 0.0
    %5792 = vmatpush1.xpose.msra.mxu0 0.0
    %5793 = vmatprep.subr.mxu0 0.0
    %5794 = vmatpush1.xpose.msra.mxu0 0.0
    %5795 = vmatprep.mubr.f32.mxu0 %v5728
    %5796 = vmatmul.mubr.f32.gmra.mrb[0].mxu0 %v5724
    %v5797 = vpop.f32.mrb[0].mxu0
    %v5798 = vadd.f32 0.0, %v5797
    %v5799 = vpop.f32.mrb[0].mxu0
    %5800 = vdwg.mxu0
    %v5801 = vadd.f32 %v5717, %v5798
    %s5802 = scalar_lea.vmem [#allocation4], 23
    %v5803 = vld [vmem:[%s5802] ss:$8 sm:$0x3]
    %v5805 = vlaneseq
    %v5806 = vshrl.u32 %v5805, 7
    %v5807 = vsub.s32 0, %v5806
    %v5808 = vrot.slane %v5803, %v5807
    %v5809 = vlaneseq
    %v5810 = vshrl.u32 %v5809, 7
    %v5811 = vsub.s32 1, %v5810
    %v5812 = vrot.slane %v5803, %v5811
    %5815 = vmatprep.subr.mxu0 %v2995
    %5816 = vmatpush1.xpose.msra.mxu0 %v2994
    %5817 = vmatprep.subr.mxu0 %v2997
    %5818 = vmatpush1.xpose.msra.mxu0 %v2996
    %5819 = vmatprep.subr.mxu0 0.0
    %5820 = vmatpush1.xpose.msra.mxu0 0.0
    %5821 = vmatprep.subr.mxu0 0.0
    %5822 = vmatpush1.xpose.msra.mxu0 0.0
    %5823 = vmatprep.subr.mxu0 0.0
    %5824 = vmatpush1.xpose.msra.mxu0 0.0
    %5825 = vmatprep.subr.mxu0 0.0
    %5826 = vmatpush1.xpose.msra.mxu0 0.0
    %5827 = vmatprep.subr.mxu0 0.0
    %5828 = vmatpush1.xpose.msra.mxu0 0.0
    %5829 = vmatprep.subr.mxu0 0.0
    %5830 = vmatpush1.xpose.msra.mxu0 0.0
    %5831 = vmatprep.subr.mxu0 0.0
    %5832 = vmatpush1.xpose.msra.mxu0 0.0
    %5833 = vmatprep.subr.mxu0 0.0
    %5834 = vmatpush1.xpose.msra.mxu0 0.0
    %5835 = vmatprep.subr.mxu0 0.0
    %5836 = vmatpush1.xpose.msra.mxu0 0.0
    %5837 = vmatprep.subr.mxu0 0.0
    %5838 = vmatpush1.xpose.msra.mxu0 0.0
    %5839 = vmatprep.subr.mxu0 0.0
    %5840 = vmatpush1.xpose.msra.mxu0 0.0
    %5841 = vmatprep.subr.mxu0 0.0
    %5842 = vmatpush1.xpose.msra.mxu0 0.0
    %5843 = vmatprep.subr.mxu0 0.0
    %5844 = vmatpush1.xpose.msra.mxu0 0.0
    %5845 = vmatprep.subr.mxu0 0.0
    %5846 = vmatpush1.xpose.msra.mxu0 0.0
    %5847 = vmatprep.subr.mxu0 0.0
    %5848 = vmatpush1.xpose.msra.mxu0 0.0
    %5849 = vmatprep.subr.mxu0 0.0
    %5850 = vmatpush1.xpose.msra.mxu0 0.0
    %5851 = vmatprep.subr.mxu0 0.0
    %5852 = vmatpush1.xpose.msra.mxu0 0.0
    %5853 = vmatprep.subr.mxu0 0.0
    %5854 = vmatpush1.xpose.msra.mxu0 0.0
    %5855 = vmatprep.subr.mxu0 0.0
    %5856 = vmatpush1.xpose.msra.mxu0 0.0
    %5857 = vmatprep.subr.mxu0 0.0
    %5858 = vmatpush1.xpose.msra.mxu0 0.0
    %5859 = vmatprep.subr.mxu0 0.0
    %5860 = vmatpush1.xpose.msra.mxu0 0.0
    %5861 = vmatprep.subr.mxu0 0.0
    %5862 = vmatpush1.xpose.msra.mxu0 0.0
    %5863 = vmatprep.subr.mxu0 0.0
    %5864 = vmatpush1.xpose.msra.mxu0 0.0
    %5865 = vmatprep.subr.mxu0 0.0
    %5866 = vmatpush1.xpose.msra.mxu0 0.0
    %5867 = vmatprep.subr.mxu0 0.0
    %5868 = vmatpush1.xpose.msra.mxu0 0.0
    %5869 = vmatprep.subr.mxu0 0.0
    %5870 = vmatpush1.xpose.msra.mxu0 0.0
    %5871 = vmatprep.subr.mxu0 0.0
    %5872 = vmatpush1.xpose.msra.mxu0 0.0
    %5873 = vmatprep.subr.mxu0 0.0
    %5874 = vmatpush1.xpose.msra.mxu0 0.0
    %5875 = vmatprep.subr.mxu0 0.0
    %5876 = vmatpush1.xpose.msra.mxu0 0.0
    %5877 = vmatprep.subr.mxu0 0.0
    %5878 = vmatpush1.xpose.msra.mxu0 0.0
    %5879 = vmatprep.mubr.f32.mxu0 %v5812
    %5880 = vmatmul.mubr.f32.gmra.mrb[0].mxu0 %v5808
    %v5881 = vpop.f32.mrb[0].mxu0
    %v5882 = vadd.f32 0.0, %v5881
    %v5883 = vpop.f32.mrb[0].mxu0
    %5884 = vdwg.mxu0
    %v5885 = vadd.f32 %v5801, %v5882
    %s5886 = scalar_lea.vmem [#allocation4], 48
    %v5887 = vld [vmem:[%s5886] ss:$8 sm:$0x3]
    %v5889 = vlaneseq
    %v5890 = vshrl.u32 %v5889, 7
    %v5891 = vsub.s32 0, %v5890
    %v5892 = vrot.slane %v5887, %v5891
    %v5893 = vlaneseq
    %v5894 = vshrl.u32 %v5893, 7
    %v5895 = vsub.s32 1, %v5894
    %v5896 = vrot.slane %v5887, %v5895
    %5899 = vmatprep.subr.mxu0 %v3084
    %5900 = vmatpush1.xpose.msra.mxu0 %v3083
    %5901 = vmatprep.subr.mxu0 %v3086
    %5902 = vmatpush1.xpose.msra.mxu0 %v3085
    %5903 = vmatprep.subr.mxu0 0.0
    %5904 = vmatpush1.xpose.msra.mxu0 0.0
    %5905 = vmatprep.subr.mxu0 0.0
    %5906 = vmatpush1.xpose.msra.mxu0 0.0
    %5907 = vmatprep.subr.mxu0 0.0
    %5908 = vmatpush1.xpose.msra.mxu0 0.0
    %5909 = vmatprep.subr.mxu0 0.0
    %5910 = vmatpush1.xpose.msra.mxu0 0.0
    %5911 = vmatprep.subr.mxu0 0.0
    %5912 = vmatpush1.xpose.msra.mxu0 0.0
    %5913 = vmatprep.subr.mxu0 0.0
    %5914 = vmatpush1.xpose.msra.mxu0 0.0
    %5915 = vmatprep.subr.mxu0 0.0
    %5916 = vmatpush1.xpose.msra.mxu0 0.0
    %5917 = vmatprep.subr.mxu0 0.0
    %5918 = vmatpush1.xpose.msra.mxu0 0.0
    %5919 = vmatprep.subr.mxu0 0.0
    %5920 = vmatpush1.xpose.msra.mxu0 0.0
    %5921 = vmatprep.subr.mxu0 0.0
    %5922 = vmatpush1.xpose.msra.mxu0 0.0
    %5923 = vmatprep.subr.mxu0 0.0
    %5924 = vmatpush1.xpose.msra.mxu0 0.0
    %5925 = vmatprep.subr.mxu0 0.0
    %5926 = vmatpush1.xpose.msra.mxu0 0.0
    %5927 = vmatprep.subr.mxu0 0.0
    %5928 = vmatpush1.xpose.msra.mxu0 0.0
    %5929 = vmatprep.subr.mxu0 0.0
    %5930 = vmatpush1.xpose.msra.mxu0 0.0
    %5931 = vmatprep.subr.mxu0 0.0
    %5932 = vmatpush1.xpose.msra.mxu0 0.0
    %5933 = vmatprep.subr.mxu0 0.0
    %5934 = vmatpush1.xpose.msra.mxu0 0.0
    %5935 = vmatprep.subr.mxu0 0.0
    %5936 = vmatpush1.xpose.msra.mxu0 0.0
    %5937 = vmatprep.subr.mxu0 0.0
    %5938 = vmatpush1.xpose.msra.mxu0 0.0
    %5939 = vmatprep.subr.mxu0 0.0
    %5940 = vmatpush1.xpose.msra.mxu0 0.0
    %5941 = vmatprep.subr.mxu0 0.0
    %5942 = vmatpush1.xpose.msra.mxu0 0.0
    %5943 = vmatprep.subr.mxu0 0.0
    %5944 = vmatpush1.xpose.msra.mxu0 0.0
    %5945 = vmatprep.subr.mxu0 0.0
    %5946 = vmatpush1.xpose.msra.mxu0 0.0
    %5947 = vmatprep.subr.mxu0 0.0
    %5948 = vmatpush1.xpose.msra.mxu0 0.0
    %5949 = vmatprep.subr.mxu0 0.0
    %5950 = vmatpush1.xpose.msra.mxu0 0.0
    %5951 = vmatprep.subr.mxu0 0.0
    %5952 = vmatpush1.xpose.msra.mxu0 0.0
    %5953 = vmatprep.subr.mxu0 0.0
    %5954 = vmatpush1.xpose.msra.mxu0 0.0
    %5955 = vmatprep.subr.mxu0 0.0
    %5956 = vmatpush1.xpose.msra.mxu0 0.0
    %5957 = vmatprep.subr.mxu0 0.0
    %5958 = vmatpush1.xpose.msra.mxu0 0.0
    %5959 = vmatprep.subr.mxu0 0.0
    %5960 = vmatpush1.xpose.msra.mxu0 0.0
    %5961 = vmatprep.subr.mxu0 0.0
    %5962 = vmatpush1.xpose.msra.mxu0 0.0
    %5963 = vmatprep.mubr.f32.mxu0 %v5896
    %5964 = vmatmul.mubr.f32.gmra.mrb[0].mxu0 %v5892
    %v5965 = vpop.f32.mrb[0].mxu0
    %v5966 = vadd.f32 0.0, %v5965
    %v5967 = vpop.f32.mrb[0].mxu0
    %5968 = vdwg.mxu0
    %v5969 = vadd.f32 %v5885, %v5966
    %s5970 = scalar_lea.vmem [#allocation4], 49
    %v5971 = vld [vmem:[%s5970] ss:$8 sm:$0x3]
    %v5973 = vlaneseq
    %v5974 = vshrl.u32 %v5973, 7
    %v5975 = vsub.s32 0, %v5974
    %v5976 = vrot.slane %v5971, %v5975
    %v5977 = vlaneseq
    %v5978 = vshrl.u32 %v5977, 7
    %v5979 = vsub.s32 1, %v5978
    %v5980 = vrot.slane %v5971, %v5979
    %5983 = vmatprep.subr.mxu0 %v3173
    %5984 = vmatpush1.xpose.msra.mxu0 %v3172
    %5985 = vmatprep.subr.mxu0 %v3175
    %5986 = vmatpush1.xpose.msra.mxu0 %v3174
    %5987 = vmatprep.subr.mxu0 0.0
    %5988 = vmatpush1.xpose.msra.mxu0 0.0
    %5989 = vmatprep.subr.mxu0 0.0
    %5990 = vmatpush1.xpose.msra.mxu0 0.0
    %5991 = vmatprep.subr.mxu0 0.0
    %5992 = vmatpush1.xpose.msra.mxu0 0.0
    %5993 = vmatprep.subr.mxu0 0.0
    %5994 = vmatpush1.xpose.msra.mxu0 0.0
    %5995 = vmatprep.subr.mxu0 0.0
    %5996 = vmatpush1.xpose.msra.mxu0 0.0
    %5997 = vmatprep.subr.mxu0 0.0
    %5998 = vmatpush1.xpose.msra.mxu0 0.0
    %5999 = vmatprep.subr.mxu0 0.0
    %6000 = vmatpush1.xpose.msra.mxu0 0.0
    %6001 = vmatprep.subr.mxu0 0.0
    %6002 = vmatpush1.xpose.msra.mxu0 0.0
    %6003 = vmatprep.subr.mxu0 0.0
    %6004 = vmatpush1.xpose.msra.mxu0 0.0
    %6005 = vmatprep.subr.mxu0 0.0
    %6006 = vmatpush1.xpose.msra.mxu0 0.0
    %6007 = vmatprep.subr.mxu0 0.0
    %6008 = vmatpush1.xpose.msra.mxu0 0.0
    %6009 = vmatprep.subr.mxu0 0.0
    %6010 = vmatpush1.xpose.msra.mxu0 0.0
    %6011 = vmatprep.subr.mxu0 0.0
    %6012 = vmatpush1.xpose.msra.mxu0 0.0
    %6013 = vmatprep.subr.mxu0 0.0
    %6014 = vmatpush1.xpose.msra.mxu0 0.0
    %6015 = vmatprep.subr.mxu0 0.0
    %6016 = vmatpush1.xpose.msra.mxu0 0.0
    %6017 = vmatprep.subr.mxu0 0.0
    %6018 = vmatpush1.xpose.msra.mxu0 0.0
    %6019 = vmatprep.subr.mxu0 0.0
    %6020 = vmatpush1.xpose.msra.mxu0 0.0
    %6021 = vmatprep.subr.mxu0 0.0
    %6022 = vmatpush1.xpose.msra.mxu0 0.0
    %6023 = vmatprep.subr.mxu0 0.0
    %6024 = vmatpush1.xpose.msra.mxu0 0.0
    %6025 = vmatprep.subr.mxu0 0.0
    %6026 = vmatpush1.xpose.msra.mxu0 0.0
    %6027 = vmatprep.subr.mxu0 0.0
    %6028 = vmatpush1.xpose.msra.mxu0 0.0
    %6029 = vmatprep.subr.mxu0 0.0
    %6030 = vmatpush1.xpose.msra.mxu0 0.0
    %6031 = vmatprep.subr.mxu0 0.0
    %6032 = vmatpush1.xpose.msra.mxu0 0.0
    %6033 = vmatprep.subr.mxu0 0.0
    %6034 = vmatpush1.xpose.msra.mxu0 0.0
    %6035 = vmatprep.subr.mxu0 0.0
    %6036 = vmatpush1.xpose.msra.mxu0 0.0
    %6037 = vmatprep.subr.mxu0 0.0
    %6038 = vmatpush1.xpose.msra.mxu0 0.0
    %6039 = vmatprep.subr.mxu0 0.0
    %6040 = vmatpush1.xpose.msra.mxu0 0.0
    %6041 = vmatprep.subr.mxu0 0.0
    %6042 = vmatpush1.xpose.msra.mxu0 0.0
    %6043 = vmatprep.subr.mxu0 0.0
    %6044 = vmatpush1.xpose.msra.mxu0 0.0
    %6045 = vmatprep.subr.mxu0 0.0
    %6046 = vmatpush1.xpose.msra.mxu0 0.0
    %6047 = vmatprep.mubr.f32.mxu0 %v5980
    %6048 = vmatmul.mubr.f32.gmra.mrb[0].mxu0 %v5976
    %v6049 = vpop.f32.mrb[0].mxu0
    %v6050 = vadd.f32 0.0, %v6049
    %v6051 = vpop.f32.mrb[0].mxu0
    %6052 = vdwg.mxu0
    %v6053 = vadd.f32 %v5969, %v6050
    %s6054 = scalar_lea.vmem [#allocation4], 50
    %v6055 = vld [vmem:[%s6054] ss:$8 sm:$0x3]
    %v6057 = vlaneseq
    %v6058 = vshrl.u32 %v6057, 7
    %v6059 = vsub.s32 0, %v6058
    %v6060 = vrot.slane %v6055, %v6059
    %v6061 = vlaneseq
    %v6062 = vshrl.u32 %v6061, 7
    %v6063 = vsub.s32 1, %v6062
    %v6064 = vrot.slane %v6055, %v6063
    %6067 = vmatprep.subr.mxu0 %v3262
    %6068 = vmatpush1.xpose.msra.mxu0 %v3261
    %6069 = vmatprep.subr.mxu0 %v3264
    %6070 = vmatpush1.xpose.msra.mxu0 %v3263
    %6071 = vmatprep.subr.mxu0 0.0
    %6072 = vmatpush1.xpose.msra.mxu0 0.0
    %6073 = vmatprep.subr.mxu0 0.0
    %6074 = vmatpush1.xpose.msra.mxu0 0.0
    %6075 = vmatprep.subr.mxu0 0.0
    %6076 = vmatpush1.xpose.msra.mxu0 0.0
    %6077 = vmatprep.subr.mxu0 0.0
    %6078 = vmatpush1.xpose.msra.mxu0 0.0
    %6079 = vmatprep.subr.mxu0 0.0
    %6080 = vmatpush1.xpose.msra.mxu0 0.0
    %6081 = vmatprep.subr.mxu0 0.0
    %6082 = vmatpush1.xpose.msra.mxu0 0.0
    %6083 = vmatprep.subr.mxu0 0.0
    %6084 = vmatpush1.xpose.msra.mxu0 0.0
    %6085 = vmatprep.subr.mxu0 0.0
    %6086 = vmatpush1.xpose.msra.mxu0 0.0
    %6087 = vmatprep.subr.mxu0 0.0
    %6088 = vmatpush1.xpose.msra.mxu0 0.0
    %6089 = vmatprep.subr.mxu0 0.0
    %6090 = vmatpush1.xpose.msra.mxu0 0.0
    %6091 = vmatprep.subr.mxu0 0.0
    %6092 = vmatpush1.xpose.msra.mxu0 0.0
    %6093 = vmatprep.subr.mxu0 0.0
    %6094 = vmatpush1.xpose.msra.mxu0 0.0
    %6095 = vmatprep.subr.mxu0 0.0
    %6096 = vmatpush1.xpose.msra.mxu0 0.0
    %6097 = vmatprep.subr.mxu0 0.0
    %6098 = vmatpush1.xpose.msra.mxu0 0.0
    %6099 = vmatprep.subr.mxu0 0.0
    %6100 = vmatpush1.xpose.msra.mxu0 0.0
    %6101 = vmatprep.subr.mxu0 0.0
    %6102 = vmatpush1.xpose.msra.mxu0 0.0
    %6103 = vmatprep.subr.mxu0 0.0
    %6104 = vmatpush1.xpose.msra.mxu0 0.0
    %6105 = vmatprep.subr.mxu0 0.0
    %6106 = vmatpush1.xpose.msra.mxu0 0.0
    %6107 = vmatprep.subr.mxu0 0.0
    %6108 = vmatpush1.xpose.msra.mxu0 0.0
    %6109 = vmatprep.subr.mxu0 0.0
    %6110 = vmatpush1.xpose.msra.mxu0 0.0
    %6111 = vmatprep.subr.mxu0 0.0
    %6112 = vmatpush1.xpose.msra.mxu0 0.0
    %6113 = vmatprep.subr.mxu0 0.0
    %6114 = vmatpush1.xpose.msra.mxu0 0.0
    %6115 = vmatprep.subr.mxu0 0.0
    %6116 = vmatpush1.xpose.msra.mxu0 0.0
    %6117 = vmatprep.subr.mxu0 0.0
    %6118 = vmatpush1.xpose.msra.mxu0 0.0
    %6119 = vmatprep.subr.mxu0 0.0
    %6120 = vmatpush1.xpose.msra.mxu0 0.0
    %6121 = vmatprep.subr.mxu0 0.0
    %6122 = vmatpush1.xpose.msra.mxu0 0.0
    %6123 = vmatprep.subr.mxu0 0.0
    %6124 = vmatpush1.xpose.msra.mxu0 0.0
    %6125 = vmatprep.subr.mxu0 0.0
    %6126 = vmatpush1.xpose.msra.mxu0 0.0
    %6127 = vmatprep.subr.mxu0 0.0
    %6128 = vmatpush1.xpose.msra.mxu0 0.0
    %6129 = vmatprep.subr.mxu0 0.0
    %6130 = vmatpush1.xpose.msra.mxu0 0.0
    %6131 = vmatprep.mubr.f32.mxu0 %v6064
    %6132 = vmatmul.mubr.f32.gmra.mrb[0].mxu0 %v6060
    %v6133 = vpop.f32.mrb[0].mxu0
    %v6134 = vadd.f32 0.0, %v6133
    %v6135 = vpop.f32.mrb[0].mxu0
    %6136 = vdwg.mxu0
    %v6137 = vadd.f32 %v6053, %v6134
    %s6138 = scalar_lea.vmem [#allocation4], 51
    %v6139 = vld [vmem:[%s6138] ss:$8 sm:$0x3]
    %v6141 = vlaneseq
    %v6142 = vshrl.u32 %v6141, 7
    %v6143 = vsub.s32 0, %v6142
    %v6144 = vrot.slane %v6139, %v6143
    %v6145 = vlaneseq
    %v6146 = vshrl.u32 %v6145, 7
    %v6147 = vsub.s32 1, %v6146
    %v6148 = vrot.slane %v6139, %v6147
    %6151 = vmatprep.subr.mxu0 %v3351
    %6152 = vmatpush1.xpose.msra.mxu0 %v3350
    %6153 = vmatprep.subr.mxu0 %v3353
    %6154 = vmatpush1.xpose.msra.mxu0 %v3352
    %6155 = vmatprep.subr.mxu0 0.0
    %6156 = vmatpush1.xpose.msra.mxu0 0.0
    %6157 = vmatprep.subr.mxu0 0.0
    %6158 = vmatpush1.xpose.msra.mxu0 0.0
    %6159 = vmatprep.subr.mxu0 0.0
    %6160 = vmatpush1.xpose.msra.mxu0 0.0
    %6161 = vmatprep.subr.mxu0 0.0
    %6162 = vmatpush1.xpose.msra.mxu0 0.0
    %6163 = vmatprep.subr.mxu0 0.0
    %6164 = vmatpush1.xpose.msra.mxu0 0.0
    %6165 = vmatprep.subr.mxu0 0.0
    %6166 = vmatpush1.xpose.msra.mxu0 0.0
    %6167 = vmatprep.subr.mxu0 0.0
    %6168 = vmatpush1.xpose.msra.mxu0 0.0
    %6169 = vmatprep.subr.mxu0 0.0
    %6170 = vmatpush1.xpose.msra.mxu0 0.0
    %6171 = vmatprep.subr.mxu0 0.0
    %6172 = vmatpush1.xpose.msra.mxu0 0.0
    %6173 = vmatprep.subr.mxu0 0.0
    %6174 = vmatpush1.xpose.msra.mxu0 0.0
    %6175 = vmatprep.subr.mxu0 0.0
    %6176 = vmatpush1.xpose.msra.mxu0 0.0
    %6177 = vmatprep.subr.mxu0 0.0
    %6178 = vmatpush1.xpose.msra.mxu0 0.0
    %6179 = vmatprep.subr.mxu0 0.0
    %6180 = vmatpush1.xpose.msra.mxu0 0.0
    %6181 = vmatprep.subr.mxu0 0.0
    %6182 = vmatpush1.xpose.msra.mxu0 0.0
    %6183 = vmatprep.subr.mxu0 0.0
    %6184 = vmatpush1.xpose.msra.mxu0 0.0
    %6185 = vmatprep.subr.mxu0 0.0
    %6186 = vmatpush1.xpose.msra.mxu0 0.0
    %6187 = vmatprep.subr.mxu0 0.0
    %6188 = vmatpush1.xpose.msra.mxu0 0.0
    %6189 = vmatprep.subr.mxu0 0.0
    %6190 = vmatpush1.xpose.msra.mxu0 0.0
    %6191 = vmatprep.subr.mxu0 0.0
    %6192 = vmatpush1.xpose.msra.mxu0 0.0
    %6193 = vmatprep.subr.mxu0 0.0
    %6194 = vmatpush1.xpose.msra.mxu0 0.0
    %6195 = vmatprep.subr.mxu0 0.0
    %6196 = vmatpush1.xpose.msra.mxu0 0.0
    %6197 = vmatprep.subr.mxu0 0.0
    %6198 = vmatpush1.xpose.msra.mxu0 0.0
    %6199 = vmatprep.subr.mxu0 0.0
    %6200 = vmatpush1.xpose.msra.mxu0 0.0
    %6201 = vmatprep.subr.mxu0 0.0
    %6202 = vmatpush1.xpose.msra.mxu0 0.0
    %6203 = vmatprep.subr.mxu0 0.0
    %6204 = vmatpush1.xpose.msra.mxu0 0.0
    %6205 = vmatprep.subr.mxu0 0.0
    %6206 = vmatpush1.xpose.msra.mxu0 0.0
    %6207 = vmatprep.subr.mxu0 0.0
    %6208 = vmatpush1.xpose.msra.mxu0 0.0
    %6209 = vmatprep.subr.mxu0 0.0
    %6210 = vmatpush1.xpose.msra.mxu0 0.0
    %6211 = vmatprep.subr.mxu0 0.0
    %6212 = vmatpush1.xpose.msra.mxu0 0.0
    %6213 = vmatprep.subr.mxu0 0.0
    %6214 = vmatpush1.xpose.msra.mxu0 0.0
    %6215 = vmatprep.mubr.f32.mxu0 %v6148
    %6216 = vmatmul.mubr.f32.gmra.mrb[0].mxu0 %v6144
    %v6217 = vpop.f32.mrb[0].mxu0
    %v6218 = vadd.f32 0.0, %v6217
    %v6219 = vpop.f32.mrb[0].mxu0
    %6220 = vdwg.mxu0
    %v6221 = vadd.f32 %v6137, %v6218
    %s6222 = scalar_lea.vmem [#allocation4], 52
    %v6223 = vld [vmem:[%s6222] ss:$8 sm:$0x3]
    %v6225 = vlaneseq
    %v6226 = vshrl.u32 %v6225, 7
    %v6227 = vsub.s32 0, %v6226
    %v6228 = vrot.slane %v6223, %v6227
    %v6229 = vlaneseq
    %v6230 = vshrl.u32 %v6229, 7
    %v6231 = vsub.s32 1, %v6230
    %v6232 = vrot.slane %v6223, %v6231
    %6235 = vmatprep.subr.mxu0 %v3440
    %6236 = vmatpush1.xpose.msra.mxu0 %v3439
    %6237 = vmatprep.subr.mxu0 %v3442
    %6238 = vmatpush1.xpose.msra.mxu0 %v3441
    %6239 = vmatprep.subr.mxu0 0.0
    %6240 = vmatpush1.xpose.msra.mxu0 0.0
    %6241 = vmatprep.subr.mxu0 0.0
    %6242 = vmatpush1.xpose.msra.mxu0 0.0
    %6243 = vmatprep.subr.mxu0 0.0
    %6244 = vmatpush1.xpose.msra.mxu0 0.0
    %6245 = vmatprep.subr.mxu0 0.0
    %6246 = vmatpush1.xpose.msra.mxu0 0.0
    %6247 = vmatprep.subr.mxu0 0.0
    %6248 = vmatpush1.xpose.msra.mxu0 0.0
    %6249 = vmatprep.subr.mxu0 0.0
    %6250 = vmatpush1.xpose.msra.mxu0 0.0
    %6251 = vmatprep.subr.mxu0 0.0
    %6252 = vmatpush1.xpose.msra.mxu0 0.0
    %6253 = vmatprep.subr.mxu0 0.0
    %6254 = vmatpush1.xpose.msra.mxu0 0.0
    %6255 = vmatprep.subr.mxu0 0.0
    %6256 = vmatpush1.xpose.msra.mxu0 0.0
    %6257 = vmatprep.subr.mxu0 0.0
    %6258 = vmatpush1.xpose.msra.mxu0 0.0
    %6259 = vmatprep.subr.mxu0 0.0
    %6260 = vmatpush1.xpose.msra.mxu0 0.0
    %6261 = vmatprep.subr.mxu0 0.0
    %6262 = vmatpush1.xpose.msra.mxu0 0.0
    %6263 = vmatprep.subr.mxu0 0.0
    %6264 = vmatpush1.xpose.msra.mxu0 0.0
    %6265 = vmatprep.subr.mxu0 0.0
    %6266 = vmatpush1.xpose.msra.mxu0 0.0
    %6267 = vmatprep.subr.mxu0 0.0
    %6268 = vmatpush1.xpose.msra.mxu0 0.0
    %6269 = vmatprep.subr.mxu0 0.0
    %6270 = vmatpush1.xpose.msra.mxu0 0.0
    %6271 = vmatprep.subr.mxu0 0.0
    %6272 = vmatpush1.xpose.msra.mxu0 0.0
    %6273 = vmatprep.subr.mxu0 0.0
    %6274 = vmatpush1.xpose.msra.mxu0 0.0
    %6275 = vmatprep.subr.mxu0 0.0
    %6276 = vmatpush1.xpose.msra.mxu0 0.0
    %6277 = vmatprep.subr.mxu0 0.0
    %6278 = vmatpush1.xpose.msra.mxu0 0.0
    %6279 = vmatprep.subr.mxu0 0.0
    %6280 = vmatpush1.xpose.msra.mxu0 0.0
    %6281 = vmatprep.subr.mxu0 0.0
    %6282 = vmatpush1.xpose.msra.mxu0 0.0
    %6283 = vmatprep.subr.mxu0 0.0
    %6284 = vmatpush1.xpose.msra.mxu0 0.0
    %6285 = vmatprep.subr.mxu0 0.0
    %6286 = vmatpush1.xpose.msra.mxu0 0.0
    %6287 = vmatprep.subr.mxu0 0.0
    %6288 = vmatpush1.xpose.msra.mxu0 0.0
    %6289 = vmatprep.subr.mxu0 0.0
    %6290 = vmatpush1.xpose.msra.mxu0 0.0
    %6291 = vmatprep.subr.mxu0 0.0
    %6292 = vmatpush1.xpose.msra.mxu0 0.0
    %6293 = vmatprep.subr.mxu0 0.0
    %6294 = vmatpush1.xpose.msra.mxu0 0.0
    %6295 = vmatprep.subr.mxu0 0.0
    %6296 = vmatpush1.xpose.msra.mxu0 0.0
    %6297 = vmatprep.subr.mxu0 0.0
    %6298 = vmatpush1.xpose.msra.mxu0 0.0
    %6299 = vmatprep.mubr.f32.mxu0 %v6232
    %6300 = vmatmul.mubr.f32.gmra.mrb[0].mxu0 %v6228
    %v6301 = vpop.f32.mrb[0].mxu0
    %v6302 = vadd.f32 0.0, %v6301
    %v6303 = vpop.f32.mrb[0].mxu0
    %6304 = vdwg.mxu0
    %v6305 = vadd.f32 %v6221, %v6302
    %s6306 = scalar_lea.vmem [#allocation4], 53
    %v6307 = vld [vmem:[%s6306] ss:$8 sm:$0x3]
    %v6309 = vlaneseq
    %v6310 = vshrl.u32 %v6309, 7
    %v6311 = vsub.s32 0, %v6310
    %v6312 = vrot.slane %v6307, %v6311
    %v6313 = vlaneseq
    %v6314 = vshrl.u32 %v6313, 7
    %v6315 = vsub.s32 1, %v6314
    %v6316 = vrot.slane %v6307, %v6315
    %6319 = vmatprep.subr.mxu0 %v3529
    %6320 = vmatpush1.xpose.msra.mxu0 %v3528
    %6321 = vmatprep.subr.mxu0 %v3531
    %6322 = vmatpush1.xpose.msra.mxu0 %v3530
    %6323 = vmatprep.subr.mxu0 0.0
    %6324 = vmatpush1.xpose.msra.mxu0 0.0
    %6325 = vmatprep.subr.mxu0 0.0
    %6326 = vmatpush1.xpose.msra.mxu0 0.0
    %6327 = vmatprep.subr.mxu0 0.0
    %6328 = vmatpush1.xpose.msra.mxu0 0.0
    %6329 = vmatprep.subr.mxu0 0.0
    %6330 = vmatpush1.xpose.msra.mxu0 0.0
    %6331 = vmatprep.subr.mxu0 0.0
    %6332 = vmatpush1.xpose.msra.mxu0 0.0
    %6333 = vmatprep.subr.mxu0 0.0
    %6334 = vmatpush1.xpose.msra.mxu0 0.0
    %6335 = vmatprep.subr.mxu0 0.0
    %6336 = vmatpush1.xpose.msra.mxu0 0.0
    %6337 = vmatprep.subr.mxu0 0.0
    %6338 = vmatpush1.xpose.msra.mxu0 0.0
    %6339 = vmatprep.subr.mxu0 0.0
    %6340 = vmatpush1.xpose.msra.mxu0 0.0
    %6341 = vmatprep.subr.mxu0 0.0
    %6342 = vmatpush1.xpose.msra.mxu0 0.0
    %6343 = vmatprep.subr.mxu0 0.0
    %6344 = vmatpush1.xpose.msra.mxu0 0.0
    %6345 = vmatprep.subr.mxu0 0.0
    %6346 = vmatpush1.xpose.msra.mxu0 0.0
    %6347 = vmatprep.subr.mxu0 0.0
    %6348 = vmatpush1.xpose.msra.mxu0 0.0
    %6349 = vmatprep.subr.mxu0 0.0
    %6350 = vmatpush1.xpose.msra.mxu0 0.0
    %6351 = vmatprep.subr.mxu0 0.0
    %6352 = vmatpush1.xpose.msra.mxu0 0.0
    %6353 = vmatprep.subr.mxu0 0.0
    %6354 = vmatpush1.xpose.msra.mxu0 0.0
    %6355 = vmatprep.subr.mxu0 0.0
    %6356 = vmatpush1.xpose.msra.mxu0 0.0
    %6357 = vmatprep.subr.mxu0 0.0
    %6358 = vmatpush1.xpose.msra.mxu0 0.0
    %6359 = vmatprep.subr.mxu0 0.0
    %6360 = vmatpush1.xpose.msra.mxu0 0.0
    %6361 = vmatprep.subr.mxu0 0.0
    %6362 = vmatpush1.xpose.msra.mxu0 0.0
    %6363 = vmatprep.subr.mxu0 0.0
    %6364 = vmatpush1.xpose.msra.mxu0 0.0
    %6365 = vmatprep.subr.mxu0 0.0
    %6366 = vmatpush1.xpose.msra.mxu0 0.0
    %6367 = vmatprep.subr.mxu0 0.0
    %6368 = vmatpush1.xpose.msra.mxu0 0.0
    %6369 = vmatprep.subr.mxu0 0.0
    %6370 = vmatpush1.xpose.msra.mxu0 0.0
    %6371 = vmatprep.subr.mxu0 0.0
    %6372 = vmatpush1.xpose.msra.mxu0 0.0
    %6373 = vmatprep.subr.mxu0 0.0
    %6374 = vmatpush1.xpose.msra.mxu0 0.0
    %6375 = vmatprep.subr.mxu0 0.0
    %6376 = vmatpush1.xpose.msra.mxu0 0.0
    %6377 = vmatprep.subr.mxu0 0.0
    %6378 = vmatpush1.xpose.msra.mxu0 0.0
    %6379 = vmatprep.subr.mxu0 0.0
    %6380 = vmatpush1.xpose.msra.mxu0 0.0
    %6381 = vmatprep.subr.mxu0 0.0
    %6382 = vmatpush1.xpose.msra.mxu0 0.0
    %6383 = vmatprep.mubr.f32.mxu0 %v6316
    %6384 = vmatmul.mubr.f32.gmra.mrb[0].mxu0 %v6312
    %v6385 = vpop.f32.mrb[0].mxu0
    %v6386 = vadd.f32 0.0, %v6385
    %v6387 = vpop.f32.mrb[0].mxu0
    %6388 = vdwg.mxu0
    %v6389 = vadd.f32 %v6305, %v6386
    %s6390 = scalar_lea.vmem [#allocation4], 54
    %v6391 = vld [vmem:[%s6390] ss:$8 sm:$0x3]
    %v6393 = vlaneseq
    %v6394 = vshrl.u32 %v6393, 7
    %v6395 = vsub.s32 0, %v6394
    %v6396 = vrot.slane %v6391, %v6395
    %v6397 = vlaneseq
    %v6398 = vshrl.u32 %v6397, 7
    %v6399 = vsub.s32 1, %v6398
    %v6400 = vrot.slane %v6391, %v6399
    %6403 = vmatprep.subr.mxu0 %v3618
    %6404 = vmatpush1.xpose.msra.mxu0 %v3617
    %6405 = vmatprep.subr.mxu0 %v3620
    %6406 = vmatpush1.xpose.msra.mxu0 %v3619
    %6407 = vmatprep.subr.mxu0 0.0
    %6408 = vmatpush1.xpose.msra.mxu0 0.0
    %6409 = vmatprep.subr.mxu0 0.0
    %6410 = vmatpush1.xpose.msra.mxu0 0.0
    %6411 = vmatprep.subr.mxu0 0.0
    %6412 = vmatpush1.xpose.msra.mxu0 0.0
    %6413 = vmatprep.subr.mxu0 0.0
    %6414 = vmatpush1.xpose.msra.mxu0 0.0
    %6415 = vmatprep.subr.mxu0 0.0
    %6416 = vmatpush1.xpose.msra.mxu0 0.0
    %6417 = vmatprep.subr.mxu0 0.0
    %6418 = vmatpush1.xpose.msra.mxu0 0.0
    %6419 = vmatprep.subr.mxu0 0.0
    %6420 = vmatpush1.xpose.msra.mxu0 0.0
    %6421 = vmatprep.subr.mxu0 0.0
    %6422 = vmatpush1.xpose.msra.mxu0 0.0
    %6423 = vmatprep.subr.mxu0 0.0
    %6424 = vmatpush1.xpose.msra.mxu0 0.0
    %6425 = vmatprep.subr.mxu0 0.0
    %6426 = vmatpush1.xpose.msra.mxu0 0.0
    %6427 = vmatprep.subr.mxu0 0.0
    %6428 = vmatpush1.xpose.msra.mxu0 0.0
    %6429 = vmatprep.subr.mxu0 0.0
    %6430 = vmatpush1.xpose.msra.mxu0 0.0
    %6431 = vmatprep.subr.mxu0 0.0
    %6432 = vmatpush1.xpose.msra.mxu0 0.0
    %6433 = vmatprep.subr.mxu0 0.0
    %6434 = vmatpush1.xpose.msra.mxu0 0.0
    %6435 = vmatprep.subr.mxu0 0.0
    %6436 = vmatpush1.xpose.msra.mxu0 0.0
    %6437 = vmatprep.subr.mxu0 0.0
    %6438 = vmatpush1.xpose.msra.mxu0 0.0
    %6439 = vmatprep.subr.mxu0 0.0
    %6440 = vmatpush1.xpose.msra.mxu0 0.0
    %6441 = vmatprep.subr.mxu0 0.0
    %6442 = vmatpush1.xpose.msra.mxu0 0.0
    %6443 = vmatprep.subr.mxu0 0.0
    %6444 = vmatpush1.xpose.msra.mxu0 0.0
    %6445 = vmatprep.subr.mxu0 0.0
    %6446 = vmatpush1.xpose.msra.mxu0 0.0
    %6447 = vmatprep.subr.mxu0 0.0
    %6448 = vmatpush1.xpose.msra.mxu0 0.0
    %6449 = vmatprep.subr.mxu0 0.0
    %6450 = vmatpush1.xpose.msra.mxu0 0.0
    %6451 = vmatprep.subr.mxu0 0.0
    %6452 = vmatpush1.xpose.msra.mxu0 0.0
    %6453 = vmatprep.subr.mxu0 0.0
    %6454 = vmatpush1.xpose.msra.mxu0 0.0
    %6455 = vmatprep.subr.mxu0 0.0
    %6456 = vmatpush1.xpose.msra.mxu0 0.0
    %6457 = vmatprep.subr.mxu0 0.0
    %6458 = vmatpush1.xpose.msra.mxu0 0.0
    %6459 = vmatprep.subr.mxu0 0.0
    %6460 = vmatpush1.xpose.msra.mxu0 0.0
    %6461 = vmatprep.subr.mxu0 0.0
    %6462 = vmatpush1.xpose.msra.mxu0 0.0
    %6463 = vmatprep.subr.mxu0 0.0
    %6464 = vmatpush1.xpose.msra.mxu0 0.0
    %6465 = vmatprep.subr.mxu0 0.0
    %6466 = vmatpush1.xpose.msra.mxu0 0.0
    %6467 = vmatprep.mubr.f32.mxu0 %v6400
    %6468 = vmatmul.mubr.f32.gmra.mrb[0].mxu0 %v6396
    %v6469 = vpop.f32.mrb[0].mxu0
    %v6470 = vadd.f32 0.0, %v6469
    %v6471 = vpop.f32.mrb[0].mxu0
    %6472 = vdwg.mxu0
    %v6473 = vadd.f32 %v6389, %v6470
    %s6474 = scalar_lea.vmem [#allocation4], 55
    %v6475 = vld [vmem:[%s6474] ss:$8 sm:$0x3]
    %v6477 = vlaneseq
    %v6478 = vshrl.u32 %v6477, 7
    %v6479 = vsub.s32 0, %v6478
    %v6480 = vrot.slane %v6475, %v6479
    %v6481 = vlaneseq
    %v6482 = vshrl.u32 %v6481, 7
    %v6483 = vsub.s32 1, %v6482
    %v6484 = vrot.slane %v6475, %v6483
    %6487 = vmatprep.subr.mxu0 %v3707
    %6488 = vmatpush1.xpose.msra.mxu0 %v3706
    %6489 = vmatprep.subr.mxu0 %v3709
    %6490 = vmatpush1.xpose.msra.mxu0 %v3708
    %6491 = vmatprep.subr.mxu0 0.0
    %6492 = vmatpush1.xpose.msra.mxu0 0.0
    %6493 = vmatprep.subr.mxu0 0.0
    %6494 = vmatpush1.xpose.msra.mxu0 0.0
    %6495 = vmatprep.subr.mxu0 0.0
    %6496 = vmatpush1.xpose.msra.mxu0 0.0
    %6497 = vmatprep.subr.mxu0 0.0
    %6498 = vmatpush1.xpose.msra.mxu0 0.0
    %6499 = vmatprep.subr.mxu0 0.0
    %6500 = vmatpush1.xpose.msra.mxu0 0.0
    %6501 = vmatprep.subr.mxu0 0.0
    %6502 = vmatpush1.xpose.msra.mxu0 0.0
    %6503 = vmatprep.subr.mxu0 0.0
    %6504 = vmatpush1.xpose.msra.mxu0 0.0
    %6505 = vmatprep.subr.mxu0 0.0
    %6506 = vmatpush1.xpose.msra.mxu0 0.0
    %6507 = vmatprep.subr.mxu0 0.0
    %6508 = vmatpush1.xpose.msra.mxu0 0.0
    %6509 = vmatprep.subr.mxu0 0.0
    %6510 = vmatpush1.xpose.msra.mxu0 0.0
    %6511 = vmatprep.subr.mxu0 0.0
    %6512 = vmatpush1.xpose.msra.mxu0 0.0
    %6513 = vmatprep.subr.mxu0 0.0
    %6514 = vmatpush1.xpose.msra.mxu0 0.0
    %6515 = vmatprep.subr.mxu0 0.0
    %6516 = vmatpush1.xpose.msra.mxu0 0.0
    %6517 = vmatprep.subr.mxu0 0.0
    %6518 = vmatpush1.xpose.msra.mxu0 0.0
    %6519 = vmatprep.subr.mxu0 0.0
    %6520 = vmatpush1.xpose.msra.mxu0 0.0
    %6521 = vmatprep.subr.mxu0 0.0
    %6522 = vmatpush1.xpose.msra.mxu0 0.0
    %6523 = vmatprep.subr.mxu0 0.0
    %6524 = vmatpush1.xpose.msra.mxu0 0.0
    %6525 = vmatprep.subr.mxu0 0.0
    %6526 = vmatpush1.xpose.msra.mxu0 0.0
    %6527 = vmatprep.subr.mxu0 0.0
    %6528 = vmatpush1.xpose.msra.mxu0 0.0
    %6529 = vmatprep.subr.mxu0 0.0
    %6530 = vmatpush1.xpose.msra.mxu0 0.0
    %6531 = vmatprep.subr.mxu0 0.0
    %6532 = vmatpush1.xpose.msra.mxu0 0.0
    %6533 = vmatprep.subr.mxu0 0.0
    %6534 = vmatpush1.xpose.msra.mxu0 0.0
    %6535 = vmatprep.subr.mxu0 0.0
    %6536 = vmatpush1.xpose.msra.mxu0 0.0
    %6537 = vmatprep.subr.mxu0 0.0
    %6538 = vmatpush1.xpose.msra.mxu0 0.0
    %6539 = vmatprep.subr.mxu0 0.0
    %6540 = vmatpush1.xpose.msra.mxu0 0.0
    %6541 = vmatprep.subr.mxu0 0.0
    %6542 = vmatpush1.xpose.msra.mxu0 0.0
    %6543 = vmatprep.subr.mxu0 0.0
    %6544 = vmatpush1.xpose.msra.mxu0 0.0
    %6545 = vmatprep.subr.mxu0 0.0
    %6546 = vmatpush1.xpose.msra.mxu0 0.0
    %6547 = vmatprep.subr.mxu0 0.0
    %6548 = vmatpush1.xpose.msra.mxu0 0.0
    %6549 = vmatprep.subr.mxu0 0.0
    %6550 = vmatpush1.xpose.msra.mxu0 0.0
    %6551 = vmatprep.mubr.f32.mxu0 %v6484
    %6552 = vmatmul.mubr.f32.gmra.mrb[0].mxu0 %v6480
    %v6553 = vpop.f32.mrb[0].mxu0
    %v6554 = vadd.f32 0.0, %v6553
    %v6555 = vpop.f32.mrb[0].mxu0
    %6556 = vdwg.mxu0
    %v6557 = vadd.f32 %v6473, %v6554
    %s6558 = scalar_lea.vmem [#allocation4], 80
    %v6559 = vld [vmem:[%s6558] ss:$8 sm:$0x3]
    %v6561 = vlaneseq
    %v6562 = vshrl.u32 %v6561, 7
    %v6563 = vsub.s32 0, %v6562
    %v6564 = vrot.slane %v6559, %v6563
    %v6565 = vlaneseq
    %v6566 = vshrl.u32 %v6565, 7
    %v6567 = vsub.s32 1, %v6566
    %v6568 = vrot.slane %v6559, %v6567
    %6571 = vmatprep.subr.mxu0 %v3796
    %6572 = vmatpush1.xpose.msra.mxu0 %v3795
    %6573 = vmatprep.subr.mxu0 %v3798
    %6574 = vmatpush1.xpose.msra.mxu0 %v3797
    %6575 = vmatprep.subr.mxu0 0.0
    %6576 = vmatpush1.xpose.msra.mxu0 0.0
    %6577 = vmatprep.subr.mxu0 0.0
    %6578 = vmatpush1.xpose.msra.mxu0 0.0
    %6579 = vmatprep.subr.mxu0 0.0
    %6580 = vmatpush1.xpose.msra.mxu0 0.0
    %6581 = vmatprep.subr.mxu0 0.0
    %6582 = vmatpush1.xpose.msra.mxu0 0.0
    %6583 = vmatprep.subr.mxu0 0.0
    %6584 = vmatpush1.xpose.msra.mxu0 0.0
    %6585 = vmatprep.subr.mxu0 0.0
    %6586 = vmatpush1.xpose.msra.mxu0 0.0
    %6587 = vmatprep.subr.mxu0 0.0
    %6588 = vmatpush1.xpose.msra.mxu0 0.0
    %6589 = vmatprep.subr.mxu0 0.0
    %6590 = vmatpush1.xpose.msra.mxu0 0.0
    %6591 = vmatprep.subr.mxu0 0.0
    %6592 = vmatpush1.xpose.msra.mxu0 0.0
    %6593 = vmatprep.subr.mxu0 0.0
    %6594 = vmatpush1.xpose.msra.mxu0 0.0
    %6595 = vmatprep.subr.mxu0 0.0
    %6596 = vmatpush1.xpose.msra.mxu0 0.0
    %6597 = vmatprep.subr.mxu0 0.0
    %6598 = vmatpush1.xpose.msra.mxu0 0.0
    %6599 = vmatprep.subr.mxu0 0.0
    %6600 = vmatpush1.xpose.msra.mxu0 0.0
    %6601 = vmatprep.subr.mxu0 0.0
    %6602 = vmatpush1.xpose.msra.mxu0 0.0
    %6603 = vmatprep.subr.mxu0 0.0
    %6604 = vmatpush1.xpose.msra.mxu0 0.0
    %6605 = vmatprep.subr.mxu0 0.0
    %6606 = vmatpush1.xpose.msra.mxu0 0.0
    %6607 = vmatprep.subr.mxu0 0.0
    %6608 = vmatpush1.xpose.msra.mxu0 0.0
    %6609 = vmatprep.subr.mxu0 0.0
    %6610 = vmatpush1.xpose.msra.mxu0 0.0
    %6611 = vmatprep.subr.mxu0 0.0
    %6612 = vmatpush1.xpose.msra.mxu0 0.0
    %6613 = vmatprep.subr.mxu0 0.0
    %6614 = vmatpush1.xpose.msra.mxu0 0.0
    %6615 = vmatprep.subr.mxu0 0.0
    %6616 = vmatpush1.xpose.msra.mxu0 0.0
    %6617 = vmatprep.subr.mxu0 0.0
    %6618 = vmatpush1.xpose.msra.mxu0 0.0
    %6619 = vmatprep.subr.mxu0 0.0
    %6620 = vmatpush1.xpose.msra.mxu0 0.0
    %6621 = vmatprep.subr.mxu0 0.0
    %6622 = vmatpush1.xpose.msra.mxu0 0.0
    %6623 = vmatprep.subr.mxu0 0.0
    %6624 = vmatpush1.xpose.msra.mxu0 0.0
    %6625 = vmatprep.subr.mxu0 0.0
    %6626 = vmatpush1.xpose.msra.mxu0 0.0
    %6627 = vmatprep.subr.mxu0 0.0
    %6628 = vmatpush1.xpose.msra.mxu0 0.0
    %6629 = vmatprep.subr.mxu0 0.0
    %6630 = vmatpush1.xpose.msra.mxu0 0.0
    %6631 = vmatprep.subr.mxu0 0.0
    %6632 = vmatpush1.xpose.msra.mxu0 0.0
    %6633 = vmatprep.subr.mxu0 0.0
    %6634 = vmatpush1.xpose.msra.mxu0 0.0
    %6635 = vmatprep.mubr.f32.mxu0 %v6568
    %6636 = vmatmul.mubr.f32.gmra.mrb[0].mxu0 %v6564
    %v6637 = vpop.f32.mrb[0].mxu0
    %v6638 = vadd.f32 0.0, %v6637
    %v6639 = vpop.f32.mrb[0].mxu0
    %6640 = vdwg.mxu0
    %v6641 = vadd.f32 %v6557, %v6638
    %s6642 = scalar_lea.vmem [#allocation4], 81
    %v6643 = vld [vmem:[%s6642] ss:$8 sm:$0x3]
    %v6645 = vlaneseq
    %v6646 = vshrl.u32 %v6645, 7
    %v6647 = vsub.s32 0, %v6646
    %v6648 = vrot.slane %v6643, %v6647
    %v6649 = vlaneseq
    %v6650 = vshrl.u32 %v6649, 7
    %v6651 = vsub.s32 1, %v6650
    %v6652 = vrot.slane %v6643, %v6651
    %6655 = vmatprep.subr.mxu0 %v3885
    %6656 = vmatpush1.xpose.msra.mxu0 %v3884
    %6657 = vmatprep.subr.mxu0 %v3887
    %6658 = vmatpush1.xpose.msra.mxu0 %v3886
    %6659 = vmatprep.subr.mxu0 0.0
    %6660 = vmatpush1.xpose.msra.mxu0 0.0
    %6661 = vmatprep.subr.mxu0 0.0
    %6662 = vmatpush1.xpose.msra.mxu0 0.0
    %6663 = vmatprep.subr.mxu0 0.0
    %6664 = vmatpush1.xpose.msra.mxu0 0.0
    %6665 = vmatprep.subr.mxu0 0.0
    %6666 = vmatpush1.xpose.msra.mxu0 0.0
    %6667 = vmatprep.subr.mxu0 0.0
    %6668 = vmatpush1.xpose.msra.mxu0 0.0
    %6669 = vmatprep.subr.mxu0 0.0
    %6670 = vmatpush1.xpose.msra.mxu0 0.0
    %6671 = vmatprep.subr.mxu0 0.0
    %6672 = vmatpush1.xpose.msra.mxu0 0.0
    %6673 = vmatprep.subr.mxu0 0.0
    %6674 = vmatpush1.xpose.msra.mxu0 0.0
    %6675 = vmatprep.subr.mxu0 0.0
    %6676 = vmatpush1.xpose.msra.mxu0 0.0
    %6677 = vmatprep.subr.mxu0 0.0
    %6678 = vmatpush1.xpose.msra.mxu0 0.0
    %6679 = vmatprep.subr.mxu0 0.0
    %6680 = vmatpush1.xpose.msra.mxu0 0.0
    %6681 = vmatprep.subr.mxu0 0.0
    %6682 = vmatpush1.xpose.msra.mxu0 0.0
    %6683 = vmatprep.subr.mxu0 0.0
    %6684 = vmatpush1.xpose.msra.mxu0 0.0
    %6685 = vmatprep.subr.mxu0 0.0
    %6686 = vmatpush1.xpose.msra.mxu0 0.0
    %6687 = vmatprep.subr.mxu0 0.0
    %6688 = vmatpush1.xpose.msra.mxu0 0.0
    %6689 = vmatprep.subr.mxu0 0.0
    %6690 = vmatpush1.xpose.msra.mxu0 0.0
    %6691 = vmatprep.subr.mxu0 0.0
    %6692 = vmatpush1.xpose.msra.mxu0 0.0
    %6693 = vmatprep.subr.mxu0 0.0
    %6694 = vmatpush1.xpose.msra.mxu0 0.0
    %6695 = vmatprep.subr.mxu0 0.0
    %6696 = vmatpush1.xpose.msra.mxu0 0.0
    %6697 = vmatprep.subr.mxu0 0.0
    %6698 = vmatpush1.xpose.msra.mxu0 0.0
    %6699 = vmatprep.subr.mxu0 0.0
    %6700 = vmatpush1.xpose.msra.mxu0 0.0
    %6701 = vmatprep.subr.mxu0 0.0
    %6702 = vmatpush1.xpose.msra.mxu0 0.0
    %6703 = vmatprep.subr.mxu0 0.0
    %6704 = vmatpush1.xpose.msra.mxu0 0.0
    %6705 = vmatprep.subr.mxu0 0.0
    %6706 = vmatpush1.xpose.msra.mxu0 0.0
    %6707 = vmatprep.subr.mxu0 0.0
    %6708 = vmatpush1.xpose.msra.mxu0 0.0
    %6709 = vmatprep.subr.mxu0 0.0
    %6710 = vmatpush1.xpose.msra.mxu0 0.0
    %6711 = vmatprep.subr.mxu0 0.0
    %6712 = vmatpush1.xpose.msra.mxu0 0.0
    %6713 = vmatprep.subr.mxu0 0.0
    %6714 = vmatpush1.xpose.msra.mxu0 0.0
    %6715 = vmatprep.subr.mxu0 0.0
    %6716 = vmatpush1.xpose.msra.mxu0 0.0
    %6717 = vmatprep.subr.mxu0 0.0
    %6718 = vmatpush1.xpose.msra.mxu0 0.0
    %6719 = vmatprep.mubr.f32.mxu0 %v6652
    %6720 = vmatmul.mubr.f32.gmra.mrb[0].mxu0 %v6648
    %v6721 = vpop.f32.mrb[0].mxu0
    %v6722 = vadd.f32 0.0, %v6721
    %v6723 = vpop.f32.mrb[0].mxu0
    %6724 = vdwg.mxu0
    %v6725 = vadd.f32 %v6641, %v6722
    %s6726 = scalar_lea.vmem [#allocation4], 82
    %v6727 = vld [vmem:[%s6726] ss:$8 sm:$0x3]
    %v6729 = vlaneseq
    %v6730 = vshrl.u32 %v6729, 7
    %v6731 = vsub.s32 0, %v6730
    %v6732 = vrot.slane %v6727, %v6731
    %v6733 = vlaneseq
    %v6734 = vshrl.u32 %v6733, 7
    %v6735 = vsub.s32 1, %v6734
    %v6736 = vrot.slane %v6727, %v6735
    %6739 = vmatprep.subr.mxu0 %v3974
    %6740 = vmatpush1.xpose.msra.mxu0 %v3973
    %6741 = vmatprep.subr.mxu0 %v3976
    %6742 = vmatpush1.xpose.msra.mxu0 %v3975
    %6743 = vmatprep.subr.mxu0 0.0
    %6744 = vmatpush1.xpose.msra.mxu0 0.0
    %6745 = vmatprep.subr.mxu0 0.0
    %6746 = vmatpush1.xpose.msra.mxu0 0.0
    %6747 = vmatprep.subr.mxu0 0.0
    %6748 = vmatpush1.xpose.msra.mxu0 0.0
    %6749 = vmatprep.subr.mxu0 0.0
    %6750 = vmatpush1.xpose.msra.mxu0 0.0
    %6751 = vmatprep.subr.mxu0 0.0
    %6752 = vmatpush1.xpose.msra.mxu0 0.0
    %6753 = vmatprep.subr.mxu0 0.0
    %6754 = vmatpush1.xpose.msra.mxu0 0.0
    %6755 = vmatprep.subr.mxu0 0.0
    %6756 = vmatpush1.xpose.msra.mxu0 0.0
    %6757 = vmatprep.subr.mxu0 0.0
    %6758 = vmatpush1.xpose.msra.mxu0 0.0
    %6759 = vmatprep.subr.mxu0 0.0
    %6760 = vmatpush1.xpose.msra.mxu0 0.0
    %6761 = vmatprep.subr.mxu0 0.0
    %6762 = vmatpush1.xpose.msra.mxu0 0.0
    %6763 = vmatprep.subr.mxu0 0.0
    %6764 = vmatpush1.xpose.msra.mxu0 0.0
    %6765 = vmatprep.subr.mxu0 0.0
    %6766 = vmatpush1.xpose.msra.mxu0 0.0
    %6767 = vmatprep.subr.mxu0 0.0
    %6768 = vmatpush1.xpose.msra.mxu0 0.0
    %6769 = vmatprep.subr.mxu0 0.0
    %6770 = vmatpush1.xpose.msra.mxu0 0.0
    %6771 = vmatprep.subr.mxu0 0.0
    %6772 = vmatpush1.xpose.msra.mxu0 0.0
    %6773 = vmatprep.subr.mxu0 0.0
    %6774 = vmatpush1.xpose.msra.mxu0 0.0
    %6775 = vmatprep.subr.mxu0 0.0
    %6776 = vmatpush1.xpose.msra.mxu0 0.0
    %6777 = vmatprep.subr.mxu0 0.0
    %6778 = vmatpush1.xpose.msra.mxu0 0.0
    %6779 = vmatprep.subr.mxu0 0.0
    %6780 = vmatpush1.xpose.msra.mxu0 0.0
    %6781 = vmatprep.subr.mxu0 0.0
    %6782 = vmatpush1.xpose.msra.mxu0 0.0
    %6783 = vmatprep.subr.mxu0 0.0
    %6784 = vmatpush1.xpose.msra.mxu0 0.0
    %6785 = vmatprep.subr.mxu0 0.0
    %6786 = vmatpush1.xpose.msra.mxu0 0.0
    %6787 = vmatprep.subr.mxu0 0.0
    %6788 = vmatpush1.xpose.msra.mxu0 0.0
    %6789 = vmatprep.subr.mxu0 0.0
    %6790 = vmatpush1.xpose.msra.mxu0 0.0
    %6791 = vmatprep.subr.mxu0 0.0
    %6792 = vmatpush1.xpose.msra.mxu0 0.0
    %6793 = vmatprep.subr.mxu0 0.0
    %6794 = vmatpush1.xpose.msra.mxu0 0.0
    %6795 = vmatprep.subr.mxu0 0.0
    %6796 = vmatpush1.xpose.msra.mxu0 0.0
    %6797 = vmatprep.subr.mxu0 0.0
    %6798 = vmatpush1.xpose.msra.mxu0 0.0
    %6799 = vmatprep.subr.mxu0 0.0
    %6800 = vmatpush1.xpose.msra.mxu0 0.0
    %6801 = vmatprep.subr.mxu0 0.0
    %6802 = vmatpush1.xpose.msra.mxu0 0.0
    %6803 = vmatprep.mubr.f32.mxu0 %v6736
    %6804 = vmatmul.mubr.f32.gmra.mrb[0].mxu0 %v6732
    %v6805 = vpop.f32.mrb[0].mxu0
    %v6806 = vadd.f32 0.0, %v6805
    %v6807 = vpop.f32.mrb[0].mxu0
    %6808 = vdwg.mxu0
    %v6809 = vadd.f32 %v6725, %v6806
    %s6810 = scalar_lea.vmem [#allocation4], 83
    %v6811 = vld [vmem:[%s6810] ss:$8 sm:$0x3]
    %v6813 = vlaneseq
    %v6814 = vshrl.u32 %v6813, 7
    %v6815 = vsub.s32 0, %v6814
    %v6816 = vrot.slane %v6811, %v6815
    %v6817 = vlaneseq
    %v6818 = vshrl.u32 %v6817, 7
    %v6819 = vsub.s32 1, %v6818
    %v6820 = vrot.slane %v6811, %v6819
    %6823 = vmatprep.subr.mxu0 %v4063
    %6824 = vmatpush1.xpose.msra.mxu0 %v4062
    %6825 = vmatprep.subr.mxu0 %v4065
    %6826 = vmatpush1.xpose.msra.mxu0 %v4064
    %6827 = vmatprep.subr.mxu0 0.0
    %6828 = vmatpush1.xpose.msra.mxu0 0.0
    %6829 = vmatprep.subr.mxu0 0.0
    %6830 = vmatpush1.xpose.msra.mxu0 0.0
    %6831 = vmatprep.subr.mxu0 0.0
    %6832 = vmatpush1.xpose.msra.mxu0 0.0
    %6833 = vmatprep.subr.mxu0 0.0
    %6834 = vmatpush1.xpose.msra.mxu0 0.0
    %6835 = vmatprep.subr.mxu0 0.0
    %6836 = vmatpush1.xpose.msra.mxu0 0.0
    %6837 = vmatprep.subr.mxu0 0.0
    %6838 = vmatpush1.xpose.msra.mxu0 0.0
    %6839 = vmatprep.subr.mxu0 0.0
    %6840 = vmatpush1.xpose.msra.mxu0 0.0
    %6841 = vmatprep.subr.mxu0 0.0
    %6842 = vmatpush1.xpose.msra.mxu0 0.0
    %6843 = vmatprep.subr.mxu0 0.0
    %6844 = vmatpush1.xpose.msra.mxu0 0.0
    %6845 = vmatprep.subr.mxu0 0.0
    %6846 = vmatpush1.xpose.msra.mxu0 0.0
    %6847 = vmatprep.subr.mxu0 0.0
    %6848 = vmatpush1.xpose.msra.mxu0 0.0
    %6849 = vmatprep.subr.mxu0 0.0
    %6850 = vmatpush1.xpose.msra.mxu0 0.0
    %6851 = vmatprep.subr.mxu0 0.0
    %6852 = vmatpush1.xpose.msra.mxu0 0.0
    %6853 = vmatprep.subr.mxu0 0.0
    %6854 = vmatpush1.xpose.msra.mxu0 0.0
    %6855 = vmatprep.subr.mxu0 0.0
    %6856 = vmatpush1.xpose.msra.mxu0 0.0
    %6857 = vmatprep.subr.mxu0 0.0
    %6858 = vmatpush1.xpose.msra.mxu0 0.0
    %6859 = vmatprep.subr.mxu0 0.0
    %6860 = vmatpush1.xpose.msra.mxu0 0.0
    %6861 = vmatprep.subr.mxu0 0.0
    %6862 = vmatpush1.xpose.msra.mxu0 0.0
    %6863 = vmatprep.subr.mxu0 0.0
    %6864 = vmatpush1.xpose.msra.mxu0 0.0
    %6865 = vmatprep.subr.mxu0 0.0
    %6866 = vmatpush1.xpose.msra.mxu0 0.0
    %6867 = vmatprep.subr.mxu0 0.0
    %6868 = vmatpush1.xpose.msra.mxu0 0.0
    %6869 = vmatprep.subr.mxu0 0.0
    %6870 = vmatpush1.xpose.msra.mxu0 0.0
    %6871 = vmatprep.subr.mxu0 0.0
    %6872 = vmatpush1.xpose.msra.mxu0 0.0
    %6873 = vmatprep.subr.mxu0 0.0
    %6874 = vmatpush1.xpose.msra.mxu0 0.0
    %6875 = vmatprep.subr.mxu0 0.0
    %6876 = vmatpush1.xpose.msra.mxu0 0.0
    %6877 = vmatprep.subr.mxu0 0.0
    %6878 = vmatpush1.xpose.msra.mxu0 0.0
    %6879 = vmatprep.subr.mxu0 0.0
    %6880 = vmatpush1.xpose.msra.mxu0 0.0
    %6881 = vmatprep.subr.mxu0 0.0
    %6882 = vmatpush1.xpose.msra.mxu0 0.0
    %6883 = vmatprep.subr.mxu0 0.0
    %6884 = vmatpush1.xpose.msra.mxu0 0.0
    %6885 = vmatprep.subr.mxu0 0.0
    %6886 = vmatpush1.xpose.msra.mxu0 0.0
    %6887 = vmatprep.mubr.f32.mxu0 %v6820
    %6888 = vmatmul.mubr.f32.gmra.mrb[0].mxu0 %v6816
    %v6889 = vpop.f32.mrb[0].mxu0
    %v6890 = vadd.f32 0.0, %v6889
    %v6891 = vpop.f32.mrb[0].mxu0
    %6892 = vdwg.mxu0
    %v6893 = vadd.f32 %v6809, %v6890
    %s6894 = scalar_lea.vmem [#allocation4], 84
    %v6895 = vld [vmem:[%s6894] ss:$8 sm:$0x3]
    %v6897 = vlaneseq
    %v6898 = vshrl.u32 %v6897, 7
    %v6899 = vsub.s32 0, %v6898
    %v6900 = vrot.slane %v6895, %v6899
    %v6901 = vlaneseq
    %v6902 = vshrl.u32 %v6901, 7
    %v6903 = vsub.s32 1, %v6902
    %v6904 = vrot.slane %v6895, %v6903
    %6907 = vmatprep.subr.mxu0 %v4152
    %6908 = vmatpush1.xpose.msra.mxu0 %v4151
    %6909 = vmatprep.subr.mxu0 %v4154
    %6910 = vmatpush1.xpose.msra.mxu0 %v4153
    %6911 = vmatprep.subr.mxu0 0.0
    %6912 = vmatpush1.xpose.msra.mxu0 0.0
    %6913 = vmatprep.subr.mxu0 0.0
    %6914 = vmatpush1.xpose.msra.mxu0 0.0
    %6915 = vmatprep.subr.mxu0 0.0
    %6916 = vmatpush1.xpose.msra.mxu0 0.0
    %6917 = vmatprep.subr.mxu0 0.0
    %6918 = vmatpush1.xpose.msra.mxu0 0.0
    %6919 = vmatprep.subr.mxu0 0.0
    %6920 = vmatpush1.xpose.msra.mxu0 0.0
    %6921 = vmatprep.subr.mxu0 0.0
    %6922 = vmatpush1.xpose.msra.mxu0 0.0
    %6923 = vmatprep.subr.mxu0 0.0
    %6924 = vmatpush1.xpose.msra.mxu0 0.0
    %6925 = vmatprep.subr.mxu0 0.0
    %6926 = vmatpush1.xpose.msra.mxu0 0.0
    %6927 = vmatprep.subr.mxu0 0.0
    %6928 = vmatpush1.xpose.msra.mxu0 0.0
    %6929 = vmatprep.subr.mxu0 0.0
    %6930 = vmatpush1.xpose.msra.mxu0 0.0
    %6931 = vmatprep.subr.mxu0 0.0
    %6932 = vmatpush1.xpose.msra.mxu0 0.0
    %6933 = vmatprep.subr.mxu0 0.0
    %6934 = vmatpush1.xpose.msra.mxu0 0.0
    %6935 = vmatprep.subr.mxu0 0.0
    %6936 = vmatpush1.xpose.msra.mxu0 0.0
    %6937 = vmatprep.subr.mxu0 0.0
    %6938 = vmatpush1.xpose.msra.mxu0 0.0
    %6939 = vmatprep.subr.mxu0 0.0
    %6940 = vmatpush1.xpose.msra.mxu0 0.0
    %6941 = vmatprep.subr.mxu0 0.0
    %6942 = vmatpush1.xpose.msra.mxu0 0.0
    %6943 = vmatprep.subr.mxu0 0.0
    %6944 = vmatpush1.xpose.msra.mxu0 0.0
    %6945 = vmatprep.subr.mxu0 0.0
    %6946 = vmatpush1.xpose.msra.mxu0 0.0
    %6947 = vmatprep.subr.mxu0 0.0
    %6948 = vmatpush1.xpose.msra.mxu0 0.0
    %6949 = vmatprep.subr.mxu0 0.0
    %6950 = vmatpush1.xpose.msra.mxu0 0.0
    %6951 = vmatprep.subr.mxu0 0.0
    %6952 = vmatpush1.xpose.msra.mxu0 0.0
    %6953 = vmatprep.subr.mxu0 0.0
    %6954 = vmatpush1.xpose.msra.mxu0 0.0
    %6955 = vmatprep.subr.mxu0 0.0
    %6956 = vmatpush1.xpose.msra.mxu0 0.0
    %6957 = vmatprep.subr.mxu0 0.0
    %6958 = vmatpush1.xpose.msra.mxu0 0.0
    %6959 = vmatprep.subr.mxu0 0.0
    %6960 = vmatpush1.xpose.msra.mxu0 0.0
    %6961 = vmatprep.subr.mxu0 0.0
    %6962 = vmatpush1.xpose.msra.mxu0 0.0
    %6963 = vmatprep.subr.mxu0 0.0
    %6964 = vmatpush1.xpose.msra.mxu0 0.0
    %6965 = vmatprep.subr.mxu0 0.0
    %6966 = vmatpush1.xpose.msra.mxu0 0.0
    %6967 = vmatprep.subr.mxu0 0.0
    %6968 = vmatpush1.xpose.msra.mxu0 0.0
    %6969 = vmatprep.subr.mxu0 0.0
    %6970 = vmatpush1.xpose.msra.mxu0 0.0
    %6971 = vmatprep.mubr.f32.mxu0 %v6904
    %6972 = vmatmul.mubr.f32.gmra.mrb[0].mxu0 %v6900
    %v6973 = vpop.f32.mrb[0].mxu0
    %v6974 = vadd.f32 0.0, %v6973
    %v6975 = vpop.f32.mrb[0].mxu0
    %6976 = vdwg.mxu0
    %v6977 = vadd.f32 %v6893, %v6974
    %s6978 = scalar_lea.vmem [#allocation4], 85
    %v6979 = vld [vmem:[%s6978] ss:$8 sm:$0x3]
    %v6981 = vlaneseq
    %v6982 = vshrl.u32 %v6981, 7
    %v6983 = vsub.s32 0, %v6982
    %v6984 = vrot.slane %v6979, %v6983
    %v6985 = vlaneseq
    %v6986 = vshrl.u32 %v6985, 7
    %v6987 = vsub.s32 1, %v6986
    %v6988 = vrot.slane %v6979, %v6987
    %6991 = vmatprep.subr.mxu0 %v4241
    %6992 = vmatpush1.xpose.msra.mxu0 %v4240
    %6993 = vmatprep.subr.mxu0 %v4243
    %6994 = vmatpush1.xpose.msra.mxu0 %v4242
    %6995 = vmatprep.subr.mxu0 0.0
    %6996 = vmatpush1.xpose.msra.mxu0 0.0
    %6997 = vmatprep.subr.mxu0 0.0
    %6998 = vmatpush1.xpose.msra.mxu0 0.0
    %6999 = vmatprep.subr.mxu0 0.0
    %7000 = vmatpush1.xpose.msra.mxu0 0.0
    %7001 = vmatprep.subr.mxu0 0.0
    %7002 = vmatpush1.xpose.msra.mxu0 0.0
    %7003 = vmatprep.subr.mxu0 0.0
    %7004 = vmatpush1.xpose.msra.mxu0 0.0
    %7005 = vmatprep.subr.mxu0 0.0
    %7006 = vmatpush1.xpose.msra.mxu0 0.0
    %7007 = vmatprep.subr.mxu0 0.0
    %7008 = vmatpush1.xpose.msra.mxu0 0.0
    %7009 = vmatprep.subr.mxu0 0.0
    %7010 = vmatpush1.xpose.msra.mxu0 0.0
    %7011 = vmatprep.subr.mxu0 0.0
    %7012 = vmatpush1.xpose.msra.mxu0 0.0
    %7013 = vmatprep.subr.mxu0 0.0
    %7014 = vmatpush1.xpose.msra.mxu0 0.0
    %7015 = vmatprep.subr.mxu0 0.0
    %7016 = vmatpush1.xpose.msra.mxu0 0.0
    %7017 = vmatprep.subr.mxu0 0.0
    %7018 = vmatpush1.xpose.msra.mxu0 0.0
    %7019 = vmatprep.subr.mxu0 0.0
    %7020 = vmatpush1.xpose.msra.mxu0 0.0
    %7021 = vmatprep.subr.mxu0 0.0
    %7022 = vmatpush1.xpose.msra.mxu0 0.0
    %7023 = vmatprep.subr.mxu0 0.0
    %7024 = vmatpush1.xpose.msra.mxu0 0.0
    %7025 = vmatprep.subr.mxu0 0.0
    %7026 = vmatpush1.xpose.msra.mxu0 0.0
    %7027 = vmatprep.subr.mxu0 0.0
    %7028 = vmatpush1.xpose.msra.mxu0 0.0
    %7029 = vmatprep.subr.mxu0 0.0
    %7030 = vmatpush1.xpose.msra.mxu0 0.0
    %7031 = vmatprep.subr.mxu0 0.0
    %7032 = vmatpush1.xpose.msra.mxu0 0.0
    %7033 = vmatprep.subr.mxu0 0.0
    %7034 = vmatpush1.xpose.msra.mxu0 0.0
    %7035 = vmatprep.subr.mxu0 0.0
    %7036 = vmatpush1.xpose.msra.mxu0 0.0
    %7037 = vmatprep.subr.mxu0 0.0
    %7038 = vmatpush1.xpose.msra.mxu0 0.0
    %7039 = vmatprep.subr.mxu0 0.0
    %7040 = vmatpush1.xpose.msra.mxu0 0.0
    %7041 = vmatprep.subr.mxu0 0.0
    %7042 = vmatpush1.xpose.msra.mxu0 0.0
    %7043 = vmatprep.subr.mxu0 0.0
    %7044 = vmatpush1.xpose.msra.mxu0 0.0
    %7045 = vmatprep.subr.mxu0 0.0
    %7046 = vmatpush1.xpose.msra.mxu0 0.0
    %7047 = vmatprep.subr.mxu0 0.0
    %7048 = vmatpush1.xpose.msra.mxu0 0.0
    %7049 = vmatprep.subr.mxu0 0.0
    %7050 = vmatpush1.xpose.msra.mxu0 0.0
    %7051 = vmatprep.subr.mxu0 0.0
    %7052 = vmatpush1.xpose.msra.mxu0 0.0
    %7053 = vmatprep.subr.mxu0 0.0
    %7054 = vmatpush1.xpose.msra.mxu0 0.0
    %7055 = vmatprep.mubr.f32.mxu0 %v6988
    %7056 = vmatmul.mubr.f32.gmra.mrb[0].mxu0 %v6984
    %v7057 = vpop.f32.mrb[0].mxu0
    %v7058 = vadd.f32 0.0, %v7057
    %v7059 = vpop.f32.mrb[0].mxu0
    %7060 = vdwg.mxu0
    %v7061 = vadd.f32 %v6977, %v7058
    %s7062 = scalar_lea.vmem [#allocation4], 86
    %v7063 = vld [vmem:[%s7062] ss:$8 sm:$0x3]
    %v7065 = vlaneseq
    %v7066 = vshrl.u32 %v7065, 7
    %v7067 = vsub.s32 0, %v7066
    %v7068 = vrot.slane %v7063, %v7067
    %v7069 = vlaneseq
    %v7070 = vshrl.u32 %v7069, 7
    %v7071 = vsub.s32 1, %v7070
    %v7072 = vrot.slane %v7063, %v7071
    %7075 = vmatprep.subr.mxu0 %v4330
    %7076 = vmatpush1.xpose.msra.mxu0 %v4329
    %7077 = vmatprep.subr.mxu0 %v4332
    %7078 = vmatpush1.xpose.msra.mxu0 %v4331
    %7079 = vmatprep.subr.mxu0 0.0
    %7080 = vmatpush1.xpose.msra.mxu0 0.0
    %7081 = vmatprep.subr.mxu0 0.0
    %7082 = vmatpush1.xpose.msra.mxu0 0.0
    %7083 = vmatprep.subr.mxu0 0.0
    %7084 = vmatpush1.xpose.msra.mxu0 0.0
    %7085 = vmatprep.subr.mxu0 0.0
    %7086 = vmatpush1.xpose.msra.mxu0 0.0
    %7087 = vmatprep.subr.mxu0 0.0
    %7088 = vmatpush1.xpose.msra.mxu0 0.0
    %7089 = vmatprep.subr.mxu0 0.0
    %7090 = vmatpush1.xpose.msra.mxu0 0.0
    %7091 = vmatprep.subr.mxu0 0.0
    %7092 = vmatpush1.xpose.msra.mxu0 0.0
    %7093 = vmatprep.subr.mxu0 0.0
    %7094 = vmatpush1.xpose.msra.mxu0 0.0
    %7095 = vmatprep.subr.mxu0 0.0
    %7096 = vmatpush1.xpose.msra.mxu0 0.0
    %7097 = vmatprep.subr.mxu0 0.0
    %7098 = vmatpush1.xpose.msra.mxu0 0.0
    %7099 = vmatprep.subr.mxu0 0.0
    %7100 = vmatpush1.xpose.msra.mxu0 0.0
    %7101 = vmatprep.subr.mxu0 0.0
    %7102 = vmatpush1.xpose.msra.mxu0 0.0
    %7103 = vmatprep.subr.mxu0 0.0
    %7104 = vmatpush1.xpose.msra.mxu0 0.0
    %7105 = vmatprep.subr.mxu0 0.0
    %7106 = vmatpush1.xpose.msra.mxu0 0.0
    %7107 = vmatprep.subr.mxu0 0.0
    %7108 = vmatpush1.xpose.msra.mxu0 0.0
    %7109 = vmatprep.subr.mxu0 0.0
    %7110 = vmatpush1.xpose.msra.mxu0 0.0
    %7111 = vmatprep.subr.mxu0 0.0
    %7112 = vmatpush1.xpose.msra.mxu0 0.0
    %7113 = vmatprep.subr.mxu0 0.0
    %7114 = vmatpush1.xpose.msra.mxu0 0.0
    %7115 = vmatprep.subr.mxu0 0.0
    %7116 = vmatpush1.xpose.msra.mxu0 0.0
    %7117 = vmatprep.subr.mxu0 0.0
    %7118 = vmatpush1.xpose.msra.mxu0 0.0
    %7119 = vmatprep.subr.mxu0 0.0
    %7120 = vmatpush1.xpose.msra.mxu0 0.0
    %7121 = vmatprep.subr.mxu0 0.0
    %7122 = vmatpush1.xpose.msra.mxu0 0.0
    %7123 = vmatprep.subr.mxu0 0.0
    %7124 = vmatpush1.xpose.msra.mxu0 0.0
    %7125 = vmatprep.subr.mxu0 0.0
    %7126 = vmatpush1.xpose.msra.mxu0 0.0
    %7127 = vmatprep.subr.mxu0 0.0
    %7128 = vmatpush1.xpose.msra.mxu0 0.0
    %7129 = vmatprep.subr.mxu0 0.0
    %7130 = vmatpush1.xpose.msra.mxu0 0.0
    %7131 = vmatprep.subr.mxu0 0.0
    %7132 = vmatpush1.xpose.msra.mxu0 0.0
    %7133 = vmatprep.subr.mxu0 0.0
    %7134 = vmatpush1.xpose.msra.mxu0 0.0
    %7135 = vmatprep.subr.mxu0 0.0
    %7136 = vmatpush1.xpose.msra.mxu0 0.0
    %7137 = vmatprep.subr.mxu0 0.0
    %7138 = vmatpush1.xpose.msra.mxu0 0.0
    %7139 = vmatprep.mubr.f32.mxu0 %v7072
    %7140 = vmatmul.mubr.f32.gmra.mrb[0].mxu0 %v7068
    %v7141 = vpop.f32.mrb[0].mxu0
    %v7142 = vadd.f32 0.0, %v7141
    %v7143 = vpop.f32.mrb[0].mxu0
    %7144 = vdwg.mxu0
    %v7145 = vadd.f32 %v7061, %v7142
    %s7146 = scalar_lea.vmem [#allocation4], 87
    %v7147 = vld [vmem:[%s7146] ss:$8 sm:$0x3]
    %v7149 = vlaneseq
    %v7150 = vshrl.u32 %v7149, 7
    %v7151 = vsub.s32 0, %v7150
    %v7152 = vrot.slane %v7147, %v7151
    %v7153 = vlaneseq
    %v7154 = vshrl.u32 %v7153, 7
    %v7155 = vsub.s32 1, %v7154
    %v7156 = vrot.slane %v7147, %v7155
    %7159 = vmatprep.subr.mxu0 %v4419
    %7160 = vmatpush1.xpose.msra.mxu0 %v4418
    %7161 = vmatprep.subr.mxu0 %v4421
    %7162 = vmatpush1.xpose.msra.mxu0 %v4420
    %7163 = vmatprep.subr.mxu0 0.0
    %7164 = vmatpush1.xpose.msra.mxu0 0.0
    %7165 = vmatprep.subr.mxu0 0.0
    %7166 = vmatpush1.xpose.msra.mxu0 0.0
    %7167 = vmatprep.subr.mxu0 0.0
    %7168 = vmatpush1.xpose.msra.mxu0 0.0
    %7169 = vmatprep.subr.mxu0 0.0
    %7170 = vmatpush1.xpose.msra.mxu0 0.0
    %7171 = vmatprep.subr.mxu0 0.0
    %7172 = vmatpush1.xpose.msra.mxu0 0.0
    %7173 = vmatprep.subr.mxu0 0.0
    %7174 = vmatpush1.xpose.msra.mxu0 0.0
    %7175 = vmatprep.subr.mxu0 0.0
    %7176 = vmatpush1.xpose.msra.mxu0 0.0
    %7177 = vmatprep.subr.mxu0 0.0
    %7178 = vmatpush1.xpose.msra.mxu0 0.0
    %7179 = vmatprep.subr.mxu0 0.0
    %7180 = vmatpush1.xpose.msra.mxu0 0.0
    %7181 = vmatprep.subr.mxu0 0.0
    %7182 = vmatpush1.xpose.msra.mxu0 0.0
    %7183 = vmatprep.subr.mxu0 0.0
    %7184 = vmatpush1.xpose.msra.mxu0 0.0
    %7185 = vmatprep.subr.mxu0 0.0
    %7186 = vmatpush1.xpose.msra.mxu0 0.0
    %7187 = vmatprep.subr.mxu0 0.0
    %7188 = vmatpush1.xpose.msra.mxu0 0.0
    %7189 = vmatprep.subr.mxu0 0.0
    %7190 = vmatpush1.xpose.msra.mxu0 0.0
    %7191 = vmatprep.subr.mxu0 0.0
    %7192 = vmatpush1.xpose.msra.mxu0 0.0
    %7193 = vmatprep.subr.mxu0 0.0
    %7194 = vmatpush1.xpose.msra.mxu0 0.0
    %7195 = vmatprep.subr.mxu0 0.0
    %7196 = vmatpush1.xpose.msra.mxu0 0.0
    %7197 = vmatprep.subr.mxu0 0.0
    %7198 = vmatpush1.xpose.msra.mxu0 0.0
    %7199 = vmatprep.subr.mxu0 0.0
    %7200 = vmatpush1.xpose.msra.mxu0 0.0
    %7201 = vmatprep.subr.mxu0 0.0
    %7202 = vmatpush1.xpose.msra.mxu0 0.0
    %7203 = vmatprep.subr.mxu0 0.0
    %7204 = vmatpush1.xpose.msra.mxu0 0.0
    %7205 = vmatprep.subr.mxu0 0.0
    %7206 = vmatpush1.xpose.msra.mxu0 0.0
    %7207 = vmatprep.subr.mxu0 0.0
    %7208 = vmatpush1.xpose.msra.mxu0 0.0
    %7209 = vmatprep.subr.mxu0 0.0
    %7210 = vmatpush1.xpose.msra.mxu0 0.0
    %7211 = vmatprep.subr.mxu0 0.0
    %7212 = vmatpush1.xpose.msra.mxu0 0.0
    %7213 = vmatprep.subr.mxu0 0.0
    %7214 = vmatpush1.xpose.msra.mxu0 0.0
    %7215 = vmatprep.subr.mxu0 0.0
    %7216 = vmatpush1.xpose.msra.mxu0 0.0
    %7217 = vmatprep.subr.mxu0 0.0
    %7218 = vmatpush1.xpose.msra.mxu0 0.0
    %7219 = vmatprep.subr.mxu0 0.0
    %7220 = vmatpush1.xpose.msra.mxu0 0.0
    %7221 = vmatprep.subr.mxu0 0.0
    %7222 = vmatpush1.xpose.msra.mxu0 0.0
    %7223 = vmatprep.mubr.f32.mxu0 %v7156
    %7224 = vmatmul.mubr.f32.gmra.mrb[0].mxu0 %v7152
    %v7225 = vpop.f32.mrb[0].mxu0
    %v7226 = vadd.f32 0.0, %v7225
    %v7227 = vpop.f32.mrb[0].mxu0
    %7228 = vdwg.mxu0
    %v7229 = vadd.f32 %v7145, %v7226
    %s7230 = scalar_lea.vmem [#allocation4], 112
    %v7231 = vld [vmem:[%s7230] ss:$8 sm:$0x3]
    %v7233 = vlaneseq
    %v7234 = vshrl.u32 %v7233, 7
    %v7235 = vsub.s32 0, %v7234
    %v7236 = vrot.slane %v7231, %v7235
    %v7237 = vlaneseq
    %v7238 = vshrl.u32 %v7237, 7
    %v7239 = vsub.s32 1, %v7238
    %v7240 = vrot.slane %v7231, %v7239
    %7243 = vmatprep.subr.mxu0 %v4508
    %7244 = vmatpush1.xpose.msra.mxu0 %v4507
    %7245 = vmatprep.subr.mxu0 %v4510
    %7246 = vmatpush1.xpose.msra.mxu0 %v4509
    %7247 = vmatprep.subr.mxu0 0.0
    %7248 = vmatpush1.xpose.msra.mxu0 0.0
    %7249 = vmatprep.subr.mxu0 0.0
    %7250 = vmatpush1.xpose.msra.mxu0 0.0
    %7251 = vmatprep.subr.mxu0 0.0
    %7252 = vmatpush1.xpose.msra.mxu0 0.0
    %7253 = vmatprep.subr.mxu0 0.0
    %7254 = vmatpush1.xpose.msra.mxu0 0.0
    %7255 = vmatprep.subr.mxu0 0.0
    %7256 = vmatpush1.xpose.msra.mxu0 0.0
    %7257 = vmatprep.subr.mxu0 0.0
    %7258 = vmatpush1.xpose.msra.mxu0 0.0
    %7259 = vmatprep.subr.mxu0 0.0
    %7260 = vmatpush1.xpose.msra.mxu0 0.0
    %7261 = vmatprep.subr.mxu0 0.0
    %7262 = vmatpush1.xpose.msra.mxu0 0.0
    %7263 = vmatprep.subr.mxu0 0.0
    %7264 = vmatpush1.xpose.msra.mxu0 0.0
    %7265 = vmatprep.subr.mxu0 0.0
    %7266 = vmatpush1.xpose.msra.mxu0 0.0
    %7267 = vmatprep.subr.mxu0 0.0
    %7268 = vmatpush1.xpose.msra.mxu0 0.0
    %7269 = vmatprep.subr.mxu0 0.0
    %7270 = vmatpush1.xpose.msra.mxu0 0.0
    %7271 = vmatprep.subr.mxu0 0.0
    %7272 = vmatpush1.xpose.msra.mxu0 0.0
    %7273 = vmatprep.subr.mxu0 0.0
    %7274 = vmatpush1.xpose.msra.mxu0 0.0
    %7275 = vmatprep.subr.mxu0 0.0
    %7276 = vmatpush1.xpose.msra.mxu0 0.0
    %7277 = vmatprep.subr.mxu0 0.0
    %7278 = vmatpush1.xpose.msra.mxu0 0.0
    %7279 = vmatprep.subr.mxu0 0.0
    %7280 = vmatpush1.xpose.msra.mxu0 0.0
    %7281 = vmatprep.subr.mxu0 0.0
    %7282 = vmatpush1.xpose.msra.mxu0 0.0
    %7283 = vmatprep.subr.mxu0 0.0
    %7284 = vmatpush1.xpose.msra.mxu0 0.0
    %7285 = vmatprep.subr.mxu0 0.0
    %7286 = vmatpush1.xpose.msra.mxu0 0.0
    %7287 = vmatprep.subr.mxu0 0.0
    %7288 = vmatpush1.xpose.msra.mxu0 0.0
    %7289 = vmatprep.subr.mxu0 0.0
    %7290 = vmatpush1.xpose.msra.mxu0 0.0
    %7291 = vmatprep.subr.mxu0 0.0
    %7292 = vmatpush1.xpose.msra.mxu0 0.0
    %7293 = vmatprep.subr.mxu0 0.0
    %7294 = vmatpush1.xpose.msra.mxu0 0.0
    %7295 = vmatprep.subr.mxu0 0.0
    %7296 = vmatpush1.xpose.msra.mxu0 0.0
    %7297 = vmatprep.subr.mxu0 0.0
    %7298 = vmatpush1.xpose.msra.mxu0 0.0
    %7299 = vmatprep.subr.mxu0 0.0
    %7300 = vmatpush1.xpose.msra.mxu0 0.0
    %7301 = vmatprep.subr.mxu0 0.0
    %7302 = vmatpush1.xpose.msra.mxu0 0.0
    %7303 = vmatprep.subr.mxu0 0.0
    %7304 = vmatpush1.xpose.msra.mxu0 0.0
    %7305 = vmatprep.subr.mxu0 0.0
    %7306 = vmatpush1.xpose.msra.mxu0 0.0
    %7307 = vmatprep.mubr.f32.mxu0 %v7240
    %7308 = vmatmul.mubr.f32.gmra.mrb[0].mxu0 %v7236
    %v7309 = vpop.f32.mrb[0].mxu0
    %v7310 = vadd.f32 0.0, %v7309
    %v7311 = vpop.f32.mrb[0].mxu0
    %7312 = vdwg.mxu0
    %v7313 = vadd.f32 %v7229, %v7310
    %s7314 = scalar_lea.vmem [#allocation4], 113
    %v7315 = vld [vmem:[%s7314] ss:$8 sm:$0x3]
    %v7317 = vlaneseq
    %v7318 = vshrl.u32 %v7317, 7
    %v7319 = vsub.s32 0, %v7318
    %v7320 = vrot.slane %v7315, %v7319
    %v7321 = vlaneseq
    %v7322 = vshrl.u32 %v7321, 7
    %v7323 = vsub.s32 1, %v7322
    %v7324 = vrot.slane %v7315, %v7323
    %7327 = vmatprep.subr.mxu0 %v4597
    %7328 = vmatpush1.xpose.msra.mxu0 %v4596
    %7329 = vmatprep.subr.mxu0 %v4599
    %7330 = vmatpush1.xpose.msra.mxu0 %v4598
    %7331 = vmatprep.subr.mxu0 0.0
    %7332 = vmatpush1.xpose.msra.mxu0 0.0
    %7333 = vmatprep.subr.mxu0 0.0
    %7334 = vmatpush1.xpose.msra.mxu0 0.0
    %7335 = vmatprep.subr.mxu0 0.0
    %7336 = vmatpush1.xpose.msra.mxu0 0.0
    %7337 = vmatprep.subr.mxu0 0.0
    %7338 = vmatpush1.xpose.msra.mxu0 0.0
    %7339 = vmatprep.subr.mxu0 0.0
    %7340 = vmatpush1.xpose.msra.mxu0 0.0
    %7341 = vmatprep.subr.mxu0 0.0
    %7342 = vmatpush1.xpose.msra.mxu0 0.0
    %7343 = vmatprep.subr.mxu0 0.0
    %7344 = vmatpush1.xpose.msra.mxu0 0.0
    %7345 = vmatprep.subr.mxu0 0.0
    %7346 = vmatpush1.xpose.msra.mxu0 0.0
    %7347 = vmatprep.subr.mxu0 0.0
    %7348 = vmatpush1.xpose.msra.mxu0 0.0
    %7349 = vmatprep.subr.mxu0 0.0
    %7350 = vmatpush1.xpose.msra.mxu0 0.0
    %7351 = vmatprep.subr.mxu0 0.0
    %7352 = vmatpush1.xpose.msra.mxu0 0.0
    %7353 = vmatprep.subr.mxu0 0.0
    %7354 = vmatpush1.xpose.msra.mxu0 0.0
    %7355 = vmatprep.subr.mxu0 0.0
    %7356 = vmatpush1.xpose.msra.mxu0 0.0
    %7357 = vmatprep.subr.mxu0 0.0
    %7358 = vmatpush1.xpose.msra.mxu0 0.0
    %7359 = vmatprep.subr.mxu0 0.0
    %7360 = vmatpush1.xpose.msra.mxu0 0.0
    %7361 = vmatprep.subr.mxu0 0.0
    %7362 = vmatpush1.xpose.msra.mxu0 0.0
    %7363 = vmatprep.subr.mxu0 0.0
    %7364 = vmatpush1.xpose.msra.mxu0 0.0
    %7365 = vmatprep.subr.mxu0 0.0
    %7366 = vmatpush1.xpose.msra.mxu0 0.0
    %7367 = vmatprep.subr.mxu0 0.0
    %7368 = vmatpush1.xpose.msra.mxu0 0.0
    %7369 = vmatprep.subr.mxu0 0.0
    %7370 = vmatpush1.xpose.msra.mxu0 0.0
    %7371 = vmatprep.subr.mxu0 0.0
    %7372 = vmatpush1.xpose.msra.mxu0 0.0
    %7373 = vmatprep.subr.mxu0 0.0
    %7374 = vmatpush1.xpose.msra.mxu0 0.0
    %7375 = vmatprep.subr.mxu0 0.0
    %7376 = vmatpush1.xpose.msra.mxu0 0.0
    %7377 = vmatprep.subr.mxu0 0.0
    %7378 = vmatpush1.xpose.msra.mxu0 0.0
    %7379 = vmatprep.subr.mxu0 0.0
    %7380 = vmatpush1.xpose.msra.mxu0 0.0
    %7381 = vmatprep.subr.mxu0 0.0
    %7382 = vmatpush1.xpose.msra.mxu0 0.0
    %7383 = vmatprep.subr.mxu0 0.0
    %7384 = vmatpush1.xpose.msra.mxu0 0.0
    %7385 = vmatprep.subr.mxu0 0.0
    %7386 = vmatpush1.xpose.msra.mxu0 0.0
    %7387 = vmatprep.subr.mxu0 0.0
    %7388 = vmatpush1.xpose.msra.mxu0 0.0
    %7389 = vmatprep.subr.mxu0 0.0
    %7390 = vmatpush1.xpose.msra.mxu0 0.0
    %7391 = vmatprep.mubr.f32.mxu0 %v7324
    %7392 = vmatmul.mubr.f32.gmra.mrb[0].mxu0 %v7320
    %v7393 = vpop.f32.mrb[0].mxu0
    %v7394 = vadd.f32 0.0, %v7393
    %v7395 = vpop.f32.mrb[0].mxu0
    %7396 = vdwg.mxu0
    %v7397 = vadd.f32 %v7313, %v7394
    %s7398 = scalar_lea.vmem [#allocation4], 114
    %v7399 = vld [vmem:[%s7398] ss:$8 sm:$0x3]
    %v7401 = vlaneseq
    %v7402 = vshrl.u32 %v7401, 7
    %v7403 = vsub.s32 0, %v7402
    %v7404 = vrot.slane %v7399, %v7403
    %v7405 = vlaneseq
    %v7406 = vshrl.u32 %v7405, 7
    %v7407 = vsub.s32 1, %v7406
    %v7408 = vrot.slane %v7399, %v7407
    %7411 = vmatprep.subr.mxu0 %v4686
    %7412 = vmatpush1.xpose.msra.mxu0 %v4685
    %7413 = vmatprep.subr.mxu0 %v4688
    %7414 = vmatpush1.xpose.msra.mxu0 %v4687
    %7415 = vmatprep.subr.mxu0 0.0
    %7416 = vmatpush1.xpose.msra.mxu0 0.0
    %7417 = vmatprep.subr.mxu0 0.0
    %7418 = vmatpush1.xpose.msra.mxu0 0.0
    %7419 = vmatprep.subr.mxu0 0.0
    %7420 = vmatpush1.xpose.msra.mxu0 0.0
    %7421 = vmatprep.subr.mxu0 0.0
    %7422 = vmatpush1.xpose.msra.mxu0 0.0
    %7423 = vmatprep.subr.mxu0 0.0
    %7424 = vmatpush1.xpose.msra.mxu0 0.0
    %7425 = vmatprep.subr.mxu0 0.0
    %7426 = vmatpush1.xpose.msra.mxu0 0.0
    %7427 = vmatprep.subr.mxu0 0.0
    %7428 = vmatpush1.xpose.msra.mxu0 0.0
    %7429 = vmatprep.subr.mxu0 0.0
    %7430 = vmatpush1.xpose.msra.mxu0 0.0
    %7431 = vmatprep.subr.mxu0 0.0
    %7432 = vmatpush1.xpose.msra.mxu0 0.0
    %7433 = vmatprep.subr.mxu0 0.0
    %7434 = vmatpush1.xpose.msra.mxu0 0.0
    %7435 = vmatprep.subr.mxu0 0.0
    %7436 = vmatpush1.xpose.msra.mxu0 0.0
    %7437 = vmatprep.subr.mxu0 0.0
    %7438 = vmatpush1.xpose.msra.mxu0 0.0
    %7439 = vmatprep.subr.mxu0 0.0
    %7440 = vmatpush1.xpose.msra.mxu0 0.0
    %7441 = vmatprep.subr.mxu0 0.0
    %7442 = vmatpush1.xpose.msra.mxu0 0.0
    %7443 = vmatprep.subr.mxu0 0.0
    %7444 = vmatpush1.xpose.msra.mxu0 0.0
    %7445 = vmatprep.subr.mxu0 0.0
    %7446 = vmatpush1.xpose.msra.mxu0 0.0
    %7447 = vmatprep.subr.mxu0 0.0
    %7448 = vmatpush1.xpose.msra.mxu0 0.0
    %7449 = vmatprep.subr.mxu0 0.0
    %7450 = vmatpush1.xpose.msra.mxu0 0.0
    %7451 = vmatprep.subr.mxu0 0.0
    %7452 = vmatpush1.xpose.msra.mxu0 0.0
    %7453 = vmatprep.subr.mxu0 0.0
    %7454 = vmatpush1.xpose.msra.mxu0 0.0
    %7455 = vmatprep.subr.mxu0 0.0
    %7456 = vmatpush1.xpose.msra.mxu0 0.0
    %7457 = vmatprep.subr.mxu0 0.0
    %7458 = vmatpush1.xpose.msra.mxu0 0.0
    %7459 = vmatprep.subr.mxu0 0.0
    %7460 = vmatpush1.xpose.msra.mxu0 0.0
    %7461 = vmatprep.subr.mxu0 0.0
    %7462 = vmatpush1.xpose.msra.mxu0 0.0
    %7463 = vmatprep.subr.mxu0 0.0
    %7464 = vmatpush1.xpose.msra.mxu0 0.0
    %7465 = vmatprep.subr.mxu0 0.0
    %7466 = vmatpush1.xpose.msra.mxu0 0.0
    %7467 = vmatprep.subr.mxu0 0.0
    %7468 = vmatpush1.xpose.msra.mxu0 0.0
    %7469 = vmatprep.subr.mxu0 0.0
    %7470 = vmatpush1.xpose.msra.mxu0 0.0
    %7471 = vmatprep.subr.mxu0 0.0
    %7472 = vmatpush1.xpose.msra.mxu0 0.0
    %7473 = vmatprep.subr.mxu0 0.0
    %7474 = vmatpush1.xpose.msra.mxu0 0.0
    %7475 = vmatprep.mubr.f32.mxu0 %v7408
    %7476 = vmatmul.mubr.f32.gmra.mrb[0].mxu0 %v7404
    %v7477 = vpop.f32.mrb[0].mxu0
    %v7478 = vadd.f32 0.0, %v7477
    %v7479 = vpop.f32.mrb[0].mxu0
    %7480 = vdwg.mxu0
    %v7481 = vadd.f32 %v7397, %v7478
    %s7482 = scalar_lea.vmem [#allocation4], 115
    %v7483 = vld [vmem:[%s7482] ss:$8 sm:$0x3]
    %v7485 = vlaneseq
    %v7486 = vshrl.u32 %v7485, 7
    %v7487 = vsub.s32 0, %v7486
    %v7488 = vrot.slane %v7483, %v7487
    %v7489 = vlaneseq
    %v7490 = vshrl.u32 %v7489, 7
    %v7491 = vsub.s32 1, %v7490
    %v7492 = vrot.slane %v7483, %v7491
    %7495 = vmatprep.subr.mxu0 %v4775
    %7496 = vmatpush1.xpose.msra.mxu0 %v4774
    %7497 = vmatprep.subr.mxu0 %v4777
    %7498 = vmatpush1.xpose.msra.mxu0 %v4776
    %7499 = vmatprep.subr.mxu0 0.0
    %7500 = vmatpush1.xpose.msra.mxu0 0.0
    %7501 = vmatprep.subr.mxu0 0.0
    %7502 = vmatpush1.xpose.msra.mxu0 0.0
    %7503 = vmatprep.subr.mxu0 0.0
    %7504 = vmatpush1.xpose.msra.mxu0 0.0
    %7505 = vmatprep.subr.mxu0 0.0
    %7506 = vmatpush1.xpose.msra.mxu0 0.0
    %7507 = vmatprep.subr.mxu0 0.0
    %7508 = vmatpush1.xpose.msra.mxu0 0.0
    %7509 = vmatprep.subr.mxu0 0.0
    %7510 = vmatpush1.xpose.msra.mxu0 0.0
    %7511 = vmatprep.subr.mxu0 0.0
    %7512 = vmatpush1.xpose.msra.mxu0 0.0
    %7513 = vmatprep.subr.mxu0 0.0
    %7514 = vmatpush1.xpose.msra.mxu0 0.0
    %7515 = vmatprep.subr.mxu0 0.0
    %7516 = vmatpush1.xpose.msra.mxu0 0.0
    %7517 = vmatprep.subr.mxu0 0.0
    %7518 = vmatpush1.xpose.msra.mxu0 0.0
    %7519 = vmatprep.subr.mxu0 0.0
    %7520 = vmatpush1.xpose.msra.mxu0 0.0
    %7521 = vmatprep.subr.mxu0 0.0
    %7522 = vmatpush1.xpose.msra.mxu0 0.0
    %7523 = vmatprep.subr.mxu0 0.0
    %7524 = vmatpush1.xpose.msra.mxu0 0.0
    %7525 = vmatprep.subr.mxu0 0.0
    %7526 = vmatpush1.xpose.msra.mxu0 0.0
    %7527 = vmatprep.subr.mxu0 0.0
    %7528 = vmatpush1.xpose.msra.mxu0 0.0
    %7529 = vmatprep.subr.mxu0 0.0
    %7530 = vmatpush1.xpose.msra.mxu0 0.0
    %7531 = vmatprep.subr.mxu0 0.0
    %7532 = vmatpush1.xpose.msra.mxu0 0.0
    %7533 = vmatprep.subr.mxu0 0.0
    %7534 = vmatpush1.xpose.msra.mxu0 0.0
    %7535 = vmatprep.subr.mxu0 0.0
    %7536 = vmatpush1.xpose.msra.mxu0 0.0
    %7537 = vmatprep.subr.mxu0 0.0
    %7538 = vmatpush1.xpose.msra.mxu0 0.0
    %7539 = vmatprep.subr.mxu0 0.0
    %7540 = vmatpush1.xpose.msra.mxu0 0.0
    %7541 = vmatprep.subr.mxu0 0.0
    %7542 = vmatpush1.xpose.msra.mxu0 0.0
    %7543 = vmatprep.subr.mxu0 0.0
    %7544 = vmatpush1.xpose.msra.mxu0 0.0
    %7545 = vmatprep.subr.mxu0 0.0
    %7546 = vmatpush1.xpose.msra.mxu0 0.0
    %7547 = vmatprep.subr.mxu0 0.0
    %7548 = vmatpush1.xpose.msra.mxu0 0.0
    %7549 = vmatprep.subr.mxu0 0.0
    %7550 = vmatpush1.xpose.msra.mxu0 0.0
    %7551 = vmatprep.subr.mxu0 0.0
    %7552 = vmatpush1.xpose.msra.mxu0 0.0
    %7553 = vmatprep.subr.mxu0 0.0
    %7554 = vmatpush1.xpose.msra.mxu0 0.0
    %7555 = vmatprep.subr.mxu0 0.0
    %7556 = vmatpush1.xpose.msra.mxu0 0.0
    %7557 = vmatprep.subr.mxu0 0.0
    %7558 = vmatpush1.xpose.msra.mxu0 0.0
    %7559 = vmatprep.mubr.f32.mxu0 %v7492
    %7560 = vmatmul.mubr.f32.gmra.mrb[0].mxu0 %v7488
    %v7561 = vpop.f32.mrb[0].mxu0
    %v7562 = vadd.f32 0.0, %v7561
    %v7563 = vpop.f32.mrb[0].mxu0
    %7564 = vdwg.mxu0
    %v7565 = vadd.f32 %v7481, %v7562
    %s7566 = scalar_lea.vmem [#allocation4], 116
    %v7567 = vld [vmem:[%s7566] ss:$8 sm:$0x3]
    %v7569 = vlaneseq
    %v7570 = vshrl.u32 %v7569, 7
    %v7571 = vsub.s32 0, %v7570
    %v7572 = vrot.slane %v7567, %v7571
    %v7573 = vlaneseq
    %v7574 = vshrl.u32 %v7573, 7
    %v7575 = vsub.s32 1, %v7574
    %v7576 = vrot.slane %v7567, %v7575
    %7579 = vmatprep.subr.mxu0 %v4864
    %7580 = vmatpush1.xpose.msra.mxu0 %v4863
    %7581 = vmatprep.subr.mxu0 %v4866
    %7582 = vmatpush1.xpose.msra.mxu0 %v4865
    %7583 = vmatprep.subr.mxu0 0.0
    %7584 = vmatpush1.xpose.msra.mxu0 0.0
    %7585 = vmatprep.subr.mxu0 0.0
    %7586 = vmatpush1.xpose.msra.mxu0 0.0
    %7587 = vmatprep.subr.mxu0 0.0
    %7588 = vmatpush1.xpose.msra.mxu0 0.0
    %7589 = vmatprep.subr.mxu0 0.0
    %7590 = vmatpush1.xpose.msra.mxu0 0.0
    %7591 = vmatprep.subr.mxu0 0.0
    %7592 = vmatpush1.xpose.msra.mxu0 0.0
    %7593 = vmatprep.subr.mxu0 0.0
    %7594 = vmatpush1.xpose.msra.mxu0 0.0
    %7595 = vmatprep.subr.mxu0 0.0
    %7596 = vmatpush1.xpose.msra.mxu0 0.0
    %7597 = vmatprep.subr.mxu0 0.0
    %7598 = vmatpush1.xpose.msra.mxu0 0.0
    %7599 = vmatprep.subr.mxu0 0.0
    %7600 = vmatpush1.xpose.msra.mxu0 0.0
    %7601 = vmatprep.subr.mxu0 0.0
    %7602 = vmatpush1.xpose.msra.mxu0 0.0
    %7603 = vmatprep.subr.mxu0 0.0
    %7604 = vmatpush1.xpose.msra.mxu0 0.0
    %7605 = vmatprep.subr.mxu0 0.0
    %7606 = vmatpush1.xpose.msra.mxu0 0.0
    %7607 = vmatprep.subr.mxu0 0.0
    %7608 = vmatpush1.xpose.msra.mxu0 0.0
    %7609 = vmatprep.subr.mxu0 0.0
    %7610 = vmatpush1.xpose.msra.mxu0 0.0
    %7611 = vmatprep.subr.mxu0 0.0
    %7612 = vmatpush1.xpose.msra.mxu0 0.0
    %7613 = vmatprep.subr.mxu0 0.0
    %7614 = vmatpush1.xpose.msra.mxu0 0.0
    %7615 = vmatprep.subr.mxu0 0.0
    %7616 = vmatpush1.xpose.msra.mxu0 0.0
    %7617 = vmatprep.subr.mxu0 0.0
    %7618 = vmatpush1.xpose.msra.mxu0 0.0
    %7619 = vmatprep.subr.mxu0 0.0
    %7620 = vmatpush1.xpose.msra.mxu0 0.0
    %7621 = vmatprep.subr.mxu0 0.0
    %7622 = vmatpush1.xpose.msra.mxu0 0.0
    %7623 = vmatprep.subr.mxu0 0.0
    %7624 = vmatpush1.xpose.msra.mxu0 0.0
    %7625 = vmatprep.subr.mxu0 0.0
    %7626 = vmatpush1.xpose.msra.mxu0 0.0
    %7627 = vmatprep.subr.mxu0 0.0
    %7628 = vmatpush1.xpose.msra.mxu0 0.0
    %7629 = vmatprep.subr.mxu0 0.0
    %7630 = vmatpush1.xpose.msra.mxu0 0.0
    %7631 = vmatprep.subr.mxu0 0.0
    %7632 = vmatpush1.xpose.msra.mxu0 0.0
    %7633 = vmatprep.subr.mxu0 0.0
    %7634 = vmatpush1.xpose.msra.mxu0 0.0
    %7635 = vmatprep.subr.mxu0 0.0
    %7636 = vmatpush1.xpose.msra.mxu0 0.0
    %7637 = vmatprep.subr.mxu0 0.0
    %7638 = vmatpush1.xpose.msra.mxu0 0.0
    %7639 = vmatprep.subr.mxu0 0.0
    %7640 = vmatpush1.xpose.msra.mxu0 0.0
    %7641 = vmatprep.subr.mxu0 0.0
    %7642 = vmatpush1.xpose.msra.mxu0 0.0
    %7643 = vmatprep.mubr.f32.mxu0 %v7576
    %7644 = vmatmul.mubr.f32.gmra.mrb[0].mxu0 %v7572
    %v7645 = vpop.f32.mrb[0].mxu0
    %v7646 = vadd.f32 0.0, %v7645
    %v7647 = vpop.f32.mrb[0].mxu0
    %7648 = vdwg.mxu0
    %v7649 = vadd.f32 %v7565, %v7646
    %s7650 = scalar_lea.vmem [#allocation4], 117
    %v7651 = vld [vmem:[%s7650] ss:$8 sm:$0x3]
    %v7653 = vlaneseq
    %v7654 = vshrl.u32 %v7653, 7
    %v7655 = vsub.s32 0, %v7654
    %v7656 = vrot.slane %v7651, %v7655
    %v7657 = vlaneseq
    %v7658 = vshrl.u32 %v7657, 7
    %v7659 = vsub.s32 1, %v7658
    %v7660 = vrot.slane %v7651, %v7659
    %7663 = vmatprep.subr.mxu0 %v4953
    %7664 = vmatpush1.xpose.msra.mxu0 %v4952
    %7665 = vmatprep.subr.mxu0 %v4955
    %7666 = vmatpush1.xpose.msra.mxu0 %v4954
    %7667 = vmatprep.subr.mxu0 0.0
    %7668 = vmatpush1.xpose.msra.mxu0 0.0
    %7669 = vmatprep.subr.mxu0 0.0
    %7670 = vmatpush1.xpose.msra.mxu0 0.0
    %7671 = vmatprep.subr.mxu0 0.0
    %7672 = vmatpush1.xpose.msra.mxu0 0.0
    %7673 = vmatprep.subr.mxu0 0.0
    %7674 = vmatpush1.xpose.msra.mxu0 0.0
    %7675 = vmatprep.subr.mxu0 0.0
    %7676 = vmatpush1.xpose.msra.mxu0 0.0
    %7677 = vmatprep.subr.mxu0 0.0
    %7678 = vmatpush1.xpose.msra.mxu0 0.0
    %7679 = vmatprep.subr.mxu0 0.0
    %7680 = vmatpush1.xpose.msra.mxu0 0.0
    %7681 = vmatprep.subr.mxu0 0.0
    %7682 = vmatpush1.xpose.msra.mxu0 0.0
    %7683 = vmatprep.subr.mxu0 0.0
    %7684 = vmatpush1.xpose.msra.mxu0 0.0
    %7685 = vmatprep.subr.mxu0 0.0
    %7686 = vmatpush1.xpose.msra.mxu0 0.0
    %7687 = vmatprep.subr.mxu0 0.0
    %7688 = vmatpush1.xpose.msra.mxu0 0.0
    %7689 = vmatprep.subr.mxu0 0.0
    %7690 = vmatpush1.xpose.msra.mxu0 0.0
    %7691 = vmatprep.subr.mxu0 0.0
    %7692 = vmatpush1.xpose.msra.mxu0 0.0
    %7693 = vmatprep.subr.mxu0 0.0
    %7694 = vmatpush1.xpose.msra.mxu0 0.0
    %7695 = vmatprep.subr.mxu0 0.0
    %7696 = vmatpush1.xpose.msra.mxu0 0.0
    %7697 = vmatprep.subr.mxu0 0.0
    %7698 = vmatpush1.xpose.msra.mxu0 0.0
    %7699 = vmatprep.subr.mxu0 0.0
    %7700 = vmatpush1.xpose.msra.mxu0 0.0
    %7701 = vmatprep.subr.mxu0 0.0
    %7702 = vmatpush1.xpose.msra.mxu0 0.0
    %7703 = vmatprep.subr.mxu0 0.0
    %7704 = vmatpush1.xpose.msra.mxu0 0.0
    %7705 = vmatprep.subr.mxu0 0.0
    %7706 = vmatpush1.xpose.msra.mxu0 0.0
    %7707 = vmatprep.subr.mxu0 0.0
    %7708 = vmatpush1.xpose.msra.mxu0 0.0
    %7709 = vmatprep.subr.mxu0 0.0
    %7710 = vmatpush1.xpose.msra.mxu0 0.0
    %7711 = vmatprep.subr.mxu0 0.0
    %7712 = vmatpush1.xpose.msra.mxu0 0.0
    %7713 = vmatprep.subr.mxu0 0.0
    %7714 = vmatpush1.xpose.msra.mxu0 0.0
    %7715 = vmatprep.subr.mxu0 0.0
    %7716 = vmatpush1.xpose.msra.mxu0 0.0
    %7717 = vmatprep.subr.mxu0 0.0
    %7718 = vmatpush1.xpose.msra.mxu0 0.0
    %7719 = vmatprep.subr.mxu0 0.0
    %7720 = vmatpush1.xpose.msra.mxu0 0.0
    %7721 = vmatprep.subr.mxu0 0.0
    %7722 = vmatpush1.xpose.msra.mxu0 0.0
    %7723 = vmatprep.subr.mxu0 0.0
    %7724 = vmatpush1.xpose.msra.mxu0 0.0
    %7725 = vmatprep.subr.mxu0 0.0
    %7726 = vmatpush1.xpose.msra.mxu0 0.0
    %7727 = vmatprep.mubr.f32.mxu0 %v7660
    %7728 = vmatmul.mubr.f32.gmra.mrb[0].mxu0 %v7656
    %v7729 = vpop.f32.mrb[0].mxu0
    %v7730 = vadd.f32 0.0, %v7729
    %v7731 = vpop.f32.mrb[0].mxu0
    %7732 = vdwg.mxu0
    %v7733 = vadd.f32 %v7649, %v7730
    %s7734 = scalar_lea.vmem [#allocation4], 118
    %v7735 = vld [vmem:[%s7734] ss:$8 sm:$0x3]
    %v7737 = vlaneseq
    %v7738 = vshrl.u32 %v7737, 7
    %v7739 = vsub.s32 0, %v7738
    %v7740 = vrot.slane %v7735, %v7739
    %v7741 = vlaneseq
    %v7742 = vshrl.u32 %v7741, 7
    %v7743 = vsub.s32 1, %v7742
    %v7744 = vrot.slane %v7735, %v7743
    %7747 = vmatprep.subr.mxu0 %v5042
    %7748 = vmatpush1.xpose.msra.mxu0 %v5041
    %7749 = vmatprep.subr.mxu0 %v5044
    %7750 = vmatpush1.xpose.msra.mxu0 %v5043
    %7751 = vmatprep.subr.mxu0 0.0
    %7752 = vmatpush1.xpose.msra.mxu0 0.0
    %7753 = vmatprep.subr.mxu0 0.0
    %7754 = vmatpush1.xpose.msra.mxu0 0.0
    %7755 = vmatprep.subr.mxu0 0.0
    %7756 = vmatpush1.xpose.msra.mxu0 0.0
    %7757 = vmatprep.subr.mxu0 0.0
    %7758 = vmatpush1.xpose.msra.mxu0 0.0
    %7759 = vmatprep.subr.mxu0 0.0
    %7760 = vmatpush1.xpose.msra.mxu0 0.0
    %7761 = vmatprep.subr.mxu0 0.0
    %7762 = vmatpush1.xpose.msra.mxu0 0.0
    %7763 = vmatprep.subr.mxu0 0.0
    %7764 = vmatpush1.xpose.msra.mxu0 0.0
    %7765 = vmatprep.subr.mxu0 0.0
    %7766 = vmatpush1.xpose.msra.mxu0 0.0
    %7767 = vmatprep.subr.mxu0 0.0
    %7768 = vmatpush1.xpose.msra.mxu0 0.0
    %7769 = vmatprep.subr.mxu0 0.0
    %7770 = vmatpush1.xpose.msra.mxu0 0.0
    %7771 = vmatprep.subr.mxu0 0.0
    %7772 = vmatpush1.xpose.msra.mxu0 0.0
    %7773 = vmatprep.subr.mxu0 0.0
    %7774 = vmatpush1.xpose.msra.mxu0 0.0
    %7775 = vmatprep.subr.mxu0 0.0
    %7776 = vmatpush1.xpose.msra.mxu0 0.0
    %7777 = vmatprep.subr.mxu0 0.0
    %7778 = vmatpush1.xpose.msra.mxu0 0.0
    %7779 = vmatprep.subr.mxu0 0.0
    %7780 = vmatpush1.xpose.msra.mxu0 0.0
    %7781 = vmatprep.subr.mxu0 0.0
    %7782 = vmatpush1.xpose.msra.mxu0 0.0
    %7783 = vmatprep.subr.mxu0 0.0
    %7784 = vmatpush1.xpose.msra.mxu0 0.0
    %7785 = vmatprep.subr.mxu0 0.0
    %7786 = vmatpush1.xpose.msra.mxu0 0.0
    %7787 = vmatprep.subr.mxu0 0.0
    %7788 = vmatpush1.xpose.msra.mxu0 0.0
    %7789 = vmatprep.subr.mxu0 0.0
    %7790 = vmatpush1.xpose.msra.mxu0 0.0
    %7791 = vmatprep.subr.mxu0 0.0
    %7792 = vmatpush1.xpose.msra.mxu0 0.0
    %7793 = vmatprep.subr.mxu0 0.0
    %7794 = vmatpush1.xpose.msra.mxu0 0.0
    %7795 = vmatprep.subr.mxu0 0.0
    %7796 = vmatpush1.xpose.msra.mxu0 0.0
    %7797 = vmatprep.subr.mxu0 0.0
    %7798 = vmatpush1.xpose.msra.mxu0 0.0
    %7799 = vmatprep.subr.mxu0 0.0
    %7800 = vmatpush1.xpose.msra.mxu0 0.0
    %7801 = vmatprep.subr.mxu0 0.0
    %7802 = vmatpush1.xpose.msra.mxu0 0.0
    %7803 = vmatprep.subr.mxu0 0.0
    %7804 = vmatpush1.xpose.msra.mxu0 0.0
    %7805 = vmatprep.subr.mxu0 0.0
    %7806 = vmatpush1.xpose.msra.mxu0 0.0
    %7807 = vmatprep.subr.mxu0 0.0
    %7808 = vmatpush1.xpose.msra.mxu0 0.0
    %7809 = vmatprep.subr.mxu0 0.0
    %7810 = vmatpush1.xpose.msra.mxu0 0.0
    %7811 = vmatprep.mubr.f32.mxu0 %v7744
    %7812 = vmatmul.mubr.f32.gmra.mrb[0].mxu0 %v7740
    %v7813 = vpop.f32.mrb[0].mxu0
    %v7814 = vadd.f32 0.0, %v7813
    %v7815 = vpop.f32.mrb[0].mxu0
    %7816 = vdwg.mxu0
    %v7817 = vadd.f32 %v7733, %v7814
    %s7818 = scalar_lea.vmem [#allocation4], 119
    %v7819 = vld [vmem:[%s7818] ss:$8 sm:$0x3]
    %v7821 = vlaneseq
    %v7822 = vshrl.u32 %v7821, 7
    %v7823 = vsub.s32 0, %v7822
    %v7824 = vrot.slane %v7819, %v7823
    %v7825 = vlaneseq
    %v7826 = vshrl.u32 %v7825, 7
    %v7827 = vsub.s32 1, %v7826
    %v7828 = vrot.slane %v7819, %v7827
    %7831 = vmatprep.subr.mxu0 %v5131
    %7832 = vmatpush1.xpose.msra.mxu0 %v5130
    %7833 = vmatprep.subr.mxu0 %v5133
    %7834 = vmatpush1.xpose.msra.mxu0 %v5132
    %7835 = vmatprep.subr.mxu0 0.0
    %7836 = vmatpush1.xpose.msra.mxu0 0.0
    %7837 = vmatprep.subr.mxu0 0.0
    %7838 = vmatpush1.xpose.msra.mxu0 0.0
    %7839 = vmatprep.subr.mxu0 0.0
    %7840 = vmatpush1.xpose.msra.mxu0 0.0
    %7841 = vmatprep.subr.mxu0 0.0
    %7842 = vmatpush1.xpose.msra.mxu0 0.0
    %7843 = vmatprep.subr.mxu0 0.0
    %7844 = vmatpush1.xpose.msra.mxu0 0.0
    %7845 = vmatprep.subr.mxu0 0.0
    %7846 = vmatpush1.xpose.msra.mxu0 0.0
    %7847 = vmatprep.subr.mxu0 0.0
    %7848 = vmatpush1.xpose.msra.mxu0 0.0
    %7849 = vmatprep.subr.mxu0 0.0
    %7850 = vmatpush1.xpose.msra.mxu0 0.0
    %7851 = vmatprep.subr.mxu0 0.0
    %7852 = vmatpush1.xpose.msra.mxu0 0.0
    %7853 = vmatprep.subr.mxu0 0.0
    %7854 = vmatpush1.xpose.msra.mxu0 0.0
    %7855 = vmatprep.subr.mxu0 0.0
    %7856 = vmatpush1.xpose.msra.mxu0 0.0
    %7857 = vmatprep.subr.mxu0 0.0
    %7858 = vmatpush1.xpose.msra.mxu0 0.0
    %7859 = vmatprep.subr.mxu0 0.0
    %7860 = vmatpush1.xpose.msra.mxu0 0.0
    %7861 = vmatprep.subr.mxu0 0.0
    %7862 = vmatpush1.xpose.msra.mxu0 0.0
    %7863 = vmatprep.subr.mxu0 0.0
    %7864 = vmatpush1.xpose.msra.mxu0 0.0
    %7865 = vmatprep.subr.mxu0 0.0
    %7866 = vmatpush1.xpose.msra.mxu0 0.0
    %7867 = vmatprep.subr.mxu0 0.0
    %7868 = vmatpush1.xpose.msra.mxu0 0.0
    %7869 = vmatprep.subr.mxu0 0.0
    %7870 = vmatpush1.xpose.msra.mxu0 0.0
    %7871 = vmatprep.subr.mxu0 0.0
    %7872 = vmatpush1.xpose.msra.mxu0 0.0
    %7873 = vmatprep.subr.mxu0 0.0
    %7874 = vmatpush1.xpose.msra.mxu0 0.0
    %7875 = vmatprep.subr.mxu0 0.0
    %7876 = vmatpush1.xpose.msra.mxu0 0.0
    %7877 = vmatprep.subr.mxu0 0.0
    %7878 = vmatpush1.xpose.msra.mxu0 0.0
    %7879 = vmatprep.subr.mxu0 0.0
    %7880 = vmatpush1.xpose.msra.mxu0 0.0
    %7881 = vmatprep.subr.mxu0 0.0
    %7882 = vmatpush1.xpose.msra.mxu0 0.0
    %7883 = vmatprep.subr.mxu0 0.0
    %7884 = vmatpush1.xpose.msra.mxu0 0.0
    %7885 = vmatprep.subr.mxu0 0.0
    %7886 = vmatpush1.xpose.msra.mxu0 0.0
    %7887 = vmatprep.subr.mxu0 0.0
    %7888 = vmatpush1.xpose.msra.mxu0 0.0
    %7889 = vmatprep.subr.mxu0 0.0
    %7890 = vmatpush1.xpose.msra.mxu0 0.0
    %7891 = vmatprep.subr.mxu0 0.0
    %7892 = vmatpush1.xpose.msra.mxu0 0.0
    %7893 = vmatprep.subr.mxu0 0.0
    %7894 = vmatpush1.xpose.msra.mxu0 0.0
    %7895 = vmatprep.mubr.f32.mxu0 %v7828
    %7896 = vmatmul.mubr.f32.gmra.mrb[0].mxu0 %v7824
    %v7897 = vpop.f32.mrb[0].mxu0
    %v7898 = vadd.f32 0.0, %v7897
    %v7899 = vpop.f32.mrb[0].mxu0
    %7900 = vdwg.mxu0
    %v7901 = vadd.f32 %v7817, %v7898
    %v7903 = vrot.slane %v7901, 7
    %vm7905 = vcmask 1040384
    %v7906 = vsel %vm7905, %v5215, %v7903
    %v7907 = vld [vmem:[%s7] sm:$0x1]
    %v7909 = vlaneseq
    %v7910 = vshrl.u32 %v7909, 7
    %v7911 = vsub.s32 0, %v7910
    %v7912 = vrot.slane %v7907, %v7911
    %v7914 = vadd.f32 %v7906, %v7912
    %vm7915 = vcmask 74752
    %7916 = vst.msk [vmem:[#allocation5] sm:$0x3] %vm7915, %v7914
    // Predicated region
    $region34: #{cnn_network1_forward.1} parent=1 // pred_check
      _
    $region35: #{cnn_network1_forward.1} parent=1 // pred_check_branch
      %7918 = sbr.rel (0) target = $region37
    $region36: #{cnn_network1_forward.1} parent=1 // pred_region
      %s7920 = ssub.s32 32, 32
      %7921 = vsyncadd [#allocation6], %s7920
      %s7923 = sshll.u32 [#allocation5], 4
      %s7924 = int_to_ptr.vmem [resolvable:$true] %s7923
      %7926 = dma.vmem_to_hbm [thread:$0]  %s7924, 32, %s8, [#allocation6]
    $region37: #{cnn_network1_forward.1} parent=1 // pred_fallthru
      _
    // Predicated region
    $region38: #{cnn_network1_forward.1} parent=1 // pred_check
      _
    $region39: #{cnn_network1_forward.1} parent=1 // pred_check_branch
      %7928 = sbr.rel (0) target = $region41
    $region40: #{cnn_network1_forward.1} parent=1 // pred_region
      %7929 = dma.done [#allocation6], 32
    $region41: #{cnn_network1_forward.1} parent=1 // pred_fallthru
      _
    %7930 = vsyncpa [#allocation6], 1

</llo_original>
